<compile_context>
chip_gen: v7x
topology: tpu7x:2x2x1
jax: 0.10.0
libtpu: 0.0.40
codegen_flags: <defaults>
</compile_context>

<pallas_src>
import functools
import math

import jax
import jax.numpy as jnp
from jax import lax
from jax.experimental import pallas as pl
from jax.experimental.pallas import tpu as pltpu

# ---------------- model hyper-params (small, consistent with the module) -----
D_MODEL = 32
N_HEAD = 4
D_HEAD = D_MODEL // N_HEAD
D_FF = 64
NUM_ENC_LAYERS = 2
NUM_DEC_LAYERS = 2
EPS = 1e-5
SCALE = 1.0 / math.sqrt(D_HEAD)
NEG_INF = -1e30

# fixed flattening order of the stacked per-layer parameters (fused QKV / KV)
ENC_KEYS = ("wqkv", "bqkv", "wo", "bo", "w1", "b1", "w2", "b2",
            "ln1_g", "ln1_b", "ln2_g", "ln2_b")
DEC_KEYS = ("s_wqkv", "s_bqkv", "s_wo", "s_bo",
            "c_wq", "c_bq", "c_wkv", "c_bkv", "c_wo", "c_bo",
            "w1", "b1", "w2", "b2",
            "ln1_g", "ln1_b", "ln2_g", "ln2_b", "ln3_g", "ln3_b")


# ---------------- in-kernel helpers ------------------------------------------
def _layernorm(x, g, b):
    mu = jnp.mean(x, axis=-1, keepdims=True)
    var = jnp.mean((x - mu) ** 2, axis=-1, keepdims=True)
    return (x - mu) * lax.rsqrt(var + EPS) * g + b


def _attend(q, k, v, mask_bias, wo, bo):
    """Scaled-dot-product attention on batch-folded slabs.

    q: (Nq, E), k/v: (Nk, E), mask_bias: (Nq, Nk) additive (0 / -1e30).
    Per-head outputs are accumulated through the matching rows of W_o
    (no lane-axis concatenate).
    """
    nq = q.shape[0]
    acc = jnp.zeros((nq, D_MODEL), jnp.float32)
    for h in range(N_HEAD):                       # static loop; stays in vregs
        sl = slice(h * D_HEAD, (h + 1) * D_HEAD)
        qh, kh, vh = q[:, sl], k[:, sl], v[:, sl]
        # scores[i, j] = sum_d qh[i, d] * kh[j, d]
        s = lax.dot_general(qh, kh, (((1,), (1,)), ((), ())),
                            preferred_element_type=jnp.float32) * SCALE
        s = s + mask_bias                         # block-diagonal over batch
        s = s - jnp.max(s, axis=-1, keepdims=True)
        p = jnp.exp(s)
        p = p / jnp.sum(p, axis=-1, keepdims=True)
        oh = jnp.dot(p, vh, preferred_element_type=jnp.float32)
        acc = acc + jnp.dot(oh, wo[sl, :], preferred_element_type=jnp.float32)
    return acc + bo


def _self_attn(x, mask_bias, wqkv, bqkv, wo, bo):
    # Single fused (N,32)x(32,96) projection for Q|K|V.
    qkv = jnp.dot(x, wqkv, preferred_element_type=jnp.float32) + bqkv
    q = qkv[:, 0 * D_MODEL:1 * D_MODEL]
    k = qkv[:, 1 * D_MODEL:2 * D_MODEL]
    v = qkv[:, 2 * D_MODEL:3 * D_MODEL]
    return _attend(q, k, v, mask_bias, wo, bo)


def _cross_attn(xq, memory, mask_bias, wq, bq, wkv, bkv, wo, bo):
    q = jnp.dot(xq, wq, preferred_element_type=jnp.float32) + bq
    # Single fused (N,32)x(32,64) projection for K|V of the encoder memory.
    kv = jnp.dot(memory, wkv, preferred_element_type=jnp.float32) + bkv
    k = kv[:, 0 * D_MODEL:1 * D_MODEL]
    v = kv[:, 1 * D_MODEL:2 * D_MODEL]
    return _attend(q, k, v, mask_bias, wo, bo)


def _ffn(x, w1, b1, w2, b2):
    h = jnp.maximum(jnp.dot(x, w1, preferred_element_type=jnp.float32) + b1, 0.0)
    return jnp.dot(h, w2, preferred_element_type=jnp.float32) + b2


# ---------------- the single fused kernel -------------------------------------
def transformer_kernel(*refs):
    src_ref, tgt_ref = refs[0], refs[1]
    mask_ss_ref, mask_tt_ref, mask_ts_ref = refs[2], refs[3], refs[4]
    i = 5
    enc = dict(zip(ENC_KEYS, refs[i:i + len(ENC_KEYS)])); i += len(ENC_KEYS)
    en_g_ref, en_b_ref = refs[i], refs[i + 1]; i += 2
    dec = dict(zip(DEC_KEYS, refs[i:i + len(DEC_KEYS)])); i += len(DEC_KEYS)
    dn_g_ref, dn_b_ref = refs[i], refs[i + 1]; i += 2
    out_ref = refs[i]

    mask_ss = mask_ss_ref[...]
    mask_tt = mask_tt_ref[...]
    mask_ts = mask_ts_ref[...]

    # ---------------- encoder ----------------
    x = src_ref[...].astype(jnp.float32)              # (S*B, E)
    for l in range(NUM_ENC_LAYERS):
        a = _self_attn(x, mask_ss,
                       enc["wqkv"][l], enc["bqkv"][l], enc["wo"][l], enc["bo"][l])
        x = _layernorm(x + a, enc["ln1_g"][l], enc["ln1_b"][l])
        f = _ffn(x, enc["w1"][l], enc["b1"][l], enc["w2"][l], enc["b2"][l])
        x = _layernorm(x + f, enc["ln2_g"][l], enc["ln2_b"][l])
    memory = _layernorm(x, en_g_ref[...], en_b_ref[...])   # (S*B, E)

    # ---------------- decoder ----------------
    y = tgt_ref[...].astype(jnp.float32)               # (T*B, E)
    for l in range(NUM_DEC_LAYERS):
        a = _self_attn(y, mask_tt,
                       dec["s_wqkv"][l], dec["s_bqkv"][l], dec["s_wo"][l], dec["s_bo"][l])
        y = _layernorm(y + a, dec["ln1_g"][l], dec["ln1_b"][l])
        a = _cross_attn(y, memory, mask_ts,
                        dec["c_wq"][l], dec["c_bq"][l],
                        dec["c_wkv"][l], dec["c_bkv"][l],
                        dec["c_wo"][l], dec["c_bo"][l])
        y = _layernorm(y + a, dec["ln2_g"][l], dec["ln2_b"][l])
        f = _ffn(y, dec["w1"][l], dec["b1"][l], dec["w2"][l], dec["b2"][l])
        y = _layernorm(y + f, dec["ln3_g"][l], dec["ln3_b"][l])
    y = _layernorm(y, dn_g_ref[...], dn_b_ref[...])

    out_ref[...] = y.astype(out_ref.dtype)


# ---------------- wrapper ------------------------------------------------------
def _cross_batch_bias(n_q, n_k, batch):
    bq = jnp.arange(n_q) % batch
    bk = jnp.arange(n_k) % batch
    return jnp.where(bq[:, None] == bk[None, :], 0.0, NEG_INF).astype(jnp.float32)


def _stack_enc(enc_layers):
    out = {}
    out["wqkv"] = jnp.stack(
        [jnp.concatenate([p["wq"], p["wk"], p["wv"]], axis=1) for p in enc_layers])
    out["bqkv"] = jnp.stack(
        [jnp.concatenate([p["bq"], p["bk"], p["bv"]], axis=1) for p in enc_layers])
    for k in ("wo", "bo", "w1", "b1", "w2", "b2",
              "ln1_g", "ln1_b", "ln2_g", "ln2_b"):
        out[k] = jnp.stack([p[k] for p in enc_layers])
    return [out[k] for k in ENC_KEYS]


def _stack_dec(dec_layers):
    out = {}
    out["s_wqkv"] = jnp.stack(
        [jnp.concatenate([p["s_wq"], p["s_wk"], p["s_wv"]], axis=1) for p in dec_layers])
    out["s_bqkv"] = jnp.stack(
        [jnp.concatenate([p["s_bq"], p["s_bk"], p["s_bv"]], axis=1) for p in dec_layers])
    out["c_wkv"] = jnp.stack(
        [jnp.concatenate([p["c_wk"], p["c_wv"]], axis=1) for p in dec_layers])
    out["c_bkv"] = jnp.stack(
        [jnp.concatenate([p["c_bk"], p["c_bv"]], axis=1) for p in dec_layers])
    for k in ("s_wo", "s_bo", "c_wq", "c_bq", "c_wo", "c_bo",
              "w1", "b1", "w2", "b2",
              "ln1_g", "ln1_b", "ln2_g", "ln2_b", "ln3_g", "ln3_b"):
        out[k] = jnp.stack([p[k] for p in dec_layers])
    return [out[k] for k in DEC_KEYS]


def transformer_forward(src, tgt, enc_layers, enc_norm, dec_layers, dec_norm):
    """src: (S, B, E), tgt: (T, B, E) — seq-first like PyTorch. Returns (T, B, E)."""
    S, B, E = src.shape
    T = tgt.shape[0]
    ns, nt = S * B, T * B

    flat = [src.reshape(ns, E), tgt.reshape(nt, E),       # contiguous reshape = free
            _cross_batch_bias(ns, ns, B),
            _cross_batch_bias(nt, nt, B),
            _cross_batch_bias(nt, ns, B)]
    flat += _stack_enc(enc_layers)
    flat += [enc_norm["g"], enc_norm["b"]]
    flat += _stack_dec(dec_layers)
    flat += [dec_norm["g"], dec_norm["b"]]

    vmem = functools.partial(pl.BlockSpec, memory_space=pltpu.MemorySpace.VMEM)
    out = pl.pallas_call(                                  # single launch, no grid:
        transformer_kernel,                                # whole-array VMEM refs
        out_shape=jax.ShapeDtypeStruct((nt, E), tgt.dtype),
        in_specs=[vmem() for _ in flat],
        out_specs=vmem(),
    )(*flat)
    return out.reshape(T, B, E)


# ---------------- pure-JAX reference (for correctness check) -------------------
def _ref_mha(xq, xkv, wq, wk, wv, wo, bq, bk, bv, bo):
    Lq, B, E = xq.shape
    Lk = xkv.shape[0]
    q = xq @ wq + bq[0]
    k = xkv @ wk + bk[0]
    v = xkv @ wv + bv[0]
    qh = q.reshape(Lq, B, N_HEAD, D_HEAD).transpose(1, 2, 0, 3)
    kh = k.reshape(Lk, B, N_HEAD, D_HEAD).transpose(1, 2, 0, 3)
    vh = v.reshape(Lk, B, N_HEAD, D_HEAD).transpose(1, 2, 0, 3)
    s = jnp.einsum("bhqd,bhkd->bhqk", qh, kh) * SCALE
    a = jax.nn.softmax(s, axis=-1)
    o = jnp.einsum("bhqk,bhkd->bhqd", a, vh).transpose(2, 0, 1, 3).reshape(Lq, B, E)
    return o @ wo + bo[0]


def _ref_ln(x, g, b):
    mu = x.mean(-1, keepdims=True)
    var = ((x - mu) ** 2).mean(-1, keepdims=True)
    return (x - mu) / jnp.sqrt(var + EPS) * g[0] + b[0]


def reference_transformer(src, tgt, enc_layers, enc_norm, dec_layers, dec_norm):
    x = src
    for p in enc_layers:
        a = _ref_mha(x, x, p["wq"], p["wk"], p["wv"], p["wo"],
                     p["bq"], p["bk"], p["bv"], p["bo"])
        x = _ref_ln(x + a, p["ln1_g"], p["ln1_b"])
        h = jnp.maximum(x @ p["w1"] + p["b1"][0], 0.0)
        x = _ref_ln(x + (h @ p["w2"] + p["b2"][0]), p["ln2_g"], p["ln2_b"])
    memory = _ref_ln(x, enc_norm["g"], enc_norm["b"])

    y = tgt
    for p in dec_layers:
        a = _ref_mha(y, y, p["s_wq"], p["s_wk"], p["s_wv"], p["s_wo"],
                     p["s_bq"], p["s_bk"], p["s_bv"], p["s_bo"])
        y = _ref_ln(y + a, p["ln1_g"], p["ln1_b"])
        a = _ref_mha(y, memory, p["c_wq"], p["c_wk"], p["c_wv"], p["c_wo"],
                     p["c_bq"], p["c_bk"], p["c_bv"], p["c_bo"])
        y = _ref_ln(y + a, p["ln2_g"], p["ln2_b"])
        h = jnp.maximum(y @ p["w1"] + p["b1"][0], 0.0)
        y = _ref_ln(y + (h @ p["w2"] + p["b2"][0]), p["ln3_g"], p["ln3_b"])
    return _ref_ln(y, dec_norm["g"], dec_norm["b"])


# ---------------- deterministic parameter construction -------------------------
def _init_enc_layer(key):
    ks = jax.random.split(key, 8)
    s = 0.05
    return {
        "wq": s * jax.random.normal(ks[0], (D_MODEL, D_MODEL), jnp.float32),
        "wk": s * jax.random.normal(ks[1], (D_MODEL, D_MODEL), jnp.float32),
        "wv": s * jax.random.normal(ks[2], (D_MODEL, D_MODEL), jnp.float32),
        "wo": s * jax.random.normal(ks[3], (D_MODEL, D_MODEL), jnp.float32),
        "bq": jnp.zeros((1, D_MODEL), jnp.float32),
        "bk": jnp.zeros((1, D_MODEL), jnp.float32),
        "bv": jnp.zeros((1, D_MODEL), jnp.float32),
        "bo": 0.01 * jax.random.normal(ks[4], (1, D_MODEL), jnp.float32),
        "w1": s * jax.random.normal(ks[5], (D_MODEL, D_FF), jnp.float32),
        "b1": 0.01 * jax.random.normal(ks[6], (1, D_FF), jnp.float32),
        "w2": s * jax.random.normal(ks[7], (D_FF, D_MODEL), jnp.float32),
        "b2": jnp.zeros((1, D_MODEL), jnp.float32),
        "ln1_g": jnp.ones((1, D_MODEL), jnp.float32),
        "ln1_b": jnp.zeros((1, D_MODEL), jnp.float32),
        "ln2_g": jnp.ones((1, D_MODEL), jnp.float32),
        "ln2_b": jnp.zeros((1, D_MODEL), jnp.float32),
    }


def _init_dec_layer(key):
    ks = jax.random.split(key, 13)
    s = 0.05
    d = {}
    for i, pre in enumerate(("s_", "c_")):
        base = 5 * i
        d[pre + "wq"] = s * jax.random.normal(ks[base + 0], (D_MODEL, D_MODEL), jnp.float32)
        d[pre + "wk"] = s * jax.random.normal(ks[base + 1], (D_MODEL, D_MODEL), jnp.float32)
        d[pre + "wv"] = s * jax.random.normal(ks[base + 2], (D_MODEL, D_MODEL), jnp.float32)
        d[pre + "wo"] = s * jax.random.normal(ks[base + 3], (D_MODEL, D_MODEL), jnp.float32)
        d[pre + "bq"] = jnp.zeros((1, D_MODEL), jnp.float32)
        d[pre + "bk"] = jnp.zeros((1, D_MODEL), jnp.float32)
        d[pre + "bv"] = jnp.zeros((1, D_MODEL), jnp.float32)
        d[pre + "bo"] = 0.01 * jax.random.normal(ks[base + 4], (1, D_MODEL), jnp.float32)
    d["w1"] = s * jax.random.normal(ks[10], (D_MODEL, D_FF), jnp.float32)
    d["b1"] = 0.01 * jax.random.normal(ks[11], (1, D_FF), jnp.float32)
    d["w2"] = s * jax.random.normal(ks[12], (D_FF, D_MODEL), jnp.float32)
    d["b2"] = jnp.zeros((1, D_MODEL), jnp.float32)
    for n in ("ln1", "ln2", "ln3"):
        d[n + "_g"] = jnp.ones((1, D_MODEL), jnp.float32)
        d[n + "_b"] = jnp.zeros((1, D_MODEL), jnp.float32)
    return d


def make_params(key):
    enc_layers, dec_layers = [], []
    for _ in range(NUM_ENC_LAYERS):
        key, sub = jax.random.split(key)
        enc_layers.append(_init_enc_layer(sub))
    for _ in range(NUM_DEC_LAYERS):
        key, sub = jax.random.split(key)
        dec_layers.append(_init_dec_layer(sub))
    enc_norm = {"g": jnp.ones((1, D_MODEL), jnp.float32),
                "b": jnp.zeros((1, D_MODEL), jnp.float32)}
    dec_norm = {"g": jnp.ones((1, D_MODEL), jnp.float32),
                "b": jnp.zeros((1, D_MODEL), jnp.float32)}
    return enc_layers, enc_norm, dec_layers, dec_norm


# ---------------- main ----------------------------------------------------------
if __name__ == "__main__":
    key = jax.random.PRNGKey(0)
    k_param, k_src, k_tgt = jax.random.split(key, 3)

    S, T, B = 8, 8, 2
    src = jax.random.normal(k_src, (S, B, D_MODEL), jnp.float32)   # seq-first like PyTorch
    tgt = jax.random.normal(k_tgt, (T, B, D_MODEL), jnp.float32)

    enc_layers, enc_norm, dec_layers, dec_norm = make_params(k_param)

    out = transformer_forward(src, tgt, enc_layers, enc_norm, dec_layers, dec_norm)
    out = jax.block_until_ready(out)

    ref = reference_transformer(src, tgt, enc_layers, enc_norm, dec_layers, dec_norm)
    assert out.shape == (T, B, D_MODEL)
    assert jnp.allclose(out, ref, rtol=1e-4, atol=1e-4), "mismatch vs reference"

    print("KERNEL_OK")
</pallas_src>

<mosaic_0001>
module attributes {stable_mosaic.version = 11 : i64} {
  func.func @transformer_kernel(%arg0: memref<16x32xf32, #tpu.memory_space<vmem>>, %arg1: memref<16x32xf32, #tpu.memory_space<vmem>>, %arg2: memref<16x16xf32, #tpu.memory_space<vmem>>, %arg3: memref<16x16xf32, #tpu.memory_space<vmem>>, %arg4: memref<16x16xf32, #tpu.memory_space<vmem>>, %arg5: memref<2x32x96xf32, #tpu.memory_space<vmem>>, %arg6: memref<2x1x96xf32, #tpu.memory_space<vmem>>, %arg7: memref<2x32x32xf32, #tpu.memory_space<vmem>>, %arg8: memref<2x1x32xf32, #tpu.memory_space<vmem>>, %arg9: memref<2x32x64xf32, #tpu.memory_space<vmem>>, %arg10: memref<2x1x64xf32, #tpu.memory_space<vmem>>, %arg11: memref<2x64x32xf32, #tpu.memory_space<vmem>>, %arg12: memref<2x1x32xf32, #tpu.memory_space<vmem>>, %arg13: memref<2x1x32xf32, #tpu.memory_space<vmem>>, %arg14: memref<2x1x32xf32, #tpu.memory_space<vmem>>, %arg15: memref<2x1x32xf32, #tpu.memory_space<vmem>>, %arg16: memref<2x1x32xf32, #tpu.memory_space<vmem>>, %arg17: memref<1x32xf32, #tpu.memory_space<vmem>>, %arg18: memref<1x32xf32, #tpu.memory_space<vmem>>, %arg19: memref<2x32x96xf32, #tpu.memory_space<vmem>>, %arg20: memref<2x1x96xf32, #tpu.memory_space<vmem>>, %arg21: memref<2x32x32xf32, #tpu.memory_space<vmem>>, %arg22: memref<2x1x32xf32, #tpu.memory_space<vmem>>, %arg23: memref<2x32x32xf32, #tpu.memory_space<vmem>>, %arg24: memref<2x1x32xf32, #tpu.memory_space<vmem>>, %arg25: memref<2x32x64xf32, #tpu.memory_space<vmem>>, %arg26: memref<2x1x64xf32, #tpu.memory_space<vmem>>, %arg27: memref<2x32x32xf32, #tpu.memory_space<vmem>>, %arg28: memref<2x1x32xf32, #tpu.memory_space<vmem>>, %arg29: memref<2x32x64xf32, #tpu.memory_space<vmem>>, %arg30: memref<2x1x64xf32, #tpu.memory_space<vmem>>, %arg31: memref<2x64x32xf32, #tpu.memory_space<vmem>>, %arg32: memref<2x1x32xf32, #tpu.memory_space<vmem>>, %arg33: memref<2x1x32xf32, #tpu.memory_space<vmem>>, %arg34: memref<2x1x32xf32, #tpu.memory_space<vmem>>, %arg35: memref<2x1x32xf32, #tpu.memory_space<vmem>>, %arg36: memref<2x1x32xf32, #tpu.memory_space<vmem>>, %arg37: memref<2x1x32xf32, #tpu.memory_space<vmem>>, %arg38: memref<2x1x32xf32, #tpu.memory_space<vmem>>, %arg39: memref<1x32xf32, #tpu.memory_space<vmem>>, %arg40: memref<1x32xf32, #tpu.memory_space<vmem>>, %arg41: memref<16x32xf32, #tpu.memory_space<vmem>>) attributes {dimension_semantics = [], scalar_prefetch = 0 : i64, scratch_operands = 0 : i64, tpu.core_type = #tpu.core_type<tc>} {
    %c0 = arith.constant 0 : index
    %c0_0 = arith.constant 0 : index
    %0 = vector.load %arg2[%c0, %c0_0] : memref<16x16xf32, #tpu.memory_space<vmem>>, vector<16x16xf32>
    %c0_1 = arith.constant 0 : index
    %c0_2 = arith.constant 0 : index
    %1 = vector.load %arg3[%c0_1, %c0_2] : memref<16x16xf32, #tpu.memory_space<vmem>>, vector<16x16xf32>
    %c0_3 = arith.constant 0 : index
    %c0_4 = arith.constant 0 : index
    %2 = vector.load %arg4[%c0_3, %c0_4] : memref<16x16xf32, #tpu.memory_space<vmem>>, vector<16x16xf32>
    %c0_5 = arith.constant 0 : index
    %c0_6 = arith.constant 0 : index
    %3 = vector.load %arg0[%c0_5, %c0_6] : memref<16x32xf32, #tpu.memory_space<vmem>>, vector<16x32xf32>
    %c0_7 = arith.constant 0 : index
    %c0_8 = arith.constant 0 : index
    %c0_9 = arith.constant 0 : index
    %4 = vector.load %arg5[%c0_7, %c0_8, %c0_9] : memref<2x32x96xf32, #tpu.memory_space<vmem>>, vector<1x32x96xf32>
    %5 = vector.shape_cast %4 : vector<1x32x96xf32> to vector<32x96xf32>
    %c0_10 = arith.constant 0 : index
    %c0_11 = arith.constant 0 : index
    %c0_12 = arith.constant 0 : index
    %6 = vector.load %arg6[%c0_10, %c0_11, %c0_12] : memref<2x1x96xf32, #tpu.memory_space<vmem>>, vector<1x1x96xf32>
    %7 = vector.shape_cast %6 : vector<1x1x96xf32> to vector<1x96xf32>
    %c0_13 = arith.constant 0 : index
    %c0_14 = arith.constant 0 : index
    %c0_15 = arith.constant 0 : index
    %8 = vector.load %arg7[%c0_13, %c0_14, %c0_15] : memref<2x32x32xf32, #tpu.memory_space<vmem>>, vector<1x32x32xf32>
    %9 = vector.shape_cast %8 : vector<1x32x32xf32> to vector<32x32xf32>
    %c0_16 = arith.constant 0 : index
    %c0_17 = arith.constant 0 : index
    %c0_18 = arith.constant 0 : index
    %10 = vector.load %arg8[%c0_16, %c0_17, %c0_18] : memref<2x1x32xf32, #tpu.memory_space<vmem>>, vector<1x1x32xf32>
    %11 = vector.shape_cast %10 : vector<1x1x32xf32> to vector<1x32xf32>
    %cst = arith.constant dense<0.000000e+00> : vector<16x96xf32>
    %12 = tpu.matmul %3, %5, %cst {dimension_numbers = #tpu.dot_dimension_numbers<[1], [0], [0], [1], [0, 0, 1, 1], [], []>} : vector<16x32xf32>, vector<32x96xf32>, vector<16x96xf32> -> vector<16x96xf32>
    %13 = vector.broadcast %7 : vector<1x96xf32> to vector<16x96xf32>
    %14 = arith.addf %12, %13 : vector<16x96xf32>
    %15 = vector.extract_strided_slice %14 {offsets = [0, 0], sizes = [16, 32], strides = [1, 1]} : vector<16x96xf32> to vector<16x32xf32>
    %16 = vector.extract_strided_slice %14 {offsets = [0, 32], sizes = [16, 32], strides = [1, 1]} : vector<16x96xf32> to vector<16x32xf32>
    %17 = vector.extract_strided_slice %14 {offsets = [0, 64], sizes = [16, 32], strides = [1, 1]} : vector<16x96xf32> to vector<16x32xf32>
    %cst_19 = arith.constant 0.000000e+00 : f32
    %18 = vector.broadcast %cst_19 : f32 to vector<16x32xf32>
    %19 = vector.extract_strided_slice %15 {offsets = [0, 0], sizes = [16, 8], strides = [1, 1]} : vector<16x32xf32> to vector<16x8xf32>
    %20 = vector.extract_strided_slice %16 {offsets = [0, 0], sizes = [16, 8], strides = [1, 1]} : vector<16x32xf32> to vector<16x8xf32>
    %21 = vector.extract_strided_slice %17 {offsets = [0, 0], sizes = [16, 8], strides = [1, 1]} : vector<16x32xf32> to vector<16x8xf32>
    %cst_20 = arith.constant dense<0.000000e+00> : vector<16x16xf32>
    %22 = tpu.matmul %19, %20, %cst_20 {dimension_numbers = #tpu.dot_dimension_numbers<[1], [1], [0], [0], [0, 0, 1, 0], [], []>} : vector<16x8xf32>, vector<16x8xf32>, vector<16x16xf32> -> vector<16x16xf32>
    %cst_21 = arith.constant 0.353553385 : f32
    %23 = vector.broadcast %cst_21 : f32 to vector<16x16xf32>
    %24 = arith.mulf %22, %23 : vector<16x16xf32>
    %25 = arith.addf %24, %0 : vector<16x16xf32>
    %cst_22 = arith.constant dense<0xFF800000> : vector<16xf32>
    %26 = vector.multi_reduction <maximumf>, %25, %cst_22 [1] : vector<16x16xf32> to vector<16xf32>
    %27 = vector.shape_cast %26 : vector<16xf32> to vector<16x1xf32>
    %28 = vector.broadcast %27 : vector<16x1xf32> to vector<16x16xf32>
    %29 = arith.subf %25, %28 : vector<16x16xf32>
    %30 = math.exp %29 : vector<16x16xf32>
    %cst_23 = arith.constant dense<0.000000e+00> : vector<16xf32>
    %31 = vector.multi_reduction <add>, %30, %cst_23 [1] : vector<16x16xf32> to vector<16xf32>
    %32 = vector.shape_cast %31 : vector<16xf32> to vector<16x1xf32>
    %33 = vector.broadcast %32 : vector<16x1xf32> to vector<16x16xf32>
    %34 = arith.divf %30, %33 : vector<16x16xf32>
    %cst_24 = arith.constant dense<0.000000e+00> : vector<16x8xf32>
    %35 = tpu.matmul %34, %21, %cst_24 {dimension_numbers = #tpu.dot_dimension_numbers<[1], [0], [0], [1], [0, 0, 1, 1], [], []>} : vector<16x16xf32>, vector<16x8xf32>, vector<16x8xf32> -> vector<16x8xf32>
    %36 = vector.extract_strided_slice %9 {offsets = [0, 0], sizes = [8, 32], strides = [1, 1]} : vector<32x32xf32> to vector<8x32xf32>
    %cst_25 = arith.constant dense<0.000000e+00> : vector<16x32xf32>
    %37 = tpu.matmul %35, %36, %cst_25 {dimension_numbers = #tpu.dot_dimension_numbers<[1], [0], [0], [1], [0, 0, 1, 1], [], []>} : vector<16x8xf32>, vector<8x32xf32>, vector<16x32xf32> -> vector<16x32xf32>
    %38 = arith.addf %18, %37 : vector<16x32xf32>
    %39 = vector.extract_strided_slice %15 {offsets = [0, 8], sizes = [16, 8], strides = [1, 1]} : vector<16x32xf32> to vector<16x8xf32>
    %40 = vector.extract_strided_slice %16 {offsets = [0, 8], sizes = [16, 8], strides = [1, 1]} : vector<16x32xf32> to vector<16x8xf32>
    %41 = vector.extract_strided_slice %17 {offsets = [0, 8], sizes = [16, 8], strides = [1, 1]} : vector<16x32xf32> to vector<16x8xf32>
    %cst_26 = arith.constant dense<0.000000e+00> : vector<16x16xf32>
    %42 = tpu.matmul %39, %40, %cst_26 {dimension_numbers = #tpu.dot_dimension_numbers<[1], [1], [0], [0], [0, 0, 1, 0], [], []>} : vector<16x8xf32>, vector<16x8xf32>, vector<16x16xf32> -> vector<16x16xf32>
    %cst_27 = arith.constant 0.353553385 : f32
    %43 = vector.broadcast %cst_27 : f32 to vector<16x16xf32>
    %44 = arith.mulf %42, %43 : vector<16x16xf32>
    %45 = arith.addf %44, %0 : vector<16x16xf32>
    %cst_28 = arith.constant dense<0xFF800000> : vector<16xf32>
    %46 = vector.multi_reduction <maximumf>, %45, %cst_28 [1] : vector<16x16xf32> to vector<16xf32>
    %47 = vector.shape_cast %46 : vector<16xf32> to vector<16x1xf32>
    %48 = vector.broadcast %47 : vector<16x1xf32> to vector<16x16xf32>
    %49 = arith.subf %45, %48 : vector<16x16xf32>
    %50 = math.exp %49 : vector<16x16xf32>
    %cst_29 = arith.constant dense<0.000000e+00> : vector<16xf32>
    %51 = vector.multi_reduction <add>, %50, %cst_29 [1] : vector<16x16xf32> to vector<16xf32>
    %52 = vector.shape_cast %51 : vector<16xf32> to vector<16x1xf32>
    %53 = vector.broadcast %52 : vector<16x1xf32> to vector<16x16xf32>
    %54 = arith.divf %50, %53 : vector<16x16xf32>
    %cst_30 = arith.constant dense<0.000000e+00> : vector<16x8xf32>
    %55 = tpu.matmul %54, %41, %cst_30 {dimension_numbers = #tpu.dot_dimension_numbers<[1], [0], [0], [1], [0, 0, 1, 1], [], []>} : vector<16x16xf32>, vector<16x8xf32>, vector<16x8xf32> -> vector<16x8xf32>
    %56 = vector.extract_strided_slice %9 {offsets = [8, 0], sizes = [8, 32], strides = [1, 1]} : vector<32x32xf32> to vector<8x32xf32>
    %cst_31 = arith.constant dense<0.000000e+00> : vector<16x32xf32>
    %57 = tpu.matmul %55, %56, %cst_31 {dimension_numbers = #tpu.dot_dimension_numbers<[1], [0], [0], [1], [0, 0, 1, 1], [], []>} : vector<16x8xf32>, vector<8x32xf32>, vector<16x32xf32> -> vector<16x32xf32>
    %58 = arith.addf %38, %57 : vector<16x32xf32>
    %59 = vector.extract_strided_slice %15 {offsets = [0, 16], sizes = [16, 8], strides = [1, 1]} : vector<16x32xf32> to vector<16x8xf32>
    %60 = vector.extract_strided_slice %16 {offsets = [0, 16], sizes = [16, 8], strides = [1, 1]} : vector<16x32xf32> to vector<16x8xf32>
    %61 = vector.extract_strided_slice %17 {offsets = [0, 16], sizes = [16, 8], strides = [1, 1]} : vector<16x32xf32> to vector<16x8xf32>
    %cst_32 = arith.constant dense<0.000000e+00> : vector<16x16xf32>
    %62 = tpu.matmul %59, %60, %cst_32 {dimension_numbers = #tpu.dot_dimension_numbers<[1], [1], [0], [0], [0, 0, 1, 0], [], []>} : vector<16x8xf32>, vector<16x8xf32>, vector<16x16xf32> -> vector<16x16xf32>
    %cst_33 = arith.constant 0.353553385 : f32
    %63 = vector.broadcast %cst_33 : f32 to vector<16x16xf32>
    %64 = arith.mulf %62, %63 : vector<16x16xf32>
    %65 = arith.addf %64, %0 : vector<16x16xf32>
    %cst_34 = arith.constant dense<0xFF800000> : vector<16xf32>
    %66 = vector.multi_reduction <maximumf>, %65, %cst_34 [1] : vector<16x16xf32> to vector<16xf32>
    %67 = vector.shape_cast %66 : vector<16xf32> to vector<16x1xf32>
    %68 = vector.broadcast %67 : vector<16x1xf32> to vector<16x16xf32>
    %69 = arith.subf %65, %68 : vector<16x16xf32>
    %70 = math.exp %69 : vector<16x16xf32>
    %cst_35 = arith.constant dense<0.000000e+00> : vector<16xf32>
    %71 = vector.multi_reduction <add>, %70, %cst_35 [1] : vector<16x16xf32> to vector<16xf32>
    %72 = vector.shape_cast %71 : vector<16xf32> to vector<16x1xf32>
    %73 = vector.broadcast %72 : vector<16x1xf32> to vector<16x16xf32>
    %74 = arith.divf %70, %73 : vector<16x16xf32>
    %cst_36 = arith.constant dense<0.000000e+00> : vector<16x8xf32>
    %75 = tpu.matmul %74, %61, %cst_36 {dimension_numbers = #tpu.dot_dimension_numbers<[1], [0], [0], [1], [0, 0, 1, 1], [], []>} : vector<16x16xf32>, vector<16x8xf32>, vector<16x8xf32> -> vector<16x8xf32>
    %76 = vector.extract_strided_slice %9 {offsets = [16, 0], sizes = [8, 32], strides = [1, 1]} : vector<32x32xf32> to vector<8x32xf32>
    %cst_37 = arith.constant dense<0.000000e+00> : vector<16x32xf32>
    %77 = tpu.matmul %75, %76, %cst_37 {dimension_numbers = #tpu.dot_dimension_numbers<[1], [0], [0], [1], [0, 0, 1, 1], [], []>} : vector<16x8xf32>, vector<8x32xf32>, vector<16x32xf32> -> vector<16x32xf32>
    %78 = arith.addf %58, %77 : vector<16x32xf32>
    %79 = vector.extract_strided_slice %15 {offsets = [0, 24], sizes = [16, 8], strides = [1, 1]} : vector<16x32xf32> to vector<16x8xf32>
    %80 = vector.extract_strided_slice %16 {offsets = [0, 24], sizes = [16, 8], strides = [1, 1]} : vector<16x32xf32> to vector<16x8xf32>
    %81 = vector.extract_strided_slice %17 {offsets = [0, 24], sizes = [16, 8], strides = [1, 1]} : vector<16x32xf32> to vector<16x8xf32>
    %cst_38 = arith.constant dense<0.000000e+00> : vector<16x16xf32>
    %82 = tpu.matmul %79, %80, %cst_38 {dimension_numbers = #tpu.dot_dimension_numbers<[1], [1], [0], [0], [0, 0, 1, 0], [], []>} : vector<16x8xf32>, vector<16x8xf32>, vector<16x16xf32> -> vector<16x16xf32>
    %cst_39 = arith.constant 0.353553385 : f32
    %83 = vector.broadcast %cst_39 : f32 to vector<16x16xf32>
    %84 = arith.mulf %82, %83 : vector<16x16xf32>
    %85 = arith.addf %84, %0 : vector<16x16xf32>
    %cst_40 = arith.constant dense<0xFF800000> : vector<16xf32>
    %86 = vector.multi_reduction <maximumf>, %85, %cst_40 [1] : vector<16x16xf32> to vector<16xf32>
    %87 = vector.shape_cast %86 : vector<16xf32> to vector<16x1xf32>
    %88 = vector.broadcast %87 : vector<16x1xf32> to vector<16x16xf32>
    %89 = arith.subf %85, %88 : vector<16x16xf32>
    %90 = math.exp %89 : vector<16x16xf32>
    %cst_41 = arith.constant dense<0.000000e+00> : vector<16xf32>
    %91 = vector.multi_reduction <add>, %90, %cst_41 [1] : vector<16x16xf32> to vector<16xf32>
    %92 = vector.shape_cast %91 : vector<16xf32> to vector<16x1xf32>
    %93 = vector.broadcast %92 : vector<16x1xf32> to vector<16x16xf32>
    %94 = arith.divf %90, %93 : vector<16x16xf32>
    %cst_42 = arith.constant dense<0.000000e+00> : vector<16x8xf32>
    %95 = tpu.matmul %94, %81, %cst_42 {dimension_numbers = #tpu.dot_dimension_numbers<[1], [0], [0], [1], [0, 0, 1, 1], [], []>} : vector<16x16xf32>, vector<16x8xf32>, vector<16x8xf32> -> vector<16x8xf32>
    %96 = vector.extract_strided_slice %9 {offsets = [24, 0], sizes = [8, 32], strides = [1, 1]} : vector<32x32xf32> to vector<8x32xf32>
    %cst_43 = arith.constant dense<0.000000e+00> : vector<16x32xf32>
    %97 = tpu.matmul %95, %96, %cst_43 {dimension_numbers = #tpu.dot_dimension_numbers<[1], [0], [0], [1], [0, 0, 1, 1], [], []>} : vector<16x8xf32>, vector<8x32xf32>, vector<16x32xf32> -> vector<16x32xf32>
    %98 = arith.addf %78, %97 : vector<16x32xf32>
    %99 = vector.broadcast %11 : vector<1x32xf32> to vector<16x32xf32>
    %100 = arith.addf %98, %99 : vector<16x32xf32>
    %101 = arith.addf %3, %100 : vector<16x32xf32>
    %c0_44 = arith.constant 0 : index
    %c0_45 = arith.constant 0 : index
    %c0_46 = arith.constant 0 : index
    %102 = vector.load %arg13[%c0_44, %c0_45, %c0_46] : memref<2x1x32xf32, #tpu.memory_space<vmem>>, vector<1x1x32xf32>
    %103 = vector.shape_cast %102 : vector<1x1x32xf32> to vector<1x32xf32>
    %c0_47 = arith.constant 0 : index
    %c0_48 = arith.constant 0 : index
    %c0_49 = arith.constant 0 : index
    %104 = vector.load %arg14[%c0_47, %c0_48, %c0_49] : memref<2x1x32xf32, #tpu.memory_space<vmem>>, vector<1x1x32xf32>
    %105 = vector.shape_cast %104 : vector<1x1x32xf32> to vector<1x32xf32>
    %cst_50 = arith.constant dense<0.000000e+00> : vector<16xf32>
    %106 = vector.multi_reduction <add>, %101, %cst_50 [1] : vector<16x32xf32> to vector<16xf32>
    %107 = vector.shape_cast %106 : vector<16xf32> to vector<16x1xf32>
    %cst_51 = arith.constant 3.200000e+01 : f32
    %108 = vector.broadcast %cst_51 : f32 to vector<16x1xf32>
    %109 = arith.divf %107, %108 : vector<16x1xf32>
    %110 = vector.broadcast %109 : vector<16x1xf32> to vector<16x32xf32>
    %111 = arith.subf %101, %110 : vector<16x32xf32>
    %112 = arith.mulf %111, %111 : vector<16x32xf32>
    %cst_52 = arith.constant dense<0.000000e+00> : vector<16xf32>
    %113 = vector.multi_reduction <add>, %112, %cst_52 [1] : vector<16x32xf32> to vector<16xf32>
    %114 = vector.shape_cast %113 : vector<16xf32> to vector<16x1xf32>
    %cst_53 = arith.constant 3.200000e+01 : f32
    %115 = vector.broadcast %cst_53 : f32 to vector<16x1xf32>
    %116 = arith.divf %114, %115 : vector<16x1xf32>
    %117 = vector.broadcast %109 : vector<16x1xf32> to vector<16x32xf32>
    %118 = arith.subf %101, %117 : vector<16x32xf32>
    %cst_54 = arith.constant 9.99999974E-6 : f32
    %119 = vector.broadcast %cst_54 : f32 to vector<16x1xf32>
    %120 = arith.addf %116, %119 : vector<16x1xf32>
    %121 = math.rsqrt %120 : vector<16x1xf32>
    %122 = vector.broadcast %121 : vector<16x1xf32> to vector<16x32xf32>
    %123 = arith.mulf %118, %122 : vector<16x32xf32>
    %124 = vector.broadcast %103 : vector<1x32xf32> to vector<16x32xf32>
    %125 = arith.mulf %123, %124 : vector<16x32xf32>
    %126 = vector.broadcast %105 : vector<1x32xf32> to vector<16x32xf32>
    %127 = arith.addf %125, %126 : vector<16x32xf32>
    %c0_55 = arith.constant 0 : index
    %c0_56 = arith.constant 0 : index
    %c0_57 = arith.constant 0 : index
    %128 = vector.load %arg9[%c0_55, %c0_56, %c0_57] : memref<2x32x64xf32, #tpu.memory_space<vmem>>, vector<1x32x64xf32>
    %129 = vector.shape_cast %128 : vector<1x32x64xf32> to vector<32x64xf32>
    %c0_58 = arith.constant 0 : index
    %c0_59 = arith.constant 0 : index
    %c0_60 = arith.constant 0 : index
    %130 = vector.load %arg10[%c0_58, %c0_59, %c0_60] : memref<2x1x64xf32, #tpu.memory_space<vmem>>, vector<1x1x64xf32>
    %131 = vector.shape_cast %130 : vector<1x1x64xf32> to vector<1x64xf32>
    %c0_61 = arith.constant 0 : index
    %c0_62 = arith.constant 0 : index
    %c0_63 = arith.constant 0 : index
    %132 = vector.load %arg11[%c0_61, %c0_62, %c0_63] : memref<2x64x32xf32, #tpu.memory_space<vmem>>, vector<1x64x32xf32>
    %133 = vector.shape_cast %132 : vector<1x64x32xf32> to vector<64x32xf32>
    %c0_64 = arith.constant 0 : index
    %c0_65 = arith.constant 0 : index
    %c0_66 = arith.constant 0 : index
    %134 = vector.load %arg12[%c0_64, %c0_65, %c0_66] : memref<2x1x32xf32, #tpu.memory_space<vmem>>, vector<1x1x32xf32>
    %135 = vector.shape_cast %134 : vector<1x1x32xf32> to vector<1x32xf32>
    %cst_67 = arith.constant dense<0.000000e+00> : vector<16x64xf32>
    %136 = tpu.matmul %127, %129, %cst_67 {dimension_numbers = #tpu.dot_dimension_numbers<[1], [0], [0], [1], [0, 0, 1, 1], [], []>} : vector<16x32xf32>, vector<32x64xf32>, vector<16x64xf32> -> vector<16x64xf32>
    %137 = vector.broadcast %131 : vector<1x64xf32> to vector<16x64xf32>
    %138 = arith.addf %136, %137 : vector<16x64xf32>
    %cst_68 = arith.constant 0.000000e+00 : f32
    %139 = vector.broadcast %cst_68 : f32 to vector<16x64xf32>
    %140 = arith.maximumf %138, %139 : vector<16x64xf32>
    %cst_69 = arith.constant dense<0.000000e+00> : vector<16x32xf32>
    %141 = tpu.matmul %140, %133, %cst_69 {dimension_numbers = #tpu.dot_dimension_numbers<[1], [0], [0], [1], [0, 0, 1, 1], [], []>} : vector<16x64xf32>, vector<64x32xf32>, vector<16x32xf32> -> vector<16x32xf32>
    %142 = vector.broadcast %135 : vector<1x32xf32> to vector<16x32xf32>
    %143 = arith.addf %141, %142 : vector<16x32xf32>
    %144 = arith.addf %127, %143 : vector<16x32xf32>
    %c0_70 = arith.constant 0 : index
    %c0_71 = arith.constant 0 : index
    %c0_72 = arith.constant 0 : index
    %145 = vector.load %arg15[%c0_70, %c0_71, %c0_72] : memref<2x1x32xf32, #tpu.memory_space<vmem>>, vector<1x1x32xf32>
    %146 = vector.shape_cast %145 : vector<1x1x32xf32> to vector<1x32xf32>
    %c0_73 = arith.constant 0 : index
    %c0_74 = arith.constant 0 : index
    %c0_75 = arith.constant 0 : index
    %147 = vector.load %arg16[%c0_73, %c0_74, %c0_75] : memref<2x1x32xf32, #tpu.memory_space<vmem>>, vector<1x1x32xf32>
    %148 = vector.shape_cast %147 : vector<1x1x32xf32> to vector<1x32xf32>
    %cst_76 = arith.constant dense<0.000000e+00> : vector<16xf32>
    %149 = vector.multi_reduction <add>, %144, %cst_76 [1] : vector<16x32xf32> to vector<16xf32>
    %150 = vector.shape_cast %149 : vector<16xf32> to vector<16x1xf32>
    %cst_77 = arith.constant 3.200000e+01 : f32
    %151 = vector.broadcast %cst_77 : f32 to vector<16x1xf32>
    %152 = arith.divf %150, %151 : vector<16x1xf32>
    %153 = vector.broadcast %152 : vector<16x1xf32> to vector<16x32xf32>
    %154 = arith.subf %144, %153 : vector<16x32xf32>
    %155 = arith.mulf %154, %154 : vector<16x32xf32>
    %cst_78 = arith.constant dense<0.000000e+00> : vector<16xf32>
    %156 = vector.multi_reduction <add>, %155, %cst_78 [1] : vector<16x32xf32> to vector<16xf32>
    %157 = vector.shape_cast %156 : vector<16xf32> to vector<16x1xf32>
    %cst_79 = arith.constant 3.200000e+01 : f32
    %158 = vector.broadcast %cst_79 : f32 to vector<16x1xf32>
    %159 = arith.divf %157, %158 : vector<16x1xf32>
    %160 = vector.broadcast %152 : vector<16x1xf32> to vector<16x32xf32>
    %161 = arith.subf %144, %160 : vector<16x32xf32>
    %cst_80 = arith.constant 9.99999974E-6 : f32
    %162 = vector.broadcast %cst_80 : f32 to vector<16x1xf32>
    %163 = arith.addf %159, %162 : vector<16x1xf32>
    %164 = math.rsqrt %163 : vector<16x1xf32>
    %165 = vector.broadcast %164 : vector<16x1xf32> to vector<16x32xf32>
    %166 = arith.mulf %161, %165 : vector<16x32xf32>
    %167 = vector.broadcast %146 : vector<1x32xf32> to vector<16x32xf32>
    %168 = arith.mulf %166, %167 : vector<16x32xf32>
    %169 = vector.broadcast %148 : vector<1x32xf32> to vector<16x32xf32>
    %170 = arith.addf %168, %169 : vector<16x32xf32>
    %c1 = arith.constant 1 : index
    %c0_81 = arith.constant 0 : index
    %c0_82 = arith.constant 0 : index
    %171 = vector.load %arg5[%c1, %c0_81, %c0_82] : memref<2x32x96xf32, #tpu.memory_space<vmem>>, vector<1x32x96xf32>
    %172 = vector.shape_cast %171 : vector<1x32x96xf32> to vector<32x96xf32>
    %c1_83 = arith.constant 1 : index
    %c0_84 = arith.constant 0 : index
    %c0_85 = arith.constant 0 : index
    %173 = vector.load %arg6[%c1_83, %c0_84, %c0_85] : memref<2x1x96xf32, #tpu.memory_space<vmem>>, vector<1x1x96xf32>
    %174 = vector.shape_cast %173 : vector<1x1x96xf32> to vector<1x96xf32>
    %c1_86 = arith.constant 1 : index
    %c0_87 = arith.constant 0 : index
    %c0_88 = arith.constant 0 : index
    %175 = vector.load %arg7[%c1_86, %c0_87, %c0_88] : memref<2x32x32xf32, #tpu.memory_space<vmem>>, vector<1x32x32xf32>
    %176 = vector.shape_cast %175 : vector<1x32x32xf32> to vector<32x32xf32>
    %c1_89 = arith.constant 1 : index
    %c0_90 = arith.constant 0 : index
    %c0_91 = arith.constant 0 : index
    %177 = vector.load %arg8[%c1_89, %c0_90, %c0_91] : memref<2x1x32xf32, #tpu.memory_space<vmem>>, vector<1x1x32xf32>
    %178 = vector.shape_cast %177 : vector<1x1x32xf32> to vector<1x32xf32>
    %cst_92 = arith.constant dense<0.000000e+00> : vector<16x96xf32>
    %179 = tpu.matmul %170, %172, %cst_92 {dimension_numbers = #tpu.dot_dimension_numbers<[1], [0], [0], [1], [0, 0, 1, 1], [], []>} : vector<16x32xf32>, vector<32x96xf32>, vector<16x96xf32> -> vector<16x96xf32>
    %180 = vector.broadcast %174 : vector<1x96xf32> to vector<16x96xf32>
    %181 = arith.addf %179, %180 : vector<16x96xf32>
    %182 = vector.extract_strided_slice %181 {offsets = [0, 0], sizes = [16, 32], strides = [1, 1]} : vector<16x96xf32> to vector<16x32xf32>
    %183 = vector.extract_strided_slice %181 {offsets = [0, 32], sizes = [16, 32], strides = [1, 1]} : vector<16x96xf32> to vector<16x32xf32>
    %184 = vector.extract_strided_slice %181 {offsets = [0, 64], sizes = [16, 32], strides = [1, 1]} : vector<16x96xf32> to vector<16x32xf32>
    %cst_93 = arith.constant 0.000000e+00 : f32
    %185 = vector.broadcast %cst_93 : f32 to vector<16x32xf32>
    %186 = vector.extract_strided_slice %182 {offsets = [0, 0], sizes = [16, 8], strides = [1, 1]} : vector<16x32xf32> to vector<16x8xf32>
    %187 = vector.extract_strided_slice %183 {offsets = [0, 0], sizes = [16, 8], strides = [1, 1]} : vector<16x32xf32> to vector<16x8xf32>
    %188 = vector.extract_strided_slice %184 {offsets = [0, 0], sizes = [16, 8], strides = [1, 1]} : vector<16x32xf32> to vector<16x8xf32>
    %cst_94 = arith.constant dense<0.000000e+00> : vector<16x16xf32>
    %189 = tpu.matmul %186, %187, %cst_94 {dimension_numbers = #tpu.dot_dimension_numbers<[1], [1], [0], [0], [0, 0, 1, 0], [], []>} : vector<16x8xf32>, vector<16x8xf32>, vector<16x16xf32> -> vector<16x16xf32>
    %cst_95 = arith.constant 0.353553385 : f32
    %190 = vector.broadcast %cst_95 : f32 to vector<16x16xf32>
    %191 = arith.mulf %189, %190 : vector<16x16xf32>
    %192 = arith.addf %191, %0 : vector<16x16xf32>
    %cst_96 = arith.constant dense<0xFF800000> : vector<16xf32>
    %193 = vector.multi_reduction <maximumf>, %192, %cst_96 [1] : vector<16x16xf32> to vector<16xf32>
    %194 = vector.shape_cast %193 : vector<16xf32> to vector<16x1xf32>
    %195 = vector.broadcast %194 : vector<16x1xf32> to vector<16x16xf32>
    %196 = arith.subf %192, %195 : vector<16x16xf32>
    %197 = math.exp %196 : vector<16x16xf32>
    %cst_97 = arith.constant dense<0.000000e+00> : vector<16xf32>
    %198 = vector.multi_reduction <add>, %197, %cst_97 [1] : vector<16x16xf32> to vector<16xf32>
    %199 = vector.shape_cast %198 : vector<16xf32> to vector<16x1xf32>
    %200 = vector.broadcast %199 : vector<16x1xf32> to vector<16x16xf32>
    %201 = arith.divf %197, %200 : vector<16x16xf32>
    %cst_98 = arith.constant dense<0.000000e+00> : vector<16x8xf32>
    %202 = tpu.matmul %201, %188, %cst_98 {dimension_numbers = #tpu.dot_dimension_numbers<[1], [0], [0], [1], [0, 0, 1, 1], [], []>} : vector<16x16xf32>, vector<16x8xf32>, vector<16x8xf32> -> vector<16x8xf32>
    %203 = vector.extract_strided_slice %176 {offsets = [0, 0], sizes = [8, 32], strides = [1, 1]} : vector<32x32xf32> to vector<8x32xf32>
    %cst_99 = arith.constant dense<0.000000e+00> : vector<16x32xf32>
    %204 = tpu.matmul %202, %203, %cst_99 {dimension_numbers = #tpu.dot_dimension_numbers<[1], [0], [0], [1], [0, 0, 1, 1], [], []>} : vector<16x8xf32>, vector<8x32xf32>, vector<16x32xf32> -> vector<16x32xf32>
    %205 = arith.addf %185, %204 : vector<16x32xf32>
    %206 = vector.extract_strided_slice %182 {offsets = [0, 8], sizes = [16, 8], strides = [1, 1]} : vector<16x32xf32> to vector<16x8xf32>
    %207 = vector.extract_strided_slice %183 {offsets = [0, 8], sizes = [16, 8], strides = [1, 1]} : vector<16x32xf32> to vector<16x8xf32>
    %208 = vector.extract_strided_slice %184 {offsets = [0, 8], sizes = [16, 8], strides = [1, 1]} : vector<16x32xf32> to vector<16x8xf32>
    %cst_100 = arith.constant dense<0.000000e+00> : vector<16x16xf32>
    %209 = tpu.matmul %206, %207, %cst_100 {dimension_numbers = #tpu.dot_dimension_numbers<[1], [1], [0], [0], [0, 0, 1, 0], [], []>} : vector<16x8xf32>, vector<16x8xf32>, vector<16x16xf32> -> vector<16x16xf32>
    %cst_101 = arith.constant 0.353553385 : f32
    %210 = vector.broadcast %cst_101 : f32 to vector<16x16xf32>
    %211 = arith.mulf %209, %210 : vector<16x16xf32>
    %212 = arith.addf %211, %0 : vector<16x16xf32>
    %cst_102 = arith.constant dense<0xFF800000> : vector<16xf32>
    %213 = vector.multi_reduction <maximumf>, %212, %cst_102 [1] : vector<16x16xf32> to vector<16xf32>
    %214 = vector.shape_cast %213 : vector<16xf32> to vector<16x1xf32>
    %215 = vector.broadcast %214 : vector<16x1xf32> to vector<16x16xf32>
    %216 = arith.subf %212, %215 : vector<16x16xf32>
    %217 = math.exp %216 : vector<16x16xf32>
    %cst_103 = arith.constant dense<0.000000e+00> : vector<16xf32>
    %218 = vector.multi_reduction <add>, %217, %cst_103 [1] : vector<16x16xf32> to vector<16xf32>
    %219 = vector.shape_cast %218 : vector<16xf32> to vector<16x1xf32>
    %220 = vector.broadcast %219 : vector<16x1xf32> to vector<16x16xf32>
    %221 = arith.divf %217, %220 : vector<16x16xf32>
    %cst_104 = arith.constant dense<0.000000e+00> : vector<16x8xf32>
    %222 = tpu.matmul %221, %208, %cst_104 {dimension_numbers = #tpu.dot_dimension_numbers<[1], [0], [0], [1], [0, 0, 1, 1], [], []>} : vector<16x16xf32>, vector<16x8xf32>, vector<16x8xf32> -> vector<16x8xf32>
    %223 = vector.extract_strided_slice %176 {offsets = [8, 0], sizes = [8, 32], strides = [1, 1]} : vector<32x32xf32> to vector<8x32xf32>
    %cst_105 = arith.constant dense<0.000000e+00> : vector<16x32xf32>
    %224 = tpu.matmul %222, %223, %cst_105 {dimension_numbers = #tpu.dot_dimension_numbers<[1], [0], [0], [1], [0, 0, 1, 1], [], []>} : vector<16x8xf32>, vector<8x32xf32>, vector<16x32xf32> -> vector<16x32xf32>
    %225 = arith.addf %205, %224 : vector<16x32xf32>
    %226 = vector.extract_strided_slice %182 {offsets = [0, 16], sizes = [16, 8], strides = [1, 1]} : vector<16x32xf32> to vector<16x8xf32>
    %227 = vector.extract_strided_slice %183 {offsets = [0, 16], sizes = [16, 8], strides = [1, 1]} : vector<16x32xf32> to vector<16x8xf32>
    %228 = vector.extract_strided_slice %184 {offsets = [0, 16], sizes = [16, 8], strides = [1, 1]} : vector<16x32xf32> to vector<16x8xf32>
    %cst_106 = arith.constant dense<0.000000e+00> : vector<16x16xf32>
    %229 = tpu.matmul %226, %227, %cst_106 {dimension_numbers = #tpu.dot_dimension_numbers<[1], [1], [0], [0], [0, 0, 1, 0], [], []>} : vector<16x8xf32>, vector<16x8xf32>, vector<16x16xf32> -> vector<16x16xf32>
    %cst_107 = arith.constant 0.353553385 : f32
    %230 = vector.broadcast %cst_107 : f32 to vector<16x16xf32>
    %231 = arith.mulf %229, %230 : vector<16x16xf32>
    %232 = arith.addf %231, %0 : vector<16x16xf32>
    %cst_108 = arith.constant dense<0xFF800000> : vector<16xf32>
    %233 = vector.multi_reduction <maximumf>, %232, %cst_108 [1] : vector<16x16xf32> to vector<16xf32>
    %234 = vector.shape_cast %233 : vector<16xf32> to vector<16x1xf32>
    %235 = vector.broadcast %234 : vector<16x1xf32> to vector<16x16xf32>
    %236 = arith.subf %232, %235 : vector<16x16xf32>
    %237 = math.exp %236 : vector<16x16xf32>
    %cst_109 = arith.constant dense<0.000000e+00> : vector<16xf32>
    %238 = vector.multi_reduction <add>, %237, %cst_109 [1] : vector<16x16xf32> to vector<16xf32>
    %239 = vector.shape_cast %238 : vector<16xf32> to vector<16x1xf32>
    %240 = vector.broadcast %239 : vector<16x1xf32> to vector<16x16xf32>
    %241 = arith.divf %237, %240 : vector<16x16xf32>
    %cst_110 = arith.constant dense<0.000000e+00> : vector<16x8xf32>
    %242 = tpu.matmul %241, %228, %cst_110 {dimension_numbers = #tpu.dot_dimension_numbers<[1], [0], [0], [1], [0, 0, 1, 1], [], []>} : vector<16x16xf32>, vector<16x8xf32>, vector<16x8xf32> -> vector<16x8xf32>
    %243 = vector.extract_strided_slice %176 {offsets = [16, 0], sizes = [8, 32], strides = [1, 1]} : vector<32x32xf32> to vector<8x32xf32>
    %cst_111 = arith.constant dense<0.000000e+00> : vector<16x32xf32>
    %244 = tpu.matmul %242, %243, %cst_111 {dimension_numbers = #tpu.dot_dimension_numbers<[1], [0], [0], [1], [0, 0, 1, 1], [], []>} : vector<16x8xf32>, vector<8x32xf32>, vector<16x32xf32> -> vector<16x32xf32>
    %245 = arith.addf %225, %244 : vector<16x32xf32>
    %246 = vector.extract_strided_slice %182 {offsets = [0, 24], sizes = [16, 8], strides = [1, 1]} : vector<16x32xf32> to vector<16x8xf32>
    %247 = vector.extract_strided_slice %183 {offsets = [0, 24], sizes = [16, 8], strides = [1, 1]} : vector<16x32xf32> to vector<16x8xf32>
    %248 = vector.extract_strided_slice %184 {offsets = [0, 24], sizes = [16, 8], strides = [1, 1]} : vector<16x32xf32> to vector<16x8xf32>
    %cst_112 = arith.constant dense<0.000000e+00> : vector<16x16xf32>
    %249 = tpu.matmul %246, %247, %cst_112 {dimension_numbers = #tpu.dot_dimension_numbers<[1], [1], [0], [0], [0, 0, 1, 0], [], []>} : vector<16x8xf32>, vector<16x8xf32>, vector<16x16xf32> -> vector<16x16xf32>
    %cst_113 = arith.constant 0.353553385 : f32
    %250 = vector.broadcast %cst_113 : f32 to vector<16x16xf32>
    %251 = arith.mulf %249, %250 : vector<16x16xf32>
    %252 = arith.addf %251, %0 : vector<16x16xf32>
    %cst_114 = arith.constant dense<0xFF800000> : vector<16xf32>
    %253 = vector.multi_reduction <maximumf>, %252, %cst_114 [1] : vector<16x16xf32> to vector<16xf32>
    %254 = vector.shape_cast %253 : vector<16xf32> to vector<16x1xf32>
    %255 = vector.broadcast %254 : vector<16x1xf32> to vector<16x16xf32>
    %256 = arith.subf %252, %255 : vector<16x16xf32>
    %257 = math.exp %256 : vector<16x16xf32>
    %cst_115 = arith.constant dense<0.000000e+00> : vector<16xf32>
    %258 = vector.multi_reduction <add>, %257, %cst_115 [1] : vector<16x16xf32> to vector<16xf32>
    %259 = vector.shape_cast %258 : vector<16xf32> to vector<16x1xf32>
    %260 = vector.broadcast %259 : vector<16x1xf32> to vector<16x16xf32>
    %261 = arith.divf %257, %260 : vector<16x16xf32>
    %cst_116 = arith.constant dense<0.000000e+00> : vector<16x8xf32>
    %262 = tpu.matmul %261, %248, %cst_116 {dimension_numbers = #tpu.dot_dimension_numbers<[1], [0], [0], [1], [0, 0, 1, 1], [], []>} : vector<16x16xf32>, vector<16x8xf32>, vector<16x8xf32> -> vector<16x8xf32>
    %263 = vector.extract_strided_slice %176 {offsets = [24, 0], sizes = [8, 32], strides = [1, 1]} : vector<32x32xf32> to vector<8x32xf32>
    %cst_117 = arith.constant dense<0.000000e+00> : vector<16x32xf32>
    %264 = tpu.matmul %262, %263, %cst_117 {dimension_numbers = #tpu.dot_dimension_numbers<[1], [0], [0], [1], [0, 0, 1, 1], [], []>} : vector<16x8xf32>, vector<8x32xf32>, vector<16x32xf32> -> vector<16x32xf32>
    %265 = arith.addf %245, %264 : vector<16x32xf32>
    %266 = vector.broadcast %178 : vector<1x32xf32> to vector<16x32xf32>
    %267 = arith.addf %265, %266 : vector<16x32xf32>
    %268 = arith.addf %170, %267 : vector<16x32xf32>
    %c1_118 = arith.constant 1 : index
    %c0_119 = arith.constant 0 : index
    %c0_120 = arith.constant 0 : index
    %269 = vector.load %arg13[%c1_118, %c0_119, %c0_120] : memref<2x1x32xf32, #tpu.memory_space<vmem>>, vector<1x1x32xf32>
    %270 = vector.shape_cast %269 : vector<1x1x32xf32> to vector<1x32xf32>
    %c1_121 = arith.constant 1 : index
    %c0_122 = arith.constant 0 : index
    %c0_123 = arith.constant 0 : index
    %271 = vector.load %arg14[%c1_121, %c0_122, %c0_123] : memref<2x1x32xf32, #tpu.memory_space<vmem>>, vector<1x1x32xf32>
    %272 = vector.shape_cast %271 : vector<1x1x32xf32> to vector<1x32xf32>
    %cst_124 = arith.constant dense<0.000000e+00> : vector<16xf32>
    %273 = vector.multi_reduction <add>, %268, %cst_124 [1] : vector<16x32xf32> to vector<16xf32>
    %274 = vector.shape_cast %273 : vector<16xf32> to vector<16x1xf32>
    %cst_125 = arith.constant 3.200000e+01 : f32
    %275 = vector.broadcast %cst_125 : f32 to vector<16x1xf32>
    %276 = arith.divf %274, %275 : vector<16x1xf32>
    %277 = vector.broadcast %276 : vector<16x1xf32> to vector<16x32xf32>
    %278 = arith.subf %268, %277 : vector<16x32xf32>
    %279 = arith.mulf %278, %278 : vector<16x32xf32>
    %cst_126 = arith.constant dense<0.000000e+00> : vector<16xf32>
    %280 = vector.multi_reduction <add>, %279, %cst_126 [1] : vector<16x32xf32> to vector<16xf32>
    %281 = vector.shape_cast %280 : vector<16xf32> to vector<16x1xf32>
    %cst_127 = arith.constant 3.200000e+01 : f32
    %282 = vector.broadcast %cst_127 : f32 to vector<16x1xf32>
    %283 = arith.divf %281, %282 : vector<16x1xf32>
    %284 = vector.broadcast %276 : vector<16x1xf32> to vector<16x32xf32>
    %285 = arith.subf %268, %284 : vector<16x32xf32>
    %cst_128 = arith.constant 9.99999974E-6 : f32
    %286 = vector.broadcast %cst_128 : f32 to vector<16x1xf32>
    %287 = arith.addf %283, %286 : vector<16x1xf32>
    %288 = math.rsqrt %287 : vector<16x1xf32>
    %289 = vector.broadcast %288 : vector<16x1xf32> to vector<16x32xf32>
    %290 = arith.mulf %285, %289 : vector<16x32xf32>
    %291 = vector.broadcast %270 : vector<1x32xf32> to vector<16x32xf32>
    %292 = arith.mulf %290, %291 : vector<16x32xf32>
    %293 = vector.broadcast %272 : vector<1x32xf32> to vector<16x32xf32>
    %294 = arith.addf %292, %293 : vector<16x32xf32>
    %c1_129 = arith.constant 1 : index
    %c0_130 = arith.constant 0 : index
    %c0_131 = arith.constant 0 : index
    %295 = vector.load %arg9[%c1_129, %c0_130, %c0_131] : memref<2x32x64xf32, #tpu.memory_space<vmem>>, vector<1x32x64xf32>
    %296 = vector.shape_cast %295 : vector<1x32x64xf32> to vector<32x64xf32>
    %c1_132 = arith.constant 1 : index
    %c0_133 = arith.constant 0 : index
    %c0_134 = arith.constant 0 : index
    %297 = vector.load %arg10[%c1_132, %c0_133, %c0_134] : memref<2x1x64xf32, #tpu.memory_space<vmem>>, vector<1x1x64xf32>
    %298 = vector.shape_cast %297 : vector<1x1x64xf32> to vector<1x64xf32>
    %c1_135 = arith.constant 1 : index
    %c0_136 = arith.constant 0 : index
    %c0_137 = arith.constant 0 : index
    %299 = vector.load %arg11[%c1_135, %c0_136, %c0_137] : memref<2x64x32xf32, #tpu.memory_space<vmem>>, vector<1x64x32xf32>
    %300 = vector.shape_cast %299 : vector<1x64x32xf32> to vector<64x32xf32>
    %c1_138 = arith.constant 1 : index
    %c0_139 = arith.constant 0 : index
    %c0_140 = arith.constant 0 : index
    %301 = vector.load %arg12[%c1_138, %c0_139, %c0_140] : memref<2x1x32xf32, #tpu.memory_space<vmem>>, vector<1x1x32xf32>
    %302 = vector.shape_cast %301 : vector<1x1x32xf32> to vector<1x32xf32>
    %cst_141 = arith.constant dense<0.000000e+00> : vector<16x64xf32>
    %303 = tpu.matmul %294, %296, %cst_141 {dimension_numbers = #tpu.dot_dimension_numbers<[1], [0], [0], [1], [0, 0, 1, 1], [], []>} : vector<16x32xf32>, vector<32x64xf32>, vector<16x64xf32> -> vector<16x64xf32>
    %304 = vector.broadcast %298 : vector<1x64xf32> to vector<16x64xf32>
    %305 = arith.addf %303, %304 : vector<16x64xf32>
    %cst_142 = arith.constant 0.000000e+00 : f32
    %306 = vector.broadcast %cst_142 : f32 to vector<16x64xf32>
    %307 = arith.maximumf %305, %306 : vector<16x64xf32>
    %cst_143 = arith.constant dense<0.000000e+00> : vector<16x32xf32>
    %308 = tpu.matmul %307, %300, %cst_143 {dimension_numbers = #tpu.dot_dimension_numbers<[1], [0], [0], [1], [0, 0, 1, 1], [], []>} : vector<16x64xf32>, vector<64x32xf32>, vector<16x32xf32> -> vector<16x32xf32>
    %309 = vector.broadcast %302 : vector<1x32xf32> to vector<16x32xf32>
    %310 = arith.addf %308, %309 : vector<16x32xf32>
    %311 = arith.addf %294, %310 : vector<16x32xf32>
    %c1_144 = arith.constant 1 : index
    %c0_145 = arith.constant 0 : index
    %c0_146 = arith.constant 0 : index
    %312 = vector.load %arg15[%c1_144, %c0_145, %c0_146] : memref<2x1x32xf32, #tpu.memory_space<vmem>>, vector<1x1x32xf32>
    %313 = vector.shape_cast %312 : vector<1x1x32xf32> to vector<1x32xf32>
    %c1_147 = arith.constant 1 : index
    %c0_148 = arith.constant 0 : index
    %c0_149 = arith.constant 0 : index
    %314 = vector.load %arg16[%c1_147, %c0_148, %c0_149] : memref<2x1x32xf32, #tpu.memory_space<vmem>>, vector<1x1x32xf32>
    %315 = vector.shape_cast %314 : vector<1x1x32xf32> to vector<1x32xf32>
    %cst_150 = arith.constant dense<0.000000e+00> : vector<16xf32>
    %316 = vector.multi_reduction <add>, %311, %cst_150 [1] : vector<16x32xf32> to vector<16xf32>
    %317 = vector.shape_cast %316 : vector<16xf32> to vector<16x1xf32>
    %cst_151 = arith.constant 3.200000e+01 : f32
    %318 = vector.broadcast %cst_151 : f32 to vector<16x1xf32>
    %319 = arith.divf %317, %318 : vector<16x1xf32>
    %320 = vector.broadcast %319 : vector<16x1xf32> to vector<16x32xf32>
    %321 = arith.subf %311, %320 : vector<16x32xf32>
    %322 = arith.mulf %321, %321 : vector<16x32xf32>
    %cst_152 = arith.constant dense<0.000000e+00> : vector<16xf32>
    %323 = vector.multi_reduction <add>, %322, %cst_152 [1] : vector<16x32xf32> to vector<16xf32>
    %324 = vector.shape_cast %323 : vector<16xf32> to vector<16x1xf32>
    %cst_153 = arith.constant 3.200000e+01 : f32
    %325 = vector.broadcast %cst_153 : f32 to vector<16x1xf32>
    %326 = arith.divf %324, %325 : vector<16x1xf32>
    %327 = vector.broadcast %319 : vector<16x1xf32> to vector<16x32xf32>
    %328 = arith.subf %311, %327 : vector<16x32xf32>
    %cst_154 = arith.constant 9.99999974E-6 : f32
    %329 = vector.broadcast %cst_154 : f32 to vector<16x1xf32>
    %330 = arith.addf %326, %329 : vector<16x1xf32>
    %331 = math.rsqrt %330 : vector<16x1xf32>
    %332 = vector.broadcast %331 : vector<16x1xf32> to vector<16x32xf32>
    %333 = arith.mulf %328, %332 : vector<16x32xf32>
    %334 = vector.broadcast %313 : vector<1x32xf32> to vector<16x32xf32>
    %335 = arith.mulf %333, %334 : vector<16x32xf32>
    %336 = vector.broadcast %315 : vector<1x32xf32> to vector<16x32xf32>
    %337 = arith.addf %335, %336 : vector<16x32xf32>
    %c0_155 = arith.constant 0 : index
    %c0_156 = arith.constant 0 : index
    %338 = vector.load %arg17[%c0_155, %c0_156] : memref<1x32xf32, #tpu.memory_space<vmem>>, vector<1x32xf32>
    %c0_157 = arith.constant 0 : index
    %c0_158 = arith.constant 0 : index
    %339 = vector.load %arg18[%c0_157, %c0_158] : memref<1x32xf32, #tpu.memory_space<vmem>>, vector<1x32xf32>
    %cst_159 = arith.constant dense<0.000000e+00> : vector<16xf32>
    %340 = vector.multi_reduction <add>, %337, %cst_159 [1] : vector<16x32xf32> to vector<16xf32>
    %341 = vector.shape_cast %340 : vector<16xf32> to vector<16x1xf32>
    %cst_160 = arith.constant 3.200000e+01 : f32
    %342 = vector.broadcast %cst_160 : f32 to vector<16x1xf32>
    %343 = arith.divf %341, %342 : vector<16x1xf32>
    %344 = vector.broadcast %343 : vector<16x1xf32> to vector<16x32xf32>
    %345 = arith.subf %337, %344 : vector<16x32xf32>
    %346 = arith.mulf %345, %345 : vector<16x32xf32>
    %cst_161 = arith.constant dense<0.000000e+00> : vector<16xf32>
    %347 = vector.multi_reduction <add>, %346, %cst_161 [1] : vector<16x32xf32> to vector<16xf32>
    %348 = vector.shape_cast %347 : vector<16xf32> to vector<16x1xf32>
    %cst_162 = arith.constant 3.200000e+01 : f32
    %349 = vector.broadcast %cst_162 : f32 to vector<16x1xf32>
    %350 = arith.divf %348, %349 : vector<16x1xf32>
    %351 = vector.broadcast %343 : vector<16x1xf32> to vector<16x32xf32>
    %352 = arith.subf %337, %351 : vector<16x32xf32>
    %cst_163 = arith.constant 9.99999974E-6 : f32
    %353 = vector.broadcast %cst_163 : f32 to vector<16x1xf32>
    %354 = arith.addf %350, %353 : vector<16x1xf32>
    %355 = math.rsqrt %354 : vector<16x1xf32>
    %356 = vector.broadcast %355 : vector<16x1xf32> to vector<16x32xf32>
    %357 = arith.mulf %352, %356 : vector<16x32xf32>
    %358 = vector.broadcast %338 : vector<1x32xf32> to vector<16x32xf32>
    %359 = arith.mulf %357, %358 : vector<16x32xf32>
    %360 = vector.broadcast %339 : vector<1x32xf32> to vector<16x32xf32>
    %361 = arith.addf %359, %360 : vector<16x32xf32>
    %c0_164 = arith.constant 0 : index
    %c0_165 = arith.constant 0 : index
    %362 = vector.load %arg1[%c0_164, %c0_165] : memref<16x32xf32, #tpu.memory_space<vmem>>, vector<16x32xf32>
    %c0_166 = arith.constant 0 : index
    %c0_167 = arith.constant 0 : index
    %c0_168 = arith.constant 0 : index
    %363 = vector.load %arg19[%c0_166, %c0_167, %c0_168] : memref<2x32x96xf32, #tpu.memory_space<vmem>>, vector<1x32x96xf32>
    %364 = vector.shape_cast %363 : vector<1x32x96xf32> to vector<32x96xf32>
    %c0_169 = arith.constant 0 : index
    %c0_170 = arith.constant 0 : index
    %c0_171 = arith.constant 0 : index
    %365 = vector.load %arg20[%c0_169, %c0_170, %c0_171] : memref<2x1x96xf32, #tpu.memory_space<vmem>>, vector<1x1x96xf32>
    %366 = vector.shape_cast %365 : vector<1x1x96xf32> to vector<1x96xf32>
    %c0_172 = arith.constant 0 : index
    %c0_173 = arith.constant 0 : index
    %c0_174 = arith.constant 0 : index
    %367 = vector.load %arg21[%c0_172, %c0_173, %c0_174] : memref<2x32x32xf32, #tpu.memory_space<vmem>>, vector<1x32x32xf32>
    %368 = vector.shape_cast %367 : vector<1x32x32xf32> to vector<32x32xf32>
    %c0_175 = arith.constant 0 : index
    %c0_176 = arith.constant 0 : index
    %c0_177 = arith.constant 0 : index
    %369 = vector.load %arg22[%c0_175, %c0_176, %c0_177] : memref<2x1x32xf32, #tpu.memory_space<vmem>>, vector<1x1x32xf32>
    %370 = vector.shape_cast %369 : vector<1x1x32xf32> to vector<1x32xf32>
    %cst_178 = arith.constant dense<0.000000e+00> : vector<16x96xf32>
    %371 = tpu.matmul %362, %364, %cst_178 {dimension_numbers = #tpu.dot_dimension_numbers<[1], [0], [0], [1], [0, 0, 1, 1], [], []>} : vector<16x32xf32>, vector<32x96xf32>, vector<16x96xf32> -> vector<16x96xf32>
    %372 = vector.broadcast %366 : vector<1x96xf32> to vector<16x96xf32>
    %373 = arith.addf %371, %372 : vector<16x96xf32>
    %374 = vector.extract_strided_slice %373 {offsets = [0, 0], sizes = [16, 32], strides = [1, 1]} : vector<16x96xf32> to vector<16x32xf32>
    %375 = vector.extract_strided_slice %373 {offsets = [0, 32], sizes = [16, 32], strides = [1, 1]} : vector<16x96xf32> to vector<16x32xf32>
    %376 = vector.extract_strided_slice %373 {offsets = [0, 64], sizes = [16, 32], strides = [1, 1]} : vector<16x96xf32> to vector<16x32xf32>
    %cst_179 = arith.constant 0.000000e+00 : f32
    %377 = vector.broadcast %cst_179 : f32 to vector<16x32xf32>
    %378 = vector.extract_strided_slice %374 {offsets = [0, 0], sizes = [16, 8], strides = [1, 1]} : vector<16x32xf32> to vector<16x8xf32>
    %379 = vector.extract_strided_slice %375 {offsets = [0, 0], sizes = [16, 8], strides = [1, 1]} : vector<16x32xf32> to vector<16x8xf32>
    %380 = vector.extract_strided_slice %376 {offsets = [0, 0], sizes = [16, 8], strides = [1, 1]} : vector<16x32xf32> to vector<16x8xf32>
    %cst_180 = arith.constant dense<0.000000e+00> : vector<16x16xf32>
    %381 = tpu.matmul %378, %379, %cst_180 {dimension_numbers = #tpu.dot_dimension_numbers<[1], [1], [0], [0], [0, 0, 1, 0], [], []>} : vector<16x8xf32>, vector<16x8xf32>, vector<16x16xf32> -> vector<16x16xf32>
    %cst_181 = arith.constant 0.353553385 : f32
    %382 = vector.broadcast %cst_181 : f32 to vector<16x16xf32>
    %383 = arith.mulf %381, %382 : vector<16x16xf32>
    %384 = arith.addf %383, %1 : vector<16x16xf32>
    %cst_182 = arith.constant dense<0xFF800000> : vector<16xf32>
    %385 = vector.multi_reduction <maximumf>, %384, %cst_182 [1] : vector<16x16xf32> to vector<16xf32>
    %386 = vector.shape_cast %385 : vector<16xf32> to vector<16x1xf32>
    %387 = vector.broadcast %386 : vector<16x1xf32> to vector<16x16xf32>
    %388 = arith.subf %384, %387 : vector<16x16xf32>
    %389 = math.exp %388 : vector<16x16xf32>
    %cst_183 = arith.constant dense<0.000000e+00> : vector<16xf32>
    %390 = vector.multi_reduction <add>, %389, %cst_183 [1] : vector<16x16xf32> to vector<16xf32>
    %391 = vector.shape_cast %390 : vector<16xf32> to vector<16x1xf32>
    %392 = vector.broadcast %391 : vector<16x1xf32> to vector<16x16xf32>
    %393 = arith.divf %389, %392 : vector<16x16xf32>
    %cst_184 = arith.constant dense<0.000000e+00> : vector<16x8xf32>
    %394 = tpu.matmul %393, %380, %cst_184 {dimension_numbers = #tpu.dot_dimension_numbers<[1], [0], [0], [1], [0, 0, 1, 1], [], []>} : vector<16x16xf32>, vector<16x8xf32>, vector<16x8xf32> -> vector<16x8xf32>
    %395 = vector.extract_strided_slice %368 {offsets = [0, 0], sizes = [8, 32], strides = [1, 1]} : vector<32x32xf32> to vector<8x32xf32>
    %cst_185 = arith.constant dense<0.000000e+00> : vector<16x32xf32>
    %396 = tpu.matmul %394, %395, %cst_185 {dimension_numbers = #tpu.dot_dimension_numbers<[1], [0], [0], [1], [0, 0, 1, 1], [], []>} : vector<16x8xf32>, vector<8x32xf32>, vector<16x32xf32> -> vector<16x32xf32>
    %397 = arith.addf %377, %396 : vector<16x32xf32>
    %398 = vector.extract_strided_slice %374 {offsets = [0, 8], sizes = [16, 8], strides = [1, 1]} : vector<16x32xf32> to vector<16x8xf32>
    %399 = vector.extract_strided_slice %375 {offsets = [0, 8], sizes = [16, 8], strides = [1, 1]} : vector<16x32xf32> to vector<16x8xf32>
    %400 = vector.extract_strided_slice %376 {offsets = [0, 8], sizes = [16, 8], strides = [1, 1]} : vector<16x32xf32> to vector<16x8xf32>
    %cst_186 = arith.constant dense<0.000000e+00> : vector<16x16xf32>
    %401 = tpu.matmul %398, %399, %cst_186 {dimension_numbers = #tpu.dot_dimension_numbers<[1], [1], [0], [0], [0, 0, 1, 0], [], []>} : vector<16x8xf32>, vector<16x8xf32>, vector<16x16xf32> -> vector<16x16xf32>
    %cst_187 = arith.constant 0.353553385 : f32
    %402 = vector.broadcast %cst_187 : f32 to vector<16x16xf32>
    %403 = arith.mulf %401, %402 : vector<16x16xf32>
    %404 = arith.addf %403, %1 : vector<16x16xf32>
    %cst_188 = arith.constant dense<0xFF800000> : vector<16xf32>
    %405 = vector.multi_reduction <maximumf>, %404, %cst_188 [1] : vector<16x16xf32> to vector<16xf32>
    %406 = vector.shape_cast %405 : vector<16xf32> to vector<16x1xf32>
    %407 = vector.broadcast %406 : vector<16x1xf32> to vector<16x16xf32>
    %408 = arith.subf %404, %407 : vector<16x16xf32>
    %409 = math.exp %408 : vector<16x16xf32>
    %cst_189 = arith.constant dense<0.000000e+00> : vector<16xf32>
    %410 = vector.multi_reduction <add>, %409, %cst_189 [1] : vector<16x16xf32> to vector<16xf32>
    %411 = vector.shape_cast %410 : vector<16xf32> to vector<16x1xf32>
    %412 = vector.broadcast %411 : vector<16x1xf32> to vector<16x16xf32>
    %413 = arith.divf %409, %412 : vector<16x16xf32>
    %cst_190 = arith.constant dense<0.000000e+00> : vector<16x8xf32>
    %414 = tpu.matmul %413, %400, %cst_190 {dimension_numbers = #tpu.dot_dimension_numbers<[1], [0], [0], [1], [0, 0, 1, 1], [], []>} : vector<16x16xf32>, vector<16x8xf32>, vector<16x8xf32> -> vector<16x8xf32>
    %415 = vector.extract_strided_slice %368 {offsets = [8, 0], sizes = [8, 32], strides = [1, 1]} : vector<32x32xf32> to vector<8x32xf32>
    %cst_191 = arith.constant dense<0.000000e+00> : vector<16x32xf32>
    %416 = tpu.matmul %414, %415, %cst_191 {dimension_numbers = #tpu.dot_dimension_numbers<[1], [0], [0], [1], [0, 0, 1, 1], [], []>} : vector<16x8xf32>, vector<8x32xf32>, vector<16x32xf32> -> vector<16x32xf32>
    %417 = arith.addf %397, %416 : vector<16x32xf32>
    %418 = vector.extract_strided_slice %374 {offsets = [0, 16], sizes = [16, 8], strides = [1, 1]} : vector<16x32xf32> to vector<16x8xf32>
    %419 = vector.extract_strided_slice %375 {offsets = [0, 16], sizes = [16, 8], strides = [1, 1]} : vector<16x32xf32> to vector<16x8xf32>
    %420 = vector.extract_strided_slice %376 {offsets = [0, 16], sizes = [16, 8], strides = [1, 1]} : vector<16x32xf32> to vector<16x8xf32>
    %cst_192 = arith.constant dense<0.000000e+00> : vector<16x16xf32>
    %421 = tpu.matmul %418, %419, %cst_192 {dimension_numbers = #tpu.dot_dimension_numbers<[1], [1], [0], [0], [0, 0, 1, 0], [], []>} : vector<16x8xf32>, vector<16x8xf32>, vector<16x16xf32> -> vector<16x16xf32>
    %cst_193 = arith.constant 0.353553385 : f32
    %422 = vector.broadcast %cst_193 : f32 to vector<16x16xf32>
    %423 = arith.mulf %421, %422 : vector<16x16xf32>
    %424 = arith.addf %423, %1 : vector<16x16xf32>
    %cst_194 = arith.constant dense<0xFF800000> : vector<16xf32>
    %425 = vector.multi_reduction <maximumf>, %424, %cst_194 [1] : vector<16x16xf32> to vector<16xf32>
    %426 = vector.shape_cast %425 : vector<16xf32> to vector<16x1xf32>
    %427 = vector.broadcast %426 : vector<16x1xf32> to vector<16x16xf32>
    %428 = arith.subf %424, %427 : vector<16x16xf32>
    %429 = math.exp %428 : vector<16x16xf32>
    %cst_195 = arith.constant dense<0.000000e+00> : vector<16xf32>
    %430 = vector.multi_reduction <add>, %429, %cst_195 [1] : vector<16x16xf32> to vector<16xf32>
    %431 = vector.shape_cast %430 : vector<16xf32> to vector<16x1xf32>
    %432 = vector.broadcast %431 : vector<16x1xf32> to vector<16x16xf32>
    %433 = arith.divf %429, %432 : vector<16x16xf32>
    %cst_196 = arith.constant dense<0.000000e+00> : vector<16x8xf32>
    %434 = tpu.matmul %433, %420, %cst_196 {dimension_numbers = #tpu.dot_dimension_numbers<[1], [0], [0], [1], [0, 0, 1, 1], [], []>} : vector<16x16xf32>, vector<16x8xf32>, vector<16x8xf32> -> vector<16x8xf32>
    %435 = vector.extract_strided_slice %368 {offsets = [16, 0], sizes = [8, 32], strides = [1, 1]} : vector<32x32xf32> to vector<8x32xf32>
    %cst_197 = arith.constant dense<0.000000e+00> : vector<16x32xf32>
    %436 = tpu.matmul %434, %435, %cst_197 {dimension_numbers = #tpu.dot_dimension_numbers<[1], [0], [0], [1], [0, 0, 1, 1], [], []>} : vector<16x8xf32>, vector<8x32xf32>, vector<16x32xf32> -> vector<16x32xf32>
    %437 = arith.addf %417, %436 : vector<16x32xf32>
    %438 = vector.extract_strided_slice %374 {offsets = [0, 24], sizes = [16, 8], strides = [1, 1]} : vector<16x32xf32> to vector<16x8xf32>
    %439 = vector.extract_strided_slice %375 {offsets = [0, 24], sizes = [16, 8], strides = [1, 1]} : vector<16x32xf32> to vector<16x8xf32>
    %440 = vector.extract_strided_slice %376 {offsets = [0, 24], sizes = [16, 8], strides = [1, 1]} : vector<16x32xf32> to vector<16x8xf32>
    %cst_198 = arith.constant dense<0.000000e+00> : vector<16x16xf32>
    %441 = tpu.matmul %438, %439, %cst_198 {dimension_numbers = #tpu.dot_dimension_numbers<[1], [1], [0], [0], [0, 0, 1, 0], [], []>} : vector<16x8xf32>, vector<16x8xf32>, vector<16x16xf32> -> vector<16x16xf32>
    %cst_199 = arith.constant 0.353553385 : f32
    %442 = vector.broadcast %cst_199 : f32 to vector<16x16xf32>
    %443 = arith.mulf %441, %442 : vector<16x16xf32>
    %444 = arith.addf %443, %1 : vector<16x16xf32>
    %cst_200 = arith.constant dense<0xFF800000> : vector<16xf32>
    %445 = vector.multi_reduction <maximumf>, %444, %cst_200 [1] : vector<16x16xf32> to vector<16xf32>
    %446 = vector.shape_cast %445 : vector<16xf32> to vector<16x1xf32>
    %447 = vector.broadcast %446 : vector<16x1xf32> to vector<16x16xf32>
    %448 = arith.subf %444, %447 : vector<16x16xf32>
    %449 = math.exp %448 : vector<16x16xf32>
    %cst_201 = arith.constant dense<0.000000e+00> : vector<16xf32>
    %450 = vector.multi_reduction <add>, %449, %cst_201 [1] : vector<16x16xf32> to vector<16xf32>
    %451 = vector.shape_cast %450 : vector<16xf32> to vector<16x1xf32>
    %452 = vector.broadcast %451 : vector<16x1xf32> to vector<16x16xf32>
    %453 = arith.divf %449, %452 : vector<16x16xf32>
    %cst_202 = arith.constant dense<0.000000e+00> : vector<16x8xf32>
    %454 = tpu.matmul %453, %440, %cst_202 {dimension_numbers = #tpu.dot_dimension_numbers<[1], [0], [0], [1], [0, 0, 1, 1], [], []>} : vector<16x16xf32>, vector<16x8xf32>, vector<16x8xf32> -> vector<16x8xf32>
    %455 = vector.extract_strided_slice %368 {offsets = [24, 0], sizes = [8, 32], strides = [1, 1]} : vector<32x32xf32> to vector<8x32xf32>
    %cst_203 = arith.constant dense<0.000000e+00> : vector<16x32xf32>
    %456 = tpu.matmul %454, %455, %cst_203 {dimension_numbers = #tpu.dot_dimension_numbers<[1], [0], [0], [1], [0, 0, 1, 1], [], []>} : vector<16x8xf32>, vector<8x32xf32>, vector<16x32xf32> -> vector<16x32xf32>
    %457 = arith.addf %437, %456 : vector<16x32xf32>
    %458 = vector.broadcast %370 : vector<1x32xf32> to vector<16x32xf32>
    %459 = arith.addf %457, %458 : vector<16x32xf32>
    %460 = arith.addf %362, %459 : vector<16x32xf32>
    %c0_204 = arith.constant 0 : index
    %c0_205 = arith.constant 0 : index
    %c0_206 = arith.constant 0 : index
    %461 = vector.load %arg33[%c0_204, %c0_205, %c0_206] : memref<2x1x32xf32, #tpu.memory_space<vmem>>, vector<1x1x32xf32>
    %462 = vector.shape_cast %461 : vector<1x1x32xf32> to vector<1x32xf32>
    %c0_207 = arith.constant 0 : index
    %c0_208 = arith.constant 0 : index
    %c0_209 = arith.constant 0 : index
    %463 = vector.load %arg34[%c0_207, %c0_208, %c0_209] : memref<2x1x32xf32, #tpu.memory_space<vmem>>, vector<1x1x32xf32>
    %464 = vector.shape_cast %463 : vector<1x1x32xf32> to vector<1x32xf32>
    %cst_210 = arith.constant dense<0.000000e+00> : vector<16xf32>
    %465 = vector.multi_reduction <add>, %460, %cst_210 [1] : vector<16x32xf32> to vector<16xf32>
    %466 = vector.shape_cast %465 : vector<16xf32> to vector<16x1xf32>
    %cst_211 = arith.constant 3.200000e+01 : f32
    %467 = vector.broadcast %cst_211 : f32 to vector<16x1xf32>
    %468 = arith.divf %466, %467 : vector<16x1xf32>
    %469 = vector.broadcast %468 : vector<16x1xf32> to vector<16x32xf32>
    %470 = arith.subf %460, %469 : vector<16x32xf32>
    %471 = arith.mulf %470, %470 : vector<16x32xf32>
    %cst_212 = arith.constant dense<0.000000e+00> : vector<16xf32>
    %472 = vector.multi_reduction <add>, %471, %cst_212 [1] : vector<16x32xf32> to vector<16xf32>
    %473 = vector.shape_cast %472 : vector<16xf32> to vector<16x1xf32>
    %cst_213 = arith.constant 3.200000e+01 : f32
    %474 = vector.broadcast %cst_213 : f32 to vector<16x1xf32>
    %475 = arith.divf %473, %474 : vector<16x1xf32>
    %476 = vector.broadcast %468 : vector<16x1xf32> to vector<16x32xf32>
    %477 = arith.subf %460, %476 : vector<16x32xf32>
    %cst_214 = arith.constant 9.99999974E-6 : f32
    %478 = vector.broadcast %cst_214 : f32 to vector<16x1xf32>
    %479 = arith.addf %475, %478 : vector<16x1xf32>
    %480 = math.rsqrt %479 : vector<16x1xf32>
    %481 = vector.broadcast %480 : vector<16x1xf32> to vector<16x32xf32>
    %482 = arith.mulf %477, %481 : vector<16x32xf32>
    %483 = vector.broadcast %462 : vector<1x32xf32> to vector<16x32xf32>
    %484 = arith.mulf %482, %483 : vector<16x32xf32>
    %485 = vector.broadcast %464 : vector<1x32xf32> to vector<16x32xf32>
    %486 = arith.addf %484, %485 : vector<16x32xf32>
    %c0_215 = arith.constant 0 : index
    %c0_216 = arith.constant 0 : index
    %c0_217 = arith.constant 0 : index
    %487 = vector.load %arg23[%c0_215, %c0_216, %c0_217] : memref<2x32x32xf32, #tpu.memory_space<vmem>>, vector<1x32x32xf32>
    %488 = vector.shape_cast %487 : vector<1x32x32xf32> to vector<32x32xf32>
    %c0_218 = arith.constant 0 : index
    %c0_219 = arith.constant 0 : index
    %c0_220 = arith.constant 0 : index
    %489 = vector.load %arg24[%c0_218, %c0_219, %c0_220] : memref<2x1x32xf32, #tpu.memory_space<vmem>>, vector<1x1x32xf32>
    %490 = vector.shape_cast %489 : vector<1x1x32xf32> to vector<1x32xf32>
    %c0_221 = arith.constant 0 : index
    %c0_222 = arith.constant 0 : index
    %c0_223 = arith.constant 0 : index
    %491 = vector.load %arg25[%c0_221, %c0_222, %c0_223] : memref<2x32x64xf32, #tpu.memory_space<vmem>>, vector<1x32x64xf32>
    %492 = vector.shape_cast %491 : vector<1x32x64xf32> to vector<32x64xf32>
    %c0_224 = arith.constant 0 : index
    %c0_225 = arith.constant 0 : index
    %c0_226 = arith.constant 0 : index
    %493 = vector.load %arg26[%c0_224, %c0_225, %c0_226] : memref<2x1x64xf32, #tpu.memory_space<vmem>>, vector<1x1x64xf32>
    %494 = vector.shape_cast %493 : vector<1x1x64xf32> to vector<1x64xf32>
    %c0_227 = arith.constant 0 : index
    %c0_228 = arith.constant 0 : index
    %c0_229 = arith.constant 0 : index
    %495 = vector.load %arg27[%c0_227, %c0_228, %c0_229] : memref<2x32x32xf32, #tpu.memory_space<vmem>>, vector<1x32x32xf32>
    %496 = vector.shape_cast %495 : vector<1x32x32xf32> to vector<32x32xf32>
    %c0_230 = arith.constant 0 : index
    %c0_231 = arith.constant 0 : index
    %c0_232 = arith.constant 0 : index
    %497 = vector.load %arg28[%c0_230, %c0_231, %c0_232] : memref<2x1x32xf32, #tpu.memory_space<vmem>>, vector<1x1x32xf32>
    %498 = vector.shape_cast %497 : vector<1x1x32xf32> to vector<1x32xf32>
    %cst_233 = arith.constant dense<0.000000e+00> : vector<16x32xf32>
    %499 = tpu.matmul %486, %488, %cst_233 {dimension_numbers = #tpu.dot_dimension_numbers<[1], [0], [0], [1], [0, 0, 1, 1], [], []>} : vector<16x32xf32>, vector<32x32xf32>, vector<16x32xf32> -> vector<16x32xf32>
    %500 = vector.broadcast %490 : vector<1x32xf32> to vector<16x32xf32>
    %501 = arith.addf %499, %500 : vector<16x32xf32>
    %cst_234 = arith.constant dense<0.000000e+00> : vector<16x64xf32>
    %502 = tpu.matmul %361, %492, %cst_234 {dimension_numbers = #tpu.dot_dimension_numbers<[1], [0], [0], [1], [0, 0, 1, 1], [], []>} : vector<16x32xf32>, vector<32x64xf32>, vector<16x64xf32> -> vector<16x64xf32>
    %503 = vector.broadcast %494 : vector<1x64xf32> to vector<16x64xf32>
    %504 = arith.addf %502, %503 : vector<16x64xf32>
    %505 = vector.extract_strided_slice %504 {offsets = [0, 0], sizes = [16, 32], strides = [1, 1]} : vector<16x64xf32> to vector<16x32xf32>
    %506 = vector.extract_strided_slice %504 {offsets = [0, 32], sizes = [16, 32], strides = [1, 1]} : vector<16x64xf32> to vector<16x32xf32>
    %cst_235 = arith.constant 0.000000e+00 : f32
    %507 = vector.broadcast %cst_235 : f32 to vector<16x32xf32>
    %508 = vector.extract_strided_slice %501 {offsets = [0, 0], sizes = [16, 8], strides = [1, 1]} : vector<16x32xf32> to vector<16x8xf32>
    %509 = vector.extract_strided_slice %505 {offsets = [0, 0], sizes = [16, 8], strides = [1, 1]} : vector<16x32xf32> to vector<16x8xf32>
    %510 = vector.extract_strided_slice %506 {offsets = [0, 0], sizes = [16, 8], strides = [1, 1]} : vector<16x32xf32> to vector<16x8xf32>
    %cst_236 = arith.constant dense<0.000000e+00> : vector<16x16xf32>
    %511 = tpu.matmul %508, %509, %cst_236 {dimension_numbers = #tpu.dot_dimension_numbers<[1], [1], [0], [0], [0, 0, 1, 0], [], []>} : vector<16x8xf32>, vector<16x8xf32>, vector<16x16xf32> -> vector<16x16xf32>
    %cst_237 = arith.constant 0.353553385 : f32
    %512 = vector.broadcast %cst_237 : f32 to vector<16x16xf32>
    %513 = arith.mulf %511, %512 : vector<16x16xf32>
    %514 = arith.addf %513, %2 : vector<16x16xf32>
    %cst_238 = arith.constant dense<0xFF800000> : vector<16xf32>
    %515 = vector.multi_reduction <maximumf>, %514, %cst_238 [1] : vector<16x16xf32> to vector<16xf32>
    %516 = vector.shape_cast %515 : vector<16xf32> to vector<16x1xf32>
    %517 = vector.broadcast %516 : vector<16x1xf32> to vector<16x16xf32>
    %518 = arith.subf %514, %517 : vector<16x16xf32>
    %519 = math.exp %518 : vector<16x16xf32>
    %cst_239 = arith.constant dense<0.000000e+00> : vector<16xf32>
    %520 = vector.multi_reduction <add>, %519, %cst_239 [1] : vector<16x16xf32> to vector<16xf32>
    %521 = vector.shape_cast %520 : vector<16xf32> to vector<16x1xf32>
    %522 = vector.broadcast %521 : vector<16x1xf32> to vector<16x16xf32>
    %523 = arith.divf %519, %522 : vector<16x16xf32>
    %cst_240 = arith.constant dense<0.000000e+00> : vector<16x8xf32>
    %524 = tpu.matmul %523, %510, %cst_240 {dimension_numbers = #tpu.dot_dimension_numbers<[1], [0], [0], [1], [0, 0, 1, 1], [], []>} : vector<16x16xf32>, vector<16x8xf32>, vector<16x8xf32> -> vector<16x8xf32>
    %525 = vector.extract_strided_slice %496 {offsets = [0, 0], sizes = [8, 32], strides = [1, 1]} : vector<32x32xf32> to vector<8x32xf32>
    %cst_241 = arith.constant dense<0.000000e+00> : vector<16x32xf32>
    %526 = tpu.matmul %524, %525, %cst_241 {dimension_numbers = #tpu.dot_dimension_numbers<[1], [0], [0], [1], [0, 0, 1, 1], [], []>} : vector<16x8xf32>, vector<8x32xf32>, vector<16x32xf32> -> vector<16x32xf32>
    %527 = arith.addf %507, %526 : vector<16x32xf32>
    %528 = vector.extract_strided_slice %501 {offsets = [0, 8], sizes = [16, 8], strides = [1, 1]} : vector<16x32xf32> to vector<16x8xf32>
    %529 = vector.extract_strided_slice %505 {offsets = [0, 8], sizes = [16, 8], strides = [1, 1]} : vector<16x32xf32> to vector<16x8xf32>
    %530 = vector.extract_strided_slice %506 {offsets = [0, 8], sizes = [16, 8], strides = [1, 1]} : vector<16x32xf32> to vector<16x8xf32>
    %cst_242 = arith.constant dense<0.000000e+00> : vector<16x16xf32>
    %531 = tpu.matmul %528, %529, %cst_242 {dimension_numbers = #tpu.dot_dimension_numbers<[1], [1], [0], [0], [0, 0, 1, 0], [], []>} : vector<16x8xf32>, vector<16x8xf32>, vector<16x16xf32> -> vector<16x16xf32>
    %cst_243 = arith.constant 0.353553385 : f32
    %532 = vector.broadcast %cst_243 : f32 to vector<16x16xf32>
    %533 = arith.mulf %531, %532 : vector<16x16xf32>
    %534 = arith.addf %533, %2 : vector<16x16xf32>
    %cst_244 = arith.constant dense<0xFF800000> : vector<16xf32>
    %535 = vector.multi_reduction <maximumf>, %534, %cst_244 [1] : vector<16x16xf32> to vector<16xf32>
    %536 = vector.shape_cast %535 : vector<16xf32> to vector<16x1xf32>
    %537 = vector.broadcast %536 : vector<16x1xf32> to vector<16x16xf32>
    %538 = arith.subf %534, %537 : vector<16x16xf32>
    %539 = math.exp %538 : vector<16x16xf32>
    %cst_245 = arith.constant dense<0.000000e+00> : vector<16xf32>
    %540 = vector.multi_reduction <add>, %539, %cst_245 [1] : vector<16x16xf32> to vector<16xf32>
    %541 = vector.shape_cast %540 : vector<16xf32> to vector<16x1xf32>
    %542 = vector.broadcast %541 : vector<16x1xf32> to vector<16x16xf32>
    %543 = arith.divf %539, %542 : vector<16x16xf32>
    %cst_246 = arith.constant dense<0.000000e+00> : vector<16x8xf32>
    %544 = tpu.matmul %543, %530, %cst_246 {dimension_numbers = #tpu.dot_dimension_numbers<[1], [0], [0], [1], [0, 0, 1, 1], [], []>} : vector<16x16xf32>, vector<16x8xf32>, vector<16x8xf32> -> vector<16x8xf32>
    %545 = vector.extract_strided_slice %496 {offsets = [8, 0], sizes = [8, 32], strides = [1, 1]} : vector<32x32xf32> to vector<8x32xf32>
    %cst_247 = arith.constant dense<0.000000e+00> : vector<16x32xf32>
    %546 = tpu.matmul %544, %545, %cst_247 {dimension_numbers = #tpu.dot_dimension_numbers<[1], [0], [0], [1], [0, 0, 1, 1], [], []>} : vector<16x8xf32>, vector<8x32xf32>, vector<16x32xf32> -> vector<16x32xf32>
    %547 = arith.addf %527, %546 : vector<16x32xf32>
    %548 = vector.extract_strided_slice %501 {offsets = [0, 16], sizes = [16, 8], strides = [1, 1]} : vector<16x32xf32> to vector<16x8xf32>
    %549 = vector.extract_strided_slice %505 {offsets = [0, 16], sizes = [16, 8], strides = [1, 1]} : vector<16x32xf32> to vector<16x8xf32>
    %550 = vector.extract_strided_slice %506 {offsets = [0, 16], sizes = [16, 8], strides = [1, 1]} : vector<16x32xf32> to vector<16x8xf32>
    %cst_248 = arith.constant dense<0.000000e+00> : vector<16x16xf32>
    %551 = tpu.matmul %548, %549, %cst_248 {dimension_numbers = #tpu.dot_dimension_numbers<[1], [1], [0], [0], [0, 0, 1, 0], [], []>} : vector<16x8xf32>, vector<16x8xf32>, vector<16x16xf32> -> vector<16x16xf32>
    %cst_249 = arith.constant 0.353553385 : f32
    %552 = vector.broadcast %cst_249 : f32 to vector<16x16xf32>
    %553 = arith.mulf %551, %552 : vector<16x16xf32>
    %554 = arith.addf %553, %2 : vector<16x16xf32>
    %cst_250 = arith.constant dense<0xFF800000> : vector<16xf32>
    %555 = vector.multi_reduction <maximumf>, %554, %cst_250 [1] : vector<16x16xf32> to vector<16xf32>
    %556 = vector.shape_cast %555 : vector<16xf32> to vector<16x1xf32>
    %557 = vector.broadcast %556 : vector<16x1xf32> to vector<16x16xf32>
    %558 = arith.subf %554, %557 : vector<16x16xf32>
    %559 = math.exp %558 : vector<16x16xf32>
    %cst_251 = arith.constant dense<0.000000e+00> : vector<16xf32>
    %560 = vector.multi_reduction <add>, %559, %cst_251 [1] : vector<16x16xf32> to vector<16xf32>
    %561 = vector.shape_cast %560 : vector<16xf32> to vector<16x1xf32>
    %562 = vector.broadcast %561 : vector<16x1xf32> to vector<16x16xf32>
    %563 = arith.divf %559, %562 : vector<16x16xf32>
    %cst_252 = arith.constant dense<0.000000e+00> : vector<16x8xf32>
    %564 = tpu.matmul %563, %550, %cst_252 {dimension_numbers = #tpu.dot_dimension_numbers<[1], [0], [0], [1], [0, 0, 1, 1], [], []>} : vector<16x16xf32>, vector<16x8xf32>, vector<16x8xf32> -> vector<16x8xf32>
    %565 = vector.extract_strided_slice %496 {offsets = [16, 0], sizes = [8, 32], strides = [1, 1]} : vector<32x32xf32> to vector<8x32xf32>
    %cst_253 = arith.constant dense<0.000000e+00> : vector<16x32xf32>
    %566 = tpu.matmul %564, %565, %cst_253 {dimension_numbers = #tpu.dot_dimension_numbers<[1], [0], [0], [1], [0, 0, 1, 1], [], []>} : vector<16x8xf32>, vector<8x32xf32>, vector<16x32xf32> -> vector<16x32xf32>
    %567 = arith.addf %547, %566 : vector<16x32xf32>
    %568 = vector.extract_strided_slice %501 {offsets = [0, 24], sizes = [16, 8], strides = [1, 1]} : vector<16x32xf32> to vector<16x8xf32>
    %569 = vector.extract_strided_slice %505 {offsets = [0, 24], sizes = [16, 8], strides = [1, 1]} : vector<16x32xf32> to vector<16x8xf32>
    %570 = vector.extract_strided_slice %506 {offsets = [0, 24], sizes = [16, 8], strides = [1, 1]} : vector<16x32xf32> to vector<16x8xf32>
    %cst_254 = arith.constant dense<0.000000e+00> : vector<16x16xf32>
    %571 = tpu.matmul %568, %569, %cst_254 {dimension_numbers = #tpu.dot_dimension_numbers<[1], [1], [0], [0], [0, 0, 1, 0], [], []>} : vector<16x8xf32>, vector<16x8xf32>, vector<16x16xf32> -> vector<16x16xf32>
    %cst_255 = arith.constant 0.353553385 : f32
    %572 = vector.broadcast %cst_255 : f32 to vector<16x16xf32>
    %573 = arith.mulf %571, %572 : vector<16x16xf32>
    %574 = arith.addf %573, %2 : vector<16x16xf32>
    %cst_256 = arith.constant dense<0xFF800000> : vector<16xf32>
    %575 = vector.multi_reduction <maximumf>, %574, %cst_256 [1] : vector<16x16xf32> to vector<16xf32>
    %576 = vector.shape_cast %575 : vector<16xf32> to vector<16x1xf32>
    %577 = vector.broadcast %576 : vector<16x1xf32> to vector<16x16xf32>
    %578 = arith.subf %574, %577 : vector<16x16xf32>
    %579 = math.exp %578 : vector<16x16xf32>
    %cst_257 = arith.constant dense<0.000000e+00> : vector<16xf32>
    %580 = vector.multi_reduction <add>, %579, %cst_257 [1] : vector<16x16xf32> to vector<16xf32>
    %581 = vector.shape_cast %580 : vector<16xf32> to vector<16x1xf32>
    %582 = vector.broadcast %581 : vector<16x1xf32> to vector<16x16xf32>
    %583 = arith.divf %579, %582 : vector<16x16xf32>
    %cst_258 = arith.constant dense<0.000000e+00> : vector<16x8xf32>
    %584 = tpu.matmul %583, %570, %cst_258 {dimension_numbers = #tpu.dot_dimension_numbers<[1], [0], [0], [1], [0, 0, 1, 1], [], []>} : vector<16x16xf32>, vector<16x8xf32>, vector<16x8xf32> -> vector<16x8xf32>
    %585 = vector.extract_strided_slice %496 {offsets = [24, 0], sizes = [8, 32], strides = [1, 1]} : vector<32x32xf32> to vector<8x32xf32>
    %cst_259 = arith.constant dense<0.000000e+00> : vector<16x32xf32>
    %586 = tpu.matmul %584, %585, %cst_259 {dimension_numbers = #tpu.dot_dimension_numbers<[1], [0], [0], [1], [0, 0, 1, 1], [], []>} : vector<16x8xf32>, vector<8x32xf32>, vector<16x32xf32> -> vector<16x32xf32>
    %587 = arith.addf %567, %586 : vector<16x32xf32>
    %588 = vector.broadcast %498 : vector<1x32xf32> to vector<16x32xf32>
    %589 = arith.addf %587, %588 : vector<16x32xf32>
    %590 = arith.addf %486, %589 : vector<16x32xf32>
    %c0_260 = arith.constant 0 : index
    %c0_261 = arith.constant 0 : index
    %c0_262 = arith.constant 0 : index
    %591 = vector.load %arg35[%c0_260, %c0_261, %c0_262] : memref<2x1x32xf32, #tpu.memory_space<vmem>>, vector<1x1x32xf32>
    %592 = vector.shape_cast %591 : vector<1x1x32xf32> to vector<1x32xf32>
    %c0_263 = arith.constant 0 : index
    %c0_264 = arith.constant 0 : index
    %c0_265 = arith.constant 0 : index
    %593 = vector.load %arg36[%c0_263, %c0_264, %c0_265] : memref<2x1x32xf32, #tpu.memory_space<vmem>>, vector<1x1x32xf32>
    %594 = vector.shape_cast %593 : vector<1x1x32xf32> to vector<1x32xf32>
    %cst_266 = arith.constant dense<0.000000e+00> : vector<16xf32>
    %595 = vector.multi_reduction <add>, %590, %cst_266 [1] : vector<16x32xf32> to vector<16xf32>
    %596 = vector.shape_cast %595 : vector<16xf32> to vector<16x1xf32>
    %cst_267 = arith.constant 3.200000e+01 : f32
    %597 = vector.broadcast %cst_267 : f32 to vector<16x1xf32>
    %598 = arith.divf %596, %597 : vector<16x1xf32>
    %599 = vector.broadcast %598 : vector<16x1xf32> to vector<16x32xf32>
    %600 = arith.subf %590, %599 : vector<16x32xf32>
    %601 = arith.mulf %600, %600 : vector<16x32xf32>
    %cst_268 = arith.constant dense<0.000000e+00> : vector<16xf32>
    %602 = vector.multi_reduction <add>, %601, %cst_268 [1] : vector<16x32xf32> to vector<16xf32>
    %603 = vector.shape_cast %602 : vector<16xf32> to vector<16x1xf32>
    %cst_269 = arith.constant 3.200000e+01 : f32
    %604 = vector.broadcast %cst_269 : f32 to vector<16x1xf32>
    %605 = arith.divf %603, %604 : vector<16x1xf32>
    %606 = vector.broadcast %598 : vector<16x1xf32> to vector<16x32xf32>
    %607 = arith.subf %590, %606 : vector<16x32xf32>
    %cst_270 = arith.constant 9.99999974E-6 : f32
    %608 = vector.broadcast %cst_270 : f32 to vector<16x1xf32>
    %609 = arith.addf %605, %608 : vector<16x1xf32>
    %610 = math.rsqrt %609 : vector<16x1xf32>
    %611 = vector.broadcast %610 : vector<16x1xf32> to vector<16x32xf32>
    %612 = arith.mulf %607, %611 : vector<16x32xf32>
    %613 = vector.broadcast %592 : vector<1x32xf32> to vector<16x32xf32>
    %614 = arith.mulf %612, %613 : vector<16x32xf32>
    %615 = vector.broadcast %594 : vector<1x32xf32> to vector<16x32xf32>
    %616 = arith.addf %614, %615 : vector<16x32xf32>
    %c0_271 = arith.constant 0 : index
    %c0_272 = arith.constant 0 : index
    %c0_273 = arith.constant 0 : index
    %617 = vector.load %arg29[%c0_271, %c0_272, %c0_273] : memref<2x32x64xf32, #tpu.memory_space<vmem>>, vector<1x32x64xf32>
    %618 = vector.shape_cast %617 : vector<1x32x64xf32> to vector<32x64xf32>
    %c0_274 = arith.constant 0 : index
    %c0_275 = arith.constant 0 : index
    %c0_276 = arith.constant 0 : index
    %619 = vector.load %arg30[%c0_274, %c0_275, %c0_276] : memref<2x1x64xf32, #tpu.memory_space<vmem>>, vector<1x1x64xf32>
    %620 = vector.shape_cast %619 : vector<1x1x64xf32> to vector<1x64xf32>
    %c0_277 = arith.constant 0 : index
    %c0_278 = arith.constant 0 : index
    %c0_279 = arith.constant 0 : index
    %621 = vector.load %arg31[%c0_277, %c0_278, %c0_279] : memref<2x64x32xf32, #tpu.memory_space<vmem>>, vector<1x64x32xf32>
    %622 = vector.shape_cast %621 : vector<1x64x32xf32> to vector<64x32xf32>
    %c0_280 = arith.constant 0 : index
    %c0_281 = arith.constant 0 : index
    %c0_282 = arith.constant 0 : index
    %623 = vector.load %arg32[%c0_280, %c0_281, %c0_282] : memref<2x1x32xf32, #tpu.memory_space<vmem>>, vector<1x1x32xf32>
    %624 = vector.shape_cast %623 : vector<1x1x32xf32> to vector<1x32xf32>
    %cst_283 = arith.constant dense<0.000000e+00> : vector<16x64xf32>
    %625 = tpu.matmul %616, %618, %cst_283 {dimension_numbers = #tpu.dot_dimension_numbers<[1], [0], [0], [1], [0, 0, 1, 1], [], []>} : vector<16x32xf32>, vector<32x64xf32>, vector<16x64xf32> -> vector<16x64xf32>
    %626 = vector.broadcast %620 : vector<1x64xf32> to vector<16x64xf32>
    %627 = arith.addf %625, %626 : vector<16x64xf32>
    %cst_284 = arith.constant 0.000000e+00 : f32
    %628 = vector.broadcast %cst_284 : f32 to vector<16x64xf32>
    %629 = arith.maximumf %627, %628 : vector<16x64xf32>
    %cst_285 = arith.constant dense<0.000000e+00> : vector<16x32xf32>
    %630 = tpu.matmul %629, %622, %cst_285 {dimension_numbers = #tpu.dot_dimension_numbers<[1], [0], [0], [1], [0, 0, 1, 1], [], []>} : vector<16x64xf32>, vector<64x32xf32>, vector<16x32xf32> -> vector<16x32xf32>
    %631 = vector.broadcast %624 : vector<1x32xf32> to vector<16x32xf32>
    %632 = arith.addf %630, %631 : vector<16x32xf32>
    %633 = arith.addf %616, %632 : vector<16x32xf32>
    %c0_286 = arith.constant 0 : index
    %c0_287 = arith.constant 0 : index
    %c0_288 = arith.constant 0 : index
    %634 = vector.load %arg37[%c0_286, %c0_287, %c0_288] : memref<2x1x32xf32, #tpu.memory_space<vmem>>, vector<1x1x32xf32>
    %635 = vector.shape_cast %634 : vector<1x1x32xf32> to vector<1x32xf32>
    %c0_289 = arith.constant 0 : index
    %c0_290 = arith.constant 0 : index
    %c0_291 = arith.constant 0 : index
    %636 = vector.load %arg38[%c0_289, %c0_290, %c0_291] : memref<2x1x32xf32, #tpu.memory_space<vmem>>, vector<1x1x32xf32>
    %637 = vector.shape_cast %636 : vector<1x1x32xf32> to vector<1x32xf32>
    %cst_292 = arith.constant dense<0.000000e+00> : vector<16xf32>
    %638 = vector.multi_reduction <add>, %633, %cst_292 [1] : vector<16x32xf32> to vector<16xf32>
    %639 = vector.shape_cast %638 : vector<16xf32> to vector<16x1xf32>
    %cst_293 = arith.constant 3.200000e+01 : f32
    %640 = vector.broadcast %cst_293 : f32 to vector<16x1xf32>
    %641 = arith.divf %639, %640 : vector<16x1xf32>
    %642 = vector.broadcast %641 : vector<16x1xf32> to vector<16x32xf32>
    %643 = arith.subf %633, %642 : vector<16x32xf32>
    %644 = arith.mulf %643, %643 : vector<16x32xf32>
    %cst_294 = arith.constant dense<0.000000e+00> : vector<16xf32>
    %645 = vector.multi_reduction <add>, %644, %cst_294 [1] : vector<16x32xf32> to vector<16xf32>
    %646 = vector.shape_cast %645 : vector<16xf32> to vector<16x1xf32>
    %cst_295 = arith.constant 3.200000e+01 : f32
    %647 = vector.broadcast %cst_295 : f32 to vector<16x1xf32>
    %648 = arith.divf %646, %647 : vector<16x1xf32>
    %649 = vector.broadcast %641 : vector<16x1xf32> to vector<16x32xf32>
    %650 = arith.subf %633, %649 : vector<16x32xf32>
    %cst_296 = arith.constant 9.99999974E-6 : f32
    %651 = vector.broadcast %cst_296 : f32 to vector<16x1xf32>
    %652 = arith.addf %648, %651 : vector<16x1xf32>
    %653 = math.rsqrt %652 : vector<16x1xf32>
    %654 = vector.broadcast %653 : vector<16x1xf32> to vector<16x32xf32>
    %655 = arith.mulf %650, %654 : vector<16x32xf32>
    %656 = vector.broadcast %635 : vector<1x32xf32> to vector<16x32xf32>
    %657 = arith.mulf %655, %656 : vector<16x32xf32>
    %658 = vector.broadcast %637 : vector<1x32xf32> to vector<16x32xf32>
    %659 = arith.addf %657, %658 : vector<16x32xf32>
    %c1_297 = arith.constant 1 : index
    %c0_298 = arith.constant 0 : index
    %c0_299 = arith.constant 0 : index
    %660 = vector.load %arg19[%c1_297, %c0_298, %c0_299] : memref<2x32x96xf32, #tpu.memory_space<vmem>>, vector<1x32x96xf32>
    %661 = vector.shape_cast %660 : vector<1x32x96xf32> to vector<32x96xf32>
    %c1_300 = arith.constant 1 : index
    %c0_301 = arith.constant 0 : index
    %c0_302 = arith.constant 0 : index
    %662 = vector.load %arg20[%c1_300, %c0_301, %c0_302] : memref<2x1x96xf32, #tpu.memory_space<vmem>>, vector<1x1x96xf32>
    %663 = vector.shape_cast %662 : vector<1x1x96xf32> to vector<1x96xf32>
    %c1_303 = arith.constant 1 : index
    %c0_304 = arith.constant 0 : index
    %c0_305 = arith.constant 0 : index
    %664 = vector.load %arg21[%c1_303, %c0_304, %c0_305] : memref<2x32x32xf32, #tpu.memory_space<vmem>>, vector<1x32x32xf32>
    %665 = vector.shape_cast %664 : vector<1x32x32xf32> to vector<32x32xf32>
    %c1_306 = arith.constant 1 : index
    %c0_307 = arith.constant 0 : index
    %c0_308 = arith.constant 0 : index
    %666 = vector.load %arg22[%c1_306, %c0_307, %c0_308] : memref<2x1x32xf32, #tpu.memory_space<vmem>>, vector<1x1x32xf32>
    %667 = vector.shape_cast %666 : vector<1x1x32xf32> to vector<1x32xf32>
    %cst_309 = arith.constant dense<0.000000e+00> : vector<16x96xf32>
    %668 = tpu.matmul %659, %661, %cst_309 {dimension_numbers = #tpu.dot_dimension_numbers<[1], [0], [0], [1], [0, 0, 1, 1], [], []>} : vector<16x32xf32>, vector<32x96xf32>, vector<16x96xf32> -> vector<16x96xf32>
    %669 = vector.broadcast %663 : vector<1x96xf32> to vector<16x96xf32>
    %670 = arith.addf %668, %669 : vector<16x96xf32>
    %671 = vector.extract_strided_slice %670 {offsets = [0, 0], sizes = [16, 32], strides = [1, 1]} : vector<16x96xf32> to vector<16x32xf32>
    %672 = vector.extract_strided_slice %670 {offsets = [0, 32], sizes = [16, 32], strides = [1, 1]} : vector<16x96xf32> to vector<16x32xf32>
    %673 = vector.extract_strided_slice %670 {offsets = [0, 64], sizes = [16, 32], strides = [1, 1]} : vector<16x96xf32> to vector<16x32xf32>
    %cst_310 = arith.constant 0.000000e+00 : f32
    %674 = vector.broadcast %cst_310 : f32 to vector<16x32xf32>
    %675 = vector.extract_strided_slice %671 {offsets = [0, 0], sizes = [16, 8], strides = [1, 1]} : vector<16x32xf32> to vector<16x8xf32>
    %676 = vector.extract_strided_slice %672 {offsets = [0, 0], sizes = [16, 8], strides = [1, 1]} : vector<16x32xf32> to vector<16x8xf32>
    %677 = vector.extract_strided_slice %673 {offsets = [0, 0], sizes = [16, 8], strides = [1, 1]} : vector<16x32xf32> to vector<16x8xf32>
    %cst_311 = arith.constant dense<0.000000e+00> : vector<16x16xf32>
    %678 = tpu.matmul %675, %676, %cst_311 {dimension_numbers = #tpu.dot_dimension_numbers<[1], [1], [0], [0], [0, 0, 1, 0], [], []>} : vector<16x8xf32>, vector<16x8xf32>, vector<16x16xf32> -> vector<16x16xf32>
    %cst_312 = arith.constant 0.353553385 : f32
    %679 = vector.broadcast %cst_312 : f32 to vector<16x16xf32>
    %680 = arith.mulf %678, %679 : vector<16x16xf32>
    %681 = arith.addf %680, %1 : vector<16x16xf32>
    %cst_313 = arith.constant dense<0xFF800000> : vector<16xf32>
    %682 = vector.multi_reduction <maximumf>, %681, %cst_313 [1] : vector<16x16xf32> to vector<16xf32>
    %683 = vector.shape_cast %682 : vector<16xf32> to vector<16x1xf32>
    %684 = vector.broadcast %683 : vector<16x1xf32> to vector<16x16xf32>
    %685 = arith.subf %681, %684 : vector<16x16xf32>
    %686 = math.exp %685 : vector<16x16xf32>
    %cst_314 = arith.constant dense<0.000000e+00> : vector<16xf32>
    %687 = vector.multi_reduction <add>, %686, %cst_314 [1] : vector<16x16xf32> to vector<16xf32>
    %688 = vector.shape_cast %687 : vector<16xf32> to vector<16x1xf32>
    %689 = vector.broadcast %688 : vector<16x1xf32> to vector<16x16xf32>
    %690 = arith.divf %686, %689 : vector<16x16xf32>
    %cst_315 = arith.constant dense<0.000000e+00> : vector<16x8xf32>
    %691 = tpu.matmul %690, %677, %cst_315 {dimension_numbers = #tpu.dot_dimension_numbers<[1], [0], [0], [1], [0, 0, 1, 1], [], []>} : vector<16x16xf32>, vector<16x8xf32>, vector<16x8xf32> -> vector<16x8xf32>
    %692 = vector.extract_strided_slice %665 {offsets = [0, 0], sizes = [8, 32], strides = [1, 1]} : vector<32x32xf32> to vector<8x32xf32>
    %cst_316 = arith.constant dense<0.000000e+00> : vector<16x32xf32>
    %693 = tpu.matmul %691, %692, %cst_316 {dimension_numbers = #tpu.dot_dimension_numbers<[1], [0], [0], [1], [0, 0, 1, 1], [], []>} : vector<16x8xf32>, vector<8x32xf32>, vector<16x32xf32> -> vector<16x32xf32>
    %694 = arith.addf %674, %693 : vector<16x32xf32>
    %695 = vector.extract_strided_slice %671 {offsets = [0, 8], sizes = [16, 8], strides = [1, 1]} : vector<16x32xf32> to vector<16x8xf32>
    %696 = vector.extract_strided_slice %672 {offsets = [0, 8], sizes = [16, 8], strides = [1, 1]} : vector<16x32xf32> to vector<16x8xf32>
    %697 = vector.extract_strided_slice %673 {offsets = [0, 8], sizes = [16, 8], strides = [1, 1]} : vector<16x32xf32> to vector<16x8xf32>
    %cst_317 = arith.constant dense<0.000000e+00> : vector<16x16xf32>
    %698 = tpu.matmul %695, %696, %cst_317 {dimension_numbers = #tpu.dot_dimension_numbers<[1], [1], [0], [0], [0, 0, 1, 0], [], []>} : vector<16x8xf32>, vector<16x8xf32>, vector<16x16xf32> -> vector<16x16xf32>
    %cst_318 = arith.constant 0.353553385 : f32
    %699 = vector.broadcast %cst_318 : f32 to vector<16x16xf32>
    %700 = arith.mulf %698, %699 : vector<16x16xf32>
    %701 = arith.addf %700, %1 : vector<16x16xf32>
    %cst_319 = arith.constant dense<0xFF800000> : vector<16xf32>
    %702 = vector.multi_reduction <maximumf>, %701, %cst_319 [1] : vector<16x16xf32> to vector<16xf32>
    %703 = vector.shape_cast %702 : vector<16xf32> to vector<16x1xf32>
    %704 = vector.broadcast %703 : vector<16x1xf32> to vector<16x16xf32>
    %705 = arith.subf %701, %704 : vector<16x16xf32>
    %706 = math.exp %705 : vector<16x16xf32>
    %cst_320 = arith.constant dense<0.000000e+00> : vector<16xf32>
    %707 = vector.multi_reduction <add>, %706, %cst_320 [1] : vector<16x16xf32> to vector<16xf32>
    %708 = vector.shape_cast %707 : vector<16xf32> to vector<16x1xf32>
    %709 = vector.broadcast %708 : vector<16x1xf32> to vector<16x16xf32>
    %710 = arith.divf %706, %709 : vector<16x16xf32>
    %cst_321 = arith.constant dense<0.000000e+00> : vector<16x8xf32>
    %711 = tpu.matmul %710, %697, %cst_321 {dimension_numbers = #tpu.dot_dimension_numbers<[1], [0], [0], [1], [0, 0, 1, 1], [], []>} : vector<16x16xf32>, vector<16x8xf32>, vector<16x8xf32> -> vector<16x8xf32>
    %712 = vector.extract_strided_slice %665 {offsets = [8, 0], sizes = [8, 32], strides = [1, 1]} : vector<32x32xf32> to vector<8x32xf32>
    %cst_322 = arith.constant dense<0.000000e+00> : vector<16x32xf32>
    %713 = tpu.matmul %711, %712, %cst_322 {dimension_numbers = #tpu.dot_dimension_numbers<[1], [0], [0], [1], [0, 0, 1, 1], [], []>} : vector<16x8xf32>, vector<8x32xf32>, vector<16x32xf32> -> vector<16x32xf32>
    %714 = arith.addf %694, %713 : vector<16x32xf32>
    %715 = vector.extract_strided_slice %671 {offsets = [0, 16], sizes = [16, 8], strides = [1, 1]} : vector<16x32xf32> to vector<16x8xf32>
    %716 = vector.extract_strided_slice %672 {offsets = [0, 16], sizes = [16, 8], strides = [1, 1]} : vector<16x32xf32> to vector<16x8xf32>
    %717 = vector.extract_strided_slice %673 {offsets = [0, 16], sizes = [16, 8], strides = [1, 1]} : vector<16x32xf32> to vector<16x8xf32>
    %cst_323 = arith.constant dense<0.000000e+00> : vector<16x16xf32>
    %718 = tpu.matmul %715, %716, %cst_323 {dimension_numbers = #tpu.dot_dimension_numbers<[1], [1], [0], [0], [0, 0, 1, 0], [], []>} : vector<16x8xf32>, vector<16x8xf32>, vector<16x16xf32> -> vector<16x16xf32>
    %cst_324 = arith.constant 0.353553385 : f32
    %719 = vector.broadcast %cst_324 : f32 to vector<16x16xf32>
    %720 = arith.mulf %718, %719 : vector<16x16xf32>
    %721 = arith.addf %720, %1 : vector<16x16xf32>
    %cst_325 = arith.constant dense<0xFF800000> : vector<16xf32>
    %722 = vector.multi_reduction <maximumf>, %721, %cst_325 [1] : vector<16x16xf32> to vector<16xf32>
    %723 = vector.shape_cast %722 : vector<16xf32> to vector<16x1xf32>
    %724 = vector.broadcast %723 : vector<16x1xf32> to vector<16x16xf32>
    %725 = arith.subf %721, %724 : vector<16x16xf32>
    %726 = math.exp %725 : vector<16x16xf32>
    %cst_326 = arith.constant dense<0.000000e+00> : vector<16xf32>
    %727 = vector.multi_reduction <add>, %726, %cst_326 [1] : vector<16x16xf32> to vector<16xf32>
    %728 = vector.shape_cast %727 : vector<16xf32> to vector<16x1xf32>
    %729 = vector.broadcast %728 : vector<16x1xf32> to vector<16x16xf32>
    %730 = arith.divf %726, %729 : vector<16x16xf32>
    %cst_327 = arith.constant dense<0.000000e+00> : vector<16x8xf32>
    %731 = tpu.matmul %730, %717, %cst_327 {dimension_numbers = #tpu.dot_dimension_numbers<[1], [0], [0], [1], [0, 0, 1, 1], [], []>} : vector<16x16xf32>, vector<16x8xf32>, vector<16x8xf32> -> vector<16x8xf32>
    %732 = vector.extract_strided_slice %665 {offsets = [16, 0], sizes = [8, 32], strides = [1, 1]} : vector<32x32xf32> to vector<8x32xf32>
    %cst_328 = arith.constant dense<0.000000e+00> : vector<16x32xf32>
    %733 = tpu.matmul %731, %732, %cst_328 {dimension_numbers = #tpu.dot_dimension_numbers<[1], [0], [0], [1], [0, 0, 1, 1], [], []>} : vector<16x8xf32>, vector<8x32xf32>, vector<16x32xf32> -> vector<16x32xf32>
    %734 = arith.addf %714, %733 : vector<16x32xf32>
    %735 = vector.extract_strided_slice %671 {offsets = [0, 24], sizes = [16, 8], strides = [1, 1]} : vector<16x32xf32> to vector<16x8xf32>
    %736 = vector.extract_strided_slice %672 {offsets = [0, 24], sizes = [16, 8], strides = [1, 1]} : vector<16x32xf32> to vector<16x8xf32>
    %737 = vector.extract_strided_slice %673 {offsets = [0, 24], sizes = [16, 8], strides = [1, 1]} : vector<16x32xf32> to vector<16x8xf32>
    %cst_329 = arith.constant dense<0.000000e+00> : vector<16x16xf32>
    %738 = tpu.matmul %735, %736, %cst_329 {dimension_numbers = #tpu.dot_dimension_numbers<[1], [1], [0], [0], [0, 0, 1, 0], [], []>} : vector<16x8xf32>, vector<16x8xf32>, vector<16x16xf32> -> vector<16x16xf32>
    %cst_330 = arith.constant 0.353553385 : f32
    %739 = vector.broadcast %cst_330 : f32 to vector<16x16xf32>
    %740 = arith.mulf %738, %739 : vector<16x16xf32>
    %741 = arith.addf %740, %1 : vector<16x16xf32>
    %cst_331 = arith.constant dense<0xFF800000> : vector<16xf32>
    %742 = vector.multi_reduction <maximumf>, %741, %cst_331 [1] : vector<16x16xf32> to vector<16xf32>
    %743 = vector.shape_cast %742 : vector<16xf32> to vector<16x1xf32>
    %744 = vector.broadcast %743 : vector<16x1xf32> to vector<16x16xf32>
    %745 = arith.subf %741, %744 : vector<16x16xf32>
    %746 = math.exp %745 : vector<16x16xf32>
    %cst_332 = arith.constant dense<0.000000e+00> : vector<16xf32>
    %747 = vector.multi_reduction <add>, %746, %cst_332 [1] : vector<16x16xf32> to vector<16xf32>
    %748 = vector.shape_cast %747 : vector<16xf32> to vector<16x1xf32>
    %749 = vector.broadcast %748 : vector<16x1xf32> to vector<16x16xf32>
    %750 = arith.divf %746, %749 : vector<16x16xf32>
    %cst_333 = arith.constant dense<0.000000e+00> : vector<16x8xf32>
    %751 = tpu.matmul %750, %737, %cst_333 {dimension_numbers = #tpu.dot_dimension_numbers<[1], [0], [0], [1], [0, 0, 1, 1], [], []>} : vector<16x16xf32>, vector<16x8xf32>, vector<16x8xf32> -> vector<16x8xf32>
    %752 = vector.extract_strided_slice %665 {offsets = [24, 0], sizes = [8, 32], strides = [1, 1]} : vector<32x32xf32> to vector<8x32xf32>
    %cst_334 = arith.constant dense<0.000000e+00> : vector<16x32xf32>
    %753 = tpu.matmul %751, %752, %cst_334 {dimension_numbers = #tpu.dot_dimension_numbers<[1], [0], [0], [1], [0, 0, 1, 1], [], []>} : vector<16x8xf32>, vector<8x32xf32>, vector<16x32xf32> -> vector<16x32xf32>
    %754 = arith.addf %734, %753 : vector<16x32xf32>
    %755 = vector.broadcast %667 : vector<1x32xf32> to vector<16x32xf32>
    %756 = arith.addf %754, %755 : vector<16x32xf32>
    %757 = arith.addf %659, %756 : vector<16x32xf32>
    %c1_335 = arith.constant 1 : index
    %c0_336 = arith.constant 0 : index
    %c0_337 = arith.constant 0 : index
    %758 = vector.load %arg33[%c1_335, %c0_336, %c0_337] : memref<2x1x32xf32, #tpu.memory_space<vmem>>, vector<1x1x32xf32>
    %759 = vector.shape_cast %758 : vector<1x1x32xf32> to vector<1x32xf32>
    %c1_338 = arith.constant 1 : index
    %c0_339 = arith.constant 0 : index
    %c0_340 = arith.constant 0 : index
    %760 = vector.load %arg34[%c1_338, %c0_339, %c0_340] : memref<2x1x32xf32, #tpu.memory_space<vmem>>, vector<1x1x32xf32>
    %761 = vector.shape_cast %760 : vector<1x1x32xf32> to vector<1x32xf32>
    %cst_341 = arith.constant dense<0.000000e+00> : vector<16xf32>
    %762 = vector.multi_reduction <add>, %757, %cst_341 [1] : vector<16x32xf32> to vector<16xf32>
    %763 = vector.shape_cast %762 : vector<16xf32> to vector<16x1xf32>
    %cst_342 = arith.constant 3.200000e+01 : f32
    %764 = vector.broadcast %cst_342 : f32 to vector<16x1xf32>
    %765 = arith.divf %763, %764 : vector<16x1xf32>
    %766 = vector.broadcast %765 : vector<16x1xf32> to vector<16x32xf32>
    %767 = arith.subf %757, %766 : vector<16x32xf32>
    %768 = arith.mulf %767, %767 : vector<16x32xf32>
    %cst_343 = arith.constant dense<0.000000e+00> : vector<16xf32>
    %769 = vector.multi_reduction <add>, %768, %cst_343 [1] : vector<16x32xf32> to vector<16xf32>
    %770 = vector.shape_cast %769 : vector<16xf32> to vector<16x1xf32>
    %cst_344 = arith.constant 3.200000e+01 : f32
    %771 = vector.broadcast %cst_344 : f32 to vector<16x1xf32>
    %772 = arith.divf %770, %771 : vector<16x1xf32>
    %773 = vector.broadcast %765 : vector<16x1xf32> to vector<16x32xf32>
    %774 = arith.subf %757, %773 : vector<16x32xf32>
    %cst_345 = arith.constant 9.99999974E-6 : f32
    %775 = vector.broadcast %cst_345 : f32 to vector<16x1xf32>
    %776 = arith.addf %772, %775 : vector<16x1xf32>
    %777 = math.rsqrt %776 : vector<16x1xf32>
    %778 = vector.broadcast %777 : vector<16x1xf32> to vector<16x32xf32>
    %779 = arith.mulf %774, %778 : vector<16x32xf32>
    %780 = vector.broadcast %759 : vector<1x32xf32> to vector<16x32xf32>
    %781 = arith.mulf %779, %780 : vector<16x32xf32>
    %782 = vector.broadcast %761 : vector<1x32xf32> to vector<16x32xf32>
    %783 = arith.addf %781, %782 : vector<16x32xf32>
    %c1_346 = arith.constant 1 : index
    %c0_347 = arith.constant 0 : index
    %c0_348 = arith.constant 0 : index
    %784 = vector.load %arg23[%c1_346, %c0_347, %c0_348] : memref<2x32x32xf32, #tpu.memory_space<vmem>>, vector<1x32x32xf32>
    %785 = vector.shape_cast %784 : vector<1x32x32xf32> to vector<32x32xf32>
    %c1_349 = arith.constant 1 : index
    %c0_350 = arith.constant 0 : index
    %c0_351 = arith.constant 0 : index
    %786 = vector.load %arg24[%c1_349, %c0_350, %c0_351] : memref<2x1x32xf32, #tpu.memory_space<vmem>>, vector<1x1x32xf32>
    %787 = vector.shape_cast %786 : vector<1x1x32xf32> to vector<1x32xf32>
    %c1_352 = arith.constant 1 : index
    %c0_353 = arith.constant 0 : index
    %c0_354 = arith.constant 0 : index
    %788 = vector.load %arg25[%c1_352, %c0_353, %c0_354] : memref<2x32x64xf32, #tpu.memory_space<vmem>>, vector<1x32x64xf32>
    %789 = vector.shape_cast %788 : vector<1x32x64xf32> to vector<32x64xf32>
    %c1_355 = arith.constant 1 : index
    %c0_356 = arith.constant 0 : index
    %c0_357 = arith.constant 0 : index
    %790 = vector.load %arg26[%c1_355, %c0_356, %c0_357] : memref<2x1x64xf32, #tpu.memory_space<vmem>>, vector<1x1x64xf32>
    %791 = vector.shape_cast %790 : vector<1x1x64xf32> to vector<1x64xf32>
    %c1_358 = arith.constant 1 : index
    %c0_359 = arith.constant 0 : index
    %c0_360 = arith.constant 0 : index
    %792 = vector.load %arg27[%c1_358, %c0_359, %c0_360] : memref<2x32x32xf32, #tpu.memory_space<vmem>>, vector<1x32x32xf32>
    %793 = vector.shape_cast %792 : vector<1x32x32xf32> to vector<32x32xf32>
    %c1_361 = arith.constant 1 : index
    %c0_362 = arith.constant 0 : index
    %c0_363 = arith.constant 0 : index
    %794 = vector.load %arg28[%c1_361, %c0_362, %c0_363] : memref<2x1x32xf32, #tpu.memory_space<vmem>>, vector<1x1x32xf32>
    %795 = vector.shape_cast %794 : vector<1x1x32xf32> to vector<1x32xf32>
    %cst_364 = arith.constant dense<0.000000e+00> : vector<16x32xf32>
    %796 = tpu.matmul %783, %785, %cst_364 {dimension_numbers = #tpu.dot_dimension_numbers<[1], [0], [0], [1], [0, 0, 1, 1], [], []>} : vector<16x32xf32>, vector<32x32xf32>, vector<16x32xf32> -> vector<16x32xf32>
    %797 = vector.broadcast %787 : vector<1x32xf32> to vector<16x32xf32>
    %798 = arith.addf %796, %797 : vector<16x32xf32>
    %cst_365 = arith.constant dense<0.000000e+00> : vector<16x64xf32>
    %799 = tpu.matmul %361, %789, %cst_365 {dimension_numbers = #tpu.dot_dimension_numbers<[1], [0], [0], [1], [0, 0, 1, 1], [], []>} : vector<16x32xf32>, vector<32x64xf32>, vector<16x64xf32> -> vector<16x64xf32>
    %800 = vector.broadcast %791 : vector<1x64xf32> to vector<16x64xf32>
    %801 = arith.addf %799, %800 : vector<16x64xf32>
    %802 = vector.extract_strided_slice %801 {offsets = [0, 0], sizes = [16, 32], strides = [1, 1]} : vector<16x64xf32> to vector<16x32xf32>
    %803 = vector.extract_strided_slice %801 {offsets = [0, 32], sizes = [16, 32], strides = [1, 1]} : vector<16x64xf32> to vector<16x32xf32>
    %cst_366 = arith.constant 0.000000e+00 : f32
    %804 = vector.broadcast %cst_366 : f32 to vector<16x32xf32>
    %805 = vector.extract_strided_slice %798 {offsets = [0, 0], sizes = [16, 8], strides = [1, 1]} : vector<16x32xf32> to vector<16x8xf32>
    %806 = vector.extract_strided_slice %802 {offsets = [0, 0], sizes = [16, 8], strides = [1, 1]} : vector<16x32xf32> to vector<16x8xf32>
    %807 = vector.extract_strided_slice %803 {offsets = [0, 0], sizes = [16, 8], strides = [1, 1]} : vector<16x32xf32> to vector<16x8xf32>
    %cst_367 = arith.constant dense<0.000000e+00> : vector<16x16xf32>
    %808 = tpu.matmul %805, %806, %cst_367 {dimension_numbers = #tpu.dot_dimension_numbers<[1], [1], [0], [0], [0, 0, 1, 0], [], []>} : vector<16x8xf32>, vector<16x8xf32>, vector<16x16xf32> -> vector<16x16xf32>
    %cst_368 = arith.constant 0.353553385 : f32
    %809 = vector.broadcast %cst_368 : f32 to vector<16x16xf32>
    %810 = arith.mulf %808, %809 : vector<16x16xf32>
    %811 = arith.addf %810, %2 : vector<16x16xf32>
    %cst_369 = arith.constant dense<0xFF800000> : vector<16xf32>
    %812 = vector.multi_reduction <maximumf>, %811, %cst_369 [1] : vector<16x16xf32> to vector<16xf32>
    %813 = vector.shape_cast %812 : vector<16xf32> to vector<16x1xf32>
    %814 = vector.broadcast %813 : vector<16x1xf32> to vector<16x16xf32>
    %815 = arith.subf %811, %814 : vector<16x16xf32>
    %816 = math.exp %815 : vector<16x16xf32>
    %cst_370 = arith.constant dense<0.000000e+00> : vector<16xf32>
    %817 = vector.multi_reduction <add>, %816, %cst_370 [1] : vector<16x16xf32> to vector<16xf32>
    %818 = vector.shape_cast %817 : vector<16xf32> to vector<16x1xf32>
    %819 = vector.broadcast %818 : vector<16x1xf32> to vector<16x16xf32>
    %820 = arith.divf %816, %819 : vector<16x16xf32>
    %cst_371 = arith.constant dense<0.000000e+00> : vector<16x8xf32>
    %821 = tpu.matmul %820, %807, %cst_371 {dimension_numbers = #tpu.dot_dimension_numbers<[1], [0], [0], [1], [0, 0, 1, 1], [], []>} : vector<16x16xf32>, vector<16x8xf32>, vector<16x8xf32> -> vector<16x8xf32>
    %822 = vector.extract_strided_slice %793 {offsets = [0, 0], sizes = [8, 32], strides = [1, 1]} : vector<32x32xf32> to vector<8x32xf32>
    %cst_372 = arith.constant dense<0.000000e+00> : vector<16x32xf32>
    %823 = tpu.matmul %821, %822, %cst_372 {dimension_numbers = #tpu.dot_dimension_numbers<[1], [0], [0], [1], [0, 0, 1, 1], [], []>} : vector<16x8xf32>, vector<8x32xf32>, vector<16x32xf32> -> vector<16x32xf32>
    %824 = arith.addf %804, %823 : vector<16x32xf32>
    %825 = vector.extract_strided_slice %798 {offsets = [0, 8], sizes = [16, 8], strides = [1, 1]} : vector<16x32xf32> to vector<16x8xf32>
    %826 = vector.extract_strided_slice %802 {offsets = [0, 8], sizes = [16, 8], strides = [1, 1]} : vector<16x32xf32> to vector<16x8xf32>
    %827 = vector.extract_strided_slice %803 {offsets = [0, 8], sizes = [16, 8], strides = [1, 1]} : vector<16x32xf32> to vector<16x8xf32>
    %cst_373 = arith.constant dense<0.000000e+00> : vector<16x16xf32>
    %828 = tpu.matmul %825, %826, %cst_373 {dimension_numbers = #tpu.dot_dimension_numbers<[1], [1], [0], [0], [0, 0, 1, 0], [], []>} : vector<16x8xf32>, vector<16x8xf32>, vector<16x16xf32> -> vector<16x16xf32>
    %cst_374 = arith.constant 0.353553385 : f32
    %829 = vector.broadcast %cst_374 : f32 to vector<16x16xf32>
    %830 = arith.mulf %828, %829 : vector<16x16xf32>
    %831 = arith.addf %830, %2 : vector<16x16xf32>
    %cst_375 = arith.constant dense<0xFF800000> : vector<16xf32>
    %832 = vector.multi_reduction <maximumf>, %831, %cst_375 [1] : vector<16x16xf32> to vector<16xf32>
    %833 = vector.shape_cast %832 : vector<16xf32> to vector<16x1xf32>
    %834 = vector.broadcast %833 : vector<16x1xf32> to vector<16x16xf32>
    %835 = arith.subf %831, %834 : vector<16x16xf32>
    %836 = math.exp %835 : vector<16x16xf32>
    %cst_376 = arith.constant dense<0.000000e+00> : vector<16xf32>
    %837 = vector.multi_reduction <add>, %836, %cst_376 [1] : vector<16x16xf32> to vector<16xf32>
    %838 = vector.shape_cast %837 : vector<16xf32> to vector<16x1xf32>
    %839 = vector.broadcast %838 : vector<16x1xf32> to vector<16x16xf32>
    %840 = arith.divf %836, %839 : vector<16x16xf32>
    %cst_377 = arith.constant dense<0.000000e+00> : vector<16x8xf32>
    %841 = tpu.matmul %840, %827, %cst_377 {dimension_numbers = #tpu.dot_dimension_numbers<[1], [0], [0], [1], [0, 0, 1, 1], [], []>} : vector<16x16xf32>, vector<16x8xf32>, vector<16x8xf32> -> vector<16x8xf32>
    %842 = vector.extract_strided_slice %793 {offsets = [8, 0], sizes = [8, 32], strides = [1, 1]} : vector<32x32xf32> to vector<8x32xf32>
    %cst_378 = arith.constant dense<0.000000e+00> : vector<16x32xf32>
    %843 = tpu.matmul %841, %842, %cst_378 {dimension_numbers = #tpu.dot_dimension_numbers<[1], [0], [0], [1], [0, 0, 1, 1], [], []>} : vector<16x8xf32>, vector<8x32xf32>, vector<16x32xf32> -> vector<16x32xf32>
    %844 = arith.addf %824, %843 : vector<16x32xf32>
    %845 = vector.extract_strided_slice %798 {offsets = [0, 16], sizes = [16, 8], strides = [1, 1]} : vector<16x32xf32> to vector<16x8xf32>
    %846 = vector.extract_strided_slice %802 {offsets = [0, 16], sizes = [16, 8], strides = [1, 1]} : vector<16x32xf32> to vector<16x8xf32>
    %847 = vector.extract_strided_slice %803 {offsets = [0, 16], sizes = [16, 8], strides = [1, 1]} : vector<16x32xf32> to vector<16x8xf32>
    %cst_379 = arith.constant dense<0.000000e+00> : vector<16x16xf32>
    %848 = tpu.matmul %845, %846, %cst_379 {dimension_numbers = #tpu.dot_dimension_numbers<[1], [1], [0], [0], [0, 0, 1, 0], [], []>} : vector<16x8xf32>, vector<16x8xf32>, vector<16x16xf32> -> vector<16x16xf32>
    %cst_380 = arith.constant 0.353553385 : f32
    %849 = vector.broadcast %cst_380 : f32 to vector<16x16xf32>
    %850 = arith.mulf %848, %849 : vector<16x16xf32>
    %851 = arith.addf %850, %2 : vector<16x16xf32>
    %cst_381 = arith.constant dense<0xFF800000> : vector<16xf32>
    %852 = vector.multi_reduction <maximumf>, %851, %cst_381 [1] : vector<16x16xf32> to vector<16xf32>
    %853 = vector.shape_cast %852 : vector<16xf32> to vector<16x1xf32>
    %854 = vector.broadcast %853 : vector<16x1xf32> to vector<16x16xf32>
    %855 = arith.subf %851, %854 : vector<16x16xf32>
    %856 = math.exp %855 : vector<16x16xf32>
    %cst_382 = arith.constant dense<0.000000e+00> : vector<16xf32>
    %857 = vector.multi_reduction <add>, %856, %cst_382 [1] : vector<16x16xf32> to vector<16xf32>
    %858 = vector.shape_cast %857 : vector<16xf32> to vector<16x1xf32>
    %859 = vector.broadcast %858 : vector<16x1xf32> to vector<16x16xf32>
    %860 = arith.divf %856, %859 : vector<16x16xf32>
    %cst_383 = arith.constant dense<0.000000e+00> : vector<16x8xf32>
    %861 = tpu.matmul %860, %847, %cst_383 {dimension_numbers = #tpu.dot_dimension_numbers<[1], [0], [0], [1], [0, 0, 1, 1], [], []>} : vector<16x16xf32>, vector<16x8xf32>, vector<16x8xf32> -> vector<16x8xf32>
    %862 = vector.extract_strided_slice %793 {offsets = [16, 0], sizes = [8, 32], strides = [1, 1]} : vector<32x32xf32> to vector<8x32xf32>
    %cst_384 = arith.constant dense<0.000000e+00> : vector<16x32xf32>
    %863 = tpu.matmul %861, %862, %cst_384 {dimension_numbers = #tpu.dot_dimension_numbers<[1], [0], [0], [1], [0, 0, 1, 1], [], []>} : vector<16x8xf32>, vector<8x32xf32>, vector<16x32xf32> -> vector<16x32xf32>
    %864 = arith.addf %844, %863 : vector<16x32xf32>
    %865 = vector.extract_strided_slice %798 {offsets = [0, 24], sizes = [16, 8], strides = [1, 1]} : vector<16x32xf32> to vector<16x8xf32>
    %866 = vector.extract_strided_slice %802 {offsets = [0, 24], sizes = [16, 8], strides = [1, 1]} : vector<16x32xf32> to vector<16x8xf32>
    %867 = vector.extract_strided_slice %803 {offsets = [0, 24], sizes = [16, 8], strides = [1, 1]} : vector<16x32xf32> to vector<16x8xf32>
    %cst_385 = arith.constant dense<0.000000e+00> : vector<16x16xf32>
    %868 = tpu.matmul %865, %866, %cst_385 {dimension_numbers = #tpu.dot_dimension_numbers<[1], [1], [0], [0], [0, 0, 1, 0], [], []>} : vector<16x8xf32>, vector<16x8xf32>, vector<16x16xf32> -> vector<16x16xf32>
    %cst_386 = arith.constant 0.353553385 : f32
    %869 = vector.broadcast %cst_386 : f32 to vector<16x16xf32>
    %870 = arith.mulf %868, %869 : vector<16x16xf32>
    %871 = arith.addf %870, %2 : vector<16x16xf32>
    %cst_387 = arith.constant dense<0xFF800000> : vector<16xf32>
    %872 = vector.multi_reduction <maximumf>, %871, %cst_387 [1] : vector<16x16xf32> to vector<16xf32>
    %873 = vector.shape_cast %872 : vector<16xf32> to vector<16x1xf32>
    %874 = vector.broadcast %873 : vector<16x1xf32> to vector<16x16xf32>
    %875 = arith.subf %871, %874 : vector<16x16xf32>
    %876 = math.exp %875 : vector<16x16xf32>
    %cst_388 = arith.constant dense<0.000000e+00> : vector<16xf32>
    %877 = vector.multi_reduction <add>, %876, %cst_388 [1] : vector<16x16xf32> to vector<16xf32>
    %878 = vector.shape_cast %877 : vector<16xf32> to vector<16x1xf32>
    %879 = vector.broadcast %878 : vector<16x1xf32> to vector<16x16xf32>
    %880 = arith.divf %876, %879 : vector<16x16xf32>
    %cst_389 = arith.constant dense<0.000000e+00> : vector<16x8xf32>
    %881 = tpu.matmul %880, %867, %cst_389 {dimension_numbers = #tpu.dot_dimension_numbers<[1], [0], [0], [1], [0, 0, 1, 1], [], []>} : vector<16x16xf32>, vector<16x8xf32>, vector<16x8xf32> -> vector<16x8xf32>
    %882 = vector.extract_strided_slice %793 {offsets = [24, 0], sizes = [8, 32], strides = [1, 1]} : vector<32x32xf32> to vector<8x32xf32>
    %cst_390 = arith.constant dense<0.000000e+00> : vector<16x32xf32>
    %883 = tpu.matmul %881, %882, %cst_390 {dimension_numbers = #tpu.dot_dimension_numbers<[1], [0], [0], [1], [0, 0, 1, 1], [], []>} : vector<16x8xf32>, vector<8x32xf32>, vector<16x32xf32> -> vector<16x32xf32>
    %884 = arith.addf %864, %883 : vector<16x32xf32>
    %885 = vector.broadcast %795 : vector<1x32xf32> to vector<16x32xf32>
    %886 = arith.addf %884, %885 : vector<16x32xf32>
    %887 = arith.addf %783, %886 : vector<16x32xf32>
    %c1_391 = arith.constant 1 : index
    %c0_392 = arith.constant 0 : index
    %c0_393 = arith.constant 0 : index
    %888 = vector.load %arg35[%c1_391, %c0_392, %c0_393] : memref<2x1x32xf32, #tpu.memory_space<vmem>>, vector<1x1x32xf32>
    %889 = vector.shape_cast %888 : vector<1x1x32xf32> to vector<1x32xf32>
    %c1_394 = arith.constant 1 : index
    %c0_395 = arith.constant 0 : index
    %c0_396 = arith.constant 0 : index
    %890 = vector.load %arg36[%c1_394, %c0_395, %c0_396] : memref<2x1x32xf32, #tpu.memory_space<vmem>>, vector<1x1x32xf32>
    %891 = vector.shape_cast %890 : vector<1x1x32xf32> to vector<1x32xf32>
    %cst_397 = arith.constant dense<0.000000e+00> : vector<16xf32>
    %892 = vector.multi_reduction <add>, %887, %cst_397 [1] : vector<16x32xf32> to vector<16xf32>
    %893 = vector.shape_cast %892 : vector<16xf32> to vector<16x1xf32>
    %cst_398 = arith.constant 3.200000e+01 : f32
    %894 = vector.broadcast %cst_398 : f32 to vector<16x1xf32>
    %895 = arith.divf %893, %894 : vector<16x1xf32>
    %896 = vector.broadcast %895 : vector<16x1xf32> to vector<16x32xf32>
    %897 = arith.subf %887, %896 : vector<16x32xf32>
    %898 = arith.mulf %897, %897 : vector<16x32xf32>
    %cst_399 = arith.constant dense<0.000000e+00> : vector<16xf32>
    %899 = vector.multi_reduction <add>, %898, %cst_399 [1] : vector<16x32xf32> to vector<16xf32>
    %900 = vector.shape_cast %899 : vector<16xf32> to vector<16x1xf32>
    %cst_400 = arith.constant 3.200000e+01 : f32
    %901 = vector.broadcast %cst_400 : f32 to vector<16x1xf32>
    %902 = arith.divf %900, %901 : vector<16x1xf32>
    %903 = vector.broadcast %895 : vector<16x1xf32> to vector<16x32xf32>
    %904 = arith.subf %887, %903 : vector<16x32xf32>
    %cst_401 = arith.constant 9.99999974E-6 : f32
    %905 = vector.broadcast %cst_401 : f32 to vector<16x1xf32>
    %906 = arith.addf %902, %905 : vector<16x1xf32>
    %907 = math.rsqrt %906 : vector<16x1xf32>
    %908 = vector.broadcast %907 : vector<16x1xf32> to vector<16x32xf32>
    %909 = arith.mulf %904, %908 : vector<16x32xf32>
    %910 = vector.broadcast %889 : vector<1x32xf32> to vector<16x32xf32>
    %911 = arith.mulf %909, %910 : vector<16x32xf32>
    %912 = vector.broadcast %891 : vector<1x32xf32> to vector<16x32xf32>
    %913 = arith.addf %911, %912 : vector<16x32xf32>
    %c1_402 = arith.constant 1 : index
    %c0_403 = arith.constant 0 : index
    %c0_404 = arith.constant 0 : index
    %914 = vector.load %arg29[%c1_402, %c0_403, %c0_404] : memref<2x32x64xf32, #tpu.memory_space<vmem>>, vector<1x32x64xf32>
    %915 = vector.shape_cast %914 : vector<1x32x64xf32> to vector<32x64xf32>
    %c1_405 = arith.constant 1 : index
    %c0_406 = arith.constant 0 : index
    %c0_407 = arith.constant 0 : index
    %916 = vector.load %arg30[%c1_405, %c0_406, %c0_407] : memref<2x1x64xf32, #tpu.memory_space<vmem>>, vector<1x1x64xf32>
    %917 = vector.shape_cast %916 : vector<1x1x64xf32> to vector<1x64xf32>
    %c1_408 = arith.constant 1 : index
    %c0_409 = arith.constant 0 : index
    %c0_410 = arith.constant 0 : index
    %918 = vector.load %arg31[%c1_408, %c0_409, %c0_410] : memref<2x64x32xf32, #tpu.memory_space<vmem>>, vector<1x64x32xf32>
    %919 = vector.shape_cast %918 : vector<1x64x32xf32> to vector<64x32xf32>
    %c1_411 = arith.constant 1 : index
    %c0_412 = arith.constant 0 : index
    %c0_413 = arith.constant 0 : index
    %920 = vector.load %arg32[%c1_411, %c0_412, %c0_413] : memref<2x1x32xf32, #tpu.memory_space<vmem>>, vector<1x1x32xf32>
    %921 = vector.shape_cast %920 : vector<1x1x32xf32> to vector<1x32xf32>
    %cst_414 = arith.constant dense<0.000000e+00> : vector<16x64xf32>
    %922 = tpu.matmul %913, %915, %cst_414 {dimension_numbers = #tpu.dot_dimension_numbers<[1], [0], [0], [1], [0, 0, 1, 1], [], []>} : vector<16x32xf32>, vector<32x64xf32>, vector<16x64xf32> -> vector<16x64xf32>
    %923 = vector.broadcast %917 : vector<1x64xf32> to vector<16x64xf32>
    %924 = arith.addf %922, %923 : vector<16x64xf32>
    %cst_415 = arith.constant 0.000000e+00 : f32
    %925 = vector.broadcast %cst_415 : f32 to vector<16x64xf32>
    %926 = arith.maximumf %924, %925 : vector<16x64xf32>
    %cst_416 = arith.constant dense<0.000000e+00> : vector<16x32xf32>
    %927 = tpu.matmul %926, %919, %cst_416 {dimension_numbers = #tpu.dot_dimension_numbers<[1], [0], [0], [1], [0, 0, 1, 1], [], []>} : vector<16x64xf32>, vector<64x32xf32>, vector<16x32xf32> -> vector<16x32xf32>
    %928 = vector.broadcast %921 : vector<1x32xf32> to vector<16x32xf32>
    %929 = arith.addf %927, %928 : vector<16x32xf32>
    %930 = arith.addf %913, %929 : vector<16x32xf32>
    %c1_417 = arith.constant 1 : index
    %c0_418 = arith.constant 0 : index
    %c0_419 = arith.constant 0 : index
    %931 = vector.load %arg37[%c1_417, %c0_418, %c0_419] : memref<2x1x32xf32, #tpu.memory_space<vmem>>, vector<1x1x32xf32>
    %932 = vector.shape_cast %931 : vector<1x1x32xf32> to vector<1x32xf32>
    %c1_420 = arith.constant 1 : index
    %c0_421 = arith.constant 0 : index
    %c0_422 = arith.constant 0 : index
    %933 = vector.load %arg38[%c1_420, %c0_421, %c0_422] : memref<2x1x32xf32, #tpu.memory_space<vmem>>, vector<1x1x32xf32>
    %934 = vector.shape_cast %933 : vector<1x1x32xf32> to vector<1x32xf32>
    %cst_423 = arith.constant dense<0.000000e+00> : vector<16xf32>
    %935 = vector.multi_reduction <add>, %930, %cst_423 [1] : vector<16x32xf32> to vector<16xf32>
    %936 = vector.shape_cast %935 : vector<16xf32> to vector<16x1xf32>
    %cst_424 = arith.constant 3.200000e+01 : f32
    %937 = vector.broadcast %cst_424 : f32 to vector<16x1xf32>
    %938 = arith.divf %936, %937 : vector<16x1xf32>
    %939 = vector.broadcast %938 : vector<16x1xf32> to vector<16x32xf32>
    %940 = arith.subf %930, %939 : vector<16x32xf32>
    %941 = arith.mulf %940, %940 : vector<16x32xf32>
    %cst_425 = arith.constant dense<0.000000e+00> : vector<16xf32>
    %942 = vector.multi_reduction <add>, %941, %cst_425 [1] : vector<16x32xf32> to vector<16xf32>
    %943 = vector.shape_cast %942 : vector<16xf32> to vector<16x1xf32>
    %cst_426 = arith.constant 3.200000e+01 : f32
    %944 = vector.broadcast %cst_426 : f32 to vector<16x1xf32>
    %945 = arith.divf %943, %944 : vector<16x1xf32>
    %946 = vector.broadcast %938 : vector<16x1xf32> to vector<16x32xf32>
    %947 = arith.subf %930, %946 : vector<16x32xf32>
    %cst_427 = arith.constant 9.99999974E-6 : f32
    %948 = vector.broadcast %cst_427 : f32 to vector<16x1xf32>
    %949 = arith.addf %945, %948 : vector<16x1xf32>
    %950 = math.rsqrt %949 : vector<16x1xf32>
    %951 = vector.broadcast %950 : vector<16x1xf32> to vector<16x32xf32>
    %952 = arith.mulf %947, %951 : vector<16x32xf32>
    %953 = vector.broadcast %932 : vector<1x32xf32> to vector<16x32xf32>
    %954 = arith.mulf %952, %953 : vector<16x32xf32>
    %955 = vector.broadcast %934 : vector<1x32xf32> to vector<16x32xf32>
    %956 = arith.addf %954, %955 : vector<16x32xf32>
    %c0_428 = arith.constant 0 : index
    %c0_429 = arith.constant 0 : index
    %957 = vector.load %arg39[%c0_428, %c0_429] : memref<1x32xf32, #tpu.memory_space<vmem>>, vector<1x32xf32>
    %c0_430 = arith.constant 0 : index
    %c0_431 = arith.constant 0 : index
    %958 = vector.load %arg40[%c0_430, %c0_431] : memref<1x32xf32, #tpu.memory_space<vmem>>, vector<1x32xf32>
    %cst_432 = arith.constant dense<0.000000e+00> : vector<16xf32>
    %959 = vector.multi_reduction <add>, %956, %cst_432 [1] : vector<16x32xf32> to vector<16xf32>
    %960 = vector.shape_cast %959 : vector<16xf32> to vector<16x1xf32>
    %cst_433 = arith.constant 3.200000e+01 : f32
    %961 = vector.broadcast %cst_433 : f32 to vector<16x1xf32>
    %962 = arith.divf %960, %961 : vector<16x1xf32>
    %963 = vector.broadcast %962 : vector<16x1xf32> to vector<16x32xf32>
    %964 = arith.subf %956, %963 : vector<16x32xf32>
    %965 = arith.mulf %964, %964 : vector<16x32xf32>
    %cst_434 = arith.constant dense<0.000000e+00> : vector<16xf32>
    %966 = vector.multi_reduction <add>, %965, %cst_434 [1] : vector<16x32xf32> to vector<16xf32>
    %967 = vector.shape_cast %966 : vector<16xf32> to vector<16x1xf32>
    %cst_435 = arith.constant 3.200000e+01 : f32
    %968 = vector.broadcast %cst_435 : f32 to vector<16x1xf32>
    %969 = arith.divf %967, %968 : vector<16x1xf32>
    %970 = vector.broadcast %962 : vector<16x1xf32> to vector<16x32xf32>
    %971 = arith.subf %956, %970 : vector<16x32xf32>
    %cst_436 = arith.constant 9.99999974E-6 : f32
    %972 = vector.broadcast %cst_436 : f32 to vector<16x1xf32>
    %973 = arith.addf %969, %972 : vector<16x1xf32>
    %974 = math.rsqrt %973 : vector<16x1xf32>
    %975 = vector.broadcast %974 : vector<16x1xf32> to vector<16x32xf32>
    %976 = arith.mulf %971, %975 : vector<16x32xf32>
    %977 = vector.broadcast %957 : vector<1x32xf32> to vector<16x32xf32>
    %978 = arith.mulf %976, %977 : vector<16x32xf32>
    %979 = vector.broadcast %958 : vector<1x32xf32> to vector<16x32xf32>
    %980 = arith.addf %978, %979 : vector<16x32xf32>
    %c0_437 = arith.constant 0 : index
    %c0_438 = arith.constant 0 : index
    %981 = vector.load %arg41[%c0_437, %c0_438] : memref<16x32xf32, #tpu.memory_space<vmem>>, vector<16x32xf32>
    tpu.vector_store %arg41[%c0_437, %c0_438], %980 {strides = array<i32>} : memref<16x32xf32, #tpu.memory_space<vmem>>, vector<16x32xf32>,
    return
  }
}

</mosaic_0001>

<llo_original>
// kernel: tpu_custom_call.1
$region0: #{tpu_custom_call.1}
  #allocation0 [shape = 'u32[]', space=smem, size = 0x4, offset = 0x4, fixed_abs, tag = 'smem constant byte address 0x4 - core index']
  #allocation1 [shape = 'u32[144,128]{1,0:T(1,128)}', space=vmem, size = 0x12000, scoped, tag = 'internal scratch']
  %s0 = inlined_call_operand.smem [shape: u32[42], index: -1, kind: input, shape index: {}]
  %s1 = sld [smem:[%s0]]
  %s2 = scalar_lea.smem %s0, 1
  %s3 = sld [smem:[%s2]]
  %s4 = scalar_lea.smem %s0, 2
  %s5 = sld [smem:[%s4]]
  %s6 = scalar_lea.smem %s0, 3
  %s7 = sld [smem:[%s6]]
  %s8 = scalar_lea.smem %s0, 4
  %s9 = sld [smem:[%s8]]
  %s10 = scalar_lea.smem %s0, 5
  %s11 = sld [smem:[%s10]]
  %s12 = scalar_lea.smem %s0, 6
  %s13 = sld [smem:[%s12]]
  %s14 = scalar_lea.smem %s0, 7
  %s15 = sld [smem:[%s14]]
  %s16 = scalar_lea.smem %s0, 8
  %s17 = sld [smem:[%s16]]
  %s18 = scalar_lea.smem %s0, 9
  %s19 = sld [smem:[%s18]]
  %s20 = scalar_lea.smem %s0, 10
  %s21 = sld [smem:[%s20]]
  %s22 = scalar_lea.smem %s0, 11
  %s23 = sld [smem:[%s22]]
  %s24 = scalar_lea.smem %s0, 12
  %s25 = sld [smem:[%s24]]
  %s26 = scalar_lea.smem %s0, 13
  %s27 = sld [smem:[%s26]]
  %s28 = scalar_lea.smem %s0, 14
  %s29 = sld [smem:[%s28]]
  %s30 = scalar_lea.smem %s0, 15
  %s31 = sld [smem:[%s30]]
  %s32 = scalar_lea.smem %s0, 16
  %s33 = sld [smem:[%s32]]
  %s34 = scalar_lea.smem %s0, 17
  %s35 = sld [smem:[%s34]]
  %s36 = scalar_lea.smem %s0, 18
  %s37 = sld [smem:[%s36]]
  %s38 = scalar_lea.smem %s0, 19
  %s39 = sld [smem:[%s38]]
  %s40 = scalar_lea.smem %s0, 20
  %s41 = sld [smem:[%s40]]
  %s42 = scalar_lea.smem %s0, 21
  %s43 = sld [smem:[%s42]]
  %s44 = scalar_lea.smem %s0, 22
  %s45 = sld [smem:[%s44]]
  %s46 = scalar_lea.smem %s0, 23
  %s47 = sld [smem:[%s46]]
  %s48 = scalar_lea.smem %s0, 24
  %s49 = sld [smem:[%s48]]
  %s50 = scalar_lea.smem %s0, 25
  %s51 = sld [smem:[%s50]]
  %s52 = scalar_lea.smem %s0, 26
  %s53 = sld [smem:[%s52]]
  %s54 = scalar_lea.smem %s0, 27
  %s55 = sld [smem:[%s54]]
  %s56 = scalar_lea.smem %s0, 28
  %s57 = sld [smem:[%s56]]
  %s58 = scalar_lea.smem %s0, 29
  %s59 = sld [smem:[%s58]]
  %s60 = scalar_lea.smem %s0, 30
  %s61 = sld [smem:[%s60]]
  %s62 = scalar_lea.smem %s0, 31
  %s63 = sld [smem:[%s62]]
  %s64 = scalar_lea.smem %s0, 32
  %s65 = sld [smem:[%s64]]
  %s66 = scalar_lea.smem %s0, 33
  %s67 = sld [smem:[%s66]]
  %s68 = scalar_lea.smem %s0, 34
  %s69 = sld [smem:[%s68]]
  %s70 = scalar_lea.smem %s0, 35
  %s71 = sld [smem:[%s70]]
  %s72 = scalar_lea.smem %s0, 36
  %s73 = sld [smem:[%s72]]
  %s74 = scalar_lea.smem %s0, 37
  %s75 = sld [smem:[%s74]]
  %s76 = scalar_lea.smem %s0, 38
  %s77 = sld [smem:[%s76]]
  %s78 = scalar_lea.smem %s0, 39
  %s79 = sld [smem:[%s78]]
  %s80 = scalar_lea.smem %s0, 40
  %s81 = sld [smem:[%s80]]
  %s82 = scalar_lea.smem %s0, 41
  %s83 = sld [smem:[%s82]]
  %s84 = sld [smem:[#allocation0]]
  $region238: #{tpu_custom_call.1} parent=0
    _
  %s86 = ssub.s32 1, %s84
  %s87 = scalar_select 0, %s86, %s84
  $region1: #{tpu_custom_call.1} parent=0
    #allocation2 [shape = 'u8[8192]{0}', space=vmem, size = 0x2000, scoped, tag = 'input window, operand 0, single buffered']
    #allocation3 [shape = 's32[1]{0}', space=sflag, size = 0x4, scoped, tag = 'scoped memory for tpu_custom_call.1']
    #allocation4 [shape = 's32[1]{0}', space=sflag, size = 0x4, scoped, tag = 'scoped memory for tpu_custom_call.1']
    #allocation5 [shape = 'u8[8192]{0}', space=vmem, size = 0x2000, scoped, tag = 'input window, operand 1, single buffered']
    #allocation6 [shape = 's32[1]{0}', space=sflag, size = 0x4, scoped, tag = 'scoped memory for tpu_custom_call.1']
    #allocation7 [shape = 'u8[8192]{0}', space=vmem, size = 0x2000, scoped, tag = 'input window, operand 2, single buffered']
    #allocation8 [shape = 'u8[8192]{0}', space=vmem, size = 0x2000, scoped, tag = 'input window, operand 3, single buffered']
    #allocation9 [shape = 's32[1]{0}', space=sflag, size = 0x4, scoped, tag = 'scoped memory for tpu_custom_call.1']
    #allocation10 [shape = 'u8[8192]{0}', space=vmem, size = 0x2000, scoped, tag = 'input window, operand 4, single buffered']
    #allocation11 [shape = 'u8[1024]{0}', space=vmem, size = 0x400, scoped, tag = 'input window, operand 10, single buffered']
    #allocation12 [shape = 's32[1]{0}', space=sflag, size = 0x4, scoped, tag = 'scoped memory for tpu_custom_call.1']
    #allocation13 [shape = 'u8[1024]{0}', space=vmem, size = 0x400, scoped, tag = 'input window, operand 12, single buffered']
    #allocation14 [shape = 'u8[1024]{0}', space=vmem, size = 0x400, scoped, tag = 'input window, operand 13, single buffered']
    #allocation15 [shape = 's32[1]{0}', space=sflag, size = 0x4, scoped, tag = 'scoped memory for tpu_custom_call.1']
    #allocation16 [shape = 'u8[1024]{0}', space=vmem, size = 0x400, scoped, tag = 'input window, operand 14, single buffered']
    #allocation17 [shape = 'u8[1024]{0}', space=vmem, size = 0x400, scoped, tag = 'input window, operand 15, single buffered']
    #allocation18 [shape = 's32[1]{0}', space=sflag, size = 0x4, scoped, tag = 'scoped memory for tpu_custom_call.1']
    #allocation19 [shape = 'u8[1024]{0}', space=vmem, size = 0x400, scoped, tag = 'input window, operand 16, single buffered']
    #allocation20 [shape = 'u8[512]{0}', space=vmem, size = 0x400, scoped, tag = 'input window, operand 17, single buffered']
    #allocation21 [shape = 's32[1]{0}', space=sflag, size = 0x4, scoped, tag = 'scoped memory for tpu_custom_call.1']
    #allocation22 [shape = 'u8[512]{0}', space=vmem, size = 0x400, scoped, tag = 'input window, operand 18, single buffered']
    #allocation23 [shape = 'u8[32768]{0}', space=vmem, size = 0x8000, scoped, tag = 'input window, operand 25, single buffered']
    #allocation24 [shape = 's32[1]{0}', space=sflag, size = 0x4, scoped, tag = 'scoped memory for tpu_custom_call.1']
    #allocation25 [shape = 'u8[32768]{0}', space=vmem, size = 0x8000, scoped, tag = 'input window, operand 27, single buffered']
    #allocation26 [shape = 'u8[32768]{0}', space=vmem, size = 0x8000, scoped, tag = 'input window, operand 29, single buffered']
    #allocation27 [shape = 's32[1]{0}', space=sflag, size = 0x4, scoped, tag = 'scoped memory for tpu_custom_call.1']
    #allocation28 [shape = 'u8[8192]{0}', space=vmem, size = 0x2000, scoped, tag = 'output window, operand 0, single buffered']
    %88 = vsyncpa [#allocation3], 0
    %89 = vsyncpa [#allocation6], 0
    %90 = vsyncpa [#allocation9], 0
    %91 = vsyncpa [#allocation12], 0
    %92 = vsyncpa [#allocation15], 0
    %93 = vsyncpa [#allocation18], 0
    %94 = vsyncpa [#allocation21], 0
    %95 = vsyncpa [#allocation24], 0
    %96 = vsyncpa [#allocation27], 0
    %97 = vsyncpa [#allocation4], 0
    // Predicated region
    $region2: #{tpu_custom_call.1} parent=1 // pred_check
      _
    $region3: #{tpu_custom_call.1} parent=1 // pred_check_branch
      %99 = sbr.rel (0) target = $region5
    $region4: #{tpu_custom_call.1} parent=1 // pred_region
      %s101 = ssub.s32 256, 256
      %102 = vsyncadd [#allocation3], %s101
      %s103 = sshll.u32 [#allocation2], 4
      %s104 = int_to_ptr.vmem [resolvable:$true] %s103
      %109 = dma.hbm_to_vmem [thread:$0]  %s1, 256, %s104, [#allocation3], 128, 128, 8
    $region5: #{tpu_custom_call.1} parent=1 // pred_fallthru
      _
    // Predicated region
    $region6: #{tpu_custom_call.1} parent=1 // pred_check
      _
    $region7: #{tpu_custom_call.1} parent=1 // pred_check_branch
      %111 = sbr.rel (0) target = $region9
    $region8: #{tpu_custom_call.1} parent=1 // pred_region
      %s113 = ssub.s32 256, 256
      %114 = vsyncadd [#allocation6], %s113
      %s115 = sshll.u32 [#allocation5], 4
      %s116 = int_to_ptr.vmem [resolvable:$true] %s115
      %121 = dma.hbm_to_vmem [thread:$0]  %s3, 256, %s116, [#allocation6], 128, 128, 8
    $region9: #{tpu_custom_call.1} parent=1 // pred_fallthru
      _
    // Predicated region
    $region10: #{tpu_custom_call.1} parent=1 // pred_check
      _
    $region11: #{tpu_custom_call.1} parent=1 // pred_check_branch
      %123 = sbr.rel (0) target = $region13
    $region12: #{tpu_custom_call.1} parent=1 // pred_region
      %s125 = ssub.s32 256, 256
      %126 = vsyncadd [#allocation6], %s125
      %s127 = sshll.u32 [#allocation7], 4
      %s128 = int_to_ptr.vmem [resolvable:$true] %s127
      %133 = dma.hbm_to_vmem [thread:$0]  %s5, 256, %s128, [#allocation6], 128, 128, 8
    $region13: #{tpu_custom_call.1} parent=1 // pred_fallthru
      _
    // Predicated region
    $region14: #{tpu_custom_call.1} parent=1 // pred_check
      _
    $region15: #{tpu_custom_call.1} parent=1 // pred_check_branch
      %135 = sbr.rel (0) target = $region17
    $region16: #{tpu_custom_call.1} parent=1 // pred_region
      %s137 = ssub.s32 256, 256
      %138 = vsyncadd [#allocation9], %s137
      %s139 = sshll.u32 [#allocation8], 4
      %s140 = int_to_ptr.vmem [resolvable:$true] %s139
      %145 = dma.hbm_to_vmem [thread:$0]  %s7, 256, %s140, [#allocation9], 128, 128, 8
    $region17: #{tpu_custom_call.1} parent=1 // pred_fallthru
      _
    // Predicated region
    $region18: #{tpu_custom_call.1} parent=1 // pred_check
      _
    $region19: #{tpu_custom_call.1} parent=1 // pred_check_branch
      %147 = sbr.rel (0) target = $region21
    $region20: #{tpu_custom_call.1} parent=1 // pred_region
      %s149 = ssub.s32 256, 256
      %150 = vsyncadd [#allocation9], %s149
      %s151 = sshll.u32 [#allocation10], 4
      %s152 = int_to_ptr.vmem [resolvable:$true] %s151
      %157 = dma.hbm_to_vmem [thread:$0]  %s9, 256, %s152, [#allocation9], 128, 128, 8
    $region21: #{tpu_custom_call.1} parent=1 // pred_fallthru
      _
    // Predicated region
    $region22: #{tpu_custom_call.1} parent=1 // pred_check
      _
    $region23: #{tpu_custom_call.1} parent=1 // pred_check_branch
      %159 = sbr.rel (0) target = $region25
    $region24: #{tpu_custom_call.1} parent=1 // pred_region
      _
    $region25: #{tpu_custom_call.1} parent=1 // pred_fallthru
      _
    // Predicated region
    $region26: #{tpu_custom_call.1} parent=1 // pred_check
      _
    $region27: #{tpu_custom_call.1} parent=1 // pred_check_branch
      %161 = sbr.rel (0) target = $region29
    $region28: #{tpu_custom_call.1} parent=1 // pred_region
      _
    $region29: #{tpu_custom_call.1} parent=1 // pred_fallthru
      _
    // Predicated region
    $region30: #{tpu_custom_call.1} parent=1 // pred_check
      _
    $region31: #{tpu_custom_call.1} parent=1 // pred_check_branch
      %163 = sbr.rel (0) target = $region33
    $region32: #{tpu_custom_call.1} parent=1 // pred_region
      _
    $region33: #{tpu_custom_call.1} parent=1 // pred_fallthru
      _
    // Predicated region
    $region34: #{tpu_custom_call.1} parent=1 // pred_check
      _
    $region35: #{tpu_custom_call.1} parent=1 // pred_check_branch
      %165 = sbr.rel (0) target = $region37
    $region36: #{tpu_custom_call.1} parent=1 // pred_region
      _
    $region37: #{tpu_custom_call.1} parent=1 // pred_fallthru
      _
    // Predicated region
    $region38: #{tpu_custom_call.1} parent=1 // pred_check
      _
    $region39: #{tpu_custom_call.1} parent=1 // pred_check_branch
      %167 = sbr.rel (0) target = $region41
    $region40: #{tpu_custom_call.1} parent=1 // pred_region
      _
    $region41: #{tpu_custom_call.1} parent=1 // pred_fallthru
      _
    // Predicated region
    $region42: #{tpu_custom_call.1} parent=1 // pred_check
      _
    $region43: #{tpu_custom_call.1} parent=1 // pred_check_branch
      %169 = sbr.rel (0) target = $region45
    $region44: #{tpu_custom_call.1} parent=1 // pred_region
      %s171 = ssub.s32 32, 32
      %172 = vsyncadd [#allocation12], %s171
      %s173 = sshll.u32 [#allocation11], 4
      %s174 = int_to_ptr.vmem [resolvable:$true] %s173
      %179 = dma.hbm_to_vmem [thread:$0]  %s21, 32, %s174, [#allocation12], 16, 16, 1
    $region45: #{tpu_custom_call.1} parent=1 // pred_fallthru
      _
    // Predicated region
    $region46: #{tpu_custom_call.1} parent=1 // pred_check
      _
    $region47: #{tpu_custom_call.1} parent=1 // pred_check_branch
      %181 = sbr.rel (0) target = $region49
    $region48: #{tpu_custom_call.1} parent=1 // pred_region
      _
    $region49: #{tpu_custom_call.1} parent=1 // pred_fallthru
      _
    // Predicated region
    $region50: #{tpu_custom_call.1} parent=1 // pred_check
      _
    $region51: #{tpu_custom_call.1} parent=1 // pred_check_branch
      %183 = sbr.rel (0) target = $region53
    $region52: #{tpu_custom_call.1} parent=1 // pred_region
      %s185 = ssub.s32 32, 32
      %186 = vsyncadd [#allocation12], %s185
      %s187 = sshll.u32 [#allocation13], 4
      %s188 = int_to_ptr.vmem [resolvable:$true] %s187
      %193 = dma.hbm_to_vmem [thread:$0]  %s25, 32, %s188, [#allocation12], 16, 16, 1
    $region53: #{tpu_custom_call.1} parent=1 // pred_fallthru
      _
    // Predicated region
    $region54: #{tpu_custom_call.1} parent=1 // pred_check
      _
    $region55: #{tpu_custom_call.1} parent=1 // pred_check_branch
      %195 = sbr.rel (0) target = $region57
    $region56: #{tpu_custom_call.1} parent=1 // pred_region
      %s197 = ssub.s32 32, 32
      %198 = vsyncadd [#allocation15], %s197
      %s199 = sshll.u32 [#allocation14], 4
      %s200 = int_to_ptr.vmem [resolvable:$true] %s199
      %205 = dma.hbm_to_vmem [thread:$0]  %s27, 32, %s200, [#allocation15], 16, 16, 1
    $region57: #{tpu_custom_call.1} parent=1 // pred_fallthru
      _
    // Predicated region
    $region58: #{tpu_custom_call.1} parent=1 // pred_check
      _
    $region59: #{tpu_custom_call.1} parent=1 // pred_check_branch
      %207 = sbr.rel (0) target = $region61
    $region60: #{tpu_custom_call.1} parent=1 // pred_region
      %s209 = ssub.s32 32, 32
      %210 = vsyncadd [#allocation15], %s209
      %s211 = sshll.u32 [#allocation16], 4
      %s212 = int_to_ptr.vmem [resolvable:$true] %s211
      %217 = dma.hbm_to_vmem [thread:$0]  %s29, 32, %s212, [#allocation15], 16, 16, 1
    $region61: #{tpu_custom_call.1} parent=1 // pred_fallthru
      _
    // Predicated region
    $region62: #{tpu_custom_call.1} parent=1 // pred_check
      _
    $region63: #{tpu_custom_call.1} parent=1 // pred_check_branch
      %219 = sbr.rel (0) target = $region65
    $region64: #{tpu_custom_call.1} parent=1 // pred_region
      %s221 = ssub.s32 32, 32
      %222 = vsyncadd [#allocation18], %s221
      %s223 = sshll.u32 [#allocation17], 4
      %s224 = int_to_ptr.vmem [resolvable:$true] %s223
      %229 = dma.hbm_to_vmem [thread:$0]  %s31, 32, %s224, [#allocation18], 16, 16, 1
    $region65: #{tpu_custom_call.1} parent=1 // pred_fallthru
      _
    // Predicated region
    $region66: #{tpu_custom_call.1} parent=1 // pred_check
      _
    $region67: #{tpu_custom_call.1} parent=1 // pred_check_branch
      %231 = sbr.rel (0) target = $region69
    $region68: #{tpu_custom_call.1} parent=1 // pred_region
      %s233 = ssub.s32 32, 32
      %234 = vsyncadd [#allocation18], %s233
      %s235 = sshll.u32 [#allocation19], 4
      %s236 = int_to_ptr.vmem [resolvable:$true] %s235
      %241 = dma.hbm_to_vmem [thread:$0]  %s33, 32, %s236, [#allocation18], 16, 16, 1
    $region69: #{tpu_custom_call.1} parent=1 // pred_fallthru
      _
    // Predicated region
    $region70: #{tpu_custom_call.1} parent=1 // pred_check
      _
    $region71: #{tpu_custom_call.1} parent=1 // pred_check_branch
      %243 = sbr.rel (0) target = $region73
    $region72: #{tpu_custom_call.1} parent=1 // pred_region
      %s245 = ssub.s32 16, 16
      %246 = vsyncadd [#allocation21], %s245
      %s248 = sshll.u32 [#allocation20], 4
      %s249 = int_to_ptr.vmem [resolvable:$true] %s248
      %251 = dma.hbm_to_vmem [thread:$0]  %s35, 16, %s249, [#allocation21]
    $region73: #{tpu_custom_call.1} parent=1 // pred_fallthru
      _
    // Predicated region
    $region74: #{tpu_custom_call.1} parent=1 // pred_check
      _
    $region75: #{tpu_custom_call.1} parent=1 // pred_check_branch
      %253 = sbr.rel (0) target = $region77
    $region76: #{tpu_custom_call.1} parent=1 // pred_region
      %s255 = ssub.s32 16, 16
      %256 = vsyncadd [#allocation21], %s255
      %s258 = sshll.u32 [#allocation22], 4
      %s259 = int_to_ptr.vmem [resolvable:$true] %s258
      %261 = dma.hbm_to_vmem [thread:$0]  %s37, 16, %s259, [#allocation21]
    $region77: #{tpu_custom_call.1} parent=1 // pred_fallthru
      _
    // Predicated region
    $region78: #{tpu_custom_call.1} parent=1 // pred_check
      _
    $region79: #{tpu_custom_call.1} parent=1 // pred_check_branch
      %263 = sbr.rel (0) target = $region81
    $region80: #{tpu_custom_call.1} parent=1 // pred_region
      _
    $region81: #{tpu_custom_call.1} parent=1 // pred_fallthru
      _
    // Predicated region
    $region82: #{tpu_custom_call.1} parent=1 // pred_check
      _
    $region83: #{tpu_custom_call.1} parent=1 // pred_check_branch
      %265 = sbr.rel (0) target = $region85
    $region84: #{tpu_custom_call.1} parent=1 // pred_region
      _
    $region85: #{tpu_custom_call.1} parent=1 // pred_fallthru
      _
    // Predicated region
    $region86: #{tpu_custom_call.1} parent=1 // pred_check
      _
    $region87: #{tpu_custom_call.1} parent=1 // pred_check_branch
      %267 = sbr.rel (0) target = $region89
    $region88: #{tpu_custom_call.1} parent=1 // pred_region
      _
    $region89: #{tpu_custom_call.1} parent=1 // pred_fallthru
      _
    // Predicated region
    $region90: #{tpu_custom_call.1} parent=1 // pred_check
      _
    $region91: #{tpu_custom_call.1} parent=1 // pred_check_branch
      %269 = sbr.rel (0) target = $region93
    $region92: #{tpu_custom_call.1} parent=1 // pred_region
      _
    $region93: #{tpu_custom_call.1} parent=1 // pred_fallthru
      _
    // Predicated region
    $region94: #{tpu_custom_call.1} parent=1 // pred_check
      _
    $region95: #{tpu_custom_call.1} parent=1 // pred_check_branch
      %271 = sbr.rel (0) target = $region97
    $region96: #{tpu_custom_call.1} parent=1 // pred_region
      _
    $region97: #{tpu_custom_call.1} parent=1 // pred_fallthru
      _
    // Predicated region
    $region98: #{tpu_custom_call.1} parent=1 // pred_check
      _
    $region99: #{tpu_custom_call.1} parent=1 // pred_check_branch
      %273 = sbr.rel (0) target = $region101
    $region100: #{tpu_custom_call.1} parent=1 // pred_region
      _
    $region101: #{tpu_custom_call.1} parent=1 // pred_fallthru
      _
    // Predicated region
    $region102: #{tpu_custom_call.1} parent=1 // pred_check
      _
    $region103: #{tpu_custom_call.1} parent=1 // pred_check_branch
      %275 = sbr.rel (0) target = $region105
    $region104: #{tpu_custom_call.1} parent=1 // pred_region
      %s277 = ssub.s32 1024, 1024
      %278 = vsyncadd [#allocation24], %s277
      %s279 = sshll.u32 [#allocation23], 4
      %s280 = int_to_ptr.vmem [resolvable:$true] %s279
      %285 = dma.hbm_to_vmem [thread:$0]  %s51, 1024, %s280, [#allocation24], 128, 128, 8
    $region105: #{tpu_custom_call.1} parent=1 // pred_fallthru
      _
    // Predicated region
    $region106: #{tpu_custom_call.1} parent=1 // pred_check
      _
    $region107: #{tpu_custom_call.1} parent=1 // pred_check_branch
      %287 = sbr.rel (0) target = $region109
    $region108: #{tpu_custom_call.1} parent=1 // pred_region
      _
    $region109: #{tpu_custom_call.1} parent=1 // pred_fallthru
      _
    // Predicated region
    $region110: #{tpu_custom_call.1} parent=1 // pred_check
      _
    $region111: #{tpu_custom_call.1} parent=1 // pred_check_branch
      %289 = sbr.rel (0) target = $region113
    $region112: #{tpu_custom_call.1} parent=1 // pred_region
      %s291 = ssub.s32 1024, 1024
      %292 = vsyncadd [#allocation24], %s291
      %s293 = sshll.u32 [#allocation25], 4
      %s294 = int_to_ptr.vmem [resolvable:$true] %s293
      %299 = dma.hbm_to_vmem [thread:$0]  %s55, 1024, %s294, [#allocation24], 128, 128, 8
    $region113: #{tpu_custom_call.1} parent=1 // pred_fallthru
      _
    // Predicated region
    $region114: #{tpu_custom_call.1} parent=1 // pred_check
      _
    $region115: #{tpu_custom_call.1} parent=1 // pred_check_branch
      %301 = sbr.rel (0) target = $region117
    $region116: #{tpu_custom_call.1} parent=1 // pred_region
      _
    $region117: #{tpu_custom_call.1} parent=1 // pred_fallthru
      _
    // Predicated region
    $region118: #{tpu_custom_call.1} parent=1 // pred_check
      _
    $region119: #{tpu_custom_call.1} parent=1 // pred_check_branch
      %303 = sbr.rel (0) target = $region121
    $region120: #{tpu_custom_call.1} parent=1 // pred_region
      %s305 = ssub.s32 1024, 1024
      %306 = vsyncadd [#allocation27], %s305
      %s307 = sshll.u32 [#allocation26], 4
      %s308 = int_to_ptr.vmem [resolvable:$true] %s307
      %313 = dma.hbm_to_vmem [thread:$0]  %s59, 1024, %s308, [#allocation27], 128, 128, 8
    $region121: #{tpu_custom_call.1} parent=1 // pred_fallthru
      _
    // Predicated region
    $region122: #{tpu_custom_call.1} parent=1 // pred_check
      _
    $region123: #{tpu_custom_call.1} parent=1 // pred_check_branch
      %315 = sbr.rel (0) target = $region125
    $region124: #{tpu_custom_call.1} parent=1 // pred_region
      _
    $region125: #{tpu_custom_call.1} parent=1 // pred_fallthru
      _
    // Predicated region
    $region126: #{tpu_custom_call.1} parent=1 // pred_check
      _
    $region127: #{tpu_custom_call.1} parent=1 // pred_check_branch
      %317 = sbr.rel (0) target = $region129
    $region128: #{tpu_custom_call.1} parent=1 // pred_region
      _
    $region129: #{tpu_custom_call.1} parent=1 // pred_fallthru
      _
    // Predicated region
    $region130: #{tpu_custom_call.1} parent=1 // pred_check
      _
    $region131: #{tpu_custom_call.1} parent=1 // pred_check_branch
      %319 = sbr.rel (0) target = $region133
    $region132: #{tpu_custom_call.1} parent=1 // pred_region
      _
    $region133: #{tpu_custom_call.1} parent=1 // pred_fallthru
      _
    // Predicated region
    $region134: #{tpu_custom_call.1} parent=1 // pred_check
      _
    $region135: #{tpu_custom_call.1} parent=1 // pred_check_branch
      %321 = sbr.rel (0) target = $region137
    $region136: #{tpu_custom_call.1} parent=1 // pred_region
      _
    $region137: #{tpu_custom_call.1} parent=1 // pred_fallthru
      _
    // Predicated region
    $region138: #{tpu_custom_call.1} parent=1 // pred_check
      _
    $region139: #{tpu_custom_call.1} parent=1 // pred_check_branch
      %323 = sbr.rel (0) target = $region141
    $region140: #{tpu_custom_call.1} parent=1 // pred_region
      _
    $region141: #{tpu_custom_call.1} parent=1 // pred_fallthru
      _
    // Predicated region
    $region142: #{tpu_custom_call.1} parent=1 // pred_check
      _
    $region143: #{tpu_custom_call.1} parent=1 // pred_check_branch
      %325 = sbr.rel (0) target = $region145
    $region144: #{tpu_custom_call.1} parent=1 // pred_region
      _
    $region145: #{tpu_custom_call.1} parent=1 // pred_fallthru
      _
    // Predicated region
    $region146: #{tpu_custom_call.1} parent=1 // pred_check
      _
    $region147: #{tpu_custom_call.1} parent=1 // pred_check_branch
      %327 = sbr.rel (0) target = $region149
    $region148: #{tpu_custom_call.1} parent=1 // pred_region
      _
    $region149: #{tpu_custom_call.1} parent=1 // pred_fallthru
      _
    // Predicated region
    $region150: #{tpu_custom_call.1} parent=1 // pred_check
      _
    $region151: #{tpu_custom_call.1} parent=1 // pred_check_branch
      %329 = sbr.rel (0) target = $region153
    $region152: #{tpu_custom_call.1} parent=1 // pred_region
      _
    $region153: #{tpu_custom_call.1} parent=1 // pred_fallthru
      _
    // Predicated region
    $region154: #{tpu_custom_call.1} parent=1 // pred_check
      _
    $region155: #{tpu_custom_call.1} parent=1 // pred_check_branch
      %331 = sbr.rel (0) target = $region157
    $region156: #{tpu_custom_call.1} parent=1 // pred_region
      _
    $region157: #{tpu_custom_call.1} parent=1 // pred_fallthru
      _
    // Predicated region
    $region158: #{tpu_custom_call.1} parent=1 // pred_check
      _
    $region159: #{tpu_custom_call.1} parent=1 // pred_check_branch
      %333 = sbr.rel (0) target = $region161
    $region160: #{tpu_custom_call.1} parent=1 // pred_region
      _
    $region161: #{tpu_custom_call.1} parent=1 // pred_fallthru
      _
    // Predicated region
    $region162: #{tpu_custom_call.1} parent=1 // pred_check
      _
    $region163: #{tpu_custom_call.1} parent=1 // pred_check_branch
      %335 = sbr.rel (0) target = $region165
    $region164: #{tpu_custom_call.1} parent=1 // pred_region
      _
    $region165: #{tpu_custom_call.1} parent=1 // pred_fallthru
      _
    // Predicated region
    $region166: #{tpu_custom_call.1} parent=1 // pred_check
      _
    $region167: #{tpu_custom_call.1} parent=1 // pred_check_branch
      %337 = sbr.rel (0) target = $region169
    $region168: #{tpu_custom_call.1} parent=1 // pred_region
      %338 = dma.done [#allocation3], 256
    $region169: #{tpu_custom_call.1} parent=1 // pred_fallthru
      _
    // Predicated region
    $region170: #{tpu_custom_call.1} parent=1 // pred_check
      _
    $region171: #{tpu_custom_call.1} parent=1 // pred_check_branch
      %340 = sbr.rel (0) target = $region173
    $region172: #{tpu_custom_call.1} parent=1 // pred_region
      %341 = dma.done [#allocation6], 256
    $region173: #{tpu_custom_call.1} parent=1 // pred_fallthru
      _
    // Predicated region
    $region174: #{tpu_custom_call.1} parent=1 // pred_check
      _
    $region175: #{tpu_custom_call.1} parent=1 // pred_check_branch
      %343 = sbr.rel (0) target = $region177
    $region176: #{tpu_custom_call.1} parent=1 // pred_region
      %344 = dma.done [#allocation6], 256
    $region177: #{tpu_custom_call.1} parent=1 // pred_fallthru
      _
    // Predicated region
    $region178: #{tpu_custom_call.1} parent=1 // pred_check
      _
    $region179: #{tpu_custom_call.1} parent=1 // pred_check_branch
      %346 = sbr.rel (0) target = $region181
    $region180: #{tpu_custom_call.1} parent=1 // pred_region
      %347 = dma.done [#allocation9], 256
    $region181: #{tpu_custom_call.1} parent=1 // pred_fallthru
      _
    // Predicated region
    $region182: #{tpu_custom_call.1} parent=1 // pred_check
      _
    $region183: #{tpu_custom_call.1} parent=1 // pred_check_branch
      %349 = sbr.rel (0) target = $region185
    $region184: #{tpu_custom_call.1} parent=1 // pred_region
      %350 = dma.done [#allocation9], 256
    $region185: #{tpu_custom_call.1} parent=1 // pred_fallthru
      _
    // Predicated region
    $region186: #{tpu_custom_call.1} parent=1 // pred_check
      _
    $region187: #{tpu_custom_call.1} parent=1 // pred_check_branch
      %352 = sbr.rel (0) target = $region189
    $region188: #{tpu_custom_call.1} parent=1 // pred_region
      %353 = dma.done [#allocation12], 32
    $region189: #{tpu_custom_call.1} parent=1 // pred_fallthru
      _
    // Predicated region
    $region190: #{tpu_custom_call.1} parent=1 // pred_check
      _
    $region191: #{tpu_custom_call.1} parent=1 // pred_check_branch
      %355 = sbr.rel (0) target = $region193
    $region192: #{tpu_custom_call.1} parent=1 // pred_region
      %356 = dma.done [#allocation12], 32
    $region193: #{tpu_custom_call.1} parent=1 // pred_fallthru
      _
    // Predicated region
    $region194: #{tpu_custom_call.1} parent=1 // pred_check
      _
    $region195: #{tpu_custom_call.1} parent=1 // pred_check_branch
      %358 = sbr.rel (0) target = $region197
    $region196: #{tpu_custom_call.1} parent=1 // pred_region
      %359 = dma.done [#allocation15], 32
    $region197: #{tpu_custom_call.1} parent=1 // pred_fallthru
      _
    // Predicated region
    $region198: #{tpu_custom_call.1} parent=1 // pred_check
      _
    $region199: #{tpu_custom_call.1} parent=1 // pred_check_branch
      %361 = sbr.rel (0) target = $region201
    $region200: #{tpu_custom_call.1} parent=1 // pred_region
      %362 = dma.done [#allocation15], 32
    $region201: #{tpu_custom_call.1} parent=1 // pred_fallthru
      _
    // Predicated region
    $region202: #{tpu_custom_call.1} parent=1 // pred_check
      _
    $region203: #{tpu_custom_call.1} parent=1 // pred_check_branch
      %364 = sbr.rel (0) target = $region205
    $region204: #{tpu_custom_call.1} parent=1 // pred_region
      %365 = dma.done [#allocation18], 32
    $region205: #{tpu_custom_call.1} parent=1 // pred_fallthru
      _
    // Predicated region
    $region206: #{tpu_custom_call.1} parent=1 // pred_check
      _
    $region207: #{tpu_custom_call.1} parent=1 // pred_check_branch
      %367 = sbr.rel (0) target = $region209
    $region208: #{tpu_custom_call.1} parent=1 // pred_region
      %368 = dma.done [#allocation18], 32
    $region209: #{tpu_custom_call.1} parent=1 // pred_fallthru
      _
    // Predicated region
    $region210: #{tpu_custom_call.1} parent=1 // pred_check
      _
    $region211: #{tpu_custom_call.1} parent=1 // pred_check_branch
      %370 = sbr.rel (0) target = $region213
    $region212: #{tpu_custom_call.1} parent=1 // pred_region
      %371 = dma.done [#allocation21], 16
    $region213: #{tpu_custom_call.1} parent=1 // pred_fallthru
      _
    // Predicated region
    $region214: #{tpu_custom_call.1} parent=1 // pred_check
      _
    $region215: #{tpu_custom_call.1} parent=1 // pred_check_branch
      %373 = sbr.rel (0) target = $region217
    $region216: #{tpu_custom_call.1} parent=1 // pred_region
      %374 = dma.done [#allocation21], 16
    $region217: #{tpu_custom_call.1} parent=1 // pred_fallthru
      _
    // Predicated region
    $region218: #{tpu_custom_call.1} parent=1 // pred_check
      _
    $region219: #{tpu_custom_call.1} parent=1 // pred_check_branch
      %376 = sbr.rel (0) target = $region221
    $region220: #{tpu_custom_call.1} parent=1 // pred_region
      %377 = dma.done [#allocation24], 1024
    $region221: #{tpu_custom_call.1} parent=1 // pred_fallthru
      _
    // Predicated region
    $region222: #{tpu_custom_call.1} parent=1 // pred_check
      _
    $region223: #{tpu_custom_call.1} parent=1 // pred_check_branch
      %379 = sbr.rel (0) target = $region225
    $region224: #{tpu_custom_call.1} parent=1 // pred_region
      %380 = dma.done [#allocation24], 1024
    $region225: #{tpu_custom_call.1} parent=1 // pred_fallthru
      _
    // Predicated region
    $region226: #{tpu_custom_call.1} parent=1 // pred_check
      _
    $region227: #{tpu_custom_call.1} parent=1 // pred_check_branch
      %382 = sbr.rel (0) target = $region229
    $region228: #{tpu_custom_call.1} parent=1 // pred_region
      %383 = dma.done [#allocation27], 1024
    $region229: #{tpu_custom_call.1} parent=1 // pred_fallthru
      _
    %v384 = vld [vmem:[#allocation7] sm:$0xff]
    %v385 = vld [vmem:[#allocation7 + $0x8] sm:$0xff]
    %v386 = vld [vmem:[#allocation8] sm:$0xff]
    %v387 = vld [vmem:[#allocation8 + $0x8] sm:$0xff]
    %v388 = vld [vmem:[#allocation10] sm:$0xff]
    %v389 = vld [vmem:[#allocation10 + $0x8] sm:$0xff]
    %v390 = vld [vmem:[#allocation2] sm:$0xff]
    %v391 = vld [vmem:[#allocation2 + $0x8] sm:$0xff]
    %v392 = vld [vmem:[%s11] sm:$0xff]
    %v393 = vld [vmem:[%s11 + $0x8] sm:$0xff]
    %v394 = vld [vmem:[%s11 + $0x10] sm:$0xff]
    %v395 = vld [vmem:[%s11 + $0x18] sm:$0xff]
    %v396 = vld [vmem:[%s13] sm:$0x1]
    %v397 = vld [vmem:[%s15] sm:$0xff]
    %v398 = vld [vmem:[%s15 + $0x8] sm:$0xff]
    %v399 = vld [vmem:[%s15 + $0x10] sm:$0xff]
    %v400 = vld [vmem:[%s15 + $0x18] sm:$0xff]
    %v401 = vld [vmem:[%s17] sm:$0x1]
    %v403 = vlaneseq
    %v404 = vshrl.u32 %v403, 7
    %v405 = vsub.s32 0, %v404
    %v406 = vrot.slane %v396, %v405
    %vm408 = vcmask 261120
    %v410 = vsel %vm408, %v390, 0
    %v413 = vsel %vm408, %v391, 0
    %415 = vmatprep.subr.mxu0 0.0
    %416 = vmatpush1.msra.mxu0 %v392
    %417 = vmatprep.subr.mxu0 0.0
    %418 = vmatpush1.msra.mxu0 %v393
    %419 = vmatprep.subr.mxu0 0.0
    %420 = vmatpush1.msra.mxu0 %v394
    %421 = vmatprep.subr.mxu0 0.0
    %422 = vmatpush1.msra.mxu0 %v395
    %423 = vmatprep.subr.mxu0 0.0
    %424 = vmatpush1.msra.mxu0 0.0
    %425 = vmatprep.subr.mxu0 0.0
    %426 = vmatpush1.msra.mxu0 0.0
    %427 = vmatprep.subr.mxu0 0.0
    %428 = vmatpush1.msra.mxu0 0.0
    %429 = vmatprep.subr.mxu0 0.0
    %430 = vmatpush1.msra.mxu0 0.0
    %431 = vmatprep.subr.mxu0 0.0
    %432 = vmatpush1.msra.mxu0 0.0
    %433 = vmatprep.subr.mxu0 0.0
    %434 = vmatpush1.msra.mxu0 0.0
    %435 = vmatprep.subr.mxu0 0.0
    %436 = vmatpush1.msra.mxu0 0.0
    %437 = vmatprep.subr.mxu0 0.0
    %438 = vmatpush1.msra.mxu0 0.0
    %439 = vmatprep.subr.mxu0 0.0
    %440 = vmatpush1.msra.mxu0 0.0
    %441 = vmatprep.subr.mxu0 0.0
    %442 = vmatpush1.msra.mxu0 0.0
    %443 = vmatprep.subr.mxu0 0.0
    %444 = vmatpush1.msra.mxu0 0.0
    %445 = vmatprep.subr.mxu0 0.0
    %446 = vmatpush1.msra.mxu0 0.0
    %447 = vmatprep.subr.mxu0 0.0
    %448 = vmatpush1.msra.mxu0 0.0
    %449 = vmatprep.subr.mxu0 0.0
    %450 = vmatpush1.msra.mxu0 0.0
    %451 = vmatprep.subr.mxu0 0.0
    %452 = vmatpush1.msra.mxu0 0.0
    %453 = vmatprep.subr.mxu0 0.0
    %454 = vmatpush1.msra.mxu0 0.0
    %455 = vmatprep.subr.mxu0 0.0
    %456 = vmatpush1.msra.mxu0 0.0
    %457 = vmatprep.subr.mxu0 0.0
    %458 = vmatpush1.msra.mxu0 0.0
    %459 = vmatprep.subr.mxu0 0.0
    %460 = vmatpush1.msra.mxu0 0.0
    %461 = vmatprep.subr.mxu0 0.0
    %462 = vmatpush1.msra.mxu0 0.0
    %463 = vmatprep.subr.mxu0 0.0
    %464 = vmatpush1.msra.mxu0 0.0
    %465 = vmatprep.subr.mxu0 0.0
    %466 = vmatpush1.msra.mxu0 0.0
    %467 = vmatprep.subr.mxu0 0.0
    %468 = vmatpush1.msra.mxu0 0.0
    %469 = vmatprep.subr.mxu0 0.0
    %470 = vmatpush1.msra.mxu0 0.0
    %471 = vmatprep.subr.mxu0 0.0
    %472 = vmatpush1.msra.mxu0 0.0
    %473 = vmatprep.subr.mxu0 0.0
    %474 = vmatpush1.msra.mxu0 0.0
    %475 = vmatprep.subr.mxu0 0.0
    %476 = vmatpush1.msra.mxu0 0.0
    %477 = vmatprep.subr.mxu0 0.0
    %478 = vmatpush1.msra.mxu0 0.0
    %479 = vmatprep.mubr.f32.mxu0 0.0
    %480 = vmatmul.mubr.f32.gmra.mrb[0].mxu0 %v410
    %v481 = vpop.f32.mrb[0].mxu0
    %v482 = vadd.f32 %v406, %v481
    %v483 = vpop.f32.mrb[0].mxu0
    %484 = vmatprep.mubr.f32.mxu0 0.0
    %485 = vmatmul.mubr.f32.gmra.mrb[0].mxu0 %v413
    %v486 = vpop.f32.mrb[0].mxu0
    %v487 = vadd.f32 %v406, %v486
    %v488 = vpop.f32.mrb[0].mxu0
    %489 = vdwg.mxu0
    %492 = vrot.lane.b32.xlu0 %v482, 96
    %v493 = vpop.permute.xlu0 %492
    %494 = vrot.lane.b32.xlu0 %v487, 96
    %v495 = vpop.permute.xlu0 %494
    %vm496 = vcmask 64512
    %v497 = vsel %vm496, %v482, 0
    %v499 = vsel %vm496, %v487, 0
    %v501 = vsel %vm496, %v493, 0
    %v503 = vsel %vm496, %v495, 0
    %505 = vmatprep.subr.mxu0 0.0
    %506 = vmatpush1.xpose.msra.mxu0 %v501
    %507 = vmatprep.subr.mxu0 0.0
    %508 = vmatpush1.xpose.msra.mxu0 %v503
    %509 = vmatprep.subr.mxu0 0.0
    %510 = vmatpush1.xpose.msra.mxu0 0.0
    %511 = vmatprep.subr.mxu0 0.0
    %512 = vmatpush1.xpose.msra.mxu0 0.0
    %513 = vmatprep.subr.mxu0 0.0
    %514 = vmatpush1.xpose.msra.mxu0 0.0
    %515 = vmatprep.subr.mxu0 0.0
    %516 = vmatpush1.xpose.msra.mxu0 0.0
    %517 = vmatprep.subr.mxu0 0.0
    %518 = vmatpush1.xpose.msra.mxu0 0.0
    %519 = vmatprep.subr.mxu0 0.0
    %520 = vmatpush1.xpose.msra.mxu0 0.0
    %521 = vmatprep.subr.mxu0 0.0
    %522 = vmatpush1.xpose.msra.mxu0 0.0
    %523 = vmatprep.subr.mxu0 0.0
    %524 = vmatpush1.xpose.msra.mxu0 0.0
    %525 = vmatprep.subr.mxu0 0.0
    %526 = vmatpush1.xpose.msra.mxu0 0.0
    %527 = vmatprep.subr.mxu0 0.0
    %528 = vmatpush1.xpose.msra.mxu0 0.0
    %529 = vmatprep.subr.mxu0 0.0
    %530 = vmatpush1.xpose.msra.mxu0 0.0
    %531 = vmatprep.subr.mxu0 0.0
    %532 = vmatpush1.xpose.msra.mxu0 0.0
    %533 = vmatprep.subr.mxu0 0.0
    %534 = vmatpush1.xpose.msra.mxu0 0.0
    %535 = vmatprep.subr.mxu0 0.0
    %536 = vmatpush1.xpose.msra.mxu0 0.0
    %537 = vmatprep.subr.mxu0 0.0
    %538 = vmatpush1.xpose.msra.mxu0 0.0
    %539 = vmatprep.subr.mxu0 0.0
    %540 = vmatpush1.xpose.msra.mxu0 0.0
    %541 = vmatprep.subr.mxu0 0.0
    %542 = vmatpush1.xpose.msra.mxu0 0.0
    %543 = vmatprep.subr.mxu0 0.0
    %544 = vmatpush1.xpose.msra.mxu0 0.0
    %545 = vmatprep.subr.mxu0 0.0
    %546 = vmatpush1.xpose.msra.mxu0 0.0
    %547 = vmatprep.subr.mxu0 0.0
    %548 = vmatpush1.xpose.msra.mxu0 0.0
    %549 = vmatprep.subr.mxu0 0.0
    %550 = vmatpush1.xpose.msra.mxu0 0.0
    %551 = vmatprep.subr.mxu0 0.0
    %552 = vmatpush1.xpose.msra.mxu0 0.0
    %553 = vmatprep.subr.mxu0 0.0
    %554 = vmatpush1.xpose.msra.mxu0 0.0
    %555 = vmatprep.subr.mxu0 0.0
    %556 = vmatpush1.xpose.msra.mxu0 0.0
    %557 = vmatprep.subr.mxu0 0.0
    %558 = vmatpush1.xpose.msra.mxu0 0.0
    %559 = vmatprep.subr.mxu0 0.0
    %560 = vmatpush1.xpose.msra.mxu0 0.0
    %561 = vmatprep.subr.mxu0 0.0
    %562 = vmatpush1.xpose.msra.mxu0 0.0
    %563 = vmatprep.subr.mxu0 0.0
    %564 = vmatpush1.xpose.msra.mxu0 0.0
    %565 = vmatprep.subr.mxu0 0.0
    %566 = vmatpush1.xpose.msra.mxu0 0.0
    %567 = vmatprep.subr.mxu0 0.0
    %568 = vmatpush1.xpose.msra.mxu0 0.0
    %569 = vmatprep.mubr.f32.mxu0 0.0
    %570 = vmatmul.mubr.f32.gmra.mrb[0].mxu0 %v497
    %v571 = vpop.f32.mrb[0].mxu0
    %v572 = vadd.f32 0.0, %v571
    %v573 = vpop.f32.mrb[0].mxu0
    %574 = vmatprep.mubr.f32.mxu0 0.0
    %575 = vmatmul.mubr.f32.gmra.mrb[0].mxu0 %v499
    %v576 = vpop.f32.mrb[0].mxu0
    %v577 = vadd.f32 0.0, %v576
    %v578 = vpop.f32.mrb[0].mxu0
    %579 = vdwg.mxu0
    %v580 = vmul.f32 %v572, 0.35355338
    %v581 = vmul.f32 %v577, 0.35355338
    %v582 = vadd.f32 %v580, %v384
    %v583 = vadd.f32 %v581, %v385
    %vm584 = vcmask 130048
    %v585 = vsel %vm584, %v582, -inf
    %586 = vmax.xlane.f32.xlu0 %v585
    %v587 = vpop.xlane.xlu0 %586
    %v588 = vsel %vm584, %v583, -inf
    %589 = vmax.xlane.f32.xlu0 %v588
    %v590 = vpop.xlane.xlu0 %589
    %v591 = vsub.f32 %v582, %v587
    %v592 = vsub.f32 %v583, %v590
    %v593 = vmul.f32 %v591, 1.442695
    %v594 = vpow.pop %v593
    %v595 = vmul.f32 %v592, 1.442695
    %v596 = vpow.pop %v595
    %v597 = vsel %vm584, %v594, 0.0
    %598 = vadd.xlane.f32.xlu0 %v597
    %v599 = vpop.xlane.xlu0 %598
    %v600 = vsel %vm584, %v596, 0.0
    %601 = vadd.xlane.f32.xlu0 %v600
    %v602 = vpop.xlane.xlu0 %601
    %v603 = vrcp.pop %v599
    %v604 = vmul.f32 %v594, %v603
    %v605 = vrcp.pop %v602
    %v606 = vmul.f32 %v596, %v605
    %607 = vrot.lane.b32.xlu0 %v482, 64
    %v608 = vpop.permute.xlu0 %607
    %609 = vrot.lane.b32.xlu0 %v487, 64
    %v610 = vpop.permute.xlu0 %609
    %v614 = vsel %vm584, %v604, 0
    %v617 = vsel %vm584, %v606, 0
    %619 = vmatprep.subr.mxu0 0.0
    %620 = vmatpush1.msra.mxu0 %v608
    %621 = vmatprep.subr.mxu0 0.0
    %622 = vmatpush1.msra.mxu0 %v610
    %623 = vmatprep.subr.mxu0 0.0
    %624 = vmatpush1.msra.mxu0 0.0
    %625 = vmatprep.subr.mxu0 0.0
    %626 = vmatpush1.msra.mxu0 0.0
    %627 = vmatprep.subr.mxu0 0.0
    %628 = vmatpush1.msra.mxu0 0.0
    %629 = vmatprep.subr.mxu0 0.0
    %630 = vmatpush1.msra.mxu0 0.0
    %631 = vmatprep.subr.mxu0 0.0
    %632 = vmatpush1.msra.mxu0 0.0
    %633 = vmatprep.subr.mxu0 0.0
    %634 = vmatpush1.msra.mxu0 0.0
    %635 = vmatprep.subr.mxu0 0.0
    %636 = vmatpush1.msra.mxu0 0.0
    %637 = vmatprep.subr.mxu0 0.0
    %638 = vmatpush1.msra.mxu0 0.0
    %639 = vmatprep.subr.mxu0 0.0
    %640 = vmatpush1.msra.mxu0 0.0
    %641 = vmatprep.subr.mxu0 0.0
    %642 = vmatpush1.msra.mxu0 0.0
    %643 = vmatprep.subr.mxu0 0.0
    %644 = vmatpush1.msra.mxu0 0.0
    %645 = vmatprep.subr.mxu0 0.0
    %646 = vmatpush1.msra.mxu0 0.0
    %647 = vmatprep.subr.mxu0 0.0
    %648 = vmatpush1.msra.mxu0 0.0
    %649 = vmatprep.subr.mxu0 0.0
    %650 = vmatpush1.msra.mxu0 0.0
    %651 = vmatprep.subr.mxu0 0.0
    %652 = vmatpush1.msra.mxu0 0.0
    %653 = vmatprep.subr.mxu0 0.0
    %654 = vmatpush1.msra.mxu0 0.0
    %655 = vmatprep.subr.mxu0 0.0
    %656 = vmatpush1.msra.mxu0 0.0
    %657 = vmatprep.subr.mxu0 0.0
    %658 = vmatpush1.msra.mxu0 0.0
    %659 = vmatprep.subr.mxu0 0.0
    %660 = vmatpush1.msra.mxu0 0.0
    %661 = vmatprep.subr.mxu0 0.0
    %662 = vmatpush1.msra.mxu0 0.0
    %663 = vmatprep.subr.mxu0 0.0
    %664 = vmatpush1.msra.mxu0 0.0
    %665 = vmatprep.subr.mxu0 0.0
    %666 = vmatpush1.msra.mxu0 0.0
    %667 = vmatprep.subr.mxu0 0.0
    %668 = vmatpush1.msra.mxu0 0.0
    %669 = vmatprep.subr.mxu0 0.0
    %670 = vmatpush1.msra.mxu0 0.0
    %671 = vmatprep.subr.mxu0 0.0
    %672 = vmatpush1.msra.mxu0 0.0
    %673 = vmatprep.subr.mxu0 0.0
    %674 = vmatpush1.msra.mxu0 0.0
    %675 = vmatprep.subr.mxu0 0.0
    %676 = vmatpush1.msra.mxu0 0.0
    %677 = vmatprep.subr.mxu0 0.0
    %678 = vmatpush1.msra.mxu0 0.0
    %679 = vmatprep.subr.mxu0 0.0
    %680 = vmatpush1.msra.mxu0 0.0
    %681 = vmatprep.subr.mxu0 0.0
    %682 = vmatpush1.msra.mxu0 0.0
    %683 = vmatprep.mubr.f32.mxu0 0.0
    %684 = vmatmul.mubr.f32.gmra.mrb[0].mxu0 %v614
    %v685 = vpop.f32.mrb[0].mxu0
    %v686 = vadd.f32 0.0, %v685
    %v687 = vpop.f32.mrb[0].mxu0
    %688 = vmatprep.mubr.f32.mxu0 0.0
    %689 = vmatmul.mubr.f32.gmra.mrb[0].mxu0 %v617
    %v690 = vpop.f32.mrb[0].mxu0
    %v691 = vadd.f32 0.0, %v690
    %v692 = vpop.f32.mrb[0].mxu0
    %693 = vdwg.mxu0
    %694 = vrot.lane.b32.xlu0 %v482, 120
    %v695 = vpop.permute.xlu0 %694
    %696 = vrot.lane.b32.xlu0 %v487, 120
    %v697 = vpop.permute.xlu0 %696
    %698 = vrot.lane.b32.xlu0 %v482, 88
    %v699 = vpop.permute.xlu0 %698
    %700 = vrot.lane.b32.xlu0 %v487, 88
    %v701 = vpop.permute.xlu0 %700
    %v702 = vsel %vm496, %v695, 0
    %v704 = vsel %vm496, %v697, 0
    %v706 = vsel %vm496, %v699, 0
    %v708 = vsel %vm496, %v701, 0
    %710 = vmatprep.subr.mxu0 0.0
    %711 = vmatpush1.xpose.msra.mxu0 %v706
    %712 = vmatprep.subr.mxu0 0.0
    %713 = vmatpush1.xpose.msra.mxu0 %v708
    %714 = vmatprep.subr.mxu0 0.0
    %715 = vmatpush1.xpose.msra.mxu0 0.0
    %716 = vmatprep.subr.mxu0 0.0
    %717 = vmatpush1.xpose.msra.mxu0 0.0
    %718 = vmatprep.subr.mxu0 0.0
    %719 = vmatpush1.xpose.msra.mxu0 0.0
    %720 = vmatprep.subr.mxu0 0.0
    %721 = vmatpush1.xpose.msra.mxu0 0.0
    %722 = vmatprep.subr.mxu0 0.0
    %723 = vmatpush1.xpose.msra.mxu0 0.0
    %724 = vmatprep.subr.mxu0 0.0
    %725 = vmatpush1.xpose.msra.mxu0 0.0
    %726 = vmatprep.subr.mxu0 0.0
    %727 = vmatpush1.xpose.msra.mxu0 0.0
    %728 = vmatprep.subr.mxu0 0.0
    %729 = vmatpush1.xpose.msra.mxu0 0.0
    %730 = vmatprep.subr.mxu0 0.0
    %731 = vmatpush1.xpose.msra.mxu0 0.0
    %732 = vmatprep.subr.mxu0 0.0
    %733 = vmatpush1.xpose.msra.mxu0 0.0
    %734 = vmatprep.subr.mxu0 0.0
    %735 = vmatpush1.xpose.msra.mxu0 0.0
    %736 = vmatprep.subr.mxu0 0.0
    %737 = vmatpush1.xpose.msra.mxu0 0.0
    %738 = vmatprep.subr.mxu0 0.0
    %739 = vmatpush1.xpose.msra.mxu0 0.0
    %740 = vmatprep.subr.mxu0 0.0
    %741 = vmatpush1.xpose.msra.mxu0 0.0
    %742 = vmatprep.subr.mxu0 0.0
    %743 = vmatpush1.xpose.msra.mxu0 0.0
    %744 = vmatprep.subr.mxu0 0.0
    %745 = vmatpush1.xpose.msra.mxu0 0.0
    %746 = vmatprep.subr.mxu0 0.0
    %747 = vmatpush1.xpose.msra.mxu0 0.0
    %748 = vmatprep.subr.mxu0 0.0
    %749 = vmatpush1.xpose.msra.mxu0 0.0
    %750 = vmatprep.subr.mxu0 0.0
    %751 = vmatpush1.xpose.msra.mxu0 0.0
    %752 = vmatprep.subr.mxu0 0.0
    %753 = vmatpush1.xpose.msra.mxu0 0.0
    %754 = vmatprep.subr.mxu0 0.0
    %755 = vmatpush1.xpose.msra.mxu0 0.0
    %756 = vmatprep.subr.mxu0 0.0
    %757 = vmatpush1.xpose.msra.mxu0 0.0
    %758 = vmatprep.subr.mxu0 0.0
    %759 = vmatpush1.xpose.msra.mxu0 0.0
    %760 = vmatprep.subr.mxu0 0.0
    %761 = vmatpush1.xpose.msra.mxu0 0.0
    %762 = vmatprep.subr.mxu0 0.0
    %763 = vmatpush1.xpose.msra.mxu0 0.0
    %764 = vmatprep.subr.mxu0 0.0
    %765 = vmatpush1.xpose.msra.mxu0 0.0
    %766 = vmatprep.subr.mxu0 0.0
    %767 = vmatpush1.xpose.msra.mxu0 0.0
    %768 = vmatprep.subr.mxu0 0.0
    %769 = vmatpush1.xpose.msra.mxu0 0.0
    %770 = vmatprep.subr.mxu0 0.0
    %771 = vmatpush1.xpose.msra.mxu0 0.0
    %772 = vmatprep.subr.mxu0 0.0
    %773 = vmatpush1.xpose.msra.mxu0 0.0
    %774 = vmatprep.mubr.f32.mxu0 0.0
    %775 = vmatmul.mubr.f32.gmra.mrb[0].mxu0 %v702
    %v776 = vpop.f32.mrb[0].mxu0
    %v777 = vadd.f32 0.0, %v776
    %v778 = vpop.f32.mrb[0].mxu0
    %779 = vmatprep.mubr.f32.mxu0 0.0
    %780 = vmatmul.mubr.f32.gmra.mrb[0].mxu0 %v704
    %v781 = vpop.f32.mrb[0].mxu0
    %v782 = vadd.f32 0.0, %v781
    %v783 = vpop.f32.mrb[0].mxu0
    %784 = vdwg.mxu0
    %v785 = vmul.f32 %v777, 0.35355338
    %v786 = vmul.f32 %v782, 0.35355338
    %v787 = vadd.f32 %v785, %v384
    %v788 = vadd.f32 %v786, %v385
    %v789 = vsel %vm584, %v787, -inf
    %790 = vmax.xlane.f32.xlu0 %v789
    %v791 = vpop.xlane.xlu0 %790
    %v792 = vsel %vm584, %v788, -inf
    %793 = vmax.xlane.f32.xlu0 %v792
    %v794 = vpop.xlane.xlu0 %793
    %v795 = vsub.f32 %v787, %v791
    %v796 = vsub.f32 %v788, %v794
    %v797 = vmul.f32 %v795, 1.442695
    %v798 = vpow.pop %v797
    %v799 = vmul.f32 %v796, 1.442695
    %v800 = vpow.pop %v799
    %v801 = vsel %vm584, %v798, 0.0
    %802 = vadd.xlane.f32.xlu0 %v801
    %v803 = vpop.xlane.xlu0 %802
    %v804 = vsel %vm584, %v800, 0.0
    %805 = vadd.xlane.f32.xlu0 %v804
    %v806 = vpop.xlane.xlu0 %805
    %v807 = vrcp.pop %v803
    %v808 = vmul.f32 %v798, %v807
    %v809 = vrcp.pop %v806
    %v810 = vmul.f32 %v800, %v809
    %811 = vrot.lane.b32.xlu0 %v482, 56
    %v812 = vpop.permute.xlu0 %811
    %813 = vrot.lane.b32.xlu0 %v487, 56
    %v814 = vpop.permute.xlu0 %813
    %v818 = vsel %vm584, %v808, 0
    %v821 = vsel %vm584, %v810, 0
    %823 = vmatprep.subr.mxu0 0.0
    %824 = vmatpush1.msra.mxu0 %v812
    %825 = vmatprep.subr.mxu0 0.0
    %826 = vmatpush1.msra.mxu0 %v814
    %827 = vmatprep.subr.mxu0 0.0
    %828 = vmatpush1.msra.mxu0 0.0
    %829 = vmatprep.subr.mxu0 0.0
    %830 = vmatpush1.msra.mxu0 0.0
    %831 = vmatprep.subr.mxu0 0.0
    %832 = vmatpush1.msra.mxu0 0.0
    %833 = vmatprep.subr.mxu0 0.0
    %834 = vmatpush1.msra.mxu0 0.0
    %835 = vmatprep.subr.mxu0 0.0
    %836 = vmatpush1.msra.mxu0 0.0
    %837 = vmatprep.subr.mxu0 0.0
    %838 = vmatpush1.msra.mxu0 0.0
    %839 = vmatprep.subr.mxu0 0.0
    %840 = vmatpush1.msra.mxu0 0.0
    %841 = vmatprep.subr.mxu0 0.0
    %842 = vmatpush1.msra.mxu0 0.0
    %843 = vmatprep.subr.mxu0 0.0
    %844 = vmatpush1.msra.mxu0 0.0
    %845 = vmatprep.subr.mxu0 0.0
    %846 = vmatpush1.msra.mxu0 0.0
    %847 = vmatprep.subr.mxu0 0.0
    %848 = vmatpush1.msra.mxu0 0.0
    %849 = vmatprep.subr.mxu0 0.0
    %850 = vmatpush1.msra.mxu0 0.0
    %851 = vmatprep.subr.mxu0 0.0
    %852 = vmatpush1.msra.mxu0 0.0
    %853 = vmatprep.subr.mxu0 0.0
    %854 = vmatpush1.msra.mxu0 0.0
    %855 = vmatprep.subr.mxu0 0.0
    %856 = vmatpush1.msra.mxu0 0.0
    %857 = vmatprep.subr.mxu0 0.0
    %858 = vmatpush1.msra.mxu0 0.0
    %859 = vmatprep.subr.mxu0 0.0
    %860 = vmatpush1.msra.mxu0 0.0
    %861 = vmatprep.subr.mxu0 0.0
    %862 = vmatpush1.msra.mxu0 0.0
    %863 = vmatprep.subr.mxu0 0.0
    %864 = vmatpush1.msra.mxu0 0.0
    %865 = vmatprep.subr.mxu0 0.0
    %866 = vmatpush1.msra.mxu0 0.0
    %867 = vmatprep.subr.mxu0 0.0
    %868 = vmatpush1.msra.mxu0 0.0
    %869 = vmatprep.subr.mxu0 0.0
    %870 = vmatpush1.msra.mxu0 0.0
    %871 = vmatprep.subr.mxu0 0.0
    %872 = vmatpush1.msra.mxu0 0.0
    %873 = vmatprep.subr.mxu0 0.0
    %874 = vmatpush1.msra.mxu0 0.0
    %875 = vmatprep.subr.mxu0 0.0
    %876 = vmatpush1.msra.mxu0 0.0
    %877 = vmatprep.subr.mxu0 0.0
    %878 = vmatpush1.msra.mxu0 0.0
    %879 = vmatprep.subr.mxu0 0.0
    %880 = vmatpush1.msra.mxu0 0.0
    %881 = vmatprep.subr.mxu0 0.0
    %882 = vmatpush1.msra.mxu0 0.0
    %883 = vmatprep.subr.mxu0 0.0
    %884 = vmatpush1.msra.mxu0 0.0
    %885 = vmatprep.subr.mxu0 0.0
    %886 = vmatpush1.msra.mxu0 0.0
    %887 = vmatprep.mubr.f32.mxu0 0.0
    %888 = vmatmul.mubr.f32.gmra.mrb[0].mxu0 %v818
    %v889 = vpop.f32.mrb[0].mxu0
    %v890 = vadd.f32 0.0, %v889
    %v891 = vpop.f32.mrb[0].mxu0
    %892 = vmatprep.mubr.f32.mxu0 0.0
    %893 = vmatmul.mubr.f32.gmra.mrb[0].mxu0 %v821
    %v894 = vpop.f32.mrb[0].mxu0
    %v895 = vadd.f32 0.0, %v894
    %v896 = vpop.f32.mrb[0].mxu0
    %897 = vdwg.mxu0
    %v899 = vsel %vm496, %v890, 0
    %v902 = vsel %vm496, %v895, 0
    %904 = vmatprep.subr.mxu0 0.0
    %905 = vmatpush1.msra.mxu0 %v398
    %906 = vmatprep.subr.mxu0 0.0
    %907 = vmatpush1.msra.mxu0 0.0
    %908 = vmatprep.subr.mxu0 0.0
    %909 = vmatpush1.msra.mxu0 0.0
    %910 = vmatprep.subr.mxu0 0.0
    %911 = vmatpush1.msra.mxu0 0.0
    %912 = vmatprep.subr.mxu0 0.0
    %913 = vmatpush1.msra.mxu0 0.0
    %914 = vmatprep.subr.mxu0 0.0
    %915 = vmatpush1.msra.mxu0 0.0
    %916 = vmatprep.subr.mxu0 0.0
    %917 = vmatpush1.msra.mxu0 0.0
    %918 = vmatprep.subr.mxu0 0.0
    %919 = vmatpush1.msra.mxu0 0.0
    %920 = vmatprep.subr.mxu0 0.0
    %921 = vmatpush1.msra.mxu0 0.0
    %922 = vmatprep.subr.mxu0 0.0
    %923 = vmatpush1.msra.mxu0 0.0
    %924 = vmatprep.subr.mxu0 0.0
    %925 = vmatpush1.msra.mxu0 0.0
    %926 = vmatprep.subr.mxu0 0.0
    %927 = vmatpush1.msra.mxu0 0.0
    %928 = vmatprep.subr.mxu0 0.0
    %929 = vmatpush1.msra.mxu0 0.0
    %930 = vmatprep.subr.mxu0 0.0
    %931 = vmatpush1.msra.mxu0 0.0
    %932 = vmatprep.subr.mxu0 0.0
    %933 = vmatpush1.msra.mxu0 0.0
    %934 = vmatprep.subr.mxu0 0.0
    %935 = vmatpush1.msra.mxu0 0.0
    %936 = vmatprep.subr.mxu0 0.0
    %937 = vmatpush1.msra.mxu0 0.0
    %938 = vmatprep.subr.mxu0 0.0
    %939 = vmatpush1.msra.mxu0 0.0
    %940 = vmatprep.subr.mxu0 0.0
    %941 = vmatpush1.msra.mxu0 0.0
    %942 = vmatprep.subr.mxu0 0.0
    %943 = vmatpush1.msra.mxu0 0.0
    %944 = vmatprep.subr.mxu0 0.0
    %945 = vmatpush1.msra.mxu0 0.0
    %946 = vmatprep.subr.mxu0 0.0
    %947 = vmatpush1.msra.mxu0 0.0
    %948 = vmatprep.subr.mxu0 0.0
    %949 = vmatpush1.msra.mxu0 0.0
    %950 = vmatprep.subr.mxu0 0.0
    %951 = vmatpush1.msra.mxu0 0.0
    %952 = vmatprep.subr.mxu0 0.0
    %953 = vmatpush1.msra.mxu0 0.0
    %954 = vmatprep.subr.mxu0 0.0
    %955 = vmatpush1.msra.mxu0 0.0
    %956 = vmatprep.subr.mxu0 0.0
    %957 = vmatpush1.msra.mxu0 0.0
    %958 = vmatprep.subr.mxu0 0.0
    %959 = vmatpush1.msra.mxu0 0.0
    %960 = vmatprep.subr.mxu0 0.0
    %961 = vmatpush1.msra.mxu0 0.0
    %962 = vmatprep.subr.mxu0 0.0
    %963 = vmatpush1.msra.mxu0 0.0
    %964 = vmatprep.subr.mxu0 0.0
    %965 = vmatpush1.msra.mxu0 0.0
    %966 = vmatprep.subr.mxu0 0.0
    %967 = vmatpush1.msra.mxu0 0.0
    %968 = vmatprep.mubr.f32.mxu0 0.0
    %969 = vmatmul.mubr.f32.gmra.mrb[0].mxu0 %v899
    %v970 = vpop.f32.mrb[0].mxu0
    %v971 = vadd.f32 0.0, %v970
    %v972 = vpop.f32.mrb[0].mxu0
    %973 = vmatprep.mubr.f32.mxu0 0.0
    %974 = vmatmul.mubr.f32.gmra.mrb[0].mxu0 %v902
    %v975 = vpop.f32.mrb[0].mxu0
    %v976 = vadd.f32 0.0, %v975
    %v977 = vpop.f32.mrb[0].mxu0
    %978 = vdwg.mxu0
    %v980 = vsel %vm496, %v686, 0
    %v983 = vsel %vm496, %v691, 0
    %985 = vmatprep.subr.mxu0 0.0
    %986 = vmatpush1.msra.mxu0 %v397
    %987 = vmatprep.subr.mxu0 0.0
    %988 = vmatpush1.msra.mxu0 0.0
    %989 = vmatprep.subr.mxu0 0.0
    %990 = vmatpush1.msra.mxu0 0.0
    %991 = vmatprep.subr.mxu0 0.0
    %992 = vmatpush1.msra.mxu0 0.0
    %993 = vmatprep.subr.mxu0 0.0
    %994 = vmatpush1.msra.mxu0 0.0
    %995 = vmatprep.subr.mxu0 0.0
    %996 = vmatpush1.msra.mxu0 0.0
    %997 = vmatprep.subr.mxu0 0.0
    %998 = vmatpush1.msra.mxu0 0.0
    %999 = vmatprep.subr.mxu0 0.0
    %1000 = vmatpush1.msra.mxu0 0.0
    %1001 = vmatprep.subr.mxu0 0.0
    %1002 = vmatpush1.msra.mxu0 0.0
    %1003 = vmatprep.subr.mxu0 0.0
    %1004 = vmatpush1.msra.mxu0 0.0
    %1005 = vmatprep.subr.mxu0 0.0
    %1006 = vmatpush1.msra.mxu0 0.0
    %1007 = vmatprep.subr.mxu0 0.0
    %1008 = vmatpush1.msra.mxu0 0.0
    %1009 = vmatprep.subr.mxu0 0.0
    %1010 = vmatpush1.msra.mxu0 0.0
    %1011 = vmatprep.subr.mxu0 0.0
    %1012 = vmatpush1.msra.mxu0 0.0
    %1013 = vmatprep.subr.mxu0 0.0
    %1014 = vmatpush1.msra.mxu0 0.0
    %1015 = vmatprep.subr.mxu0 0.0
    %1016 = vmatpush1.msra.mxu0 0.0
    %1017 = vmatprep.subr.mxu0 0.0
    %1018 = vmatpush1.msra.mxu0 0.0
    %1019 = vmatprep.subr.mxu0 0.0
    %1020 = vmatpush1.msra.mxu0 0.0
    %1021 = vmatprep.subr.mxu0 0.0
    %1022 = vmatpush1.msra.mxu0 0.0
    %1023 = vmatprep.subr.mxu0 0.0
    %1024 = vmatpush1.msra.mxu0 0.0
    %1025 = vmatprep.subr.mxu0 0.0
    %1026 = vmatpush1.msra.mxu0 0.0
    %1027 = vmatprep.subr.mxu0 0.0
    %1028 = vmatpush1.msra.mxu0 0.0
    %1029 = vmatprep.subr.mxu0 0.0
    %1030 = vmatpush1.msra.mxu0 0.0
    %1031 = vmatprep.subr.mxu0 0.0
    %1032 = vmatpush1.msra.mxu0 0.0
    %1033 = vmatprep.subr.mxu0 0.0
    %1034 = vmatpush1.msra.mxu0 0.0
    %1035 = vmatprep.subr.mxu0 0.0
    %1036 = vmatpush1.msra.mxu0 0.0
    %1037 = vmatprep.subr.mxu0 0.0
    %1038 = vmatpush1.msra.mxu0 0.0
    %1039 = vmatprep.subr.mxu0 0.0
    %1040 = vmatpush1.msra.mxu0 0.0
    %1041 = vmatprep.subr.mxu0 0.0
    %1042 = vmatpush1.msra.mxu0 0.0
    %1043 = vmatprep.subr.mxu0 0.0
    %1044 = vmatpush1.msra.mxu0 0.0
    %1045 = vmatprep.subr.mxu0 0.0
    %1046 = vmatpush1.msra.mxu0 0.0
    %1047 = vmatprep.subr.mxu0 0.0
    %1048 = vmatpush1.msra.mxu0 0.0
    %1049 = vmatprep.mubr.f32.mxu0 0.0
    %1050 = vmatmul.mubr.f32.gmra.mrb[0].mxu0 %v980
    %v1051 = vpop.f32.mrb[0].mxu0
    %v1052 = vadd.f32 %v971, %v1051
    %v1053 = vpop.f32.mrb[0].mxu0
    %1054 = vmatprep.mubr.f32.mxu0 0.0
    %1055 = vmatmul.mubr.f32.gmra.mrb[0].mxu0 %v983
    %v1056 = vpop.f32.mrb[0].mxu0
    %v1057 = vadd.f32 %v976, %v1056
    %v1058 = vpop.f32.mrb[0].mxu0
    %1059 = vdwg.mxu0
    %1060 = vrot.lane.b32.xlu0 %v482, 112
    %v1061 = vpop.permute.xlu0 %1060
    %1062 = vrot.lane.b32.xlu0 %v487, 112
    %v1063 = vpop.permute.xlu0 %1062
    %1064 = vrot.lane.b32.xlu0 %v482, 80
    %v1065 = vpop.permute.xlu0 %1064
    %1066 = vrot.lane.b32.xlu0 %v487, 80
    %v1067 = vpop.permute.xlu0 %1066
    %v1068 = vsel %vm496, %v1061, 0
    %v1070 = vsel %vm496, %v1063, 0
    %v1072 = vsel %vm496, %v1065, 0
    %v1074 = vsel %vm496, %v1067, 0
    %1076 = vmatprep.subr.mxu0 0.0
    %1077 = vmatpush1.xpose.msra.mxu0 %v1072
    %1078 = vmatprep.subr.mxu0 0.0
    %1079 = vmatpush1.xpose.msra.mxu0 %v1074
    %1080 = vmatprep.subr.mxu0 0.0
    %1081 = vmatpush1.xpose.msra.mxu0 0.0
    %1082 = vmatprep.subr.mxu0 0.0
    %1083 = vmatpush1.xpose.msra.mxu0 0.0
    %1084 = vmatprep.subr.mxu0 0.0
    %1085 = vmatpush1.xpose.msra.mxu0 0.0
    %1086 = vmatprep.subr.mxu0 0.0
    %1087 = vmatpush1.xpose.msra.mxu0 0.0
    %1088 = vmatprep.subr.mxu0 0.0
    %1089 = vmatpush1.xpose.msra.mxu0 0.0
    %1090 = vmatprep.subr.mxu0 0.0
    %1091 = vmatpush1.xpose.msra.mxu0 0.0
    %1092 = vmatprep.subr.mxu0 0.0
    %1093 = vmatpush1.xpose.msra.mxu0 0.0
    %1094 = vmatprep.subr.mxu0 0.0
    %1095 = vmatpush1.xpose.msra.mxu0 0.0
    %1096 = vmatprep.subr.mxu0 0.0
    %1097 = vmatpush1.xpose.msra.mxu0 0.0
    %1098 = vmatprep.subr.mxu0 0.0
    %1099 = vmatpush1.xpose.msra.mxu0 0.0
    %1100 = vmatprep.subr.mxu0 0.0
    %1101 = vmatpush1.xpose.msra.mxu0 0.0
    %1102 = vmatprep.subr.mxu0 0.0
    %1103 = vmatpush1.xpose.msra.mxu0 0.0
    %1104 = vmatprep.subr.mxu0 0.0
    %1105 = vmatpush1.xpose.msra.mxu0 0.0
    %1106 = vmatprep.subr.mxu0 0.0
    %1107 = vmatpush1.xpose.msra.mxu0 0.0
    %1108 = vmatprep.subr.mxu0 0.0
    %1109 = vmatpush1.xpose.msra.mxu0 0.0
    %1110 = vmatprep.subr.mxu0 0.0
    %1111 = vmatpush1.xpose.msra.mxu0 0.0
    %1112 = vmatprep.subr.mxu0 0.0
    %1113 = vmatpush1.xpose.msra.mxu0 0.0
    %1114 = vmatprep.subr.mxu0 0.0
    %1115 = vmatpush1.xpose.msra.mxu0 0.0
    %1116 = vmatprep.subr.mxu0 0.0
    %1117 = vmatpush1.xpose.msra.mxu0 0.0
    %1118 = vmatprep.subr.mxu0 0.0
    %1119 = vmatpush1.xpose.msra.mxu0 0.0
    %1120 = vmatprep.subr.mxu0 0.0
    %1121 = vmatpush1.xpose.msra.mxu0 0.0
    %1122 = vmatprep.subr.mxu0 0.0
    %1123 = vmatpush1.xpose.msra.mxu0 0.0
    %1124 = vmatprep.subr.mxu0 0.0
    %1125 = vmatpush1.xpose.msra.mxu0 0.0
    %1126 = vmatprep.subr.mxu0 0.0
    %1127 = vmatpush1.xpose.msra.mxu0 0.0
    %1128 = vmatprep.subr.mxu0 0.0
    %1129 = vmatpush1.xpose.msra.mxu0 0.0
    %1130 = vmatprep.subr.mxu0 0.0
    %1131 = vmatpush1.xpose.msra.mxu0 0.0
    %1132 = vmatprep.subr.mxu0 0.0
    %1133 = vmatpush1.xpose.msra.mxu0 0.0
    %1134 = vmatprep.subr.mxu0 0.0
    %1135 = vmatpush1.xpose.msra.mxu0 0.0
    %1136 = vmatprep.subr.mxu0 0.0
    %1137 = vmatpush1.xpose.msra.mxu0 0.0
    %1138 = vmatprep.subr.mxu0 0.0
    %1139 = vmatpush1.xpose.msra.mxu0 0.0
    %1140 = vmatprep.mubr.f32.mxu0 0.0
    %1141 = vmatmul.mubr.f32.gmra.mrb[0].mxu0 %v1068
    %v1142 = vpop.f32.mrb[0].mxu0
    %v1143 = vadd.f32 0.0, %v1142
    %v1144 = vpop.f32.mrb[0].mxu0
    %1145 = vmatprep.mubr.f32.mxu0 0.0
    %1146 = vmatmul.mubr.f32.gmra.mrb[0].mxu0 %v1070
    %v1147 = vpop.f32.mrb[0].mxu0
    %v1148 = vadd.f32 0.0, %v1147
    %v1149 = vpop.f32.mrb[0].mxu0
    %1150 = vdwg.mxu0
    %v1151 = vmul.f32 %v1143, 0.35355338
    %v1152 = vmul.f32 %v1148, 0.35355338
    %v1153 = vadd.f32 %v1151, %v384
    %v1154 = vadd.f32 %v1152, %v385
    %v1155 = vsel %vm584, %v1153, -inf
    %1156 = vmax.xlane.f32.xlu0 %v1155
    %v1157 = vpop.xlane.xlu0 %1156
    %v1158 = vsel %vm584, %v1154, -inf
    %1159 = vmax.xlane.f32.xlu0 %v1158
    %v1160 = vpop.xlane.xlu0 %1159
    %v1161 = vsub.f32 %v1153, %v1157
    %v1162 = vsub.f32 %v1154, %v1160
    %v1163 = vmul.f32 %v1161, 1.442695
    %v1164 = vpow.pop %v1163
    %v1165 = vmul.f32 %v1162, 1.442695
    %v1166 = vpow.pop %v1165
    %v1167 = vsel %vm584, %v1164, 0.0
    %1168 = vadd.xlane.f32.xlu0 %v1167
    %v1169 = vpop.xlane.xlu0 %1168
    %v1170 = vsel %vm584, %v1166, 0.0
    %1171 = vadd.xlane.f32.xlu0 %v1170
    %v1172 = vpop.xlane.xlu0 %1171
    %v1173 = vrcp.pop %v1169
    %v1174 = vmul.f32 %v1164, %v1173
    %v1175 = vrcp.pop %v1172
    %v1176 = vmul.f32 %v1166, %v1175
    %1177 = vrot.lane.b32.xlu0 %v482, 48
    %v1178 = vpop.permute.xlu0 %1177
    %1179 = vrot.lane.b32.xlu0 %v487, 48
    %v1180 = vpop.permute.xlu0 %1179
    %v1184 = vsel %vm584, %v1174, 0
    %v1187 = vsel %vm584, %v1176, 0
    %1189 = vmatprep.subr.mxu0 0.0
    %1190 = vmatpush1.msra.mxu0 %v1178
    %1191 = vmatprep.subr.mxu0 0.0
    %1192 = vmatpush1.msra.mxu0 %v1180
    %1193 = vmatprep.subr.mxu0 0.0
    %1194 = vmatpush1.msra.mxu0 0.0
    %1195 = vmatprep.subr.mxu0 0.0
    %1196 = vmatpush1.msra.mxu0 0.0
    %1197 = vmatprep.subr.mxu0 0.0
    %1198 = vmatpush1.msra.mxu0 0.0
    %1199 = vmatprep.subr.mxu0 0.0
    %1200 = vmatpush1.msra.mxu0 0.0
    %1201 = vmatprep.subr.mxu0 0.0
    %1202 = vmatpush1.msra.mxu0 0.0
    %1203 = vmatprep.subr.mxu0 0.0
    %1204 = vmatpush1.msra.mxu0 0.0
    %1205 = vmatprep.subr.mxu0 0.0
    %1206 = vmatpush1.msra.mxu0 0.0
    %1207 = vmatprep.subr.mxu0 0.0
    %1208 = vmatpush1.msra.mxu0 0.0
    %1209 = vmatprep.subr.mxu0 0.0
    %1210 = vmatpush1.msra.mxu0 0.0
    %1211 = vmatprep.subr.mxu0 0.0
    %1212 = vmatpush1.msra.mxu0 0.0
    %1213 = vmatprep.subr.mxu0 0.0
    %1214 = vmatpush1.msra.mxu0 0.0
    %1215 = vmatprep.subr.mxu0 0.0
    %1216 = vmatpush1.msra.mxu0 0.0
    %1217 = vmatprep.subr.mxu0 0.0
    %1218 = vmatpush1.msra.mxu0 0.0
    %1219 = vmatprep.subr.mxu0 0.0
    %1220 = vmatpush1.msra.mxu0 0.0
    %1221 = vmatprep.subr.mxu0 0.0
    %1222 = vmatpush1.msra.mxu0 0.0
    %1223 = vmatprep.subr.mxu0 0.0
    %1224 = vmatpush1.msra.mxu0 0.0
    %1225 = vmatprep.subr.mxu0 0.0
    %1226 = vmatpush1.msra.mxu0 0.0
    %1227 = vmatprep.subr.mxu0 0.0
    %1228 = vmatpush1.msra.mxu0 0.0
    %1229 = vmatprep.subr.mxu0 0.0
    %1230 = vmatpush1.msra.mxu0 0.0
    %1231 = vmatprep.subr.mxu0 0.0
    %1232 = vmatpush1.msra.mxu0 0.0
    %1233 = vmatprep.subr.mxu0 0.0
    %1234 = vmatpush1.msra.mxu0 0.0
    %1235 = vmatprep.subr.mxu0 0.0
    %1236 = vmatpush1.msra.mxu0 0.0
    %1237 = vmatprep.subr.mxu0 0.0
    %1238 = vmatpush1.msra.mxu0 0.0
    %1239 = vmatprep.subr.mxu0 0.0
    %1240 = vmatpush1.msra.mxu0 0.0
    %1241 = vmatprep.subr.mxu0 0.0
    %1242 = vmatpush1.msra.mxu0 0.0
    %1243 = vmatprep.subr.mxu0 0.0
    %1244 = vmatpush1.msra.mxu0 0.0
    %1245 = vmatprep.subr.mxu0 0.0
    %1246 = vmatpush1.msra.mxu0 0.0
    %1247 = vmatprep.subr.mxu0 0.0
    %1248 = vmatpush1.msra.mxu0 0.0
    %1249 = vmatprep.subr.mxu0 0.0
    %1250 = vmatpush1.msra.mxu0 0.0
    %1251 = vmatprep.subr.mxu0 0.0
    %1252 = vmatpush1.msra.mxu0 0.0
    %1253 = vmatprep.mubr.f32.mxu0 0.0
    %1254 = vmatmul.mubr.f32.gmra.mrb[0].mxu0 %v1184
    %v1255 = vpop.f32.mrb[0].mxu0
    %v1256 = vadd.f32 0.0, %v1255
    %v1257 = vpop.f32.mrb[0].mxu0
    %1258 = vmatprep.mubr.f32.mxu0 0.0
    %1259 = vmatmul.mubr.f32.gmra.mrb[0].mxu0 %v1187
    %v1260 = vpop.f32.mrb[0].mxu0
    %v1261 = vadd.f32 0.0, %v1260
    %v1262 = vpop.f32.mrb[0].mxu0
    %1263 = vdwg.mxu0
    %v1265 = vsel %vm496, %v1256, 0
    %v1268 = vsel %vm496, %v1261, 0
    %1270 = vmatprep.subr.mxu0 0.0
    %1271 = vmatpush1.msra.mxu0 %v399
    %1272 = vmatprep.subr.mxu0 0.0
    %1273 = vmatpush1.msra.mxu0 0.0
    %1274 = vmatprep.subr.mxu0 0.0
    %1275 = vmatpush1.msra.mxu0 0.0
    %1276 = vmatprep.subr.mxu0 0.0
    %1277 = vmatpush1.msra.mxu0 0.0
    %1278 = vmatprep.subr.mxu0 0.0
    %1279 = vmatpush1.msra.mxu0 0.0
    %1280 = vmatprep.subr.mxu0 0.0
    %1281 = vmatpush1.msra.mxu0 0.0
    %1282 = vmatprep.subr.mxu0 0.0
    %1283 = vmatpush1.msra.mxu0 0.0
    %1284 = vmatprep.subr.mxu0 0.0
    %1285 = vmatpush1.msra.mxu0 0.0
    %1286 = vmatprep.subr.mxu0 0.0
    %1287 = vmatpush1.msra.mxu0 0.0
    %1288 = vmatprep.subr.mxu0 0.0
    %1289 = vmatpush1.msra.mxu0 0.0
    %1290 = vmatprep.subr.mxu0 0.0
    %1291 = vmatpush1.msra.mxu0 0.0
    %1292 = vmatprep.subr.mxu0 0.0
    %1293 = vmatpush1.msra.mxu0 0.0
    %1294 = vmatprep.subr.mxu0 0.0
    %1295 = vmatpush1.msra.mxu0 0.0
    %1296 = vmatprep.subr.mxu0 0.0
    %1297 = vmatpush1.msra.mxu0 0.0
    %1298 = vmatprep.subr.mxu0 0.0
    %1299 = vmatpush1.msra.mxu0 0.0
    %1300 = vmatprep.subr.mxu0 0.0
    %1301 = vmatpush1.msra.mxu0 0.0
    %1302 = vmatprep.subr.mxu0 0.0
    %1303 = vmatpush1.msra.mxu0 0.0
    %1304 = vmatprep.subr.mxu0 0.0
    %1305 = vmatpush1.msra.mxu0 0.0
    %1306 = vmatprep.subr.mxu0 0.0
    %1307 = vmatpush1.msra.mxu0 0.0
    %1308 = vmatprep.subr.mxu0 0.0
    %1309 = vmatpush1.msra.mxu0 0.0
    %1310 = vmatprep.subr.mxu0 0.0
    %1311 = vmatpush1.msra.mxu0 0.0
    %1312 = vmatprep.subr.mxu0 0.0
    %1313 = vmatpush1.msra.mxu0 0.0
    %1314 = vmatprep.subr.mxu0 0.0
    %1315 = vmatpush1.msra.mxu0 0.0
    %1316 = vmatprep.subr.mxu0 0.0
    %1317 = vmatpush1.msra.mxu0 0.0
    %1318 = vmatprep.subr.mxu0 0.0
    %1319 = vmatpush1.msra.mxu0 0.0
    %1320 = vmatprep.subr.mxu0 0.0
    %1321 = vmatpush1.msra.mxu0 0.0
    %1322 = vmatprep.subr.mxu0 0.0
    %1323 = vmatpush1.msra.mxu0 0.0
    %1324 = vmatprep.subr.mxu0 0.0
    %1325 = vmatpush1.msra.mxu0 0.0
    %1326 = vmatprep.subr.mxu0 0.0
    %1327 = vmatpush1.msra.mxu0 0.0
    %1328 = vmatprep.subr.mxu0 0.0
    %1329 = vmatpush1.msra.mxu0 0.0
    %1330 = vmatprep.subr.mxu0 0.0
    %1331 = vmatpush1.msra.mxu0 0.0
    %1332 = vmatprep.subr.mxu0 0.0
    %1333 = vmatpush1.msra.mxu0 0.0
    %1334 = vmatprep.mubr.f32.mxu0 0.0
    %1335 = vmatmul.mubr.f32.gmra.mrb[0].mxu0 %v1265
    %v1336 = vpop.f32.mrb[0].mxu0
    %v1337 = vadd.f32 0.0, %v1336
    %v1338 = vpop.f32.mrb[0].mxu0
    %1339 = vmatprep.mubr.f32.mxu0 0.0
    %1340 = vmatmul.mubr.f32.gmra.mrb[0].mxu0 %v1268
    %v1341 = vpop.f32.mrb[0].mxu0
    %v1342 = vadd.f32 0.0, %v1341
    %v1343 = vpop.f32.mrb[0].mxu0
    %1344 = vdwg.mxu0
    %v1345 = vadd.f32 %v1052, %v1337
    %v1346 = vadd.f32 %v1057, %v1342
    %1347 = vrot.lane.b32.xlu0 %v482, 104
    %v1348 = vpop.permute.xlu0 %1347
    %1349 = vrot.lane.b32.xlu0 %v487, 104
    %v1350 = vpop.permute.xlu0 %1349
    %1351 = vrot.lane.b32.xlu0 %v482, 72
    %v1352 = vpop.permute.xlu0 %1351
    %1353 = vrot.lane.b32.xlu0 %v487, 72
    %v1354 = vpop.permute.xlu0 %1353
    %v1355 = vsel %vm496, %v1348, 0
    %v1357 = vsel %vm496, %v1350, 0
    %v1359 = vsel %vm496, %v1352, 0
    %v1361 = vsel %vm496, %v1354, 0
    %1363 = vmatprep.subr.mxu0 0.0
    %1364 = vmatpush1.xpose.msra.mxu0 %v1359
    %1365 = vmatprep.subr.mxu0 0.0
    %1366 = vmatpush1.xpose.msra.mxu0 %v1361
    %1367 = vmatprep.subr.mxu0 0.0
    %1368 = vmatpush1.xpose.msra.mxu0 0.0
    %1369 = vmatprep.subr.mxu0 0.0
    %1370 = vmatpush1.xpose.msra.mxu0 0.0
    %1371 = vmatprep.subr.mxu0 0.0
    %1372 = vmatpush1.xpose.msra.mxu0 0.0
    %1373 = vmatprep.subr.mxu0 0.0
    %1374 = vmatpush1.xpose.msra.mxu0 0.0
    %1375 = vmatprep.subr.mxu0 0.0
    %1376 = vmatpush1.xpose.msra.mxu0 0.0
    %1377 = vmatprep.subr.mxu0 0.0
    %1378 = vmatpush1.xpose.msra.mxu0 0.0
    %1379 = vmatprep.subr.mxu0 0.0
    %1380 = vmatpush1.xpose.msra.mxu0 0.0
    %1381 = vmatprep.subr.mxu0 0.0
    %1382 = vmatpush1.xpose.msra.mxu0 0.0
    %1383 = vmatprep.subr.mxu0 0.0
    %1384 = vmatpush1.xpose.msra.mxu0 0.0
    %1385 = vmatprep.subr.mxu0 0.0
    %1386 = vmatpush1.xpose.msra.mxu0 0.0
    %1387 = vmatprep.subr.mxu0 0.0
    %1388 = vmatpush1.xpose.msra.mxu0 0.0
    %1389 = vmatprep.subr.mxu0 0.0
    %1390 = vmatpush1.xpose.msra.mxu0 0.0
    %1391 = vmatprep.subr.mxu0 0.0
    %1392 = vmatpush1.xpose.msra.mxu0 0.0
    %1393 = vmatprep.subr.mxu0 0.0
    %1394 = vmatpush1.xpose.msra.mxu0 0.0
    %1395 = vmatprep.subr.mxu0 0.0
    %1396 = vmatpush1.xpose.msra.mxu0 0.0
    %1397 = vmatprep.subr.mxu0 0.0
    %1398 = vmatpush1.xpose.msra.mxu0 0.0
    %1399 = vmatprep.subr.mxu0 0.0
    %1400 = vmatpush1.xpose.msra.mxu0 0.0
    %1401 = vmatprep.subr.mxu0 0.0
    %1402 = vmatpush1.xpose.msra.mxu0 0.0
    %1403 = vmatprep.subr.mxu0 0.0
    %1404 = vmatpush1.xpose.msra.mxu0 0.0
    %1405 = vmatprep.subr.mxu0 0.0
    %1406 = vmatpush1.xpose.msra.mxu0 0.0
    %1407 = vmatprep.subr.mxu0 0.0
    %1408 = vmatpush1.xpose.msra.mxu0 0.0
    %1409 = vmatprep.subr.mxu0 0.0
    %1410 = vmatpush1.xpose.msra.mxu0 0.0
    %1411 = vmatprep.subr.mxu0 0.0
    %1412 = vmatpush1.xpose.msra.mxu0 0.0
    %1413 = vmatprep.subr.mxu0 0.0
    %1414 = vmatpush1.xpose.msra.mxu0 0.0
    %1415 = vmatprep.subr.mxu0 0.0
    %1416 = vmatpush1.xpose.msra.mxu0 0.0
    %1417 = vmatprep.subr.mxu0 0.0
    %1418 = vmatpush1.xpose.msra.mxu0 0.0
    %1419 = vmatprep.subr.mxu0 0.0
    %1420 = vmatpush1.xpose.msra.mxu0 0.0
    %1421 = vmatprep.subr.mxu0 0.0
    %1422 = vmatpush1.xpose.msra.mxu0 0.0
    %1423 = vmatprep.subr.mxu0 0.0
    %1424 = vmatpush1.xpose.msra.mxu0 0.0
    %1425 = vmatprep.subr.mxu0 0.0
    %1426 = vmatpush1.xpose.msra.mxu0 0.0
    %1427 = vmatprep.mubr.f32.mxu0 0.0
    %1428 = vmatmul.mubr.f32.gmra.mrb[0].mxu0 %v1355
    %v1429 = vpop.f32.mrb[0].mxu0
    %v1430 = vadd.f32 0.0, %v1429
    %v1431 = vpop.f32.mrb[0].mxu0
    %1432 = vmatprep.mubr.f32.mxu0 0.0
    %1433 = vmatmul.mubr.f32.gmra.mrb[0].mxu0 %v1357
    %v1434 = vpop.f32.mrb[0].mxu0
    %v1435 = vadd.f32 0.0, %v1434
    %v1436 = vpop.f32.mrb[0].mxu0
    %1437 = vdwg.mxu0
    %v1438 = vmul.f32 %v1430, 0.35355338
    %v1439 = vmul.f32 %v1435, 0.35355338
    %v1440 = vadd.f32 %v1438, %v384
    %v1441 = vadd.f32 %v1439, %v385
    %v1442 = vsel %vm584, %v1440, -inf
    %1443 = vmax.xlane.f32.xlu0 %v1442
    %v1444 = vpop.xlane.xlu0 %1443
    %v1445 = vsel %vm584, %v1441, -inf
    %1446 = vmax.xlane.f32.xlu0 %v1445
    %v1447 = vpop.xlane.xlu0 %1446
    %v1448 = vsub.f32 %v1440, %v1444
    %v1449 = vsub.f32 %v1441, %v1447
    %v1450 = vmul.f32 %v1448, 1.442695
    %v1451 = vpow.pop %v1450
    %v1452 = vmul.f32 %v1449, 1.442695
    %v1453 = vpow.pop %v1452
    %v1454 = vsel %vm584, %v1451, 0.0
    %1455 = vadd.xlane.f32.xlu0 %v1454
    %v1456 = vpop.xlane.xlu0 %1455
    %v1457 = vsel %vm584, %v1453, 0.0
    %1458 = vadd.xlane.f32.xlu0 %v1457
    %v1459 = vpop.xlane.xlu0 %1458
    %v1460 = vrcp.pop %v1456
    %v1461 = vmul.f32 %v1451, %v1460
    %v1462 = vrcp.pop %v1459
    %v1463 = vmul.f32 %v1453, %v1462
    %1464 = vrot.lane.b32.xlu0 %v482, 40
    %v1465 = vpop.permute.xlu0 %1464
    %1466 = vrot.lane.b32.xlu0 %v487, 40
    %v1467 = vpop.permute.xlu0 %1466
    %v1471 = vsel %vm584, %v1461, 0
    %v1474 = vsel %vm584, %v1463, 0
    %1476 = vmatprep.subr.mxu0 0.0
    %1477 = vmatpush1.msra.mxu0 %v1465
    %1478 = vmatprep.subr.mxu0 0.0
    %1479 = vmatpush1.msra.mxu0 %v1467
    %1480 = vmatprep.subr.mxu0 0.0
    %1481 = vmatpush1.msra.mxu0 0.0
    %1482 = vmatprep.subr.mxu0 0.0
    %1483 = vmatpush1.msra.mxu0 0.0
    %1484 = vmatprep.subr.mxu0 0.0
    %1485 = vmatpush1.msra.mxu0 0.0
    %1486 = vmatprep.subr.mxu0 0.0
    %1487 = vmatpush1.msra.mxu0 0.0
    %1488 = vmatprep.subr.mxu0 0.0
    %1489 = vmatpush1.msra.mxu0 0.0
    %1490 = vmatprep.subr.mxu0 0.0
    %1491 = vmatpush1.msra.mxu0 0.0
    %1492 = vmatprep.subr.mxu0 0.0
    %1493 = vmatpush1.msra.mxu0 0.0
    %1494 = vmatprep.subr.mxu0 0.0
    %1495 = vmatpush1.msra.mxu0 0.0
    %1496 = vmatprep.subr.mxu0 0.0
    %1497 = vmatpush1.msra.mxu0 0.0
    %1498 = vmatprep.subr.mxu0 0.0
    %1499 = vmatpush1.msra.mxu0 0.0
    %1500 = vmatprep.subr.mxu0 0.0
    %1501 = vmatpush1.msra.mxu0 0.0
    %1502 = vmatprep.subr.mxu0 0.0
    %1503 = vmatpush1.msra.mxu0 0.0
    %1504 = vmatprep.subr.mxu0 0.0
    %1505 = vmatpush1.msra.mxu0 0.0
    %1506 = vmatprep.subr.mxu0 0.0
    %1507 = vmatpush1.msra.mxu0 0.0
    %1508 = vmatprep.subr.mxu0 0.0
    %1509 = vmatpush1.msra.mxu0 0.0
    %1510 = vmatprep.subr.mxu0 0.0
    %1511 = vmatpush1.msra.mxu0 0.0
    %1512 = vmatprep.subr.mxu0 0.0
    %1513 = vmatpush1.msra.mxu0 0.0
    %1514 = vmatprep.subr.mxu0 0.0
    %1515 = vmatpush1.msra.mxu0 0.0
    %1516 = vmatprep.subr.mxu0 0.0
    %1517 = vmatpush1.msra.mxu0 0.0
    %1518 = vmatprep.subr.mxu0 0.0
    %1519 = vmatpush1.msra.mxu0 0.0
    %1520 = vmatprep.subr.mxu0 0.0
    %1521 = vmatpush1.msra.mxu0 0.0
    %1522 = vmatprep.subr.mxu0 0.0
    %1523 = vmatpush1.msra.mxu0 0.0
    %1524 = vmatprep.subr.mxu0 0.0
    %1525 = vmatpush1.msra.mxu0 0.0
    %1526 = vmatprep.subr.mxu0 0.0
    %1527 = vmatpush1.msra.mxu0 0.0
    %1528 = vmatprep.subr.mxu0 0.0
    %1529 = vmatpush1.msra.mxu0 0.0
    %1530 = vmatprep.subr.mxu0 0.0
    %1531 = vmatpush1.msra.mxu0 0.0
    %1532 = vmatprep.subr.mxu0 0.0
    %1533 = vmatpush1.msra.mxu0 0.0
    %1534 = vmatprep.subr.mxu0 0.0
    %1535 = vmatpush1.msra.mxu0 0.0
    %1536 = vmatprep.subr.mxu0 0.0
    %1537 = vmatpush1.msra.mxu0 0.0
    %1538 = vmatprep.subr.mxu0 0.0
    %1539 = vmatpush1.msra.mxu0 0.0
    %1540 = vmatprep.mubr.f32.mxu0 0.0
    %1541 = vmatmul.mubr.f32.gmra.mrb[0].mxu0 %v1471
    %v1542 = vpop.f32.mrb[0].mxu0
    %v1543 = vadd.f32 0.0, %v1542
    %v1544 = vpop.f32.mrb[0].mxu0
    %1545 = vmatprep.mubr.f32.mxu0 0.0
    %1546 = vmatmul.mubr.f32.gmra.mrb[0].mxu0 %v1474
    %v1547 = vpop.f32.mrb[0].mxu0
    %v1548 = vadd.f32 0.0, %v1547
    %v1549 = vpop.f32.mrb[0].mxu0
    %1550 = vdwg.mxu0
    %v1552 = vsel %vm496, %v1543, 0
    %v1555 = vsel %vm496, %v1548, 0
    %1557 = vmatprep.subr.mxu0 0.0
    %1558 = vmatpush1.msra.mxu0 %v400
    %1559 = vmatprep.subr.mxu0 0.0
    %1560 = vmatpush1.msra.mxu0 0.0
    %1561 = vmatprep.subr.mxu0 0.0
    %1562 = vmatpush1.msra.mxu0 0.0
    %1563 = vmatprep.subr.mxu0 0.0
    %1564 = vmatpush1.msra.mxu0 0.0
    %1565 = vmatprep.subr.mxu0 0.0
    %1566 = vmatpush1.msra.mxu0 0.0
    %1567 = vmatprep.subr.mxu0 0.0
    %1568 = vmatpush1.msra.mxu0 0.0
    %1569 = vmatprep.subr.mxu0 0.0
    %1570 = vmatpush1.msra.mxu0 0.0
    %1571 = vmatprep.subr.mxu0 0.0
    %1572 = vmatpush1.msra.mxu0 0.0
    %1573 = vmatprep.subr.mxu0 0.0
    %1574 = vmatpush1.msra.mxu0 0.0
    %1575 = vmatprep.subr.mxu0 0.0
    %1576 = vmatpush1.msra.mxu0 0.0
    %1577 = vmatprep.subr.mxu0 0.0
    %1578 = vmatpush1.msra.mxu0 0.0
    %1579 = vmatprep.subr.mxu0 0.0
    %1580 = vmatpush1.msra.mxu0 0.0
    %1581 = vmatprep.subr.mxu0 0.0
    %1582 = vmatpush1.msra.mxu0 0.0
    %1583 = vmatprep.subr.mxu0 0.0
    %1584 = vmatpush1.msra.mxu0 0.0
    %1585 = vmatprep.subr.mxu0 0.0
    %1586 = vmatpush1.msra.mxu0 0.0
    %1587 = vmatprep.subr.mxu0 0.0
    %1588 = vmatpush1.msra.mxu0 0.0
    %1589 = vmatprep.subr.mxu0 0.0
    %1590 = vmatpush1.msra.mxu0 0.0
    %1591 = vmatprep.subr.mxu0 0.0
    %1592 = vmatpush1.msra.mxu0 0.0
    %1593 = vmatprep.subr.mxu0 0.0
    %1594 = vmatpush1.msra.mxu0 0.0
    %1595 = vmatprep.subr.mxu0 0.0
    %1596 = vmatpush1.msra.mxu0 0.0
    %1597 = vmatprep.subr.mxu0 0.0
    %1598 = vmatpush1.msra.mxu0 0.0
    %1599 = vmatprep.subr.mxu0 0.0
    %1600 = vmatpush1.msra.mxu0 0.0
    %1601 = vmatprep.subr.mxu0 0.0
    %1602 = vmatpush1.msra.mxu0 0.0
    %1603 = vmatprep.subr.mxu0 0.0
    %1604 = vmatpush1.msra.mxu0 0.0
    %1605 = vmatprep.subr.mxu0 0.0
    %1606 = vmatpush1.msra.mxu0 0.0
    %1607 = vmatprep.subr.mxu0 0.0
    %1608 = vmatpush1.msra.mxu0 0.0
    %1609 = vmatprep.subr.mxu0 0.0
    %1610 = vmatpush1.msra.mxu0 0.0
    %1611 = vmatprep.subr.mxu0 0.0
    %1612 = vmatpush1.msra.mxu0 0.0
    %1613 = vmatprep.subr.mxu0 0.0
    %1614 = vmatpush1.msra.mxu0 0.0
    %1615 = vmatprep.subr.mxu0 0.0
    %1616 = vmatpush1.msra.mxu0 0.0
    %1617 = vmatprep.subr.mxu0 0.0
    %1618 = vmatpush1.msra.mxu0 0.0
    %1619 = vmatprep.subr.mxu0 0.0
    %1620 = vmatpush1.msra.mxu0 0.0
    %1621 = vmatprep.mubr.f32.mxu0 0.0
    %1622 = vmatmul.mubr.f32.gmra.mrb[0].mxu0 %v1552
    %v1623 = vpop.f32.mrb[0].mxu0
    %v1624 = vadd.f32 0.0, %v1623
    %v1625 = vpop.f32.mrb[0].mxu0
    %1626 = vmatprep.mubr.f32.mxu0 0.0
    %1627 = vmatmul.mubr.f32.gmra.mrb[0].mxu0 %v1555
    %v1628 = vpop.f32.mrb[0].mxu0
    %v1629 = vadd.f32 0.0, %v1628
    %v1630 = vpop.f32.mrb[0].mxu0
    %1631 = vdwg.mxu0
    %v1632 = vadd.f32 %v1345, %v1624
    %v1633 = vadd.f32 %v1346, %v1629
    %v1635 = vlaneseq
    %v1636 = vshrl.u32 %v1635, 7
    %v1637 = vsub.s32 0, %v1636
    %v1638 = vrot.slane %v401, %v1637
    %v1640 = vadd.f32 %v1632, %v1638
    %v1641 = vadd.f32 %v1633, %v1638
    %v1642 = vadd.f32 %v390, %v1640
    %v1643 = vadd.f32 %v391, %v1641
    %v1644 = vld [vmem:[#allocation14] sm:$0x1]
    %v1645 = vld [vmem:[#allocation16] sm:$0x1]
    %v1646 = vsel %vm408, %v1642, 0.0
    %1647 = vadd.xlane.f32.xlu0 %v1646
    %v1648 = vpop.xlane.xlu0 %1647
    %v1649 = vsel %vm408, %v1643, 0.0
    %1650 = vadd.xlane.f32.xlu0 %v1649
    %v1651 = vpop.xlane.xlu0 %1650
    %v1652 = vrcp.pop 32.0
    %v1653 = vmul.f32 %v1648, %v1652
    %v1654 = vmul.f32 %v1651, %v1652
    %v1655 = vsub.f32 %v1642, %v1653
    %v1656 = vsub.f32 %v1643, %v1654
    %v1657 = vmul.f32 %v1655, %v1655
    %v1658 = vmul.f32 %v1656, %v1656
    %v1659 = vsel %vm408, %v1657, 0.0
    %1660 = vadd.xlane.f32.xlu0 %v1659
    %v1661 = vpop.xlane.xlu0 %1660
    %v1662 = vsel %vm408, %v1658, 0.0
    %1663 = vadd.xlane.f32.xlu0 %v1662
    %v1664 = vpop.xlane.xlu0 %1663
    %v1665 = vmul.f32 %v1661, %v1652
    %v1666 = vmul.f32 %v1664, %v1652
    %v1667 = vadd.f32 %v1665, 1e-05
    %v1668 = vadd.f32 %v1666, 1e-05
    %v1669 = vrsqrt.pop %v1667
    %v1670 = vrsqrt.pop %v1668
    %v1671 = vmul.f32 %v1655, %v1669
    %v1672 = vmul.f32 %v1656, %v1670
    %v1674 = vlaneseq
    %v1675 = vshrl.u32 %v1674, 7
    %v1676 = vsub.s32 0, %v1675
    %v1677 = vrot.slane %v1644, %v1676
    %v1679 = vmul.f32 %v1671, %v1677
    %v1680 = vmul.f32 %v1672, %v1677
    %v1682 = vlaneseq
    %v1683 = vshrl.u32 %v1682, 7
    %v1684 = vsub.s32 0, %v1683
    %v1685 = vrot.slane %v1645, %v1684
    %v1687 = vadd.f32 %v1679, %v1685
    %v1688 = vadd.f32 %v1680, %v1685
    %v1689 = vld [vmem:[%s19] sm:$0xff]
    %v1690 = vld [vmem:[%s19 + $0x8] sm:$0xff]
    %v1691 = vld [vmem:[%s19 + $0x10] sm:$0xff]
    %v1692 = vld [vmem:[%s19 + $0x18] sm:$0xff]
    %v1693 = vld [vmem:[#allocation11] sm:$0x1]
    %v1694 = vld [vmem:[%s23] sm:$0xff]
    %v1695 = vld [vmem:[%s23 + $0x8] sm:$0xff]
    %v1696 = vld [vmem:[%s23 + $0x10] sm:$0xff]
    %v1697 = vld [vmem:[%s23 + $0x18] sm:$0xff]
    %v1698 = vld [vmem:[%s23 + $0x20] sm:$0xff]
    %v1699 = vld [vmem:[%s23 + $0x28] sm:$0xff]
    %v1700 = vld [vmem:[%s23 + $0x30] sm:$0xff]
    %v1701 = vld [vmem:[%s23 + $0x38] sm:$0xff]
    %v1702 = vld [vmem:[#allocation13] sm:$0x1]
    %v1704 = vlaneseq
    %v1705 = vshrl.u32 %v1704, 7
    %v1706 = vsub.s32 0, %v1705
    %v1707 = vrot.slane %v1693, %v1706
    %v1710 = vsel %vm408, %v1687, 0
    %v1713 = vsel %vm408, %v1688, 0
    %1715 = vmatprep.subr.mxu0 0.0
    %1716 = vmatpush1.msra.mxu0 %v1689
    %1717 = vmatprep.subr.mxu0 0.0
    %1718 = vmatpush1.msra.mxu0 %v1690
    %1719 = vmatprep.subr.mxu0 0.0
    %1720 = vmatpush1.msra.mxu0 %v1691
    %1721 = vmatprep.subr.mxu0 0.0
    %1722 = vmatpush1.msra.mxu0 %v1692
    %1723 = vmatprep.subr.mxu0 0.0
    %1724 = vmatpush1.msra.mxu0 0.0
    %1725 = vmatprep.subr.mxu0 0.0
    %1726 = vmatpush1.msra.mxu0 0.0
    %1727 = vmatprep.subr.mxu0 0.0
    %1728 = vmatpush1.msra.mxu0 0.0
    %1729 = vmatprep.subr.mxu0 0.0
    %1730 = vmatpush1.msra.mxu0 0.0
    %1731 = vmatprep.subr.mxu0 0.0
    %1732 = vmatpush1.msra.mxu0 0.0
    %1733 = vmatprep.subr.mxu0 0.0
    %1734 = vmatpush1.msra.mxu0 0.0
    %1735 = vmatprep.subr.mxu0 0.0
    %1736 = vmatpush1.msra.mxu0 0.0
    %1737 = vmatprep.subr.mxu0 0.0
    %1738 = vmatpush1.msra.mxu0 0.0
    %1739 = vmatprep.subr.mxu0 0.0
    %1740 = vmatpush1.msra.mxu0 0.0
    %1741 = vmatprep.subr.mxu0 0.0
    %1742 = vmatpush1.msra.mxu0 0.0
    %1743 = vmatprep.subr.mxu0 0.0
    %1744 = vmatpush1.msra.mxu0 0.0
    %1745 = vmatprep.subr.mxu0 0.0
    %1746 = vmatpush1.msra.mxu0 0.0
    %1747 = vmatprep.subr.mxu0 0.0
    %1748 = vmatpush1.msra.mxu0 0.0
    %1749 = vmatprep.subr.mxu0 0.0
    %1750 = vmatpush1.msra.mxu0 0.0
    %1751 = vmatprep.subr.mxu0 0.0
    %1752 = vmatpush1.msra.mxu0 0.0
    %1753 = vmatprep.subr.mxu0 0.0
    %1754 = vmatpush1.msra.mxu0 0.0
    %1755 = vmatprep.subr.mxu0 0.0
    %1756 = vmatpush1.msra.mxu0 0.0
    %1757 = vmatprep.subr.mxu0 0.0
    %1758 = vmatpush1.msra.mxu0 0.0
    %1759 = vmatprep.subr.mxu0 0.0
    %1760 = vmatpush1.msra.mxu0 0.0
    %1761 = vmatprep.subr.mxu0 0.0
    %1762 = vmatpush1.msra.mxu0 0.0
    %1763 = vmatprep.subr.mxu0 0.0
    %1764 = vmatpush1.msra.mxu0 0.0
    %1765 = vmatprep.subr.mxu0 0.0
    %1766 = vmatpush1.msra.mxu0 0.0
    %1767 = vmatprep.subr.mxu0 0.0
    %1768 = vmatpush1.msra.mxu0 0.0
    %1769 = vmatprep.subr.mxu0 0.0
    %1770 = vmatpush1.msra.mxu0 0.0
    %1771 = vmatprep.subr.mxu0 0.0
    %1772 = vmatpush1.msra.mxu0 0.0
    %1773 = vmatprep.subr.mxu0 0.0
    %1774 = vmatpush1.msra.mxu0 0.0
    %1775 = vmatprep.subr.mxu0 0.0
    %1776 = vmatpush1.msra.mxu0 0.0
    %1777 = vmatprep.subr.mxu0 0.0
    %1778 = vmatpush1.msra.mxu0 0.0
    %1779 = vmatprep.mubr.f32.mxu0 0.0
    %1780 = vmatmul.mubr.f32.gmra.mrb[0].mxu0 %v1710
    %v1781 = vpop.f32.mrb[0].mxu0
    %v1782 = vadd.f32 %v1707, %v1781
    %v1783 = vpop.f32.mrb[0].mxu0
    %1784 = vmatprep.mubr.f32.mxu0 0.0
    %1785 = vmatmul.mubr.f32.gmra.mrb[0].mxu0 %v1713
    %v1786 = vpop.f32.mrb[0].mxu0
    %v1787 = vadd.f32 %v1707, %v1786
    %v1788 = vpop.f32.mrb[0].mxu0
    %1789 = vdwg.mxu0
    %v1790 = vmax.f32 %v1782, 0.0
    %v1791 = vmax.f32 %v1787, 0.0
    %v1793 = vlaneseq
    %v1794 = vshrl.u32 %v1793, 7
    %v1795 = vsub.s32 0, %v1794
    %v1796 = vrot.slane %v1702, %v1795
    %vm1798 = vcmask 523264
    %v1800 = vsel %vm1798, %v1790, 0
    %v1803 = vsel %vm1798, %v1791, 0
    %1805 = vmatprep.subr.mxu0 0.0
    %1806 = vmatpush1.msra.mxu0 %v1694
    %1807 = vmatprep.subr.mxu0 0.0
    %1808 = vmatpush1.msra.mxu0 %v1695
    %1809 = vmatprep.subr.mxu0 0.0
    %1810 = vmatpush1.msra.mxu0 %v1696
    %1811 = vmatprep.subr.mxu0 0.0
    %1812 = vmatpush1.msra.mxu0 %v1697
    %1813 = vmatprep.subr.mxu0 0.0
    %1814 = vmatpush1.msra.mxu0 %v1698
    %1815 = vmatprep.subr.mxu0 0.0
    %1816 = vmatpush1.msra.mxu0 %v1699
    %1817 = vmatprep.subr.mxu0 0.0
    %1818 = vmatpush1.msra.mxu0 %v1700
    %1819 = vmatprep.subr.mxu0 0.0
    %1820 = vmatpush1.msra.mxu0 %v1701
    %1821 = vmatprep.subr.mxu0 0.0
    %1822 = vmatpush1.msra.mxu0 0.0
    %1823 = vmatprep.subr.mxu0 0.0
    %1824 = vmatpush1.msra.mxu0 0.0
    %1825 = vmatprep.subr.mxu0 0.0
    %1826 = vmatpush1.msra.mxu0 0.0
    %1827 = vmatprep.subr.mxu0 0.0
    %1828 = vmatpush1.msra.mxu0 0.0
    %1829 = vmatprep.subr.mxu0 0.0
    %1830 = vmatpush1.msra.mxu0 0.0
    %1831 = vmatprep.subr.mxu0 0.0
    %1832 = vmatpush1.msra.mxu0 0.0
    %1833 = vmatprep.subr.mxu0 0.0
    %1834 = vmatpush1.msra.mxu0 0.0
    %1835 = vmatprep.subr.mxu0 0.0
    %1836 = vmatpush1.msra.mxu0 0.0
    %1837 = vmatprep.subr.mxu0 0.0
    %1838 = vmatpush1.msra.mxu0 0.0
    %1839 = vmatprep.subr.mxu0 0.0
    %1840 = vmatpush1.msra.mxu0 0.0
    %1841 = vmatprep.subr.mxu0 0.0
    %1842 = vmatpush1.msra.mxu0 0.0
    %1843 = vmatprep.subr.mxu0 0.0
    %1844 = vmatpush1.msra.mxu0 0.0
    %1845 = vmatprep.subr.mxu0 0.0
    %1846 = vmatpush1.msra.mxu0 0.0
    %1847 = vmatprep.subr.mxu0 0.0
    %1848 = vmatpush1.msra.mxu0 0.0
    %1849 = vmatprep.subr.mxu0 0.0
    %1850 = vmatpush1.msra.mxu0 0.0
    %1851 = vmatprep.subr.mxu0 0.0
    %1852 = vmatpush1.msra.mxu0 0.0
    %1853 = vmatprep.subr.mxu0 0.0
    %1854 = vmatpush1.msra.mxu0 0.0
    %1855 = vmatprep.subr.mxu0 0.0
    %1856 = vmatpush1.msra.mxu0 0.0
    %1857 = vmatprep.subr.mxu0 0.0
    %1858 = vmatpush1.msra.mxu0 0.0
    %1859 = vmatprep.subr.mxu0 0.0
    %1860 = vmatpush1.msra.mxu0 0.0
    %1861 = vmatprep.subr.mxu0 0.0
    %1862 = vmatpush1.msra.mxu0 0.0
    %1863 = vmatprep.subr.mxu0 0.0
    %1864 = vmatpush1.msra.mxu0 0.0
    %1865 = vmatprep.subr.mxu0 0.0
    %1866 = vmatpush1.msra.mxu0 0.0
    %1867 = vmatprep.subr.mxu0 0.0
    %1868 = vmatpush1.msra.mxu0 0.0
    %1869 = vmatprep.mubr.f32.mxu0 0.0
    %1870 = vmatmul.mubr.f32.gmra.mrb[0].mxu0 %v1800
    %v1871 = vpop.f32.mrb[0].mxu0
    %v1872 = vadd.f32 %v1796, %v1871
    %v1873 = vpop.f32.mrb[0].mxu0
    %1874 = vmatprep.mubr.f32.mxu0 0.0
    %1875 = vmatmul.mubr.f32.gmra.mrb[0].mxu0 %v1803
    %v1876 = vpop.f32.mrb[0].mxu0
    %v1877 = vadd.f32 %v1796, %v1876
    %v1878 = vpop.f32.mrb[0].mxu0
    %1879 = vdwg.mxu0
    %v1880 = vadd.f32 %v1687, %v1872
    %v1881 = vadd.f32 %v1688, %v1877
    %v1882 = vld [vmem:[#allocation17] sm:$0x1]
    %v1883 = vld [vmem:[#allocation19] sm:$0x1]
    %v1884 = vsel %vm408, %v1880, 0.0
    %1885 = vadd.xlane.f32.xlu0 %v1884
    %v1886 = vpop.xlane.xlu0 %1885
    %v1887 = vsel %vm408, %v1881, 0.0
    %1888 = vadd.xlane.f32.xlu0 %v1887
    %v1889 = vpop.xlane.xlu0 %1888
    %v1890 = vmul.f32 %v1886, %v1652
    %v1891 = vmul.f32 %v1889, %v1652
    %v1892 = vsub.f32 %v1880, %v1890
    %v1893 = vsub.f32 %v1881, %v1891
    %v1894 = vmul.f32 %v1892, %v1892
    %v1895 = vmul.f32 %v1893, %v1893
    %v1896 = vsel %vm408, %v1894, 0.0
    %1897 = vadd.xlane.f32.xlu0 %v1896
    %v1898 = vpop.xlane.xlu0 %1897
    %v1899 = vsel %vm408, %v1895, 0.0
    %1900 = vadd.xlane.f32.xlu0 %v1899
    %v1901 = vpop.xlane.xlu0 %1900
    %v1902 = vmul.f32 %v1898, %v1652
    %v1903 = vmul.f32 %v1901, %v1652
    %v1904 = vadd.f32 %v1902, 1e-05
    %v1905 = vadd.f32 %v1903, 1e-05
    %v1906 = vrsqrt.pop %v1904
    %v1907 = vrsqrt.pop %v1905
    %v1908 = vmul.f32 %v1892, %v1906
    %v1909 = vmul.f32 %v1893, %v1907
    %v1911 = vlaneseq
    %v1912 = vshrl.u32 %v1911, 7
    %v1913 = vsub.s32 0, %v1912
    %v1914 = vrot.slane %v1882, %v1913
    %v1916 = vmul.f32 %v1908, %v1914
    %v1917 = vmul.f32 %v1909, %v1914
    %v1919 = vlaneseq
    %v1920 = vshrl.u32 %v1919, 7
    %v1921 = vsub.s32 0, %v1920
    %v1922 = vrot.slane %v1883, %v1921
    %v1924 = vadd.f32 %v1916, %v1922
    %v1925 = vadd.f32 %v1917, %v1922
    %s1926 = scalar_lea.vmem %s11, 32
    %v1927 = vld [vmem:[%s1926] sm:$0xff]
    %v1928 = vld [vmem:[%s1926 + $0x8] sm:$0xff]
    %v1929 = vld [vmem:[%s1926 + $0x10] sm:$0xff]
    %v1930 = vld [vmem:[%s1926 + $0x18] sm:$0xff]
    %s1931 = scalar_lea.vmem %s13, 1
    %v1932 = vld [vmem:[%s1931] sm:$0x1]
    %s1933 = scalar_lea.vmem %s15, 32
    %v1934 = vld [vmem:[%s1933] sm:$0xff]
    %v1935 = vld [vmem:[%s1933 + $0x8] sm:$0xff]
    %v1936 = vld [vmem:[%s1933 + $0x10] sm:$0xff]
    %v1937 = vld [vmem:[%s1933 + $0x18] sm:$0xff]
    %s1938 = scalar_lea.vmem %s17, 1
    %v1939 = vld [vmem:[%s1938] sm:$0x1]
    %v1941 = vlaneseq
    %v1942 = vshrl.u32 %v1941, 7
    %v1943 = vsub.s32 0, %v1942
    %v1944 = vrot.slane %v1932, %v1943
    %v1947 = vsel %vm408, %v1924, 0
    %v1950 = vsel %vm408, %v1925, 0
    %1952 = vmatprep.subr.mxu0 0.0
    %1953 = vmatpush1.msra.mxu0 %v1927
    %1954 = vmatprep.subr.mxu0 0.0
    %1955 = vmatpush1.msra.mxu0 %v1928
    %1956 = vmatprep.subr.mxu0 0.0
    %1957 = vmatpush1.msra.mxu0 %v1929
    %1958 = vmatprep.subr.mxu0 0.0
    %1959 = vmatpush1.msra.mxu0 %v1930
    %1960 = vmatprep.subr.mxu0 0.0
    %1961 = vmatpush1.msra.mxu0 0.0
    %1962 = vmatprep.subr.mxu0 0.0
    %1963 = vmatpush1.msra.mxu0 0.0
    %1964 = vmatprep.subr.mxu0 0.0
    %1965 = vmatpush1.msra.mxu0 0.0
    %1966 = vmatprep.subr.mxu0 0.0
    %1967 = vmatpush1.msra.mxu0 0.0
    %1968 = vmatprep.subr.mxu0 0.0
    %1969 = vmatpush1.msra.mxu0 0.0
    %1970 = vmatprep.subr.mxu0 0.0
    %1971 = vmatpush1.msra.mxu0 0.0
    %1972 = vmatprep.subr.mxu0 0.0
    %1973 = vmatpush1.msra.mxu0 0.0
    %1974 = vmatprep.subr.mxu0 0.0
    %1975 = vmatpush1.msra.mxu0 0.0
    %1976 = vmatprep.subr.mxu0 0.0
    %1977 = vmatpush1.msra.mxu0 0.0
    %1978 = vmatprep.subr.mxu0 0.0
    %1979 = vmatpush1.msra.mxu0 0.0
    %1980 = vmatprep.subr.mxu0 0.0
    %1981 = vmatpush1.msra.mxu0 0.0
    %1982 = vmatprep.subr.mxu0 0.0
    %1983 = vmatpush1.msra.mxu0 0.0
    %1984 = vmatprep.subr.mxu0 0.0
    %1985 = vmatpush1.msra.mxu0 0.0
    %1986 = vmatprep.subr.mxu0 0.0
    %1987 = vmatpush1.msra.mxu0 0.0
    %1988 = vmatprep.subr.mxu0 0.0
    %1989 = vmatpush1.msra.mxu0 0.0
    %1990 = vmatprep.subr.mxu0 0.0
    %1991 = vmatpush1.msra.mxu0 0.0
    %1992 = vmatprep.subr.mxu0 0.0
    %1993 = vmatpush1.msra.mxu0 0.0
    %1994 = vmatprep.subr.mxu0 0.0
    %1995 = vmatpush1.msra.mxu0 0.0
    %1996 = vmatprep.subr.mxu0 0.0
    %1997 = vmatpush1.msra.mxu0 0.0
    %1998 = vmatprep.subr.mxu0 0.0
    %1999 = vmatpush1.msra.mxu0 0.0
    %2000 = vmatprep.subr.mxu0 0.0
    %2001 = vmatpush1.msra.mxu0 0.0
    %2002 = vmatprep.subr.mxu0 0.0
    %2003 = vmatpush1.msra.mxu0 0.0
    %2004 = vmatprep.subr.mxu0 0.0
    %2005 = vmatpush1.msra.mxu0 0.0
    %2006 = vmatprep.subr.mxu0 0.0
    %2007 = vmatpush1.msra.mxu0 0.0
    %2008 = vmatprep.subr.mxu0 0.0
    %2009 = vmatpush1.msra.mxu0 0.0
    %2010 = vmatprep.subr.mxu0 0.0
    %2011 = vmatpush1.msra.mxu0 0.0
    %2012 = vmatprep.subr.mxu0 0.0
    %2013 = vmatpush1.msra.mxu0 0.0
    %2014 = vmatprep.subr.mxu0 0.0
    %2015 = vmatpush1.msra.mxu0 0.0
    %2016 = vmatprep.mubr.f32.mxu0 0.0
    %2017 = vmatmul.mubr.f32.gmra.mrb[0].mxu0 %v1947
    %v2018 = vpop.f32.mrb[0].mxu0
    %v2019 = vadd.f32 %v1944, %v2018
    %v2020 = vpop.f32.mrb[0].mxu0
    %2021 = vmatprep.mubr.f32.mxu0 0.0
    %2022 = vmatmul.mubr.f32.gmra.mrb[0].mxu0 %v1950
    %v2023 = vpop.f32.mrb[0].mxu0
    %v2024 = vadd.f32 %v1944, %v2023
    %v2025 = vpop.f32.mrb[0].mxu0
    %2026 = vdwg.mxu0
    %2029 = vrot.lane.b32.xlu0 %v2019, 96
    %v2030 = vpop.permute.xlu0 %2029
    %2031 = vrot.lane.b32.xlu0 %v2024, 96
    %v2032 = vpop.permute.xlu0 %2031
    %v2033 = vsel %vm496, %v2019, 0
    %v2035 = vsel %vm496, %v2024, 0
    %v2037 = vsel %vm496, %v2030, 0
    %v2039 = vsel %vm496, %v2032, 0
    %2041 = vmatprep.subr.mxu0 0.0
    %2042 = vmatpush1.xpose.msra.mxu0 %v2037
    %2043 = vmatprep.subr.mxu0 0.0
    %2044 = vmatpush1.xpose.msra.mxu0 %v2039
    %2045 = vmatprep.subr.mxu0 0.0
    %2046 = vmatpush1.xpose.msra.mxu0 0.0
    %2047 = vmatprep.subr.mxu0 0.0
    %2048 = vmatpush1.xpose.msra.mxu0 0.0
    %2049 = vmatprep.subr.mxu0 0.0
    %2050 = vmatpush1.xpose.msra.mxu0 0.0
    %2051 = vmatprep.subr.mxu0 0.0
    %2052 = vmatpush1.xpose.msra.mxu0 0.0
    %2053 = vmatprep.subr.mxu0 0.0
    %2054 = vmatpush1.xpose.msra.mxu0 0.0
    %2055 = vmatprep.subr.mxu0 0.0
    %2056 = vmatpush1.xpose.msra.mxu0 0.0
    %2057 = vmatprep.subr.mxu0 0.0
    %2058 = vmatpush1.xpose.msra.mxu0 0.0
    %2059 = vmatprep.subr.mxu0 0.0
    %2060 = vmatpush1.xpose.msra.mxu0 0.0
    %2061 = vmatprep.subr.mxu0 0.0
    %2062 = vmatpush1.xpose.msra.mxu0 0.0
    %2063 = vmatprep.subr.mxu0 0.0
    %2064 = vmatpush1.xpose.msra.mxu0 0.0
    %2065 = vmatprep.subr.mxu0 0.0
    %2066 = vmatpush1.xpose.msra.mxu0 0.0
    %2067 = vmatprep.subr.mxu0 0.0
    %2068 = vmatpush1.xpose.msra.mxu0 0.0
    %2069 = vmatprep.subr.mxu0 0.0
    %2070 = vmatpush1.xpose.msra.mxu0 0.0
    %2071 = vmatprep.subr.mxu0 0.0
    %2072 = vmatpush1.xpose.msra.mxu0 0.0
    %2073 = vmatprep.subr.mxu0 0.0
    %2074 = vmatpush1.xpose.msra.mxu0 0.0
    %2075 = vmatprep.subr.mxu0 0.0
    %2076 = vmatpush1.xpose.msra.mxu0 0.0
    %2077 = vmatprep.subr.mxu0 0.0
    %2078 = vmatpush1.xpose.msra.mxu0 0.0
    %2079 = vmatprep.subr.mxu0 0.0
    %2080 = vmatpush1.xpose.msra.mxu0 0.0
    %2081 = vmatprep.subr.mxu0 0.0
    %2082 = vmatpush1.xpose.msra.mxu0 0.0
    %2083 = vmatprep.subr.mxu0 0.0
    %2084 = vmatpush1.xpose.msra.mxu0 0.0
    %2085 = vmatprep.subr.mxu0 0.0
    %2086 = vmatpush1.xpose.msra.mxu0 0.0
    %2087 = vmatprep.subr.mxu0 0.0
    %2088 = vmatpush1.xpose.msra.mxu0 0.0
    %2089 = vmatprep.subr.mxu0 0.0
    %2090 = vmatpush1.xpose.msra.mxu0 0.0
    %2091 = vmatprep.subr.mxu0 0.0
    %2092 = vmatpush1.xpose.msra.mxu0 0.0
    %2093 = vmatprep.subr.mxu0 0.0
    %2094 = vmatpush1.xpose.msra.mxu0 0.0
    %2095 = vmatprep.subr.mxu0 0.0
    %2096 = vmatpush1.xpose.msra.mxu0 0.0
    %2097 = vmatprep.subr.mxu0 0.0
    %2098 = vmatpush1.xpose.msra.mxu0 0.0
    %2099 = vmatprep.subr.mxu0 0.0
    %2100 = vmatpush1.xpose.msra.mxu0 0.0
    %2101 = vmatprep.subr.mxu0 0.0
    %2102 = vmatpush1.xpose.msra.mxu0 0.0
    %2103 = vmatprep.subr.mxu0 0.0
    %2104 = vmatpush1.xpose.msra.mxu0 0.0
    %2105 = vmatprep.mubr.f32.mxu0 0.0
    %2106 = vmatmul.mubr.f32.gmra.mrb[0].mxu0 %v2033
    %v2107 = vpop.f32.mrb[0].mxu0
    %v2108 = vadd.f32 0.0, %v2107
    %v2109 = vpop.f32.mrb[0].mxu0
    %2110 = vmatprep.mubr.f32.mxu0 0.0
    %2111 = vmatmul.mubr.f32.gmra.mrb[0].mxu0 %v2035
    %v2112 = vpop.f32.mrb[0].mxu0
    %v2113 = vadd.f32 0.0, %v2112
    %v2114 = vpop.f32.mrb[0].mxu0
    %2115 = vdwg.mxu0
    %v2116 = vmul.f32 %v2108, 0.35355338
    %v2117 = vmul.f32 %v2113, 0.35355338
    %v2118 = vadd.f32 %v2116, %v384
    %v2119 = vadd.f32 %v2117, %v385
    %v2120 = vsel %vm584, %v2118, -inf
    %2121 = vmax.xlane.f32.xlu0 %v2120
    %v2122 = vpop.xlane.xlu0 %2121
    %v2123 = vsel %vm584, %v2119, -inf
    %2124 = vmax.xlane.f32.xlu0 %v2123
    %v2125 = vpop.xlane.xlu0 %2124
    %v2126 = vsub.f32 %v2118, %v2122
    %v2127 = vsub.f32 %v2119, %v2125
    %v2128 = vmul.f32 %v2126, 1.442695
    %v2129 = vpow.pop %v2128
    %v2130 = vmul.f32 %v2127, 1.442695
    %v2131 = vpow.pop %v2130
    %v2132 = vsel %vm584, %v2129, 0.0
    %2133 = vadd.xlane.f32.xlu0 %v2132
    %v2134 = vpop.xlane.xlu0 %2133
    %v2135 = vsel %vm584, %v2131, 0.0
    %2136 = vadd.xlane.f32.xlu0 %v2135
    %v2137 = vpop.xlane.xlu0 %2136
    %v2138 = vrcp.pop %v2134
    %v2139 = vmul.f32 %v2129, %v2138
    %v2140 = vrcp.pop %v2137
    %v2141 = vmul.f32 %v2131, %v2140
    %2142 = vrot.lane.b32.xlu0 %v2019, 64
    %v2143 = vpop.permute.xlu0 %2142
    %2144 = vrot.lane.b32.xlu0 %v2024, 64
    %v2145 = vpop.permute.xlu0 %2144
    %v2149 = vsel %vm584, %v2139, 0
    %v2152 = vsel %vm584, %v2141, 0
    %2154 = vmatprep.subr.mxu0 0.0
    %2155 = vmatpush1.msra.mxu0 %v2143
    %2156 = vmatprep.subr.mxu0 0.0
    %2157 = vmatpush1.msra.mxu0 %v2145
    %2158 = vmatprep.subr.mxu0 0.0
    %2159 = vmatpush1.msra.mxu0 0.0
    %2160 = vmatprep.subr.mxu0 0.0
    %2161 = vmatpush1.msra.mxu0 0.0
    %2162 = vmatprep.subr.mxu0 0.0
    %2163 = vmatpush1.msra.mxu0 0.0
    %2164 = vmatprep.subr.mxu0 0.0
    %2165 = vmatpush1.msra.mxu0 0.0
    %2166 = vmatprep.subr.mxu0 0.0
    %2167 = vmatpush1.msra.mxu0 0.0
    %2168 = vmatprep.subr.mxu0 0.0
    %2169 = vmatpush1.msra.mxu0 0.0
    %2170 = vmatprep.subr.mxu0 0.0
    %2171 = vmatpush1.msra.mxu0 0.0
    %2172 = vmatprep.subr.mxu0 0.0
    %2173 = vmatpush1.msra.mxu0 0.0
    %2174 = vmatprep.subr.mxu0 0.0
    %2175 = vmatpush1.msra.mxu0 0.0
    %2176 = vmatprep.subr.mxu0 0.0
    %2177 = vmatpush1.msra.mxu0 0.0
    %2178 = vmatprep.subr.mxu0 0.0
    %2179 = vmatpush1.msra.mxu0 0.0
    %2180 = vmatprep.subr.mxu0 0.0
    %2181 = vmatpush1.msra.mxu0 0.0
    %2182 = vmatprep.subr.mxu0 0.0
    %2183 = vmatpush1.msra.mxu0 0.0
    %2184 = vmatprep.subr.mxu0 0.0
    %2185 = vmatpush1.msra.mxu0 0.0
    %2186 = vmatprep.subr.mxu0 0.0
    %2187 = vmatpush1.msra.mxu0 0.0
    %2188 = vmatprep.subr.mxu0 0.0
    %2189 = vmatpush1.msra.mxu0 0.0
    %2190 = vmatprep.subr.mxu0 0.0
    %2191 = vmatpush1.msra.mxu0 0.0
    %2192 = vmatprep.subr.mxu0 0.0
    %2193 = vmatpush1.msra.mxu0 0.0
    %2194 = vmatprep.subr.mxu0 0.0
    %2195 = vmatpush1.msra.mxu0 0.0
    %2196 = vmatprep.subr.mxu0 0.0
    %2197 = vmatpush1.msra.mxu0 0.0
    %2198 = vmatprep.subr.mxu0 0.0
    %2199 = vmatpush1.msra.mxu0 0.0
    %2200 = vmatprep.subr.mxu0 0.0
    %2201 = vmatpush1.msra.mxu0 0.0
    %2202 = vmatprep.subr.mxu0 0.0
    %2203 = vmatpush1.msra.mxu0 0.0
    %2204 = vmatprep.subr.mxu0 0.0
    %2205 = vmatpush1.msra.mxu0 0.0
    %2206 = vmatprep.subr.mxu0 0.0
    %2207 = vmatpush1.msra.mxu0 0.0
    %2208 = vmatprep.subr.mxu0 0.0
    %2209 = vmatpush1.msra.mxu0 0.0
    %2210 = vmatprep.subr.mxu0 0.0
    %2211 = vmatpush1.msra.mxu0 0.0
    %2212 = vmatprep.subr.mxu0 0.0
    %2213 = vmatpush1.msra.mxu0 0.0
    %2214 = vmatprep.subr.mxu0 0.0
    %2215 = vmatpush1.msra.mxu0 0.0
    %2216 = vmatprep.subr.mxu0 0.0
    %2217 = vmatpush1.msra.mxu0 0.0
    %2218 = vmatprep.mubr.f32.mxu0 0.0
    %2219 = vmatmul.mubr.f32.gmra.mrb[0].mxu0 %v2149
    %v2220 = vpop.f32.mrb[0].mxu0
    %v2221 = vadd.f32 0.0, %v2220
    %v2222 = vpop.f32.mrb[0].mxu0
    %2223 = vmatprep.mubr.f32.mxu0 0.0
    %2224 = vmatmul.mubr.f32.gmra.mrb[0].mxu0 %v2152
    %v2225 = vpop.f32.mrb[0].mxu0
    %v2226 = vadd.f32 0.0, %v2225
    %v2227 = vpop.f32.mrb[0].mxu0
    %2228 = vdwg.mxu0
    %2229 = vrot.lane.b32.xlu0 %v2019, 120
    %v2230 = vpop.permute.xlu0 %2229
    %2231 = vrot.lane.b32.xlu0 %v2024, 120
    %v2232 = vpop.permute.xlu0 %2231
    %2233 = vrot.lane.b32.xlu0 %v2019, 88
    %v2234 = vpop.permute.xlu0 %2233
    %2235 = vrot.lane.b32.xlu0 %v2024, 88
    %v2236 = vpop.permute.xlu0 %2235
    %v2237 = vsel %vm496, %v2230, 0
    %v2239 = vsel %vm496, %v2232, 0
    %v2241 = vsel %vm496, %v2234, 0
    %v2243 = vsel %vm496, %v2236, 0
    %2245 = vmatprep.subr.mxu0 0.0
    %2246 = vmatpush1.xpose.msra.mxu0 %v2241
    %2247 = vmatprep.subr.mxu0 0.0
    %2248 = vmatpush1.xpose.msra.mxu0 %v2243
    %2249 = vmatprep.subr.mxu0 0.0
    %2250 = vmatpush1.xpose.msra.mxu0 0.0
    %2251 = vmatprep.subr.mxu0 0.0
    %2252 = vmatpush1.xpose.msra.mxu0 0.0
    %2253 = vmatprep.subr.mxu0 0.0
    %2254 = vmatpush1.xpose.msra.mxu0 0.0
    %2255 = vmatprep.subr.mxu0 0.0
    %2256 = vmatpush1.xpose.msra.mxu0 0.0
    %2257 = vmatprep.subr.mxu0 0.0
    %2258 = vmatpush1.xpose.msra.mxu0 0.0
    %2259 = vmatprep.subr.mxu0 0.0
    %2260 = vmatpush1.xpose.msra.mxu0 0.0
    %2261 = vmatprep.subr.mxu0 0.0
    %2262 = vmatpush1.xpose.msra.mxu0 0.0
    %2263 = vmatprep.subr.mxu0 0.0
    %2264 = vmatpush1.xpose.msra.mxu0 0.0
    %2265 = vmatprep.subr.mxu0 0.0
    %2266 = vmatpush1.xpose.msra.mxu0 0.0
    %2267 = vmatprep.subr.mxu0 0.0
    %2268 = vmatpush1.xpose.msra.mxu0 0.0
    %2269 = vmatprep.subr.mxu0 0.0
    %2270 = vmatpush1.xpose.msra.mxu0 0.0
    %2271 = vmatprep.subr.mxu0 0.0
    %2272 = vmatpush1.xpose.msra.mxu0 0.0
    %2273 = vmatprep.subr.mxu0 0.0
    %2274 = vmatpush1.xpose.msra.mxu0 0.0
    %2275 = vmatprep.subr.mxu0 0.0
    %2276 = vmatpush1.xpose.msra.mxu0 0.0
    %2277 = vmatprep.subr.mxu0 0.0
    %2278 = vmatpush1.xpose.msra.mxu0 0.0
    %2279 = vmatprep.subr.mxu0 0.0
    %2280 = vmatpush1.xpose.msra.mxu0 0.0
    %2281 = vmatprep.subr.mxu0 0.0
    %2282 = vmatpush1.xpose.msra.mxu0 0.0
    %2283 = vmatprep.subr.mxu0 0.0
    %2284 = vmatpush1.xpose.msra.mxu0 0.0
    %2285 = vmatprep.subr.mxu0 0.0
    %2286 = vmatpush1.xpose.msra.mxu0 0.0
    %2287 = vmatprep.subr.mxu0 0.0
    %2288 = vmatpush1.xpose.msra.mxu0 0.0
    %2289 = vmatprep.subr.mxu0 0.0
    %2290 = vmatpush1.xpose.msra.mxu0 0.0
    %2291 = vmatprep.subr.mxu0 0.0
    %2292 = vmatpush1.xpose.msra.mxu0 0.0
    %2293 = vmatprep.subr.mxu0 0.0
    %2294 = vmatpush1.xpose.msra.mxu0 0.0
    %2295 = vmatprep.subr.mxu0 0.0
    %2296 = vmatpush1.xpose.msra.mxu0 0.0
    %2297 = vmatprep.subr.mxu0 0.0
    %2298 = vmatpush1.xpose.msra.mxu0 0.0
    %2299 = vmatprep.subr.mxu0 0.0
    %2300 = vmatpush1.xpose.msra.mxu0 0.0
    %2301 = vmatprep.subr.mxu0 0.0
    %2302 = vmatpush1.xpose.msra.mxu0 0.0
    %2303 = vmatprep.subr.mxu0 0.0
    %2304 = vmatpush1.xpose.msra.mxu0 0.0
    %2305 = vmatprep.subr.mxu0 0.0
    %2306 = vmatpush1.xpose.msra.mxu0 0.0
    %2307 = vmatprep.subr.mxu0 0.0
    %2308 = vmatpush1.xpose.msra.mxu0 0.0
    %2309 = vmatprep.mubr.f32.mxu0 0.0
    %2310 = vmatmul.mubr.f32.gmra.mrb[0].mxu0 %v2237
    %v2311 = vpop.f32.mrb[0].mxu0
    %v2312 = vadd.f32 0.0, %v2311
    %v2313 = vpop.f32.mrb[0].mxu0
    %2314 = vmatprep.mubr.f32.mxu0 0.0
    %2315 = vmatmul.mubr.f32.gmra.mrb[0].mxu0 %v2239
    %v2316 = vpop.f32.mrb[0].mxu0
    %v2317 = vadd.f32 0.0, %v2316
    %v2318 = vpop.f32.mrb[0].mxu0
    %2319 = vdwg.mxu0
    %v2320 = vmul.f32 %v2312, 0.35355338
    %v2321 = vmul.f32 %v2317, 0.35355338
    %v2322 = vadd.f32 %v2320, %v384
    %v2323 = vadd.f32 %v2321, %v385
    %v2324 = vsel %vm584, %v2322, -inf
    %2325 = vmax.xlane.f32.xlu0 %v2324
    %v2326 = vpop.xlane.xlu0 %2325
    %v2327 = vsel %vm584, %v2323, -inf
    %2328 = vmax.xlane.f32.xlu0 %v2327
    %v2329 = vpop.xlane.xlu0 %2328
    %v2330 = vsub.f32 %v2322, %v2326
    %v2331 = vsub.f32 %v2323, %v2329
    %v2332 = vmul.f32 %v2330, 1.442695
    %v2333 = vpow.pop %v2332
    %v2334 = vmul.f32 %v2331, 1.442695
    %v2335 = vpow.pop %v2334
    %v2336 = vsel %vm584, %v2333, 0.0
    %2337 = vadd.xlane.f32.xlu0 %v2336
    %v2338 = vpop.xlane.xlu0 %2337
    %v2339 = vsel %vm584, %v2335, 0.0
    %2340 = vadd.xlane.f32.xlu0 %v2339
    %v2341 = vpop.xlane.xlu0 %2340
    %v2342 = vrcp.pop %v2338
    %v2343 = vmul.f32 %v2333, %v2342
    %v2344 = vrcp.pop %v2341
    %v2345 = vmul.f32 %v2335, %v2344
    %2346 = vrot.lane.b32.xlu0 %v2019, 56
    %v2347 = vpop.permute.xlu0 %2346
    %2348 = vrot.lane.b32.xlu0 %v2024, 56
    %v2349 = vpop.permute.xlu0 %2348
    %v2353 = vsel %vm584, %v2343, 0
    %v2356 = vsel %vm584, %v2345, 0
    %2358 = vmatprep.subr.mxu0 0.0
    %2359 = vmatpush1.msra.mxu0 %v2347
    %2360 = vmatprep.subr.mxu0 0.0
    %2361 = vmatpush1.msra.mxu0 %v2349
    %2362 = vmatprep.subr.mxu0 0.0
    %2363 = vmatpush1.msra.mxu0 0.0
    %2364 = vmatprep.subr.mxu0 0.0
    %2365 = vmatpush1.msra.mxu0 0.0
    %2366 = vmatprep.subr.mxu0 0.0
    %2367 = vmatpush1.msra.mxu0 0.0
    %2368 = vmatprep.subr.mxu0 0.0
    %2369 = vmatpush1.msra.mxu0 0.0
    %2370 = vmatprep.subr.mxu0 0.0
    %2371 = vmatpush1.msra.mxu0 0.0
    %2372 = vmatprep.subr.mxu0 0.0
    %2373 = vmatpush1.msra.mxu0 0.0
    %2374 = vmatprep.subr.mxu0 0.0
    %2375 = vmatpush1.msra.mxu0 0.0
    %2376 = vmatprep.subr.mxu0 0.0
    %2377 = vmatpush1.msra.mxu0 0.0
    %2378 = vmatprep.subr.mxu0 0.0
    %2379 = vmatpush1.msra.mxu0 0.0
    %2380 = vmatprep.subr.mxu0 0.0
    %2381 = vmatpush1.msra.mxu0 0.0
    %2382 = vmatprep.subr.mxu0 0.0
    %2383 = vmatpush1.msra.mxu0 0.0
    %2384 = vmatprep.subr.mxu0 0.0
    %2385 = vmatpush1.msra.mxu0 0.0
    %2386 = vmatprep.subr.mxu0 0.0
    %2387 = vmatpush1.msra.mxu0 0.0
    %2388 = vmatprep.subr.mxu0 0.0
    %2389 = vmatpush1.msra.mxu0 0.0
    %2390 = vmatprep.subr.mxu0 0.0
    %2391 = vmatpush1.msra.mxu0 0.0
    %2392 = vmatprep.subr.mxu0 0.0
    %2393 = vmatpush1.msra.mxu0 0.0
    %2394 = vmatprep.subr.mxu0 0.0
    %2395 = vmatpush1.msra.mxu0 0.0
    %2396 = vmatprep.subr.mxu0 0.0
    %2397 = vmatpush1.msra.mxu0 0.0
    %2398 = vmatprep.subr.mxu0 0.0
    %2399 = vmatpush1.msra.mxu0 0.0
    %2400 = vmatprep.subr.mxu0 0.0
    %2401 = vmatpush1.msra.mxu0 0.0
    %2402 = vmatprep.subr.mxu0 0.0
    %2403 = vmatpush1.msra.mxu0 0.0
    %2404 = vmatprep.subr.mxu0 0.0
    %2405 = vmatpush1.msra.mxu0 0.0
    %2406 = vmatprep.subr.mxu0 0.0
    %2407 = vmatpush1.msra.mxu0 0.0
    %2408 = vmatprep.subr.mxu0 0.0
    %2409 = vmatpush1.msra.mxu0 0.0
    %2410 = vmatprep.subr.mxu0 0.0
    %2411 = vmatpush1.msra.mxu0 0.0
    %2412 = vmatprep.subr.mxu0 0.0
    %2413 = vmatpush1.msra.mxu0 0.0
    %2414 = vmatprep.subr.mxu0 0.0
    %2415 = vmatpush1.msra.mxu0 0.0
    %2416 = vmatprep.subr.mxu0 0.0
    %2417 = vmatpush1.msra.mxu0 0.0
    %2418 = vmatprep.subr.mxu0 0.0
    %2419 = vmatpush1.msra.mxu0 0.0
    %2420 = vmatprep.subr.mxu0 0.0
    %2421 = vmatpush1.msra.mxu0 0.0
    %2422 = vmatprep.mubr.f32.mxu0 0.0
    %2423 = vmatmul.mubr.f32.gmra.mrb[0].mxu0 %v2353
    %v2424 = vpop.f32.mrb[0].mxu0
    %v2425 = vadd.f32 0.0, %v2424
    %v2426 = vpop.f32.mrb[0].mxu0
    %2427 = vmatprep.mubr.f32.mxu0 0.0
    %2428 = vmatmul.mubr.f32.gmra.mrb[0].mxu0 %v2356
    %v2429 = vpop.f32.mrb[0].mxu0
    %v2430 = vadd.f32 0.0, %v2429
    %v2431 = vpop.f32.mrb[0].mxu0
    %2432 = vdwg.mxu0
    %v2434 = vsel %vm496, %v2425, 0
    %v2437 = vsel %vm496, %v2430, 0
    %2439 = vmatprep.subr.mxu0 0.0
    %2440 = vmatpush1.msra.mxu0 %v1935
    %2441 = vmatprep.subr.mxu0 0.0
    %2442 = vmatpush1.msra.mxu0 0.0
    %2443 = vmatprep.subr.mxu0 0.0
    %2444 = vmatpush1.msra.mxu0 0.0
    %2445 = vmatprep.subr.mxu0 0.0
    %2446 = vmatpush1.msra.mxu0 0.0
    %2447 = vmatprep.subr.mxu0 0.0
    %2448 = vmatpush1.msra.mxu0 0.0
    %2449 = vmatprep.subr.mxu0 0.0
    %2450 = vmatpush1.msra.mxu0 0.0
    %2451 = vmatprep.subr.mxu0 0.0
    %2452 = vmatpush1.msra.mxu0 0.0
    %2453 = vmatprep.subr.mxu0 0.0
    %2454 = vmatpush1.msra.mxu0 0.0
    %2455 = vmatprep.subr.mxu0 0.0
    %2456 = vmatpush1.msra.mxu0 0.0
    %2457 = vmatprep.subr.mxu0 0.0
    %2458 = vmatpush1.msra.mxu0 0.0
    %2459 = vmatprep.subr.mxu0 0.0
    %2460 = vmatpush1.msra.mxu0 0.0
    %2461 = vmatprep.subr.mxu0 0.0
    %2462 = vmatpush1.msra.mxu0 0.0
    %2463 = vmatprep.subr.mxu0 0.0
    %2464 = vmatpush1.msra.mxu0 0.0
    %2465 = vmatprep.subr.mxu0 0.0
    %2466 = vmatpush1.msra.mxu0 0.0
    %2467 = vmatprep.subr.mxu0 0.0
    %2468 = vmatpush1.msra.mxu0 0.0
    %2469 = vmatprep.subr.mxu0 0.0
    %2470 = vmatpush1.msra.mxu0 0.0
    %2471 = vmatprep.subr.mxu0 0.0
    %2472 = vmatpush1.msra.mxu0 0.0
    %2473 = vmatprep.subr.mxu0 0.0
    %2474 = vmatpush1.msra.mxu0 0.0
    %2475 = vmatprep.subr.mxu0 0.0
    %2476 = vmatpush1.msra.mxu0 0.0
    %2477 = vmatprep.subr.mxu0 0.0
    %2478 = vmatpush1.msra.mxu0 0.0
    %2479 = vmatprep.subr.mxu0 0.0
    %2480 = vmatpush1.msra.mxu0 0.0
    %2481 = vmatprep.subr.mxu0 0.0
    %2482 = vmatpush1.msra.mxu0 0.0
    %2483 = vmatprep.subr.mxu0 0.0
    %2484 = vmatpush1.msra.mxu0 0.0
    %2485 = vmatprep.subr.mxu0 0.0
    %2486 = vmatpush1.msra.mxu0 0.0
    %2487 = vmatprep.subr.mxu0 0.0
    %2488 = vmatpush1.msra.mxu0 0.0
    %2489 = vmatprep.subr.mxu0 0.0
    %2490 = vmatpush1.msra.mxu0 0.0
    %2491 = vmatprep.subr.mxu0 0.0
    %2492 = vmatpush1.msra.mxu0 0.0
    %2493 = vmatprep.subr.mxu0 0.0
    %2494 = vmatpush1.msra.mxu0 0.0
    %2495 = vmatprep.subr.mxu0 0.0
    %2496 = vmatpush1.msra.mxu0 0.0
    %2497 = vmatprep.subr.mxu0 0.0
    %2498 = vmatpush1.msra.mxu0 0.0
    %2499 = vmatprep.subr.mxu0 0.0
    %2500 = vmatpush1.msra.mxu0 0.0
    %2501 = vmatprep.subr.mxu0 0.0
    %2502 = vmatpush1.msra.mxu0 0.0
    %2503 = vmatprep.mubr.f32.mxu0 0.0
    %2504 = vmatmul.mubr.f32.gmra.mrb[0].mxu0 %v2434
    %v2505 = vpop.f32.mrb[0].mxu0
    %v2506 = vadd.f32 0.0, %v2505
    %v2507 = vpop.f32.mrb[0].mxu0
    %2508 = vmatprep.mubr.f32.mxu0 0.0
    %2509 = vmatmul.mubr.f32.gmra.mrb[0].mxu0 %v2437
    %v2510 = vpop.f32.mrb[0].mxu0
    %v2511 = vadd.f32 0.0, %v2510
    %v2512 = vpop.f32.mrb[0].mxu0
    %2513 = vdwg.mxu0
    %v2515 = vsel %vm496, %v2221, 0
    %v2518 = vsel %vm496, %v2226, 0
    %2520 = vmatprep.subr.mxu0 0.0
    %2521 = vmatpush1.msra.mxu0 %v1934
    %2522 = vmatprep.subr.mxu0 0.0
    %2523 = vmatpush1.msra.mxu0 0.0
    %2524 = vmatprep.subr.mxu0 0.0
    %2525 = vmatpush1.msra.mxu0 0.0
    %2526 = vmatprep.subr.mxu0 0.0
    %2527 = vmatpush1.msra.mxu0 0.0
    %2528 = vmatprep.subr.mxu0 0.0
    %2529 = vmatpush1.msra.mxu0 0.0
    %2530 = vmatprep.subr.mxu0 0.0
    %2531 = vmatpush1.msra.mxu0 0.0
    %2532 = vmatprep.subr.mxu0 0.0
    %2533 = vmatpush1.msra.mxu0 0.0
    %2534 = vmatprep.subr.mxu0 0.0
    %2535 = vmatpush1.msra.mxu0 0.0
    %2536 = vmatprep.subr.mxu0 0.0
    %2537 = vmatpush1.msra.mxu0 0.0
    %2538 = vmatprep.subr.mxu0 0.0
    %2539 = vmatpush1.msra.mxu0 0.0
    %2540 = vmatprep.subr.mxu0 0.0
    %2541 = vmatpush1.msra.mxu0 0.0
    %2542 = vmatprep.subr.mxu0 0.0
    %2543 = vmatpush1.msra.mxu0 0.0
    %2544 = vmatprep.subr.mxu0 0.0
    %2545 = vmatpush1.msra.mxu0 0.0
    %2546 = vmatprep.subr.mxu0 0.0
    %2547 = vmatpush1.msra.mxu0 0.0
    %2548 = vmatprep.subr.mxu0 0.0
    %2549 = vmatpush1.msra.mxu0 0.0
    %2550 = vmatprep.subr.mxu0 0.0
    %2551 = vmatpush1.msra.mxu0 0.0
    %2552 = vmatprep.subr.mxu0 0.0
    %2553 = vmatpush1.msra.mxu0 0.0
    %2554 = vmatprep.subr.mxu0 0.0
    %2555 = vmatpush1.msra.mxu0 0.0
    %2556 = vmatprep.subr.mxu0 0.0
    %2557 = vmatpush1.msra.mxu0 0.0
    %2558 = vmatprep.subr.mxu0 0.0
    %2559 = vmatpush1.msra.mxu0 0.0
    %2560 = vmatprep.subr.mxu0 0.0
    %2561 = vmatpush1.msra.mxu0 0.0
    %2562 = vmatprep.subr.mxu0 0.0
    %2563 = vmatpush1.msra.mxu0 0.0
    %2564 = vmatprep.subr.mxu0 0.0
    %2565 = vmatpush1.msra.mxu0 0.0
    %2566 = vmatprep.subr.mxu0 0.0
    %2567 = vmatpush1.msra.mxu0 0.0
    %2568 = vmatprep.subr.mxu0 0.0
    %2569 = vmatpush1.msra.mxu0 0.0
    %2570 = vmatprep.subr.mxu0 0.0
    %2571 = vmatpush1.msra.mxu0 0.0
    %2572 = vmatprep.subr.mxu0 0.0
    %2573 = vmatpush1.msra.mxu0 0.0
    %2574 = vmatprep.subr.mxu0 0.0
    %2575 = vmatpush1.msra.mxu0 0.0
    %2576 = vmatprep.subr.mxu0 0.0
    %2577 = vmatpush1.msra.mxu0 0.0
    %2578 = vmatprep.subr.mxu0 0.0
    %2579 = vmatpush1.msra.mxu0 0.0
    %2580 = vmatprep.subr.mxu0 0.0
    %2581 = vmatpush1.msra.mxu0 0.0
    %2582 = vmatprep.subr.mxu0 0.0
    %2583 = vmatpush1.msra.mxu0 0.0
    %2584 = vmatprep.mubr.f32.mxu0 0.0
    %2585 = vmatmul.mubr.f32.gmra.mrb[0].mxu0 %v2515
    %v2586 = vpop.f32.mrb[0].mxu0
    %v2587 = vadd.f32 %v2506, %v2586
    %v2588 = vpop.f32.mrb[0].mxu0
    %2589 = vmatprep.mubr.f32.mxu0 0.0
    %2590 = vmatmul.mubr.f32.gmra.mrb[0].mxu0 %v2518
    %v2591 = vpop.f32.mrb[0].mxu0
    %v2592 = vadd.f32 %v2511, %v2591
    %v2593 = vpop.f32.mrb[0].mxu0
    %2594 = vdwg.mxu0
    %2595 = vrot.lane.b32.xlu0 %v2019, 112
    %v2596 = vpop.permute.xlu0 %2595
    %2597 = vrot.lane.b32.xlu0 %v2024, 112
    %v2598 = vpop.permute.xlu0 %2597
    %2599 = vrot.lane.b32.xlu0 %v2019, 80
    %v2600 = vpop.permute.xlu0 %2599
    %2601 = vrot.lane.b32.xlu0 %v2024, 80
    %v2602 = vpop.permute.xlu0 %2601
    %v2603 = vsel %vm496, %v2596, 0
    %v2605 = vsel %vm496, %v2598, 0
    %v2607 = vsel %vm496, %v2600, 0
    %v2609 = vsel %vm496, %v2602, 0
    %2611 = vmatprep.subr.mxu0 0.0
    %2612 = vmatpush1.xpose.msra.mxu0 %v2607
    %2613 = vmatprep.subr.mxu0 0.0
    %2614 = vmatpush1.xpose.msra.mxu0 %v2609
    %2615 = vmatprep.subr.mxu0 0.0
    %2616 = vmatpush1.xpose.msra.mxu0 0.0
    %2617 = vmatprep.subr.mxu0 0.0
    %2618 = vmatpush1.xpose.msra.mxu0 0.0
    %2619 = vmatprep.subr.mxu0 0.0
    %2620 = vmatpush1.xpose.msra.mxu0 0.0
    %2621 = vmatprep.subr.mxu0 0.0
    %2622 = vmatpush1.xpose.msra.mxu0 0.0
    %2623 = vmatprep.subr.mxu0 0.0
    %2624 = vmatpush1.xpose.msra.mxu0 0.0
    %2625 = vmatprep.subr.mxu0 0.0
    %2626 = vmatpush1.xpose.msra.mxu0 0.0
    %2627 = vmatprep.subr.mxu0 0.0
    %2628 = vmatpush1.xpose.msra.mxu0 0.0
    %2629 = vmatprep.subr.mxu0 0.0
    %2630 = vmatpush1.xpose.msra.mxu0 0.0
    %2631 = vmatprep.subr.mxu0 0.0
    %2632 = vmatpush1.xpose.msra.mxu0 0.0
    %2633 = vmatprep.subr.mxu0 0.0
    %2634 = vmatpush1.xpose.msra.mxu0 0.0
    %2635 = vmatprep.subr.mxu0 0.0
    %2636 = vmatpush1.xpose.msra.mxu0 0.0
    %2637 = vmatprep.subr.mxu0 0.0
    %2638 = vmatpush1.xpose.msra.mxu0 0.0
    %2639 = vmatprep.subr.mxu0 0.0
    %2640 = vmatpush1.xpose.msra.mxu0 0.0
    %2641 = vmatprep.subr.mxu0 0.0
    %2642 = vmatpush1.xpose.msra.mxu0 0.0
    %2643 = vmatprep.subr.mxu0 0.0
    %2644 = vmatpush1.xpose.msra.mxu0 0.0
    %2645 = vmatprep.subr.mxu0 0.0
    %2646 = vmatpush1.xpose.msra.mxu0 0.0
    %2647 = vmatprep.subr.mxu0 0.0
    %2648 = vmatpush1.xpose.msra.mxu0 0.0
    %2649 = vmatprep.subr.mxu0 0.0
    %2650 = vmatpush1.xpose.msra.mxu0 0.0
    %2651 = vmatprep.subr.mxu0 0.0
    %2652 = vmatpush1.xpose.msra.mxu0 0.0
    %2653 = vmatprep.subr.mxu0 0.0
    %2654 = vmatpush1.xpose.msra.mxu0 0.0
    %2655 = vmatprep.subr.mxu0 0.0
    %2656 = vmatpush1.xpose.msra.mxu0 0.0
    %2657 = vmatprep.subr.mxu0 0.0
    %2658 = vmatpush1.xpose.msra.mxu0 0.0
    %2659 = vmatprep.subr.mxu0 0.0
    %2660 = vmatpush1.xpose.msra.mxu0 0.0
    %2661 = vmatprep.subr.mxu0 0.0
    %2662 = vmatpush1.xpose.msra.mxu0 0.0
    %2663 = vmatprep.subr.mxu0 0.0
    %2664 = vmatpush1.xpose.msra.mxu0 0.0
    %2665 = vmatprep.subr.mxu0 0.0
    %2666 = vmatpush1.xpose.msra.mxu0 0.0
    %2667 = vmatprep.subr.mxu0 0.0
    %2668 = vmatpush1.xpose.msra.mxu0 0.0
    %2669 = vmatprep.subr.mxu0 0.0
    %2670 = vmatpush1.xpose.msra.mxu0 0.0
    %2671 = vmatprep.subr.mxu0 0.0
    %2672 = vmatpush1.xpose.msra.mxu0 0.0
    %2673 = vmatprep.subr.mxu0 0.0
    %2674 = vmatpush1.xpose.msra.mxu0 0.0
    %2675 = vmatprep.mubr.f32.mxu0 0.0
    %2676 = vmatmul.mubr.f32.gmra.mrb[0].mxu0 %v2603
    %v2677 = vpop.f32.mrb[0].mxu0
    %v2678 = vadd.f32 0.0, %v2677
    %v2679 = vpop.f32.mrb[0].mxu0
    %2680 = vmatprep.mubr.f32.mxu0 0.0
    %2681 = vmatmul.mubr.f32.gmra.mrb[0].mxu0 %v2605
    %v2682 = vpop.f32.mrb[0].mxu0
    %v2683 = vadd.f32 0.0, %v2682
    %v2684 = vpop.f32.mrb[0].mxu0
    %2685 = vdwg.mxu0
    %v2686 = vmul.f32 %v2678, 0.35355338
    %v2687 = vmul.f32 %v2683, 0.35355338
    %v2688 = vadd.f32 %v2686, %v384
    %v2689 = vadd.f32 %v2687, %v385
    %v2690 = vsel %vm584, %v2688, -inf
    %2691 = vmax.xlane.f32.xlu0 %v2690
    %v2692 = vpop.xlane.xlu0 %2691
    %v2693 = vsel %vm584, %v2689, -inf
    %2694 = vmax.xlane.f32.xlu0 %v2693
    %v2695 = vpop.xlane.xlu0 %2694
    %v2696 = vsub.f32 %v2688, %v2692
    %v2697 = vsub.f32 %v2689, %v2695
    %v2698 = vmul.f32 %v2696, 1.442695
    %v2699 = vpow.pop %v2698
    %v2700 = vmul.f32 %v2697, 1.442695
    %v2701 = vpow.pop %v2700
    %v2702 = vsel %vm584, %v2699, 0.0
    %2703 = vadd.xlane.f32.xlu0 %v2702
    %v2704 = vpop.xlane.xlu0 %2703
    %v2705 = vsel %vm584, %v2701, 0.0
    %2706 = vadd.xlane.f32.xlu0 %v2705
    %v2707 = vpop.xlane.xlu0 %2706
    %v2708 = vrcp.pop %v2704
    %v2709 = vmul.f32 %v2699, %v2708
    %v2710 = vrcp.pop %v2707
    %v2711 = vmul.f32 %v2701, %v2710
    %2712 = vrot.lane.b32.xlu0 %v2019, 48
    %v2713 = vpop.permute.xlu0 %2712
    %2714 = vrot.lane.b32.xlu0 %v2024, 48
    %v2715 = vpop.permute.xlu0 %2714
    %v2719 = vsel %vm584, %v2709, 0
    %v2722 = vsel %vm584, %v2711, 0
    %2724 = vmatprep.subr.mxu0 0.0
    %2725 = vmatpush1.msra.mxu0 %v2713
    %2726 = vmatprep.subr.mxu0 0.0
    %2727 = vmatpush1.msra.mxu0 %v2715
    %2728 = vmatprep.subr.mxu0 0.0
    %2729 = vmatpush1.msra.mxu0 0.0
    %2730 = vmatprep.subr.mxu0 0.0
    %2731 = vmatpush1.msra.mxu0 0.0
    %2732 = vmatprep.subr.mxu0 0.0
    %2733 = vmatpush1.msra.mxu0 0.0
    %2734 = vmatprep.subr.mxu0 0.0
    %2735 = vmatpush1.msra.mxu0 0.0
    %2736 = vmatprep.subr.mxu0 0.0
    %2737 = vmatpush1.msra.mxu0 0.0
    %2738 = vmatprep.subr.mxu0 0.0
    %2739 = vmatpush1.msra.mxu0 0.0
    %2740 = vmatprep.subr.mxu0 0.0
    %2741 = vmatpush1.msra.mxu0 0.0
    %2742 = vmatprep.subr.mxu0 0.0
    %2743 = vmatpush1.msra.mxu0 0.0
    %2744 = vmatprep.subr.mxu0 0.0
    %2745 = vmatpush1.msra.mxu0 0.0
    %2746 = vmatprep.subr.mxu0 0.0
    %2747 = vmatpush1.msra.mxu0 0.0
    %2748 = vmatprep.subr.mxu0 0.0
    %2749 = vmatpush1.msra.mxu0 0.0
    %2750 = vmatprep.subr.mxu0 0.0
    %2751 = vmatpush1.msra.mxu0 0.0
    %2752 = vmatprep.subr.mxu0 0.0
    %2753 = vmatpush1.msra.mxu0 0.0
    %2754 = vmatprep.subr.mxu0 0.0
    %2755 = vmatpush1.msra.mxu0 0.0
    %2756 = vmatprep.subr.mxu0 0.0
    %2757 = vmatpush1.msra.mxu0 0.0
    %2758 = vmatprep.subr.mxu0 0.0
    %2759 = vmatpush1.msra.mxu0 0.0
    %2760 = vmatprep.subr.mxu0 0.0
    %2761 = vmatpush1.msra.mxu0 0.0
    %2762 = vmatprep.subr.mxu0 0.0
    %2763 = vmatpush1.msra.mxu0 0.0
    %2764 = vmatprep.subr.mxu0 0.0
    %2765 = vmatpush1.msra.mxu0 0.0
    %2766 = vmatprep.subr.mxu0 0.0
    %2767 = vmatpush1.msra.mxu0 0.0
    %2768 = vmatprep.subr.mxu0 0.0
    %2769 = vmatpush1.msra.mxu0 0.0
    %2770 = vmatprep.subr.mxu0 0.0
    %2771 = vmatpush1.msra.mxu0 0.0
    %2772 = vmatprep.subr.mxu0 0.0
    %2773 = vmatpush1.msra.mxu0 0.0
    %2774 = vmatprep.subr.mxu0 0.0
    %2775 = vmatpush1.msra.mxu0 0.0
    %2776 = vmatprep.subr.mxu0 0.0
    %2777 = vmatpush1.msra.mxu0 0.0
    %2778 = vmatprep.subr.mxu0 0.0
    %2779 = vmatpush1.msra.mxu0 0.0
    %2780 = vmatprep.subr.mxu0 0.0
    %2781 = vmatpush1.msra.mxu0 0.0
    %2782 = vmatprep.subr.mxu0 0.0
    %2783 = vmatpush1.msra.mxu0 0.0
    %2784 = vmatprep.subr.mxu0 0.0
    %2785 = vmatpush1.msra.mxu0 0.0
    %2786 = vmatprep.subr.mxu0 0.0
    %2787 = vmatpush1.msra.mxu0 0.0
    %2788 = vmatprep.mubr.f32.mxu0 0.0
    %2789 = vmatmul.mubr.f32.gmra.mrb[0].mxu0 %v2719
    %v2790 = vpop.f32.mrb[0].mxu0
    %v2791 = vadd.f32 0.0, %v2790
    %v2792 = vpop.f32.mrb[0].mxu0
    %2793 = vmatprep.mubr.f32.mxu0 0.0
    %2794 = vmatmul.mubr.f32.gmra.mrb[0].mxu0 %v2722
    %v2795 = vpop.f32.mrb[0].mxu0
    %v2796 = vadd.f32 0.0, %v2795
    %v2797 = vpop.f32.mrb[0].mxu0
    %2798 = vdwg.mxu0
    %v2800 = vsel %vm496, %v2791, 0
    %v2803 = vsel %vm496, %v2796, 0
    %2805 = vmatprep.subr.mxu0 0.0
    %2806 = vmatpush1.msra.mxu0 %v1936
    %2807 = vmatprep.subr.mxu0 0.0
    %2808 = vmatpush1.msra.mxu0 0.0
    %2809 = vmatprep.subr.mxu0 0.0
    %2810 = vmatpush1.msra.mxu0 0.0
    %2811 = vmatprep.subr.mxu0 0.0
    %2812 = vmatpush1.msra.mxu0 0.0
    %2813 = vmatprep.subr.mxu0 0.0
    %2814 = vmatpush1.msra.mxu0 0.0
    %2815 = vmatprep.subr.mxu0 0.0
    %2816 = vmatpush1.msra.mxu0 0.0
    %2817 = vmatprep.subr.mxu0 0.0
    %2818 = vmatpush1.msra.mxu0 0.0
    %2819 = vmatprep.subr.mxu0 0.0
    %2820 = vmatpush1.msra.mxu0 0.0
    %2821 = vmatprep.subr.mxu0 0.0
    %2822 = vmatpush1.msra.mxu0 0.0
    %2823 = vmatprep.subr.mxu0 0.0
    %2824 = vmatpush1.msra.mxu0 0.0
    %2825 = vmatprep.subr.mxu0 0.0
    %2826 = vmatpush1.msra.mxu0 0.0
    %2827 = vmatprep.subr.mxu0 0.0
    %2828 = vmatpush1.msra.mxu0 0.0
    %2829 = vmatprep.subr.mxu0 0.0
    %2830 = vmatpush1.msra.mxu0 0.0
    %2831 = vmatprep.subr.mxu0 0.0
    %2832 = vmatpush1.msra.mxu0 0.0
    %2833 = vmatprep.subr.mxu0 0.0
    %2834 = vmatpush1.msra.mxu0 0.0
    %2835 = vmatprep.subr.mxu0 0.0
    %2836 = vmatpush1.msra.mxu0 0.0
    %2837 = vmatprep.subr.mxu0 0.0
    %2838 = vmatpush1.msra.mxu0 0.0
    %2839 = vmatprep.subr.mxu0 0.0
    %2840 = vmatpush1.msra.mxu0 0.0
    %2841 = vmatprep.subr.mxu0 0.0
    %2842 = vmatpush1.msra.mxu0 0.0
    %2843 = vmatprep.subr.mxu0 0.0
    %2844 = vmatpush1.msra.mxu0 0.0
    %2845 = vmatprep.subr.mxu0 0.0
    %2846 = vmatpush1.msra.mxu0 0.0
    %2847 = vmatprep.subr.mxu0 0.0
    %2848 = vmatpush1.msra.mxu0 0.0
    %2849 = vmatprep.subr.mxu0 0.0
    %2850 = vmatpush1.msra.mxu0 0.0
    %2851 = vmatprep.subr.mxu0 0.0
    %2852 = vmatpush1.msra.mxu0 0.0
    %2853 = vmatprep.subr.mxu0 0.0
    %2854 = vmatpush1.msra.mxu0 0.0
    %2855 = vmatprep.subr.mxu0 0.0
    %2856 = vmatpush1.msra.mxu0 0.0
    %2857 = vmatprep.subr.mxu0 0.0
    %2858 = vmatpush1.msra.mxu0 0.0
    %2859 = vmatprep.subr.mxu0 0.0
    %2860 = vmatpush1.msra.mxu0 0.0
    %2861 = vmatprep.subr.mxu0 0.0
    %2862 = vmatpush1.msra.mxu0 0.0
    %2863 = vmatprep.subr.mxu0 0.0
    %2864 = vmatpush1.msra.mxu0 0.0
    %2865 = vmatprep.subr.mxu0 0.0
    %2866 = vmatpush1.msra.mxu0 0.0
    %2867 = vmatprep.subr.mxu0 0.0
    %2868 = vmatpush1.msra.mxu0 0.0
    %2869 = vmatprep.mubr.f32.mxu0 0.0
    %2870 = vmatmul.mubr.f32.gmra.mrb[0].mxu0 %v2800
    %v2871 = vpop.f32.mrb[0].mxu0
    %v2872 = vadd.f32 0.0, %v2871
    %v2873 = vpop.f32.mrb[0].mxu0
    %2874 = vmatprep.mubr.f32.mxu0 0.0
    %2875 = vmatmul.mubr.f32.gmra.mrb[0].mxu0 %v2803
    %v2876 = vpop.f32.mrb[0].mxu0
    %v2877 = vadd.f32 0.0, %v2876
    %v2878 = vpop.f32.mrb[0].mxu0
    %2879 = vdwg.mxu0
    %v2880 = vadd.f32 %v2587, %v2872
    %v2881 = vadd.f32 %v2592, %v2877
    %2882 = vrot.lane.b32.xlu0 %v2019, 104
    %v2883 = vpop.permute.xlu0 %2882
    %2884 = vrot.lane.b32.xlu0 %v2024, 104
    %v2885 = vpop.permute.xlu0 %2884
    %2886 = vrot.lane.b32.xlu0 %v2019, 72
    %v2887 = vpop.permute.xlu0 %2886
    %2888 = vrot.lane.b32.xlu0 %v2024, 72
    %v2889 = vpop.permute.xlu0 %2888
    %v2890 = vsel %vm496, %v2883, 0
    %v2892 = vsel %vm496, %v2885, 0
    %v2894 = vsel %vm496, %v2887, 0
    %v2896 = vsel %vm496, %v2889, 0
    %2898 = vmatprep.subr.mxu0 0.0
    %2899 = vmatpush1.xpose.msra.mxu0 %v2894
    %2900 = vmatprep.subr.mxu0 0.0
    %2901 = vmatpush1.xpose.msra.mxu0 %v2896
    %2902 = vmatprep.subr.mxu0 0.0
    %2903 = vmatpush1.xpose.msra.mxu0 0.0
    %2904 = vmatprep.subr.mxu0 0.0
    %2905 = vmatpush1.xpose.msra.mxu0 0.0
    %2906 = vmatprep.subr.mxu0 0.0
    %2907 = vmatpush1.xpose.msra.mxu0 0.0
    %2908 = vmatprep.subr.mxu0 0.0
    %2909 = vmatpush1.xpose.msra.mxu0 0.0
    %2910 = vmatprep.subr.mxu0 0.0
    %2911 = vmatpush1.xpose.msra.mxu0 0.0
    %2912 = vmatprep.subr.mxu0 0.0
    %2913 = vmatpush1.xpose.msra.mxu0 0.0
    %2914 = vmatprep.subr.mxu0 0.0
    %2915 = vmatpush1.xpose.msra.mxu0 0.0
    %2916 = vmatprep.subr.mxu0 0.0
    %2917 = vmatpush1.xpose.msra.mxu0 0.0
    %2918 = vmatprep.subr.mxu0 0.0
    %2919 = vmatpush1.xpose.msra.mxu0 0.0
    %2920 = vmatprep.subr.mxu0 0.0
    %2921 = vmatpush1.xpose.msra.mxu0 0.0
    %2922 = vmatprep.subr.mxu0 0.0
    %2923 = vmatpush1.xpose.msra.mxu0 0.0
    %2924 = vmatprep.subr.mxu0 0.0
    %2925 = vmatpush1.xpose.msra.mxu0 0.0
    %2926 = vmatprep.subr.mxu0 0.0
    %2927 = vmatpush1.xpose.msra.mxu0 0.0
    %2928 = vmatprep.subr.mxu0 0.0
    %2929 = vmatpush1.xpose.msra.mxu0 0.0
    %2930 = vmatprep.subr.mxu0 0.0
    %2931 = vmatpush1.xpose.msra.mxu0 0.0
    %2932 = vmatprep.subr.mxu0 0.0
    %2933 = vmatpush1.xpose.msra.mxu0 0.0
    %2934 = vmatprep.subr.mxu0 0.0
    %2935 = vmatpush1.xpose.msra.mxu0 0.0
    %2936 = vmatprep.subr.mxu0 0.0
    %2937 = vmatpush1.xpose.msra.mxu0 0.0
    %2938 = vmatprep.subr.mxu0 0.0
    %2939 = vmatpush1.xpose.msra.mxu0 0.0
    %2940 = vmatprep.subr.mxu0 0.0
    %2941 = vmatpush1.xpose.msra.mxu0 0.0
    %2942 = vmatprep.subr.mxu0 0.0
    %2943 = vmatpush1.xpose.msra.mxu0 0.0
    %2944 = vmatprep.subr.mxu0 0.0
    %2945 = vmatpush1.xpose.msra.mxu0 0.0
    %2946 = vmatprep.subr.mxu0 0.0
    %2947 = vmatpush1.xpose.msra.mxu0 0.0
    %2948 = vmatprep.subr.mxu0 0.0
    %2949 = vmatpush1.xpose.msra.mxu0 0.0
    %2950 = vmatprep.subr.mxu0 0.0
    %2951 = vmatpush1.xpose.msra.mxu0 0.0
    %2952 = vmatprep.subr.mxu0 0.0
    %2953 = vmatpush1.xpose.msra.mxu0 0.0
    %2954 = vmatprep.subr.mxu0 0.0
    %2955 = vmatpush1.xpose.msra.mxu0 0.0
    %2956 = vmatprep.subr.mxu0 0.0
    %2957 = vmatpush1.xpose.msra.mxu0 0.0
    %2958 = vmatprep.subr.mxu0 0.0
    %2959 = vmatpush1.xpose.msra.mxu0 0.0
    %2960 = vmatprep.subr.mxu0 0.0
    %2961 = vmatpush1.xpose.msra.mxu0 0.0
    %2962 = vmatprep.mubr.f32.mxu0 0.0
    %2963 = vmatmul.mubr.f32.gmra.mrb[0].mxu0 %v2890
    %v2964 = vpop.f32.mrb[0].mxu0
    %v2965 = vadd.f32 0.0, %v2964
    %v2966 = vpop.f32.mrb[0].mxu0
    %2967 = vmatprep.mubr.f32.mxu0 0.0
    %2968 = vmatmul.mubr.f32.gmra.mrb[0].mxu0 %v2892
    %v2969 = vpop.f32.mrb[0].mxu0
    %v2970 = vadd.f32 0.0, %v2969
    %v2971 = vpop.f32.mrb[0].mxu0
    %2972 = vdwg.mxu0
    %v2973 = vmul.f32 %v2965, 0.35355338
    %v2974 = vmul.f32 %v2970, 0.35355338
    %v2975 = vadd.f32 %v2973, %v384
    %v2976 = vadd.f32 %v2974, %v385
    %v2977 = vsel %vm584, %v2975, -inf
    %2978 = vmax.xlane.f32.xlu0 %v2977
    %v2979 = vpop.xlane.xlu0 %2978
    %v2980 = vsel %vm584, %v2976, -inf
    %2981 = vmax.xlane.f32.xlu0 %v2980
    %v2982 = vpop.xlane.xlu0 %2981
    %v2983 = vsub.f32 %v2975, %v2979
    %v2984 = vsub.f32 %v2976, %v2982
    %v2985 = vmul.f32 %v2983, 1.442695
    %v2986 = vpow.pop %v2985
    %v2987 = vmul.f32 %v2984, 1.442695
    %v2988 = vpow.pop %v2987
    %v2989 = vsel %vm584, %v2986, 0.0
    %2990 = vadd.xlane.f32.xlu0 %v2989
    %v2991 = vpop.xlane.xlu0 %2990
    %v2992 = vsel %vm584, %v2988, 0.0
    %2993 = vadd.xlane.f32.xlu0 %v2992
    %v2994 = vpop.xlane.xlu0 %2993
    %v2995 = vrcp.pop %v2991
    %v2996 = vmul.f32 %v2986, %v2995
    %v2997 = vrcp.pop %v2994
    %v2998 = vmul.f32 %v2988, %v2997
    %2999 = vrot.lane.b32.xlu0 %v2019, 40
    %v3000 = vpop.permute.xlu0 %2999
    %3001 = vrot.lane.b32.xlu0 %v2024, 40
    %v3002 = vpop.permute.xlu0 %3001
    %v3006 = vsel %vm584, %v2996, 0
    %v3009 = vsel %vm584, %v2998, 0
    %3011 = vmatprep.subr.mxu0 0.0
    %3012 = vmatpush1.msra.mxu0 %v3000
    %3013 = vmatprep.subr.mxu0 0.0
    %3014 = vmatpush1.msra.mxu0 %v3002
    %3015 = vmatprep.subr.mxu0 0.0
    %3016 = vmatpush1.msra.mxu0 0.0
    %3017 = vmatprep.subr.mxu0 0.0
    %3018 = vmatpush1.msra.mxu0 0.0
    %3019 = vmatprep.subr.mxu0 0.0
    %3020 = vmatpush1.msra.mxu0 0.0
    %3021 = vmatprep.subr.mxu0 0.0
    %3022 = vmatpush1.msra.mxu0 0.0
    %3023 = vmatprep.subr.mxu0 0.0
    %3024 = vmatpush1.msra.mxu0 0.0
    %3025 = vmatprep.subr.mxu0 0.0
    %3026 = vmatpush1.msra.mxu0 0.0
    %3027 = vmatprep.subr.mxu0 0.0
    %3028 = vmatpush1.msra.mxu0 0.0
    %3029 = vmatprep.subr.mxu0 0.0
    %3030 = vmatpush1.msra.mxu0 0.0
    %3031 = vmatprep.subr.mxu0 0.0
    %3032 = vmatpush1.msra.mxu0 0.0
    %3033 = vmatprep.subr.mxu0 0.0
    %3034 = vmatpush1.msra.mxu0 0.0
    %3035 = vmatprep.subr.mxu0 0.0
    %3036 = vmatpush1.msra.mxu0 0.0
    %3037 = vmatprep.subr.mxu0 0.0
    %3038 = vmatpush1.msra.mxu0 0.0
    %3039 = vmatprep.subr.mxu0 0.0
    %3040 = vmatpush1.msra.mxu0 0.0
    %3041 = vmatprep.subr.mxu0 0.0
    %3042 = vmatpush1.msra.mxu0 0.0
    %3043 = vmatprep.subr.mxu0 0.0
    %3044 = vmatpush1.msra.mxu0 0.0
    %3045 = vmatprep.subr.mxu0 0.0
    %3046 = vmatpush1.msra.mxu0 0.0
    %3047 = vmatprep.subr.mxu0 0.0
    %3048 = vmatpush1.msra.mxu0 0.0
    %3049 = vmatprep.subr.mxu0 0.0
    %3050 = vmatpush1.msra.mxu0 0.0
    %3051 = vmatprep.subr.mxu0 0.0
    %3052 = vmatpush1.msra.mxu0 0.0
    %3053 = vmatprep.subr.mxu0 0.0
    %3054 = vmatpush1.msra.mxu0 0.0
    %3055 = vmatprep.subr.mxu0 0.0
    %3056 = vmatpush1.msra.mxu0 0.0
    %3057 = vmatprep.subr.mxu0 0.0
    %3058 = vmatpush1.msra.mxu0 0.0
    %3059 = vmatprep.subr.mxu0 0.0
    %3060 = vmatpush1.msra.mxu0 0.0
    %3061 = vmatprep.subr.mxu0 0.0
    %3062 = vmatpush1.msra.mxu0 0.0
    %3063 = vmatprep.subr.mxu0 0.0
    %3064 = vmatpush1.msra.mxu0 0.0
    %3065 = vmatprep.subr.mxu0 0.0
    %3066 = vmatpush1.msra.mxu0 0.0
    %3067 = vmatprep.subr.mxu0 0.0
    %3068 = vmatpush1.msra.mxu0 0.0
    %3069 = vmatprep.subr.mxu0 0.0
    %3070 = vmatpush1.msra.mxu0 0.0
    %3071 = vmatprep.subr.mxu0 0.0
    %3072 = vmatpush1.msra.mxu0 0.0
    %3073 = vmatprep.subr.mxu0 0.0
    %3074 = vmatpush1.msra.mxu0 0.0
    %3075 = vmatprep.mubr.f32.mxu0 0.0
    %3076 = vmatmul.mubr.f32.gmra.mrb[0].mxu0 %v3006
    %v3077 = vpop.f32.mrb[0].mxu0
    %v3078 = vadd.f32 0.0, %v3077
    %v3079 = vpop.f32.mrb[0].mxu0
    %3080 = vmatprep.mubr.f32.mxu0 0.0
    %3081 = vmatmul.mubr.f32.gmra.mrb[0].mxu0 %v3009
    %v3082 = vpop.f32.mrb[0].mxu0
    %v3083 = vadd.f32 0.0, %v3082
    %v3084 = vpop.f32.mrb[0].mxu0
    %3085 = vdwg.mxu0
    %v3087 = vsel %vm496, %v3078, 0
    %v3090 = vsel %vm496, %v3083, 0
    %3092 = vmatprep.subr.mxu0 0.0
    %3093 = vmatpush1.msra.mxu0 %v1937
    %3094 = vmatprep.subr.mxu0 0.0
    %3095 = vmatpush1.msra.mxu0 0.0
    %3096 = vmatprep.subr.mxu0 0.0
    %3097 = vmatpush1.msra.mxu0 0.0
    %3098 = vmatprep.subr.mxu0 0.0
    %3099 = vmatpush1.msra.mxu0 0.0
    %3100 = vmatprep.subr.mxu0 0.0
    %3101 = vmatpush1.msra.mxu0 0.0
    %3102 = vmatprep.subr.mxu0 0.0
    %3103 = vmatpush1.msra.mxu0 0.0
    %3104 = vmatprep.subr.mxu0 0.0
    %3105 = vmatpush1.msra.mxu0 0.0
    %3106 = vmatprep.subr.mxu0 0.0
    %3107 = vmatpush1.msra.mxu0 0.0
    %3108 = vmatprep.subr.mxu0 0.0
    %3109 = vmatpush1.msra.mxu0 0.0
    %3110 = vmatprep.subr.mxu0 0.0
    %3111 = vmatpush1.msra.mxu0 0.0
    %3112 = vmatprep.subr.mxu0 0.0
    %3113 = vmatpush1.msra.mxu0 0.0
    %3114 = vmatprep.subr.mxu0 0.0
    %3115 = vmatpush1.msra.mxu0 0.0
    %3116 = vmatprep.subr.mxu0 0.0
    %3117 = vmatpush1.msra.mxu0 0.0
    %3118 = vmatprep.subr.mxu0 0.0
    %3119 = vmatpush1.msra.mxu0 0.0
    %3120 = vmatprep.subr.mxu0 0.0
    %3121 = vmatpush1.msra.mxu0 0.0
    %3122 = vmatprep.subr.mxu0 0.0
    %3123 = vmatpush1.msra.mxu0 0.0
    %3124 = vmatprep.subr.mxu0 0.0
    %3125 = vmatpush1.msra.mxu0 0.0
    %3126 = vmatprep.subr.mxu0 0.0
    %3127 = vmatpush1.msra.mxu0 0.0
    %3128 = vmatprep.subr.mxu0 0.0
    %3129 = vmatpush1.msra.mxu0 0.0
    %3130 = vmatprep.subr.mxu0 0.0
    %3131 = vmatpush1.msra.mxu0 0.0
    %3132 = vmatprep.subr.mxu0 0.0
    %3133 = vmatpush1.msra.mxu0 0.0
    %3134 = vmatprep.subr.mxu0 0.0
    %3135 = vmatpush1.msra.mxu0 0.0
    %3136 = vmatprep.subr.mxu0 0.0
    %3137 = vmatpush1.msra.mxu0 0.0
    %3138 = vmatprep.subr.mxu0 0.0
    %3139 = vmatpush1.msra.mxu0 0.0
    %3140 = vmatprep.subr.mxu0 0.0
    %3141 = vmatpush1.msra.mxu0 0.0
    %3142 = vmatprep.subr.mxu0 0.0
    %3143 = vmatpush1.msra.mxu0 0.0
    %3144 = vmatprep.subr.mxu0 0.0
    %3145 = vmatpush1.msra.mxu0 0.0
    %3146 = vmatprep.subr.mxu0 0.0
    %3147 = vmatpush1.msra.mxu0 0.0
    %3148 = vmatprep.subr.mxu0 0.0
    %3149 = vmatpush1.msra.mxu0 0.0
    %3150 = vmatprep.subr.mxu0 0.0
    %3151 = vmatpush1.msra.mxu0 0.0
    %3152 = vmatprep.subr.mxu0 0.0
    %3153 = vmatpush1.msra.mxu0 0.0
    %3154 = vmatprep.subr.mxu0 0.0
    %3155 = vmatpush1.msra.mxu0 0.0
    %3156 = vmatprep.mubr.f32.mxu0 0.0
    %3157 = vmatmul.mubr.f32.gmra.mrb[0].mxu0 %v3087
    %v3158 = vpop.f32.mrb[0].mxu0
    %v3159 = vadd.f32 0.0, %v3158
    %v3160 = vpop.f32.mrb[0].mxu0
    %3161 = vmatprep.mubr.f32.mxu0 0.0
    %3162 = vmatmul.mubr.f32.gmra.mrb[0].mxu0 %v3090
    %v3163 = vpop.f32.mrb[0].mxu0
    %v3164 = vadd.f32 0.0, %v3163
    %v3165 = vpop.f32.mrb[0].mxu0
    %3166 = vdwg.mxu0
    %v3167 = vadd.f32 %v2880, %v3159
    %v3168 = vadd.f32 %v2881, %v3164
    %v3170 = vlaneseq
    %v3171 = vshrl.u32 %v3170, 7
    %v3172 = vsub.s32 0, %v3171
    %v3173 = vrot.slane %v1939, %v3172
    %v3175 = vadd.f32 %v3167, %v3173
    %v3176 = vadd.f32 %v3168, %v3173
    %v3177 = vadd.f32 %v1924, %v3175
    %v3178 = vadd.f32 %v1925, %v3176
    %s3179 = scalar_lea.vmem [#allocation14], 1
    %v3180 = vld [vmem:[%s3179] sm:$0x1]
    %s3181 = scalar_lea.vmem [#allocation16], 1
    %v3182 = vld [vmem:[%s3181] sm:$0x1]
    %v3183 = vsel %vm408, %v3177, 0.0
    %3184 = vadd.xlane.f32.xlu0 %v3183
    %v3185 = vpop.xlane.xlu0 %3184
    %v3186 = vsel %vm408, %v3178, 0.0
    %3187 = vadd.xlane.f32.xlu0 %v3186
    %v3188 = vpop.xlane.xlu0 %3187
    %v3189 = vmul.f32 %v3185, %v1652
    %v3190 = vmul.f32 %v3188, %v1652
    %v3191 = vsub.f32 %v3177, %v3189
    %v3192 = vsub.f32 %v3178, %v3190
    %v3193 = vmul.f32 %v3191, %v3191
    %v3194 = vmul.f32 %v3192, %v3192
    %v3195 = vsel %vm408, %v3193, 0.0
    %3196 = vadd.xlane.f32.xlu0 %v3195
    %v3197 = vpop.xlane.xlu0 %3196
    %v3198 = vsel %vm408, %v3194, 0.0
    %3199 = vadd.xlane.f32.xlu0 %v3198
    %v3200 = vpop.xlane.xlu0 %3199
    %v3201 = vmul.f32 %v3197, %v1652
    %v3202 = vmul.f32 %v3200, %v1652
    %v3203 = vadd.f32 %v3201, 1e-05
    %v3204 = vadd.f32 %v3202, 1e-05
    %v3205 = vrsqrt.pop %v3203
    %v3206 = vrsqrt.pop %v3204
    %v3207 = vmul.f32 %v3191, %v3205
    %v3208 = vmul.f32 %v3192, %v3206
    %v3210 = vlaneseq
    %v3211 = vshrl.u32 %v3210, 7
    %v3212 = vsub.s32 0, %v3211
    %v3213 = vrot.slane %v3180, %v3212
    %v3215 = vmul.f32 %v3207, %v3213
    %v3216 = vmul.f32 %v3208, %v3213
    %v3218 = vlaneseq
    %v3219 = vshrl.u32 %v3218, 7
    %v3220 = vsub.s32 0, %v3219
    %v3221 = vrot.slane %v3182, %v3220
    %v3223 = vadd.f32 %v3215, %v3221
    %v3224 = vadd.f32 %v3216, %v3221
    %s3225 = scalar_lea.vmem %s19, 32
    %v3226 = vld [vmem:[%s3225] sm:$0xff]
    %v3227 = vld [vmem:[%s3225 + $0x8] sm:$0xff]
    %v3228 = vld [vmem:[%s3225 + $0x10] sm:$0xff]
    %v3229 = vld [vmem:[%s3225 + $0x18] sm:$0xff]
    %s3230 = scalar_lea.vmem [#allocation11], 1
    %v3231 = vld [vmem:[%s3230] sm:$0x1]
    %s3232 = scalar_lea.vmem %s23, 64
    %v3233 = vld [vmem:[%s3232] sm:$0xff]
    %v3234 = vld [vmem:[%s3232 + $0x8] sm:$0xff]
    %v3235 = vld [vmem:[%s3232 + $0x10] sm:$0xff]
    %v3236 = vld [vmem:[%s3232 + $0x18] sm:$0xff]
    %v3237 = vld [vmem:[%s3232 + $0x20] sm:$0xff]
    %v3238 = vld [vmem:[%s3232 + $0x28] sm:$0xff]
    %v3239 = vld [vmem:[%s3232 + $0x30] sm:$0xff]
    %v3240 = vld [vmem:[%s3232 + $0x38] sm:$0xff]
    %s3241 = scalar_lea.vmem [#allocation13], 1
    %v3242 = vld [vmem:[%s3241] sm:$0x1]
    %v3244 = vlaneseq
    %v3245 = vshrl.u32 %v3244, 7
    %v3246 = vsub.s32 0, %v3245
    %v3247 = vrot.slane %v3231, %v3246
    %v3250 = vsel %vm408, %v3223, 0
    %v3253 = vsel %vm408, %v3224, 0
    %3255 = vmatprep.subr.mxu0 0.0
    %3256 = vmatpush1.msra.mxu0 %v3226
    %3257 = vmatprep.subr.mxu0 0.0
    %3258 = vmatpush1.msra.mxu0 %v3227
    %3259 = vmatprep.subr.mxu0 0.0
    %3260 = vmatpush1.msra.mxu0 %v3228
    %3261 = vmatprep.subr.mxu0 0.0
    %3262 = vmatpush1.msra.mxu0 %v3229
    %3263 = vmatprep.subr.mxu0 0.0
    %3264 = vmatpush1.msra.mxu0 0.0
    %3265 = vmatprep.subr.mxu0 0.0
    %3266 = vmatpush1.msra.mxu0 0.0
    %3267 = vmatprep.subr.mxu0 0.0
    %3268 = vmatpush1.msra.mxu0 0.0
    %3269 = vmatprep.subr.mxu0 0.0
    %3270 = vmatpush1.msra.mxu0 0.0
    %3271 = vmatprep.subr.mxu0 0.0
    %3272 = vmatpush1.msra.mxu0 0.0
    %3273 = vmatprep.subr.mxu0 0.0
    %3274 = vmatpush1.msra.mxu0 0.0
    %3275 = vmatprep.subr.mxu0 0.0
    %3276 = vmatpush1.msra.mxu0 0.0
    %3277 = vmatprep.subr.mxu0 0.0
    %3278 = vmatpush1.msra.mxu0 0.0
    %3279 = vmatprep.subr.mxu0 0.0
    %3280 = vmatpush1.msra.mxu0 0.0
    %3281 = vmatprep.subr.mxu0 0.0
    %3282 = vmatpush1.msra.mxu0 0.0
    %3283 = vmatprep.subr.mxu0 0.0
    %3284 = vmatpush1.msra.mxu0 0.0
    %3285 = vmatprep.subr.mxu0 0.0
    %3286 = vmatpush1.msra.mxu0 0.0
    %3287 = vmatprep.subr.mxu0 0.0
    %3288 = vmatpush1.msra.mxu0 0.0
    %3289 = vmatprep.subr.mxu0 0.0
    %3290 = vmatpush1.msra.mxu0 0.0
    %3291 = vmatprep.subr.mxu0 0.0
    %3292 = vmatpush1.msra.mxu0 0.0
    %3293 = vmatprep.subr.mxu0 0.0
    %3294 = vmatpush1.msra.mxu0 0.0
    %3295 = vmatprep.subr.mxu0 0.0
    %3296 = vmatpush1.msra.mxu0 0.0
    %3297 = vmatprep.subr.mxu0 0.0
    %3298 = vmatpush1.msra.mxu0 0.0
    %3299 = vmatprep.subr.mxu0 0.0
    %3300 = vmatpush1.msra.mxu0 0.0
    %3301 = vmatprep.subr.mxu0 0.0
    %3302 = vmatpush1.msra.mxu0 0.0
    %3303 = vmatprep.subr.mxu0 0.0
    %3304 = vmatpush1.msra.mxu0 0.0
    %3305 = vmatprep.subr.mxu0 0.0
    %3306 = vmatpush1.msra.mxu0 0.0
    %3307 = vmatprep.subr.mxu0 0.0
    %3308 = vmatpush1.msra.mxu0 0.0
    %3309 = vmatprep.subr.mxu0 0.0
    %3310 = vmatpush1.msra.mxu0 0.0
    %3311 = vmatprep.subr.mxu0 0.0
    %3312 = vmatpush1.msra.mxu0 0.0
    %3313 = vmatprep.subr.mxu0 0.0
    %3314 = vmatpush1.msra.mxu0 0.0
    %3315 = vmatprep.subr.mxu0 0.0
    %3316 = vmatpush1.msra.mxu0 0.0
    %3317 = vmatprep.subr.mxu0 0.0
    %3318 = vmatpush1.msra.mxu0 0.0
    %3319 = vmatprep.mubr.f32.mxu0 0.0
    %3320 = vmatmul.mubr.f32.gmra.mrb[0].mxu0 %v3250
    %v3321 = vpop.f32.mrb[0].mxu0
    %v3322 = vadd.f32 %v3247, %v3321
    %v3323 = vpop.f32.mrb[0].mxu0
    %3324 = vmatprep.mubr.f32.mxu0 0.0
    %3325 = vmatmul.mubr.f32.gmra.mrb[0].mxu0 %v3253
    %v3326 = vpop.f32.mrb[0].mxu0
    %v3327 = vadd.f32 %v3247, %v3326
    %v3328 = vpop.f32.mrb[0].mxu0
    %3329 = vdwg.mxu0
    %v3330 = vmax.f32 %v3322, 0.0
    %v3331 = vmax.f32 %v3327, 0.0
    %v3333 = vlaneseq
    %v3334 = vshrl.u32 %v3333, 7
    %v3335 = vsub.s32 0, %v3334
    %v3336 = vrot.slane %v3242, %v3335
    %v3339 = vsel %vm1798, %v3330, 0
    %v3342 = vsel %vm1798, %v3331, 0
    %3344 = vmatprep.subr.mxu0 0.0
    %3345 = vmatpush1.msra.mxu0 %v3233
    %3346 = vmatprep.subr.mxu0 0.0
    %3347 = vmatpush1.msra.mxu0 %v3234
    %3348 = vmatprep.subr.mxu0 0.0
    %3349 = vmatpush1.msra.mxu0 %v3235
    %3350 = vmatprep.subr.mxu0 0.0
    %3351 = vmatpush1.msra.mxu0 %v3236
    %3352 = vmatprep.subr.mxu0 0.0
    %3353 = vmatpush1.msra.mxu0 %v3237
    %3354 = vmatprep.subr.mxu0 0.0
    %3355 = vmatpush1.msra.mxu0 %v3238
    %3356 = vmatprep.subr.mxu0 0.0
    %3357 = vmatpush1.msra.mxu0 %v3239
    %3358 = vmatprep.subr.mxu0 0.0
    %3359 = vmatpush1.msra.mxu0 %v3240
    %3360 = vmatprep.subr.mxu0 0.0
    %3361 = vmatpush1.msra.mxu0 0.0
    %3362 = vmatprep.subr.mxu0 0.0
    %3363 = vmatpush1.msra.mxu0 0.0
    %3364 = vmatprep.subr.mxu0 0.0
    %3365 = vmatpush1.msra.mxu0 0.0
    %3366 = vmatprep.subr.mxu0 0.0
    %3367 = vmatpush1.msra.mxu0 0.0
    %3368 = vmatprep.subr.mxu0 0.0
    %3369 = vmatpush1.msra.mxu0 0.0
    %3370 = vmatprep.subr.mxu0 0.0
    %3371 = vmatpush1.msra.mxu0 0.0
    %3372 = vmatprep.subr.mxu0 0.0
    %3373 = vmatpush1.msra.mxu0 0.0
    %3374 = vmatprep.subr.mxu0 0.0
    %3375 = vmatpush1.msra.mxu0 0.0
    %3376 = vmatprep.subr.mxu0 0.0
    %3377 = vmatpush1.msra.mxu0 0.0
    %3378 = vmatprep.subr.mxu0 0.0
    %3379 = vmatpush1.msra.mxu0 0.0
    %3380 = vmatprep.subr.mxu0 0.0
    %3381 = vmatpush1.msra.mxu0 0.0
    %3382 = vmatprep.subr.mxu0 0.0
    %3383 = vmatpush1.msra.mxu0 0.0
    %3384 = vmatprep.subr.mxu0 0.0
    %3385 = vmatpush1.msra.mxu0 0.0
    %3386 = vmatprep.subr.mxu0 0.0
    %3387 = vmatpush1.msra.mxu0 0.0
    %3388 = vmatprep.subr.mxu0 0.0
    %3389 = vmatpush1.msra.mxu0 0.0
    %3390 = vmatprep.subr.mxu0 0.0
    %3391 = vmatpush1.msra.mxu0 0.0
    %3392 = vmatprep.subr.mxu0 0.0
    %3393 = vmatpush1.msra.mxu0 0.0
    %3394 = vmatprep.subr.mxu0 0.0
    %3395 = vmatpush1.msra.mxu0 0.0
    %3396 = vmatprep.subr.mxu0 0.0
    %3397 = vmatpush1.msra.mxu0 0.0
    %3398 = vmatprep.subr.mxu0 0.0
    %3399 = vmatpush1.msra.mxu0 0.0
    %3400 = vmatprep.subr.mxu0 0.0
    %3401 = vmatpush1.msra.mxu0 0.0
    %3402 = vmatprep.subr.mxu0 0.0
    %3403 = vmatpush1.msra.mxu0 0.0
    %3404 = vmatprep.subr.mxu0 0.0
    %3405 = vmatpush1.msra.mxu0 0.0
    %3406 = vmatprep.subr.mxu0 0.0
    %3407 = vmatpush1.msra.mxu0 0.0
    %3408 = vmatprep.mubr.f32.mxu0 0.0
    %3409 = vmatmul.mubr.f32.gmra.mrb[0].mxu0 %v3339
    %v3410 = vpop.f32.mrb[0].mxu0
    %v3411 = vadd.f32 %v3336, %v3410
    %v3412 = vpop.f32.mrb[0].mxu0
    %3413 = vmatprep.mubr.f32.mxu0 0.0
    %3414 = vmatmul.mubr.f32.gmra.mrb[0].mxu0 %v3342
    %v3415 = vpop.f32.mrb[0].mxu0
    %v3416 = vadd.f32 %v3336, %v3415
    %v3417 = vpop.f32.mrb[0].mxu0
    %3418 = vdwg.mxu0
    %v3419 = vadd.f32 %v3223, %v3411
    %v3420 = vadd.f32 %v3224, %v3416
    %s3421 = scalar_lea.vmem [#allocation17], 1
    %v3422 = vld [vmem:[%s3421] sm:$0x1]
    %s3423 = scalar_lea.vmem [#allocation19], 1
    %v3424 = vld [vmem:[%s3423] sm:$0x1]
    %v3425 = vsel %vm408, %v3419, 0.0
    %3426 = vadd.xlane.f32.xlu0 %v3425
    %v3427 = vpop.xlane.xlu0 %3426
    %v3428 = vsel %vm408, %v3420, 0.0
    %3429 = vadd.xlane.f32.xlu0 %v3428
    %v3430 = vpop.xlane.xlu0 %3429
    %v3431 = vmul.f32 %v3427, %v1652
    %v3432 = vmul.f32 %v3430, %v1652
    %v3433 = vsub.f32 %v3419, %v3431
    %v3434 = vsub.f32 %v3420, %v3432
    %v3435 = vmul.f32 %v3433, %v3433
    %v3436 = vmul.f32 %v3434, %v3434
    %v3437 = vsel %vm408, %v3435, 0.0
    %3438 = vadd.xlane.f32.xlu0 %v3437
    %v3439 = vpop.xlane.xlu0 %3438
    %v3440 = vsel %vm408, %v3436, 0.0
    %3441 = vadd.xlane.f32.xlu0 %v3440
    %v3442 = vpop.xlane.xlu0 %3441
    %v3443 = vmul.f32 %v3439, %v1652
    %v3444 = vmul.f32 %v3442, %v1652
    %v3445 = vadd.f32 %v3443, 1e-05
    %v3446 = vadd.f32 %v3444, 1e-05
    %v3447 = vrsqrt.pop %v3445
    %v3448 = vrsqrt.pop %v3446
    %v3449 = vmul.f32 %v3433, %v3447
    %v3450 = vmul.f32 %v3434, %v3448
    %v3452 = vlaneseq
    %v3453 = vshrl.u32 %v3452, 7
    %v3454 = vsub.s32 0, %v3453
    %v3455 = vrot.slane %v3422, %v3454
    %v3457 = vmul.f32 %v3449, %v3455
    %v3458 = vmul.f32 %v3450, %v3455
    %v3460 = vlaneseq
    %v3461 = vshrl.u32 %v3460, 7
    %v3462 = vsub.s32 0, %v3461
    %v3463 = vrot.slane %v3424, %v3462
    %v3465 = vadd.f32 %v3457, %v3463
    %v3466 = vadd.f32 %v3458, %v3463
    %v3467 = vld [vmem:[#allocation20] sm:$0x1]
    %v3468 = vld [vmem:[#allocation22] sm:$0x1]
    %v3469 = vsel %vm408, %v3465, 0.0
    %3470 = vadd.xlane.f32.xlu0 %v3469
    %v3471 = vpop.xlane.xlu0 %3470
    %v3472 = vsel %vm408, %v3466, 0.0
    %3473 = vadd.xlane.f32.xlu0 %v3472
    %v3474 = vpop.xlane.xlu0 %3473
    %v3475 = vmul.f32 %v3471, %v1652
    %v3476 = vmul.f32 %v3474, %v1652
    %v3477 = vsub.f32 %v3465, %v3475
    %v3478 = vsub.f32 %v3466, %v3476
    %v3479 = vmul.f32 %v3477, %v3477
    %v3480 = vmul.f32 %v3478, %v3478
    %v3481 = vsel %vm408, %v3479, 0.0
    %3482 = vadd.xlane.f32.xlu0 %v3481
    %v3483 = vpop.xlane.xlu0 %3482
    %v3484 = vsel %vm408, %v3480, 0.0
    %3485 = vadd.xlane.f32.xlu0 %v3484
    %v3486 = vpop.xlane.xlu0 %3485
    %v3487 = vmul.f32 %v3483, %v1652
    %v3488 = vmul.f32 %v3486, %v1652
    %v3489 = vadd.f32 %v3487, 1e-05
    %v3490 = vadd.f32 %v3488, 1e-05
    %v3491 = vrsqrt.pop %v3489
    %v3492 = vrsqrt.pop %v3490
    %v3493 = vmul.f32 %v3477, %v3491
    %v3494 = vmul.f32 %v3478, %v3492
    %v3496 = vlaneseq
    %v3497 = vshrl.u32 %v3496, 7
    %v3498 = vsub.s32 0, %v3497
    %v3499 = vrot.slane %v3467, %v3498
    %v3501 = vmul.f32 %v3493, %v3499
    %v3502 = vmul.f32 %v3494, %v3499
    %v3504 = vlaneseq
    %v3505 = vshrl.u32 %v3504, 7
    %v3506 = vsub.s32 0, %v3505
    %v3507 = vrot.slane %v3468, %v3506
    %v3509 = vadd.f32 %v3501, %v3507
    %v3510 = vadd.f32 %v3502, %v3507
    %v3511 = vld [vmem:[#allocation5] sm:$0xff]
    %v3512 = vld [vmem:[#allocation5 + $0x8] sm:$0xff]
    %v3513 = vld [vmem:[%s39] sm:$0xff]
    %v3514 = vld [vmem:[%s39 + $0x8] sm:$0xff]
    %v3515 = vld [vmem:[%s39 + $0x10] sm:$0xff]
    %v3516 = vld [vmem:[%s39 + $0x18] sm:$0xff]
    %v3517 = vld [vmem:[%s41] sm:$0x1]
    %v3518 = vld [vmem:[%s43] sm:$0xff]
    %v3519 = vld [vmem:[%s43 + $0x8] sm:$0xff]
    %v3520 = vld [vmem:[%s43 + $0x10] sm:$0xff]
    %v3521 = vld [vmem:[%s43 + $0x18] sm:$0xff]
    %v3522 = vld [vmem:[%s45] sm:$0x1]
    %v3524 = vlaneseq
    %v3525 = vshrl.u32 %v3524, 7
    %v3526 = vsub.s32 0, %v3525
    %v3527 = vrot.slane %v3517, %v3526
    %v3530 = vsel %vm408, %v3511, 0
    %v3533 = vsel %vm408, %v3512, 0
    %3535 = vmatprep.subr.mxu0 0.0
    %3536 = vmatpush1.msra.mxu0 %v3513
    %3537 = vmatprep.subr.mxu0 0.0
    %3538 = vmatpush1.msra.mxu0 %v3514
    %3539 = vmatprep.subr.mxu0 0.0
    %3540 = vmatpush1.msra.mxu0 %v3515
    %3541 = vmatprep.subr.mxu0 0.0
    %3542 = vmatpush1.msra.mxu0 %v3516
    %3543 = vmatprep.subr.mxu0 0.0
    %3544 = vmatpush1.msra.mxu0 0.0
    %3545 = vmatprep.subr.mxu0 0.0
    %3546 = vmatpush1.msra.mxu0 0.0
    %3547 = vmatprep.subr.mxu0 0.0
    %3548 = vmatpush1.msra.mxu0 0.0
    %3549 = vmatprep.subr.mxu0 0.0
    %3550 = vmatpush1.msra.mxu0 0.0
    %3551 = vmatprep.subr.mxu0 0.0
    %3552 = vmatpush1.msra.mxu0 0.0
    %3553 = vmatprep.subr.mxu0 0.0
    %3554 = vmatpush1.msra.mxu0 0.0
    %3555 = vmatprep.subr.mxu0 0.0
    %3556 = vmatpush1.msra.mxu0 0.0
    %3557 = vmatprep.subr.mxu0 0.0
    %3558 = vmatpush1.msra.mxu0 0.0
    %3559 = vmatprep.subr.mxu0 0.0
    %3560 = vmatpush1.msra.mxu0 0.0
    %3561 = vmatprep.subr.mxu0 0.0
    %3562 = vmatpush1.msra.mxu0 0.0
    %3563 = vmatprep.subr.mxu0 0.0
    %3564 = vmatpush1.msra.mxu0 0.0
    %3565 = vmatprep.subr.mxu0 0.0
    %3566 = vmatpush1.msra.mxu0 0.0
    %3567 = vmatprep.subr.mxu0 0.0
    %3568 = vmatpush1.msra.mxu0 0.0
    %3569 = vmatprep.subr.mxu0 0.0
    %3570 = vmatpush1.msra.mxu0 0.0
    %3571 = vmatprep.subr.mxu0 0.0
    %3572 = vmatpush1.msra.mxu0 0.0
    %3573 = vmatprep.subr.mxu0 0.0
    %3574 = vmatpush1.msra.mxu0 0.0
    %3575 = vmatprep.subr.mxu0 0.0
    %3576 = vmatpush1.msra.mxu0 0.0
    %3577 = vmatprep.subr.mxu0 0.0
    %3578 = vmatpush1.msra.mxu0 0.0
    %3579 = vmatprep.subr.mxu0 0.0
    %3580 = vmatpush1.msra.mxu0 0.0
    %3581 = vmatprep.subr.mxu0 0.0
    %3582 = vmatpush1.msra.mxu0 0.0
    %3583 = vmatprep.subr.mxu0 0.0
    %3584 = vmatpush1.msra.mxu0 0.0
    %3585 = vmatprep.subr.mxu0 0.0
    %3586 = vmatpush1.msra.mxu0 0.0
    %3587 = vmatprep.subr.mxu0 0.0
    %3588 = vmatpush1.msra.mxu0 0.0
    %3589 = vmatprep.subr.mxu0 0.0
    %3590 = vmatpush1.msra.mxu0 0.0
    %3591 = vmatprep.subr.mxu0 0.0
    %3592 = vmatpush1.msra.mxu0 0.0
    %3593 = vmatprep.subr.mxu0 0.0
    %3594 = vmatpush1.msra.mxu0 0.0
    %3595 = vmatprep.subr.mxu0 0.0
    %3596 = vmatpush1.msra.mxu0 0.0
    %3597 = vmatprep.subr.mxu0 0.0
    %3598 = vmatpush1.msra.mxu0 0.0
    %3599 = vmatprep.mubr.f32.mxu0 0.0
    %3600 = vmatmul.mubr.f32.gmra.mrb[0].mxu0 %v3530
    %v3601 = vpop.f32.mrb[0].mxu0
    %v3602 = vadd.f32 %v3527, %v3601
    %v3603 = vpop.f32.mrb[0].mxu0
    %3604 = vmatprep.mubr.f32.mxu0 0.0
    %3605 = vmatmul.mubr.f32.gmra.mrb[0].mxu0 %v3533
    %v3606 = vpop.f32.mrb[0].mxu0
    %v3607 = vadd.f32 %v3527, %v3606
    %v3608 = vpop.f32.mrb[0].mxu0
    %3609 = vdwg.mxu0
    %3612 = vrot.lane.b32.xlu0 %v3602, 96
    %v3613 = vpop.permute.xlu0 %3612
    %3614 = vrot.lane.b32.xlu0 %v3607, 96
    %v3615 = vpop.permute.xlu0 %3614
    %v3616 = vsel %vm496, %v3602, 0
    %v3618 = vsel %vm496, %v3607, 0
    %v3620 = vsel %vm496, %v3613, 0
    %v3622 = vsel %vm496, %v3615, 0
    %3624 = vmatprep.subr.mxu0 0.0
    %3625 = vmatpush1.xpose.msra.mxu0 %v3620
    %3626 = vmatprep.subr.mxu0 0.0
    %3627 = vmatpush1.xpose.msra.mxu0 %v3622
    %3628 = vmatprep.subr.mxu0 0.0
    %3629 = vmatpush1.xpose.msra.mxu0 0.0
    %3630 = vmatprep.subr.mxu0 0.0
    %3631 = vmatpush1.xpose.msra.mxu0 0.0
    %3632 = vmatprep.subr.mxu0 0.0
    %3633 = vmatpush1.xpose.msra.mxu0 0.0
    %3634 = vmatprep.subr.mxu0 0.0
    %3635 = vmatpush1.xpose.msra.mxu0 0.0
    %3636 = vmatprep.subr.mxu0 0.0
    %3637 = vmatpush1.xpose.msra.mxu0 0.0
    %3638 = vmatprep.subr.mxu0 0.0
    %3639 = vmatpush1.xpose.msra.mxu0 0.0
    %3640 = vmatprep.subr.mxu0 0.0
    %3641 = vmatpush1.xpose.msra.mxu0 0.0
    %3642 = vmatprep.subr.mxu0 0.0
    %3643 = vmatpush1.xpose.msra.mxu0 0.0
    %3644 = vmatprep.subr.mxu0 0.0
    %3645 = vmatpush1.xpose.msra.mxu0 0.0
    %3646 = vmatprep.subr.mxu0 0.0
    %3647 = vmatpush1.xpose.msra.mxu0 0.0
    %3648 = vmatprep.subr.mxu0 0.0
    %3649 = vmatpush1.xpose.msra.mxu0 0.0
    %3650 = vmatprep.subr.mxu0 0.0
    %3651 = vmatpush1.xpose.msra.mxu0 0.0
    %3652 = vmatprep.subr.mxu0 0.0
    %3653 = vmatpush1.xpose.msra.mxu0 0.0
    %3654 = vmatprep.subr.mxu0 0.0
    %3655 = vmatpush1.xpose.msra.mxu0 0.0
    %3656 = vmatprep.subr.mxu0 0.0
    %3657 = vmatpush1.xpose.msra.mxu0 0.0
    %3658 = vmatprep.subr.mxu0 0.0
    %3659 = vmatpush1.xpose.msra.mxu0 0.0
    %3660 = vmatprep.subr.mxu0 0.0
    %3661 = vmatpush1.xpose.msra.mxu0 0.0
    %3662 = vmatprep.subr.mxu0 0.0
    %3663 = vmatpush1.xpose.msra.mxu0 0.0
    %3664 = vmatprep.subr.mxu0 0.0
    %3665 = vmatpush1.xpose.msra.mxu0 0.0
    %3666 = vmatprep.subr.mxu0 0.0
    %3667 = vmatpush1.xpose.msra.mxu0 0.0
    %3668 = vmatprep.subr.mxu0 0.0
    %3669 = vmatpush1.xpose.msra.mxu0 0.0
    %3670 = vmatprep.subr.mxu0 0.0
    %3671 = vmatpush1.xpose.msra.mxu0 0.0
    %3672 = vmatprep.subr.mxu0 0.0
    %3673 = vmatpush1.xpose.msra.mxu0 0.0
    %3674 = vmatprep.subr.mxu0 0.0
    %3675 = vmatpush1.xpose.msra.mxu0 0.0
    %3676 = vmatprep.subr.mxu0 0.0
    %3677 = vmatpush1.xpose.msra.mxu0 0.0
    %3678 = vmatprep.subr.mxu0 0.0
    %3679 = vmatpush1.xpose.msra.mxu0 0.0
    %3680 = vmatprep.subr.mxu0 0.0
    %3681 = vmatpush1.xpose.msra.mxu0 0.0
    %3682 = vmatprep.subr.mxu0 0.0
    %3683 = vmatpush1.xpose.msra.mxu0 0.0
    %3684 = vmatprep.subr.mxu0 0.0
    %3685 = vmatpush1.xpose.msra.mxu0 0.0
    %3686 = vmatprep.subr.mxu0 0.0
    %3687 = vmatpush1.xpose.msra.mxu0 0.0
    %3688 = vmatprep.mubr.f32.mxu0 0.0
    %3689 = vmatmul.mubr.f32.gmra.mrb[0].mxu0 %v3616
    %v3690 = vpop.f32.mrb[0].mxu0
    %v3691 = vadd.f32 0.0, %v3690
    %v3692 = vpop.f32.mrb[0].mxu0
    %3693 = vmatprep.mubr.f32.mxu0 0.0
    %3694 = vmatmul.mubr.f32.gmra.mrb[0].mxu0 %v3618
    %v3695 = vpop.f32.mrb[0].mxu0
    %v3696 = vadd.f32 0.0, %v3695
    %v3697 = vpop.f32.mrb[0].mxu0
    %3698 = vdwg.mxu0
    %v3699 = vmul.f32 %v3691, 0.35355338
    %v3700 = vmul.f32 %v3696, 0.35355338
    %v3701 = vadd.f32 %v3699, %v386
    %v3702 = vadd.f32 %v3700, %v387
    %v3703 = vsel %vm584, %v3701, -inf
    %3704 = vmax.xlane.f32.xlu0 %v3703
    %v3705 = vpop.xlane.xlu0 %3704
    %v3706 = vsel %vm584, %v3702, -inf
    %3707 = vmax.xlane.f32.xlu0 %v3706
    %v3708 = vpop.xlane.xlu0 %3707
    %v3709 = vsub.f32 %v3701, %v3705
    %v3710 = vsub.f32 %v3702, %v3708
    %v3711 = vmul.f32 %v3709, 1.442695
    %v3712 = vpow.pop %v3711
    %v3713 = vmul.f32 %v3710, 1.442695
    %v3714 = vpow.pop %v3713
    %v3715 = vsel %vm584, %v3712, 0.0
    %3716 = vadd.xlane.f32.xlu0 %v3715
    %v3717 = vpop.xlane.xlu0 %3716
    %v3718 = vsel %vm584, %v3714, 0.0
    %3719 = vadd.xlane.f32.xlu0 %v3718
    %v3720 = vpop.xlane.xlu0 %3719
    %v3721 = vrcp.pop %v3717
    %v3722 = vmul.f32 %v3712, %v3721
    %v3723 = vrcp.pop %v3720
    %v3724 = vmul.f32 %v3714, %v3723
    %3725 = vrot.lane.b32.xlu0 %v3602, 64
    %v3726 = vpop.permute.xlu0 %3725
    %3727 = vrot.lane.b32.xlu0 %v3607, 64
    %v3728 = vpop.permute.xlu0 %3727
    %v3732 = vsel %vm584, %v3722, 0
    %v3735 = vsel %vm584, %v3724, 0
    %3737 = vmatprep.subr.mxu0 0.0
    %3738 = vmatpush1.msra.mxu0 %v3726
    %3739 = vmatprep.subr.mxu0 0.0
    %3740 = vmatpush1.msra.mxu0 %v3728
    %3741 = vmatprep.subr.mxu0 0.0
    %3742 = vmatpush1.msra.mxu0 0.0
    %3743 = vmatprep.subr.mxu0 0.0
    %3744 = vmatpush1.msra.mxu0 0.0
    %3745 = vmatprep.subr.mxu0 0.0
    %3746 = vmatpush1.msra.mxu0 0.0
    %3747 = vmatprep.subr.mxu0 0.0
    %3748 = vmatpush1.msra.mxu0 0.0
    %3749 = vmatprep.subr.mxu0 0.0
    %3750 = vmatpush1.msra.mxu0 0.0
    %3751 = vmatprep.subr.mxu0 0.0
    %3752 = vmatpush1.msra.mxu0 0.0
    %3753 = vmatprep.subr.mxu0 0.0
    %3754 = vmatpush1.msra.mxu0 0.0
    %3755 = vmatprep.subr.mxu0 0.0
    %3756 = vmatpush1.msra.mxu0 0.0
    %3757 = vmatprep.subr.mxu0 0.0
    %3758 = vmatpush1.msra.mxu0 0.0
    %3759 = vmatprep.subr.mxu0 0.0
    %3760 = vmatpush1.msra.mxu0 0.0
    %3761 = vmatprep.subr.mxu0 0.0
    %3762 = vmatpush1.msra.mxu0 0.0
    %3763 = vmatprep.subr.mxu0 0.0
    %3764 = vmatpush1.msra.mxu0 0.0
    %3765 = vmatprep.subr.mxu0 0.0
    %3766 = vmatpush1.msra.mxu0 0.0
    %3767 = vmatprep.subr.mxu0 0.0
    %3768 = vmatpush1.msra.mxu0 0.0
    %3769 = vmatprep.subr.mxu0 0.0
    %3770 = vmatpush1.msra.mxu0 0.0
    %3771 = vmatprep.subr.mxu0 0.0
    %3772 = vmatpush1.msra.mxu0 0.0
    %3773 = vmatprep.subr.mxu0 0.0
    %3774 = vmatpush1.msra.mxu0 0.0
    %3775 = vmatprep.subr.mxu0 0.0
    %3776 = vmatpush1.msra.mxu0 0.0
    %3777 = vmatprep.subr.mxu0 0.0
    %3778 = vmatpush1.msra.mxu0 0.0
    %3779 = vmatprep.subr.mxu0 0.0
    %3780 = vmatpush1.msra.mxu0 0.0
    %3781 = vmatprep.subr.mxu0 0.0
    %3782 = vmatpush1.msra.mxu0 0.0
    %3783 = vmatprep.subr.mxu0 0.0
    %3784 = vmatpush1.msra.mxu0 0.0
    %3785 = vmatprep.subr.mxu0 0.0
    %3786 = vmatpush1.msra.mxu0 0.0
    %3787 = vmatprep.subr.mxu0 0.0
    %3788 = vmatpush1.msra.mxu0 0.0
    %3789 = vmatprep.subr.mxu0 0.0
    %3790 = vmatpush1.msra.mxu0 0.0
    %3791 = vmatprep.subr.mxu0 0.0
    %3792 = vmatpush1.msra.mxu0 0.0
    %3793 = vmatprep.subr.mxu0 0.0
    %3794 = vmatpush1.msra.mxu0 0.0
    %3795 = vmatprep.subr.mxu0 0.0
    %3796 = vmatpush1.msra.mxu0 0.0
    %3797 = vmatprep.subr.mxu0 0.0
    %3798 = vmatpush1.msra.mxu0 0.0
    %3799 = vmatprep.subr.mxu0 0.0
    %3800 = vmatpush1.msra.mxu0 0.0
    %3801 = vmatprep.mubr.f32.mxu0 0.0
    %3802 = vmatmul.mubr.f32.gmra.mrb[0].mxu0 %v3732
    %v3803 = vpop.f32.mrb[0].mxu0
    %v3804 = vadd.f32 0.0, %v3803
    %v3805 = vpop.f32.mrb[0].mxu0
    %3806 = vmatprep.mubr.f32.mxu0 0.0
    %3807 = vmatmul.mubr.f32.gmra.mrb[0].mxu0 %v3735
    %v3808 = vpop.f32.mrb[0].mxu0
    %v3809 = vadd.f32 0.0, %v3808
    %v3810 = vpop.f32.mrb[0].mxu0
    %3811 = vdwg.mxu0
    %3812 = vrot.lane.b32.xlu0 %v3602, 120
    %v3813 = vpop.permute.xlu0 %3812
    %3814 = vrot.lane.b32.xlu0 %v3607, 120
    %v3815 = vpop.permute.xlu0 %3814
    %3816 = vrot.lane.b32.xlu0 %v3602, 88
    %v3817 = vpop.permute.xlu0 %3816
    %3818 = vrot.lane.b32.xlu0 %v3607, 88
    %v3819 = vpop.permute.xlu0 %3818
    %v3820 = vsel %vm496, %v3813, 0
    %v3822 = vsel %vm496, %v3815, 0
    %v3824 = vsel %vm496, %v3817, 0
    %v3826 = vsel %vm496, %v3819, 0
    %3828 = vmatprep.subr.mxu0 0.0
    %3829 = vmatpush1.xpose.msra.mxu0 %v3824
    %3830 = vmatprep.subr.mxu0 0.0
    %3831 = vmatpush1.xpose.msra.mxu0 %v3826
    %3832 = vmatprep.subr.mxu0 0.0
    %3833 = vmatpush1.xpose.msra.mxu0 0.0
    %3834 = vmatprep.subr.mxu0 0.0
    %3835 = vmatpush1.xpose.msra.mxu0 0.0
    %3836 = vmatprep.subr.mxu0 0.0
    %3837 = vmatpush1.xpose.msra.mxu0 0.0
    %3838 = vmatprep.subr.mxu0 0.0
    %3839 = vmatpush1.xpose.msra.mxu0 0.0
    %3840 = vmatprep.subr.mxu0 0.0
    %3841 = vmatpush1.xpose.msra.mxu0 0.0
    %3842 = vmatprep.subr.mxu0 0.0
    %3843 = vmatpush1.xpose.msra.mxu0 0.0
    %3844 = vmatprep.subr.mxu0 0.0
    %3845 = vmatpush1.xpose.msra.mxu0 0.0
    %3846 = vmatprep.subr.mxu0 0.0
    %3847 = vmatpush1.xpose.msra.mxu0 0.0
    %3848 = vmatprep.subr.mxu0 0.0
    %3849 = vmatpush1.xpose.msra.mxu0 0.0
    %3850 = vmatprep.subr.mxu0 0.0
    %3851 = vmatpush1.xpose.msra.mxu0 0.0
    %3852 = vmatprep.subr.mxu0 0.0
    %3853 = vmatpush1.xpose.msra.mxu0 0.0
    %3854 = vmatprep.subr.mxu0 0.0
    %3855 = vmatpush1.xpose.msra.mxu0 0.0
    %3856 = vmatprep.subr.mxu0 0.0
    %3857 = vmatpush1.xpose.msra.mxu0 0.0
    %3858 = vmatprep.subr.mxu0 0.0
    %3859 = vmatpush1.xpose.msra.mxu0 0.0
    %3860 = vmatprep.subr.mxu0 0.0
    %3861 = vmatpush1.xpose.msra.mxu0 0.0
    %3862 = vmatprep.subr.mxu0 0.0
    %3863 = vmatpush1.xpose.msra.mxu0 0.0
    %3864 = vmatprep.subr.mxu0 0.0
    %3865 = vmatpush1.xpose.msra.mxu0 0.0
    %3866 = vmatprep.subr.mxu0 0.0
    %3867 = vmatpush1.xpose.msra.mxu0 0.0
    %3868 = vmatprep.subr.mxu0 0.0
    %3869 = vmatpush1.xpose.msra.mxu0 0.0
    %3870 = vmatprep.subr.mxu0 0.0
    %3871 = vmatpush1.xpose.msra.mxu0 0.0
    %3872 = vmatprep.subr.mxu0 0.0
    %3873 = vmatpush1.xpose.msra.mxu0 0.0
    %3874 = vmatprep.subr.mxu0 0.0
    %3875 = vmatpush1.xpose.msra.mxu0 0.0
    %3876 = vmatprep.subr.mxu0 0.0
    %3877 = vmatpush1.xpose.msra.mxu0 0.0
    %3878 = vmatprep.subr.mxu0 0.0
    %3879 = vmatpush1.xpose.msra.mxu0 0.0
    %3880 = vmatprep.subr.mxu0 0.0
    %3881 = vmatpush1.xpose.msra.mxu0 0.0
    %3882 = vmatprep.subr.mxu0 0.0
    %3883 = vmatpush1.xpose.msra.mxu0 0.0
    %3884 = vmatprep.subr.mxu0 0.0
    %3885 = vmatpush1.xpose.msra.mxu0 0.0
    %3886 = vmatprep.subr.mxu0 0.0
    %3887 = vmatpush1.xpose.msra.mxu0 0.0
    %3888 = vmatprep.subr.mxu0 0.0
    %3889 = vmatpush1.xpose.msra.mxu0 0.0
    %3890 = vmatprep.subr.mxu0 0.0
    %3891 = vmatpush1.xpose.msra.mxu0 0.0
    %3892 = vmatprep.mubr.f32.mxu0 0.0
    %3893 = vmatmul.mubr.f32.gmra.mrb[0].mxu0 %v3820
    %v3894 = vpop.f32.mrb[0].mxu0
    %v3895 = vadd.f32 0.0, %v3894
    %v3896 = vpop.f32.mrb[0].mxu0
    %3897 = vmatprep.mubr.f32.mxu0 0.0
    %3898 = vmatmul.mubr.f32.gmra.mrb[0].mxu0 %v3822
    %v3899 = vpop.f32.mrb[0].mxu0
    %v3900 = vadd.f32 0.0, %v3899
    %v3901 = vpop.f32.mrb[0].mxu0
    %3902 = vdwg.mxu0
    %v3903 = vmul.f32 %v3895, 0.35355338
    %v3904 = vmul.f32 %v3900, 0.35355338
    %v3905 = vadd.f32 %v3903, %v386
    %v3906 = vadd.f32 %v3904, %v387
    %v3907 = vsel %vm584, %v3905, -inf
    %3908 = vmax.xlane.f32.xlu0 %v3907
    %v3909 = vpop.xlane.xlu0 %3908
    %v3910 = vsel %vm584, %v3906, -inf
    %3911 = vmax.xlane.f32.xlu0 %v3910
    %v3912 = vpop.xlane.xlu0 %3911
    %v3913 = vsub.f32 %v3905, %v3909
    %v3914 = vsub.f32 %v3906, %v3912
    %v3915 = vmul.f32 %v3913, 1.442695
    %v3916 = vpow.pop %v3915
    %v3917 = vmul.f32 %v3914, 1.442695
    %v3918 = vpow.pop %v3917
    %v3919 = vsel %vm584, %v3916, 0.0
    %3920 = vadd.xlane.f32.xlu0 %v3919
    %v3921 = vpop.xlane.xlu0 %3920
    %v3922 = vsel %vm584, %v3918, 0.0
    %3923 = vadd.xlane.f32.xlu0 %v3922
    %v3924 = vpop.xlane.xlu0 %3923
    %v3925 = vrcp.pop %v3921
    %v3926 = vmul.f32 %v3916, %v3925
    %v3927 = vrcp.pop %v3924
    %v3928 = vmul.f32 %v3918, %v3927
    %3929 = vrot.lane.b32.xlu0 %v3602, 56
    %v3930 = vpop.permute.xlu0 %3929
    %3931 = vrot.lane.b32.xlu0 %v3607, 56
    %v3932 = vpop.permute.xlu0 %3931
    %v3936 = vsel %vm584, %v3926, 0
    %v3939 = vsel %vm584, %v3928, 0
    %3941 = vmatprep.subr.mxu0 0.0
    %3942 = vmatpush1.msra.mxu0 %v3930
    %3943 = vmatprep.subr.mxu0 0.0
    %3944 = vmatpush1.msra.mxu0 %v3932
    %3945 = vmatprep.subr.mxu0 0.0
    %3946 = vmatpush1.msra.mxu0 0.0
    %3947 = vmatprep.subr.mxu0 0.0
    %3948 = vmatpush1.msra.mxu0 0.0
    %3949 = vmatprep.subr.mxu0 0.0
    %3950 = vmatpush1.msra.mxu0 0.0
    %3951 = vmatprep.subr.mxu0 0.0
    %3952 = vmatpush1.msra.mxu0 0.0
    %3953 = vmatprep.subr.mxu0 0.0
    %3954 = vmatpush1.msra.mxu0 0.0
    %3955 = vmatprep.subr.mxu0 0.0
    %3956 = vmatpush1.msra.mxu0 0.0
    %3957 = vmatprep.subr.mxu0 0.0
    %3958 = vmatpush1.msra.mxu0 0.0
    %3959 = vmatprep.subr.mxu0 0.0
    %3960 = vmatpush1.msra.mxu0 0.0
    %3961 = vmatprep.subr.mxu0 0.0
    %3962 = vmatpush1.msra.mxu0 0.0
    %3963 = vmatprep.subr.mxu0 0.0
    %3964 = vmatpush1.msra.mxu0 0.0
    %3965 = vmatprep.subr.mxu0 0.0
    %3966 = vmatpush1.msra.mxu0 0.0
    %3967 = vmatprep.subr.mxu0 0.0
    %3968 = vmatpush1.msra.mxu0 0.0
    %3969 = vmatprep.subr.mxu0 0.0
    %3970 = vmatpush1.msra.mxu0 0.0
    %3971 = vmatprep.subr.mxu0 0.0
    %3972 = vmatpush1.msra.mxu0 0.0
    %3973 = vmatprep.subr.mxu0 0.0
    %3974 = vmatpush1.msra.mxu0 0.0
    %3975 = vmatprep.subr.mxu0 0.0
    %3976 = vmatpush1.msra.mxu0 0.0
    %3977 = vmatprep.subr.mxu0 0.0
    %3978 = vmatpush1.msra.mxu0 0.0
    %3979 = vmatprep.subr.mxu0 0.0
    %3980 = vmatpush1.msra.mxu0 0.0
    %3981 = vmatprep.subr.mxu0 0.0
    %3982 = vmatpush1.msra.mxu0 0.0
    %3983 = vmatprep.subr.mxu0 0.0
    %3984 = vmatpush1.msra.mxu0 0.0
    %3985 = vmatprep.subr.mxu0 0.0
    %3986 = vmatpush1.msra.mxu0 0.0
    %3987 = vmatprep.subr.mxu0 0.0
    %3988 = vmatpush1.msra.mxu0 0.0
    %3989 = vmatprep.subr.mxu0 0.0
    %3990 = vmatpush1.msra.mxu0 0.0
    %3991 = vmatprep.subr.mxu0 0.0
    %3992 = vmatpush1.msra.mxu0 0.0
    %3993 = vmatprep.subr.mxu0 0.0
    %3994 = vmatpush1.msra.mxu0 0.0
    %3995 = vmatprep.subr.mxu0 0.0
    %3996 = vmatpush1.msra.mxu0 0.0
    %3997 = vmatprep.subr.mxu0 0.0
    %3998 = vmatpush1.msra.mxu0 0.0
    %3999 = vmatprep.subr.mxu0 0.0
    %4000 = vmatpush1.msra.mxu0 0.0
    %4001 = vmatprep.subr.mxu0 0.0
    %4002 = vmatpush1.msra.mxu0 0.0
    %4003 = vmatprep.subr.mxu0 0.0
    %4004 = vmatpush1.msra.mxu0 0.0
    %4005 = vmatprep.mubr.f32.mxu0 0.0
    %4006 = vmatmul.mubr.f32.gmra.mrb[0].mxu0 %v3936
    %v4007 = vpop.f32.mrb[0].mxu0
    %v4008 = vadd.f32 0.0, %v4007
    %v4009 = vpop.f32.mrb[0].mxu0
    %4010 = vmatprep.mubr.f32.mxu0 0.0
    %4011 = vmatmul.mubr.f32.gmra.mrb[0].mxu0 %v3939
    %v4012 = vpop.f32.mrb[0].mxu0
    %v4013 = vadd.f32 0.0, %v4012
    %v4014 = vpop.f32.mrb[0].mxu0
    %4015 = vdwg.mxu0
    %v4017 = vsel %vm496, %v4008, 0
    %v4020 = vsel %vm496, %v4013, 0
    %4022 = vmatprep.subr.mxu0 0.0
    %4023 = vmatpush1.msra.mxu0 %v3519
    %4024 = vmatprep.subr.mxu0 0.0
    %4025 = vmatpush1.msra.mxu0 0.0
    %4026 = vmatprep.subr.mxu0 0.0
    %4027 = vmatpush1.msra.mxu0 0.0
    %4028 = vmatprep.subr.mxu0 0.0
    %4029 = vmatpush1.msra.mxu0 0.0
    %4030 = vmatprep.subr.mxu0 0.0
    %4031 = vmatpush1.msra.mxu0 0.0
    %4032 = vmatprep.subr.mxu0 0.0
    %4033 = vmatpush1.msra.mxu0 0.0
    %4034 = vmatprep.subr.mxu0 0.0
    %4035 = vmatpush1.msra.mxu0 0.0
    %4036 = vmatprep.subr.mxu0 0.0
    %4037 = vmatpush1.msra.mxu0 0.0
    %4038 = vmatprep.subr.mxu0 0.0
    %4039 = vmatpush1.msra.mxu0 0.0
    %4040 = vmatprep.subr.mxu0 0.0
    %4041 = vmatpush1.msra.mxu0 0.0
    %4042 = vmatprep.subr.mxu0 0.0
    %4043 = vmatpush1.msra.mxu0 0.0
    %4044 = vmatprep.subr.mxu0 0.0
    %4045 = vmatpush1.msra.mxu0 0.0
    %4046 = vmatprep.subr.mxu0 0.0
    %4047 = vmatpush1.msra.mxu0 0.0
    %4048 = vmatprep.subr.mxu0 0.0
    %4049 = vmatpush1.msra.mxu0 0.0
    %4050 = vmatprep.subr.mxu0 0.0
    %4051 = vmatpush1.msra.mxu0 0.0
    %4052 = vmatprep.subr.mxu0 0.0
    %4053 = vmatpush1.msra.mxu0 0.0
    %4054 = vmatprep.subr.mxu0 0.0
    %4055 = vmatpush1.msra.mxu0 0.0
    %4056 = vmatprep.subr.mxu0 0.0
    %4057 = vmatpush1.msra.mxu0 0.0
    %4058 = vmatprep.subr.mxu0 0.0
    %4059 = vmatpush1.msra.mxu0 0.0
    %4060 = vmatprep.subr.mxu0 0.0
    %4061 = vmatpush1.msra.mxu0 0.0
    %4062 = vmatprep.subr.mxu0 0.0
    %4063 = vmatpush1.msra.mxu0 0.0
    %4064 = vmatprep.subr.mxu0 0.0
    %4065 = vmatpush1.msra.mxu0 0.0
    %4066 = vmatprep.subr.mxu0 0.0
    %4067 = vmatpush1.msra.mxu0 0.0
    %4068 = vmatprep.subr.mxu0 0.0
    %4069 = vmatpush1.msra.mxu0 0.0
    %4070 = vmatprep.subr.mxu0 0.0
    %4071 = vmatpush1.msra.mxu0 0.0
    %4072 = vmatprep.subr.mxu0 0.0
    %4073 = vmatpush1.msra.mxu0 0.0
    %4074 = vmatprep.subr.mxu0 0.0
    %4075 = vmatpush1.msra.mxu0 0.0
    %4076 = vmatprep.subr.mxu0 0.0
    %4077 = vmatpush1.msra.mxu0 0.0
    %4078 = vmatprep.subr.mxu0 0.0
    %4079 = vmatpush1.msra.mxu0 0.0
    %4080 = vmatprep.subr.mxu0 0.0
    %4081 = vmatpush1.msra.mxu0 0.0
    %4082 = vmatprep.subr.mxu0 0.0
    %4083 = vmatpush1.msra.mxu0 0.0
    %4084 = vmatprep.subr.mxu0 0.0
    %4085 = vmatpush1.msra.mxu0 0.0
    %4086 = vmatprep.mubr.f32.mxu0 0.0
    %4087 = vmatmul.mubr.f32.gmra.mrb[0].mxu0 %v4017
    %v4088 = vpop.f32.mrb[0].mxu0
    %v4089 = vadd.f32 0.0, %v4088
    %v4090 = vpop.f32.mrb[0].mxu0
    %4091 = vmatprep.mubr.f32.mxu0 0.0
    %4092 = vmatmul.mubr.f32.gmra.mrb[0].mxu0 %v4020
    %v4093 = vpop.f32.mrb[0].mxu0
    %v4094 = vadd.f32 0.0, %v4093
    %v4095 = vpop.f32.mrb[0].mxu0
    %4096 = vdwg.mxu0
    %v4098 = vsel %vm496, %v3804, 0
    %v4101 = vsel %vm496, %v3809, 0
    %4103 = vmatprep.subr.mxu0 0.0
    %4104 = vmatpush1.msra.mxu0 %v3518
    %4105 = vmatprep.subr.mxu0 0.0
    %4106 = vmatpush1.msra.mxu0 0.0
    %4107 = vmatprep.subr.mxu0 0.0
    %4108 = vmatpush1.msra.mxu0 0.0
    %4109 = vmatprep.subr.mxu0 0.0
    %4110 = vmatpush1.msra.mxu0 0.0
    %4111 = vmatprep.subr.mxu0 0.0
    %4112 = vmatpush1.msra.mxu0 0.0
    %4113 = vmatprep.subr.mxu0 0.0
    %4114 = vmatpush1.msra.mxu0 0.0
    %4115 = vmatprep.subr.mxu0 0.0
    %4116 = vmatpush1.msra.mxu0 0.0
    %4117 = vmatprep.subr.mxu0 0.0
    %4118 = vmatpush1.msra.mxu0 0.0
    %4119 = vmatprep.subr.mxu0 0.0
    %4120 = vmatpush1.msra.mxu0 0.0
    %4121 = vmatprep.subr.mxu0 0.0
    %4122 = vmatpush1.msra.mxu0 0.0
    %4123 = vmatprep.subr.mxu0 0.0
    %4124 = vmatpush1.msra.mxu0 0.0
    %4125 = vmatprep.subr.mxu0 0.0
    %4126 = vmatpush1.msra.mxu0 0.0
    %4127 = vmatprep.subr.mxu0 0.0
    %4128 = vmatpush1.msra.mxu0 0.0
    %4129 = vmatprep.subr.mxu0 0.0
    %4130 = vmatpush1.msra.mxu0 0.0
    %4131 = vmatprep.subr.mxu0 0.0
    %4132 = vmatpush1.msra.mxu0 0.0
    %4133 = vmatprep.subr.mxu0 0.0
    %4134 = vmatpush1.msra.mxu0 0.0
    %4135 = vmatprep.subr.mxu0 0.0
    %4136 = vmatpush1.msra.mxu0 0.0
    %4137 = vmatprep.subr.mxu0 0.0
    %4138 = vmatpush1.msra.mxu0 0.0
    %4139 = vmatprep.subr.mxu0 0.0
    %4140 = vmatpush1.msra.mxu0 0.0
    %4141 = vmatprep.subr.mxu0 0.0
    %4142 = vmatpush1.msra.mxu0 0.0
    %4143 = vmatprep.subr.mxu0 0.0
    %4144 = vmatpush1.msra.mxu0 0.0
    %4145 = vmatprep.subr.mxu0 0.0
    %4146 = vmatpush1.msra.mxu0 0.0
    %4147 = vmatprep.subr.mxu0 0.0
    %4148 = vmatpush1.msra.mxu0 0.0
    %4149 = vmatprep.subr.mxu0 0.0
    %4150 = vmatpush1.msra.mxu0 0.0
    %4151 = vmatprep.subr.mxu0 0.0
    %4152 = vmatpush1.msra.mxu0 0.0
    %4153 = vmatprep.subr.mxu0 0.0
    %4154 = vmatpush1.msra.mxu0 0.0
    %4155 = vmatprep.subr.mxu0 0.0
    %4156 = vmatpush1.msra.mxu0 0.0
    %4157 = vmatprep.subr.mxu0 0.0
    %4158 = vmatpush1.msra.mxu0 0.0
    %4159 = vmatprep.subr.mxu0 0.0
    %4160 = vmatpush1.msra.mxu0 0.0
    %4161 = vmatprep.subr.mxu0 0.0
    %4162 = vmatpush1.msra.mxu0 0.0
    %4163 = vmatprep.subr.mxu0 0.0
    %4164 = vmatpush1.msra.mxu0 0.0
    %4165 = vmatprep.subr.mxu0 0.0
    %4166 = vmatpush1.msra.mxu0 0.0
    %4167 = vmatprep.mubr.f32.mxu0 0.0
    %4168 = vmatmul.mubr.f32.gmra.mrb[0].mxu0 %v4098
    %v4169 = vpop.f32.mrb[0].mxu0
    %v4170 = vadd.f32 %v4089, %v4169
    %v4171 = vpop.f32.mrb[0].mxu0
    %4172 = vmatprep.mubr.f32.mxu0 0.0
    %4173 = vmatmul.mubr.f32.gmra.mrb[0].mxu0 %v4101
    %v4174 = vpop.f32.mrb[0].mxu0
    %v4175 = vadd.f32 %v4094, %v4174
    %v4176 = vpop.f32.mrb[0].mxu0
    %4177 = vdwg.mxu0
    %4178 = vrot.lane.b32.xlu0 %v3602, 112
    %v4179 = vpop.permute.xlu0 %4178
    %4180 = vrot.lane.b32.xlu0 %v3607, 112
    %v4181 = vpop.permute.xlu0 %4180
    %4182 = vrot.lane.b32.xlu0 %v3602, 80
    %v4183 = vpop.permute.xlu0 %4182
    %4184 = vrot.lane.b32.xlu0 %v3607, 80
    %v4185 = vpop.permute.xlu0 %4184
    %v4186 = vsel %vm496, %v4179, 0
    %v4188 = vsel %vm496, %v4181, 0
    %v4190 = vsel %vm496, %v4183, 0
    %v4192 = vsel %vm496, %v4185, 0
    %4194 = vmatprep.subr.mxu0 0.0
    %4195 = vmatpush1.xpose.msra.mxu0 %v4190
    %4196 = vmatprep.subr.mxu0 0.0
    %4197 = vmatpush1.xpose.msra.mxu0 %v4192
    %4198 = vmatprep.subr.mxu0 0.0
    %4199 = vmatpush1.xpose.msra.mxu0 0.0
    %4200 = vmatprep.subr.mxu0 0.0
    %4201 = vmatpush1.xpose.msra.mxu0 0.0
    %4202 = vmatprep.subr.mxu0 0.0
    %4203 = vmatpush1.xpose.msra.mxu0 0.0
    %4204 = vmatprep.subr.mxu0 0.0
    %4205 = vmatpush1.xpose.msra.mxu0 0.0
    %4206 = vmatprep.subr.mxu0 0.0
    %4207 = vmatpush1.xpose.msra.mxu0 0.0
    %4208 = vmatprep.subr.mxu0 0.0
    %4209 = vmatpush1.xpose.msra.mxu0 0.0
    %4210 = vmatprep.subr.mxu0 0.0
    %4211 = vmatpush1.xpose.msra.mxu0 0.0
    %4212 = vmatprep.subr.mxu0 0.0
    %4213 = vmatpush1.xpose.msra.mxu0 0.0
    %4214 = vmatprep.subr.mxu0 0.0
    %4215 = vmatpush1.xpose.msra.mxu0 0.0
    %4216 = vmatprep.subr.mxu0 0.0
    %4217 = vmatpush1.xpose.msra.mxu0 0.0
    %4218 = vmatprep.subr.mxu0 0.0
    %4219 = vmatpush1.xpose.msra.mxu0 0.0
    %4220 = vmatprep.subr.mxu0 0.0
    %4221 = vmatpush1.xpose.msra.mxu0 0.0
    %4222 = vmatprep.subr.mxu0 0.0
    %4223 = vmatpush1.xpose.msra.mxu0 0.0
    %4224 = vmatprep.subr.mxu0 0.0
    %4225 = vmatpush1.xpose.msra.mxu0 0.0
    %4226 = vmatprep.subr.mxu0 0.0
    %4227 = vmatpush1.xpose.msra.mxu0 0.0
    %4228 = vmatprep.subr.mxu0 0.0
    %4229 = vmatpush1.xpose.msra.mxu0 0.0
    %4230 = vmatprep.subr.mxu0 0.0
    %4231 = vmatpush1.xpose.msra.mxu0 0.0
    %4232 = vmatprep.subr.mxu0 0.0
    %4233 = vmatpush1.xpose.msra.mxu0 0.0
    %4234 = vmatprep.subr.mxu0 0.0
    %4235 = vmatpush1.xpose.msra.mxu0 0.0
    %4236 = vmatprep.subr.mxu0 0.0
    %4237 = vmatpush1.xpose.msra.mxu0 0.0
    %4238 = vmatprep.subr.mxu0 0.0
    %4239 = vmatpush1.xpose.msra.mxu0 0.0
    %4240 = vmatprep.subr.mxu0 0.0
    %4241 = vmatpush1.xpose.msra.mxu0 0.0
    %4242 = vmatprep.subr.mxu0 0.0
    %4243 = vmatpush1.xpose.msra.mxu0 0.0
    %4244 = vmatprep.subr.mxu0 0.0
    %4245 = vmatpush1.xpose.msra.mxu0 0.0
    %4246 = vmatprep.subr.mxu0 0.0
    %4247 = vmatpush1.xpose.msra.mxu0 0.0
    %4248 = vmatprep.subr.mxu0 0.0
    %4249 = vmatpush1.xpose.msra.mxu0 0.0
    %4250 = vmatprep.subr.mxu0 0.0
    %4251 = vmatpush1.xpose.msra.mxu0 0.0
    %4252 = vmatprep.subr.mxu0 0.0
    %4253 = vmatpush1.xpose.msra.mxu0 0.0
    %4254 = vmatprep.subr.mxu0 0.0
    %4255 = vmatpush1.xpose.msra.mxu0 0.0
    %4256 = vmatprep.subr.mxu0 0.0
    %4257 = vmatpush1.xpose.msra.mxu0 0.0
    %4258 = vmatprep.mubr.f32.mxu0 0.0
    %4259 = vmatmul.mubr.f32.gmra.mrb[0].mxu0 %v4186
    %v4260 = vpop.f32.mrb[0].mxu0
    %v4261 = vadd.f32 0.0, %v4260
    %v4262 = vpop.f32.mrb[0].mxu0
    %4263 = vmatprep.mubr.f32.mxu0 0.0
    %4264 = vmatmul.mubr.f32.gmra.mrb[0].mxu0 %v4188
    %v4265 = vpop.f32.mrb[0].mxu0
    %v4266 = vadd.f32 0.0, %v4265
    %v4267 = vpop.f32.mrb[0].mxu0
    %4268 = vdwg.mxu0
    %v4269 = vmul.f32 %v4261, 0.35355338
    %v4270 = vmul.f32 %v4266, 0.35355338
    %v4271 = vadd.f32 %v4269, %v386
    %v4272 = vadd.f32 %v4270, %v387
    %v4273 = vsel %vm584, %v4271, -inf
    %4274 = vmax.xlane.f32.xlu0 %v4273
    %v4275 = vpop.xlane.xlu0 %4274
    %v4276 = vsel %vm584, %v4272, -inf
    %4277 = vmax.xlane.f32.xlu0 %v4276
    %v4278 = vpop.xlane.xlu0 %4277
    %v4279 = vsub.f32 %v4271, %v4275
    %v4280 = vsub.f32 %v4272, %v4278
    %v4281 = vmul.f32 %v4279, 1.442695
    %v4282 = vpow.pop %v4281
    %v4283 = vmul.f32 %v4280, 1.442695
    %v4284 = vpow.pop %v4283
    %v4285 = vsel %vm584, %v4282, 0.0
    %4286 = vadd.xlane.f32.xlu0 %v4285
    %v4287 = vpop.xlane.xlu0 %4286
    %v4288 = vsel %vm584, %v4284, 0.0
    %4289 = vadd.xlane.f32.xlu0 %v4288
    %v4290 = vpop.xlane.xlu0 %4289
    %v4291 = vrcp.pop %v4287
    %v4292 = vmul.f32 %v4282, %v4291
    %v4293 = vrcp.pop %v4290
    %v4294 = vmul.f32 %v4284, %v4293
    %4295 = vrot.lane.b32.xlu0 %v3602, 48
    %v4296 = vpop.permute.xlu0 %4295
    %4297 = vrot.lane.b32.xlu0 %v3607, 48
    %v4298 = vpop.permute.xlu0 %4297
    %v4302 = vsel %vm584, %v4292, 0
    %v4305 = vsel %vm584, %v4294, 0
    %4307 = vmatprep.subr.mxu0 0.0
    %4308 = vmatpush1.msra.mxu0 %v4296
    %4309 = vmatprep.subr.mxu0 0.0
    %4310 = vmatpush1.msra.mxu0 %v4298
    %4311 = vmatprep.subr.mxu0 0.0
    %4312 = vmatpush1.msra.mxu0 0.0
    %4313 = vmatprep.subr.mxu0 0.0
    %4314 = vmatpush1.msra.mxu0 0.0
    %4315 = vmatprep.subr.mxu0 0.0
    %4316 = vmatpush1.msra.mxu0 0.0
    %4317 = vmatprep.subr.mxu0 0.0
    %4318 = vmatpush1.msra.mxu0 0.0
    %4319 = vmatprep.subr.mxu0 0.0
    %4320 = vmatpush1.msra.mxu0 0.0
    %4321 = vmatprep.subr.mxu0 0.0
    %4322 = vmatpush1.msra.mxu0 0.0
    %4323 = vmatprep.subr.mxu0 0.0
    %4324 = vmatpush1.msra.mxu0 0.0
    %4325 = vmatprep.subr.mxu0 0.0
    %4326 = vmatpush1.msra.mxu0 0.0
    %4327 = vmatprep.subr.mxu0 0.0
    %4328 = vmatpush1.msra.mxu0 0.0
    %4329 = vmatprep.subr.mxu0 0.0
    %4330 = vmatpush1.msra.mxu0 0.0
    %4331 = vmatprep.subr.mxu0 0.0
    %4332 = vmatpush1.msra.mxu0 0.0
    %4333 = vmatprep.subr.mxu0 0.0
    %4334 = vmatpush1.msra.mxu0 0.0
    %4335 = vmatprep.subr.mxu0 0.0
    %4336 = vmatpush1.msra.mxu0 0.0
    %4337 = vmatprep.subr.mxu0 0.0
    %4338 = vmatpush1.msra.mxu0 0.0
    %4339 = vmatprep.subr.mxu0 0.0
    %4340 = vmatpush1.msra.mxu0 0.0
    %4341 = vmatprep.subr.mxu0 0.0
    %4342 = vmatpush1.msra.mxu0 0.0
    %4343 = vmatprep.subr.mxu0 0.0
    %4344 = vmatpush1.msra.mxu0 0.0
    %4345 = vmatprep.subr.mxu0 0.0
    %4346 = vmatpush1.msra.mxu0 0.0
    %4347 = vmatprep.subr.mxu0 0.0
    %4348 = vmatpush1.msra.mxu0 0.0
    %4349 = vmatprep.subr.mxu0 0.0
    %4350 = vmatpush1.msra.mxu0 0.0
    %4351 = vmatprep.subr.mxu0 0.0
    %4352 = vmatpush1.msra.mxu0 0.0
    %4353 = vmatprep.subr.mxu0 0.0
    %4354 = vmatpush1.msra.mxu0 0.0
    %4355 = vmatprep.subr.mxu0 0.0
    %4356 = vmatpush1.msra.mxu0 0.0
    %4357 = vmatprep.subr.mxu0 0.0
    %4358 = vmatpush1.msra.mxu0 0.0
    %4359 = vmatprep.subr.mxu0 0.0
    %4360 = vmatpush1.msra.mxu0 0.0
    %4361 = vmatprep.subr.mxu0 0.0
    %4362 = vmatpush1.msra.mxu0 0.0
    %4363 = vmatprep.subr.mxu0 0.0
    %4364 = vmatpush1.msra.mxu0 0.0
    %4365 = vmatprep.subr.mxu0 0.0
    %4366 = vmatpush1.msra.mxu0 0.0
    %4367 = vmatprep.subr.mxu0 0.0
    %4368 = vmatpush1.msra.mxu0 0.0
    %4369 = vmatprep.subr.mxu0 0.0
    %4370 = vmatpush1.msra.mxu0 0.0
    %4371 = vmatprep.mubr.f32.mxu0 0.0
    %4372 = vmatmul.mubr.f32.gmra.mrb[0].mxu0 %v4302
    %v4373 = vpop.f32.mrb[0].mxu0
    %v4374 = vadd.f32 0.0, %v4373
    %v4375 = vpop.f32.mrb[0].mxu0
    %4376 = vmatprep.mubr.f32.mxu0 0.0
    %4377 = vmatmul.mubr.f32.gmra.mrb[0].mxu0 %v4305
    %v4378 = vpop.f32.mrb[0].mxu0
    %v4379 = vadd.f32 0.0, %v4378
    %v4380 = vpop.f32.mrb[0].mxu0
    %4381 = vdwg.mxu0
    %v4383 = vsel %vm496, %v4374, 0
    %v4386 = vsel %vm496, %v4379, 0
    %4388 = vmatprep.subr.mxu0 0.0
    %4389 = vmatpush1.msra.mxu0 %v3520
    %4390 = vmatprep.subr.mxu0 0.0
    %4391 = vmatpush1.msra.mxu0 0.0
    %4392 = vmatprep.subr.mxu0 0.0
    %4393 = vmatpush1.msra.mxu0 0.0
    %4394 = vmatprep.subr.mxu0 0.0
    %4395 = vmatpush1.msra.mxu0 0.0
    %4396 = vmatprep.subr.mxu0 0.0
    %4397 = vmatpush1.msra.mxu0 0.0
    %4398 = vmatprep.subr.mxu0 0.0
    %4399 = vmatpush1.msra.mxu0 0.0
    %4400 = vmatprep.subr.mxu0 0.0
    %4401 = vmatpush1.msra.mxu0 0.0
    %4402 = vmatprep.subr.mxu0 0.0
    %4403 = vmatpush1.msra.mxu0 0.0
    %4404 = vmatprep.subr.mxu0 0.0
    %4405 = vmatpush1.msra.mxu0 0.0
    %4406 = vmatprep.subr.mxu0 0.0
    %4407 = vmatpush1.msra.mxu0 0.0
    %4408 = vmatprep.subr.mxu0 0.0
    %4409 = vmatpush1.msra.mxu0 0.0
    %4410 = vmatprep.subr.mxu0 0.0
    %4411 = vmatpush1.msra.mxu0 0.0
    %4412 = vmatprep.subr.mxu0 0.0
    %4413 = vmatpush1.msra.mxu0 0.0
    %4414 = vmatprep.subr.mxu0 0.0
    %4415 = vmatpush1.msra.mxu0 0.0
    %4416 = vmatprep.subr.mxu0 0.0
    %4417 = vmatpush1.msra.mxu0 0.0
    %4418 = vmatprep.subr.mxu0 0.0
    %4419 = vmatpush1.msra.mxu0 0.0
    %4420 = vmatprep.subr.mxu0 0.0
    %4421 = vmatpush1.msra.mxu0 0.0
    %4422 = vmatprep.subr.mxu0 0.0
    %4423 = vmatpush1.msra.mxu0 0.0
    %4424 = vmatprep.subr.mxu0 0.0
    %4425 = vmatpush1.msra.mxu0 0.0
    %4426 = vmatprep.subr.mxu0 0.0
    %4427 = vmatpush1.msra.mxu0 0.0
    %4428 = vmatprep.subr.mxu0 0.0
    %4429 = vmatpush1.msra.mxu0 0.0
    %4430 = vmatprep.subr.mxu0 0.0
    %4431 = vmatpush1.msra.mxu0 0.0
    %4432 = vmatprep.subr.mxu0 0.0
    %4433 = vmatpush1.msra.mxu0 0.0
    %4434 = vmatprep.subr.mxu0 0.0
    %4435 = vmatpush1.msra.mxu0 0.0
    %4436 = vmatprep.subr.mxu0 0.0
    %4437 = vmatpush1.msra.mxu0 0.0
    %4438 = vmatprep.subr.mxu0 0.0
    %4439 = vmatpush1.msra.mxu0 0.0
    %4440 = vmatprep.subr.mxu0 0.0
    %4441 = vmatpush1.msra.mxu0 0.0
    %4442 = vmatprep.subr.mxu0 0.0
    %4443 = vmatpush1.msra.mxu0 0.0
    %4444 = vmatprep.subr.mxu0 0.0
    %4445 = vmatpush1.msra.mxu0 0.0
    %4446 = vmatprep.subr.mxu0 0.0
    %4447 = vmatpush1.msra.mxu0 0.0
    %4448 = vmatprep.subr.mxu0 0.0
    %4449 = vmatpush1.msra.mxu0 0.0
    %4450 = vmatprep.subr.mxu0 0.0
    %4451 = vmatpush1.msra.mxu0 0.0
    %4452 = vmatprep.mubr.f32.mxu0 0.0
    %4453 = vmatmul.mubr.f32.gmra.mrb[0].mxu0 %v4383
    %v4454 = vpop.f32.mrb[0].mxu0
    %v4455 = vadd.f32 0.0, %v4454
    %v4456 = vpop.f32.mrb[0].mxu0
    %4457 = vmatprep.mubr.f32.mxu0 0.0
    %4458 = vmatmul.mubr.f32.gmra.mrb[0].mxu0 %v4386
    %v4459 = vpop.f32.mrb[0].mxu0
    %v4460 = vadd.f32 0.0, %v4459
    %v4461 = vpop.f32.mrb[0].mxu0
    %4462 = vdwg.mxu0
    %v4463 = vadd.f32 %v4170, %v4455
    %v4464 = vadd.f32 %v4175, %v4460
    %4465 = vrot.lane.b32.xlu0 %v3602, 104
    %v4466 = vpop.permute.xlu0 %4465
    %4467 = vrot.lane.b32.xlu0 %v3607, 104
    %v4468 = vpop.permute.xlu0 %4467
    %4469 = vrot.lane.b32.xlu0 %v3602, 72
    %v4470 = vpop.permute.xlu0 %4469
    %4471 = vrot.lane.b32.xlu0 %v3607, 72
    %v4472 = vpop.permute.xlu0 %4471
    %v4473 = vsel %vm496, %v4466, 0
    %v4475 = vsel %vm496, %v4468, 0
    %v4477 = vsel %vm496, %v4470, 0
    %v4479 = vsel %vm496, %v4472, 0
    %4481 = vmatprep.subr.mxu0 0.0
    %4482 = vmatpush1.xpose.msra.mxu0 %v4477
    %4483 = vmatprep.subr.mxu0 0.0
    %4484 = vmatpush1.xpose.msra.mxu0 %v4479
    %4485 = vmatprep.subr.mxu0 0.0
    %4486 = vmatpush1.xpose.msra.mxu0 0.0
    %4487 = vmatprep.subr.mxu0 0.0
    %4488 = vmatpush1.xpose.msra.mxu0 0.0
    %4489 = vmatprep.subr.mxu0 0.0
    %4490 = vmatpush1.xpose.msra.mxu0 0.0
    %4491 = vmatprep.subr.mxu0 0.0
    %4492 = vmatpush1.xpose.msra.mxu0 0.0
    %4493 = vmatprep.subr.mxu0 0.0
    %4494 = vmatpush1.xpose.msra.mxu0 0.0
    %4495 = vmatprep.subr.mxu0 0.0
    %4496 = vmatpush1.xpose.msra.mxu0 0.0
    %4497 = vmatprep.subr.mxu0 0.0
    %4498 = vmatpush1.xpose.msra.mxu0 0.0
    %4499 = vmatprep.subr.mxu0 0.0
    %4500 = vmatpush1.xpose.msra.mxu0 0.0
    %4501 = vmatprep.subr.mxu0 0.0
    %4502 = vmatpush1.xpose.msra.mxu0 0.0
    %4503 = vmatprep.subr.mxu0 0.0
    %4504 = vmatpush1.xpose.msra.mxu0 0.0
    %4505 = vmatprep.subr.mxu0 0.0
    %4506 = vmatpush1.xpose.msra.mxu0 0.0
    %4507 = vmatprep.subr.mxu0 0.0
    %4508 = vmatpush1.xpose.msra.mxu0 0.0
    %4509 = vmatprep.subr.mxu0 0.0
    %4510 = vmatpush1.xpose.msra.mxu0 0.0
    %4511 = vmatprep.subr.mxu0 0.0
    %4512 = vmatpush1.xpose.msra.mxu0 0.0
    %4513 = vmatprep.subr.mxu0 0.0
    %4514 = vmatpush1.xpose.msra.mxu0 0.0
    %4515 = vmatprep.subr.mxu0 0.0
    %4516 = vmatpush1.xpose.msra.mxu0 0.0
    %4517 = vmatprep.subr.mxu0 0.0
    %4518 = vmatpush1.xpose.msra.mxu0 0.0
    %4519 = vmatprep.subr.mxu0 0.0
    %4520 = vmatpush1.xpose.msra.mxu0 0.0
    %4521 = vmatprep.subr.mxu0 0.0
    %4522 = vmatpush1.xpose.msra.mxu0 0.0
    %4523 = vmatprep.subr.mxu0 0.0
    %4524 = vmatpush1.xpose.msra.mxu0 0.0
    %4525 = vmatprep.subr.mxu0 0.0
    %4526 = vmatpush1.xpose.msra.mxu0 0.0
    %4527 = vmatprep.subr.mxu0 0.0
    %4528 = vmatpush1.xpose.msra.mxu0 0.0
    %4529 = vmatprep.subr.mxu0 0.0
    %4530 = vmatpush1.xpose.msra.mxu0 0.0
    %4531 = vmatprep.subr.mxu0 0.0
    %4532 = vmatpush1.xpose.msra.mxu0 0.0
    %4533 = vmatprep.subr.mxu0 0.0
    %4534 = vmatpush1.xpose.msra.mxu0 0.0
    %4535 = vmatprep.subr.mxu0 0.0
    %4536 = vmatpush1.xpose.msra.mxu0 0.0
    %4537 = vmatprep.subr.mxu0 0.0
    %4538 = vmatpush1.xpose.msra.mxu0 0.0
    %4539 = vmatprep.subr.mxu0 0.0
    %4540 = vmatpush1.xpose.msra.mxu0 0.0
    %4541 = vmatprep.subr.mxu0 0.0
    %4542 = vmatpush1.xpose.msra.mxu0 0.0
    %4543 = vmatprep.subr.mxu0 0.0
    %4544 = vmatpush1.xpose.msra.mxu0 0.0
    %4545 = vmatprep.mubr.f32.mxu0 0.0
    %4546 = vmatmul.mubr.f32.gmra.mrb[0].mxu0 %v4473
    %v4547 = vpop.f32.mrb[0].mxu0
    %v4548 = vadd.f32 0.0, %v4547
    %v4549 = vpop.f32.mrb[0].mxu0
    %4550 = vmatprep.mubr.f32.mxu0 0.0
    %4551 = vmatmul.mubr.f32.gmra.mrb[0].mxu0 %v4475
    %v4552 = vpop.f32.mrb[0].mxu0
    %v4553 = vadd.f32 0.0, %v4552
    %v4554 = vpop.f32.mrb[0].mxu0
    %4555 = vdwg.mxu0
    %v4556 = vmul.f32 %v4548, 0.35355338
    %v4557 = vmul.f32 %v4553, 0.35355338
    %v4558 = vadd.f32 %v4556, %v386
    %v4559 = vadd.f32 %v4557, %v387
    %v4560 = vsel %vm584, %v4558, -inf
    %4561 = vmax.xlane.f32.xlu0 %v4560
    %v4562 = vpop.xlane.xlu0 %4561
    %v4563 = vsel %vm584, %v4559, -inf
    %4564 = vmax.xlane.f32.xlu0 %v4563
    %v4565 = vpop.xlane.xlu0 %4564
    %v4566 = vsub.f32 %v4558, %v4562
    %v4567 = vsub.f32 %v4559, %v4565
    %v4568 = vmul.f32 %v4566, 1.442695
    %v4569 = vpow.pop %v4568
    %v4570 = vmul.f32 %v4567, 1.442695
    %v4571 = vpow.pop %v4570
    %v4572 = vsel %vm584, %v4569, 0.0
    %4573 = vadd.xlane.f32.xlu0 %v4572
    %v4574 = vpop.xlane.xlu0 %4573
    %v4575 = vsel %vm584, %v4571, 0.0
    %4576 = vadd.xlane.f32.xlu0 %v4575
    %v4577 = vpop.xlane.xlu0 %4576
    %v4578 = vrcp.pop %v4574
    %v4579 = vmul.f32 %v4569, %v4578
    %v4580 = vrcp.pop %v4577
    %v4581 = vmul.f32 %v4571, %v4580
    %4582 = vrot.lane.b32.xlu0 %v3602, 40
    %v4583 = vpop.permute.xlu0 %4582
    %4584 = vrot.lane.b32.xlu0 %v3607, 40
    %v4585 = vpop.permute.xlu0 %4584
    %v4589 = vsel %vm584, %v4579, 0
    %v4592 = vsel %vm584, %v4581, 0
    %4594 = vmatprep.subr.mxu0 0.0
    %4595 = vmatpush1.msra.mxu0 %v4583
    %4596 = vmatprep.subr.mxu0 0.0
    %4597 = vmatpush1.msra.mxu0 %v4585
    %4598 = vmatprep.subr.mxu0 0.0
    %4599 = vmatpush1.msra.mxu0 0.0
    %4600 = vmatprep.subr.mxu0 0.0
    %4601 = vmatpush1.msra.mxu0 0.0
    %4602 = vmatprep.subr.mxu0 0.0
    %4603 = vmatpush1.msra.mxu0 0.0
    %4604 = vmatprep.subr.mxu0 0.0
    %4605 = vmatpush1.msra.mxu0 0.0
    %4606 = vmatprep.subr.mxu0 0.0
    %4607 = vmatpush1.msra.mxu0 0.0
    %4608 = vmatprep.subr.mxu0 0.0
    %4609 = vmatpush1.msra.mxu0 0.0
    %4610 = vmatprep.subr.mxu0 0.0
    %4611 = vmatpush1.msra.mxu0 0.0
    %4612 = vmatprep.subr.mxu0 0.0
    %4613 = vmatpush1.msra.mxu0 0.0
    %4614 = vmatprep.subr.mxu0 0.0
    %4615 = vmatpush1.msra.mxu0 0.0
    %4616 = vmatprep.subr.mxu0 0.0
    %4617 = vmatpush1.msra.mxu0 0.0
    %4618 = vmatprep.subr.mxu0 0.0
    %4619 = vmatpush1.msra.mxu0 0.0
    %4620 = vmatprep.subr.mxu0 0.0
    %4621 = vmatpush1.msra.mxu0 0.0
    %4622 = vmatprep.subr.mxu0 0.0
    %4623 = vmatpush1.msra.mxu0 0.0
    %4624 = vmatprep.subr.mxu0 0.0
    %4625 = vmatpush1.msra.mxu0 0.0
    %4626 = vmatprep.subr.mxu0 0.0
    %4627 = vmatpush1.msra.mxu0 0.0
    %4628 = vmatprep.subr.mxu0 0.0
    %4629 = vmatpush1.msra.mxu0 0.0
    %4630 = vmatprep.subr.mxu0 0.0
    %4631 = vmatpush1.msra.mxu0 0.0
    %4632 = vmatprep.subr.mxu0 0.0
    %4633 = vmatpush1.msra.mxu0 0.0
    %4634 = vmatprep.subr.mxu0 0.0
    %4635 = vmatpush1.msra.mxu0 0.0
    %4636 = vmatprep.subr.mxu0 0.0
    %4637 = vmatpush1.msra.mxu0 0.0
    %4638 = vmatprep.subr.mxu0 0.0
    %4639 = vmatpush1.msra.mxu0 0.0
    %4640 = vmatprep.subr.mxu0 0.0
    %4641 = vmatpush1.msra.mxu0 0.0
    %4642 = vmatprep.subr.mxu0 0.0
    %4643 = vmatpush1.msra.mxu0 0.0
    %4644 = vmatprep.subr.mxu0 0.0
    %4645 = vmatpush1.msra.mxu0 0.0
    %4646 = vmatprep.subr.mxu0 0.0
    %4647 = vmatpush1.msra.mxu0 0.0
    %4648 = vmatprep.subr.mxu0 0.0
    %4649 = vmatpush1.msra.mxu0 0.0
    %4650 = vmatprep.subr.mxu0 0.0
    %4651 = vmatpush1.msra.mxu0 0.0
    %4652 = vmatprep.subr.mxu0 0.0
    %4653 = vmatpush1.msra.mxu0 0.0
    %4654 = vmatprep.subr.mxu0 0.0
    %4655 = vmatpush1.msra.mxu0 0.0
    %4656 = vmatprep.subr.mxu0 0.0
    %4657 = vmatpush1.msra.mxu0 0.0
    %4658 = vmatprep.mubr.f32.mxu0 0.0
    %4659 = vmatmul.mubr.f32.gmra.mrb[0].mxu0 %v4589
    %v4660 = vpop.f32.mrb[0].mxu0
    %v4661 = vadd.f32 0.0, %v4660
    %v4662 = vpop.f32.mrb[0].mxu0
    %4663 = vmatprep.mubr.f32.mxu0 0.0
    %4664 = vmatmul.mubr.f32.gmra.mrb[0].mxu0 %v4592
    %v4665 = vpop.f32.mrb[0].mxu0
    %v4666 = vadd.f32 0.0, %v4665
    %v4667 = vpop.f32.mrb[0].mxu0
    %4668 = vdwg.mxu0
    %v4670 = vsel %vm496, %v4661, 0
    %v4673 = vsel %vm496, %v4666, 0
    %4675 = vmatprep.subr.mxu0 0.0
    %4676 = vmatpush1.msra.mxu0 %v3521
    %4677 = vmatprep.subr.mxu0 0.0
    %4678 = vmatpush1.msra.mxu0 0.0
    %4679 = vmatprep.subr.mxu0 0.0
    %4680 = vmatpush1.msra.mxu0 0.0
    %4681 = vmatprep.subr.mxu0 0.0
    %4682 = vmatpush1.msra.mxu0 0.0
    %4683 = vmatprep.subr.mxu0 0.0
    %4684 = vmatpush1.msra.mxu0 0.0
    %4685 = vmatprep.subr.mxu0 0.0
    %4686 = vmatpush1.msra.mxu0 0.0
    %4687 = vmatprep.subr.mxu0 0.0
    %4688 = vmatpush1.msra.mxu0 0.0
    %4689 = vmatprep.subr.mxu0 0.0
    %4690 = vmatpush1.msra.mxu0 0.0
    %4691 = vmatprep.subr.mxu0 0.0
    %4692 = vmatpush1.msra.mxu0 0.0
    %4693 = vmatprep.subr.mxu0 0.0
    %4694 = vmatpush1.msra.mxu0 0.0
    %4695 = vmatprep.subr.mxu0 0.0
    %4696 = vmatpush1.msra.mxu0 0.0
    %4697 = vmatprep.subr.mxu0 0.0
    %4698 = vmatpush1.msra.mxu0 0.0
    %4699 = vmatprep.subr.mxu0 0.0
    %4700 = vmatpush1.msra.mxu0 0.0
    %4701 = vmatprep.subr.mxu0 0.0
    %4702 = vmatpush1.msra.mxu0 0.0
    %4703 = vmatprep.subr.mxu0 0.0
    %4704 = vmatpush1.msra.mxu0 0.0
    %4705 = vmatprep.subr.mxu0 0.0
    %4706 = vmatpush1.msra.mxu0 0.0
    %4707 = vmatprep.subr.mxu0 0.0
    %4708 = vmatpush1.msra.mxu0 0.0
    %4709 = vmatprep.subr.mxu0 0.0
    %4710 = vmatpush1.msra.mxu0 0.0
    %4711 = vmatprep.subr.mxu0 0.0
    %4712 = vmatpush1.msra.mxu0 0.0
    %4713 = vmatprep.subr.mxu0 0.0
    %4714 = vmatpush1.msra.mxu0 0.0
    %4715 = vmatprep.subr.mxu0 0.0
    %4716 = vmatpush1.msra.mxu0 0.0
    %4717 = vmatprep.subr.mxu0 0.0
    %4718 = vmatpush1.msra.mxu0 0.0
    %4719 = vmatprep.subr.mxu0 0.0
    %4720 = vmatpush1.msra.mxu0 0.0
    %4721 = vmatprep.subr.mxu0 0.0
    %4722 = vmatpush1.msra.mxu0 0.0
    %4723 = vmatprep.subr.mxu0 0.0
    %4724 = vmatpush1.msra.mxu0 0.0
    %4725 = vmatprep.subr.mxu0 0.0
    %4726 = vmatpush1.msra.mxu0 0.0
    %4727 = vmatprep.subr.mxu0 0.0
    %4728 = vmatpush1.msra.mxu0 0.0
    %4729 = vmatprep.subr.mxu0 0.0
    %4730 = vmatpush1.msra.mxu0 0.0
    %4731 = vmatprep.subr.mxu0 0.0
    %4732 = vmatpush1.msra.mxu0 0.0
    %4733 = vmatprep.subr.mxu0 0.0
    %4734 = vmatpush1.msra.mxu0 0.0
    %4735 = vmatprep.subr.mxu0 0.0
    %4736 = vmatpush1.msra.mxu0 0.0
    %4737 = vmatprep.subr.mxu0 0.0
    %4738 = vmatpush1.msra.mxu0 0.0
    %4739 = vmatprep.mubr.f32.mxu0 0.0
    %4740 = vmatmul.mubr.f32.gmra.mrb[0].mxu0 %v4670
    %v4741 = vpop.f32.mrb[0].mxu0
    %v4742 = vadd.f32 0.0, %v4741
    %v4743 = vpop.f32.mrb[0].mxu0
    %4744 = vmatprep.mubr.f32.mxu0 0.0
    %4745 = vmatmul.mubr.f32.gmra.mrb[0].mxu0 %v4673
    %v4746 = vpop.f32.mrb[0].mxu0
    %v4747 = vadd.f32 0.0, %v4746
    %v4748 = vpop.f32.mrb[0].mxu0
    %4749 = vdwg.mxu0
    %v4750 = vadd.f32 %v4463, %v4742
    %v4751 = vadd.f32 %v4464, %v4747
    %v4753 = vlaneseq
    %v4754 = vshrl.u32 %v4753, 7
    %v4755 = vsub.s32 0, %v4754
    %v4756 = vrot.slane %v3522, %v4755
    %v4758 = vadd.f32 %v4750, %v4756
    %v4759 = vadd.f32 %v4751, %v4756
    %v4760 = vadd.f32 %v3511, %v4758
    %v4761 = vadd.f32 %v3512, %v4759
    %v4762 = vld [vmem:[%s67] sm:$0x1]
    %v4763 = vld [vmem:[%s69] sm:$0x1]
    %v4764 = vsel %vm408, %v4760, 0.0
    %4765 = vadd.xlane.f32.xlu0 %v4764
    %v4766 = vpop.xlane.xlu0 %4765
    %v4767 = vsel %vm408, %v4761, 0.0
    %4768 = vadd.xlane.f32.xlu0 %v4767
    %v4769 = vpop.xlane.xlu0 %4768
    %v4770 = vmul.f32 %v4766, %v1652
    %v4771 = vmul.f32 %v4769, %v1652
    %v4772 = vsub.f32 %v4760, %v4770
    %v4773 = vsub.f32 %v4761, %v4771
    %v4774 = vmul.f32 %v4772, %v4772
    %v4775 = vmul.f32 %v4773, %v4773
    %v4776 = vsel %vm408, %v4774, 0.0
    %4777 = vadd.xlane.f32.xlu0 %v4776
    %v4778 = vpop.xlane.xlu0 %4777
    %v4779 = vsel %vm408, %v4775, 0.0
    %4780 = vadd.xlane.f32.xlu0 %v4779
    %v4781 = vpop.xlane.xlu0 %4780
    %v4782 = vmul.f32 %v4778, %v1652
    %v4783 = vmul.f32 %v4781, %v1652
    %v4784 = vadd.f32 %v4782, 1e-05
    %v4785 = vadd.f32 %v4783, 1e-05
    %v4786 = vrsqrt.pop %v4784
    %v4787 = vrsqrt.pop %v4785
    %v4788 = vmul.f32 %v4772, %v4786
    %v4789 = vmul.f32 %v4773, %v4787
    %v4791 = vlaneseq
    %v4792 = vshrl.u32 %v4791, 7
    %v4793 = vsub.s32 0, %v4792
    %v4794 = vrot.slane %v4762, %v4793
    %v4796 = vmul.f32 %v4788, %v4794
    %v4797 = vmul.f32 %v4789, %v4794
    %v4799 = vlaneseq
    %v4800 = vshrl.u32 %v4799, 7
    %v4801 = vsub.s32 0, %v4800
    %v4802 = vrot.slane %v4763, %v4801
    %v4804 = vadd.f32 %v4796, %v4802
    %v4805 = vadd.f32 %v4797, %v4802
    %v4806 = vld [vmem:[%s47] sm:$0xff]
    %v4807 = vld [vmem:[%s47 + $0x8] sm:$0xff]
    %v4808 = vld [vmem:[%s47 + $0x10] sm:$0xff]
    %v4809 = vld [vmem:[%s47 + $0x18] sm:$0xff]
    %v4810 = vld [vmem:[%s49] sm:$0x1]
    %v4811 = vld [vmem:[#allocation23] sm:$0xff]
    %v4812 = vld [vmem:[#allocation23 + $0x8] sm:$0xff]
    %v4813 = vld [vmem:[#allocation23 + $0x10] sm:$0xff]
    %v4814 = vld [vmem:[#allocation23 + $0x18] sm:$0xff]
    %v4815 = vld [vmem:[%s53] sm:$0x1]
    %v4816 = vld [vmem:[#allocation25] sm:$0xff]
    %v4817 = vld [vmem:[#allocation25 + $0x8] sm:$0xff]
    %v4818 = vld [vmem:[#allocation25 + $0x10] sm:$0xff]
    %v4819 = vld [vmem:[#allocation25 + $0x18] sm:$0xff]
    %v4820 = vld [vmem:[%s57] sm:$0x1]
    %v4822 = vlaneseq
    %v4823 = vshrl.u32 %v4822, 7
    %v4824 = vsub.s32 0, %v4823
    %v4825 = vrot.slane %v4810, %v4824
    %v4828 = vsel %vm408, %v4804, 0
    %v4831 = vsel %vm408, %v4805, 0
    %4833 = vmatprep.subr.mxu0 0.0
    %4834 = vmatpush1.msra.mxu0 %v4806
    %4835 = vmatprep.subr.mxu0 0.0
    %4836 = vmatpush1.msra.mxu0 %v4807
    %4837 = vmatprep.subr.mxu0 0.0
    %4838 = vmatpush1.msra.mxu0 %v4808
    %4839 = vmatprep.subr.mxu0 0.0
    %4840 = vmatpush1.msra.mxu0 %v4809
    %4841 = vmatprep.subr.mxu0 0.0
    %4842 = vmatpush1.msra.mxu0 0.0
    %4843 = vmatprep.subr.mxu0 0.0
    %4844 = vmatpush1.msra.mxu0 0.0
    %4845 = vmatprep.subr.mxu0 0.0
    %4846 = vmatpush1.msra.mxu0 0.0
    %4847 = vmatprep.subr.mxu0 0.0
    %4848 = vmatpush1.msra.mxu0 0.0
    %4849 = vmatprep.subr.mxu0 0.0
    %4850 = vmatpush1.msra.mxu0 0.0
    %4851 = vmatprep.subr.mxu0 0.0
    %4852 = vmatpush1.msra.mxu0 0.0
    %4853 = vmatprep.subr.mxu0 0.0
    %4854 = vmatpush1.msra.mxu0 0.0
    %4855 = vmatprep.subr.mxu0 0.0
    %4856 = vmatpush1.msra.mxu0 0.0
    %4857 = vmatprep.subr.mxu0 0.0
    %4858 = vmatpush1.msra.mxu0 0.0
    %4859 = vmatprep.subr.mxu0 0.0
    %4860 = vmatpush1.msra.mxu0 0.0
    %4861 = vmatprep.subr.mxu0 0.0
    %4862 = vmatpush1.msra.mxu0 0.0
    %4863 = vmatprep.subr.mxu0 0.0
    %4864 = vmatpush1.msra.mxu0 0.0
    %4865 = vmatprep.subr.mxu0 0.0
    %4866 = vmatpush1.msra.mxu0 0.0
    %4867 = vmatprep.subr.mxu0 0.0
    %4868 = vmatpush1.msra.mxu0 0.0
    %4869 = vmatprep.subr.mxu0 0.0
    %4870 = vmatpush1.msra.mxu0 0.0
    %4871 = vmatprep.subr.mxu0 0.0
    %4872 = vmatpush1.msra.mxu0 0.0
    %4873 = vmatprep.subr.mxu0 0.0
    %4874 = vmatpush1.msra.mxu0 0.0
    %4875 = vmatprep.subr.mxu0 0.0
    %4876 = vmatpush1.msra.mxu0 0.0
    %4877 = vmatprep.subr.mxu0 0.0
    %4878 = vmatpush1.msra.mxu0 0.0
    %4879 = vmatprep.subr.mxu0 0.0
    %4880 = vmatpush1.msra.mxu0 0.0
    %4881 = vmatprep.subr.mxu0 0.0
    %4882 = vmatpush1.msra.mxu0 0.0
    %4883 = vmatprep.subr.mxu0 0.0
    %4884 = vmatpush1.msra.mxu0 0.0
    %4885 = vmatprep.subr.mxu0 0.0
    %4886 = vmatpush1.msra.mxu0 0.0
    %4887 = vmatprep.subr.mxu0 0.0
    %4888 = vmatpush1.msra.mxu0 0.0
    %4889 = vmatprep.subr.mxu0 0.0
    %4890 = vmatpush1.msra.mxu0 0.0
    %4891 = vmatprep.subr.mxu0 0.0
    %4892 = vmatpush1.msra.mxu0 0.0
    %4893 = vmatprep.subr.mxu0 0.0
    %4894 = vmatpush1.msra.mxu0 0.0
    %4895 = vmatprep.subr.mxu0 0.0
    %4896 = vmatpush1.msra.mxu0 0.0
    %4897 = vmatprep.mubr.f32.mxu0 0.0
    %4898 = vmatmul.mubr.f32.gmra.mrb[0].mxu0 %v4828
    %v4899 = vpop.f32.mrb[0].mxu0
    %v4900 = vadd.f32 %v4825, %v4899
    %v4901 = vpop.f32.mrb[0].mxu0
    %4902 = vmatprep.mubr.f32.mxu0 0.0
    %4903 = vmatmul.mubr.f32.gmra.mrb[0].mxu0 %v4831
    %v4904 = vpop.f32.mrb[0].mxu0
    %v4905 = vadd.f32 %v4825, %v4904
    %v4906 = vpop.f32.mrb[0].mxu0
    %4907 = vdwg.mxu0
    %v4909 = vlaneseq
    %v4910 = vshrl.u32 %v4909, 7
    %v4911 = vsub.s32 0, %v4910
    %v4912 = vrot.slane %v4815, %v4911
    %v4915 = vsel %vm408, %v3509, 0
    %v4918 = vsel %vm408, %v3510, 0
    %4920 = vmatprep.subr.mxu0 0.0
    %4921 = vmatpush1.msra.mxu0 %v4811
    %4922 = vmatprep.subr.mxu0 0.0
    %4923 = vmatpush1.msra.mxu0 %v4812
    %4924 = vmatprep.subr.mxu0 0.0
    %4925 = vmatpush1.msra.mxu0 %v4813
    %4926 = vmatprep.subr.mxu0 0.0
    %4927 = vmatpush1.msra.mxu0 %v4814
    %4928 = vmatprep.subr.mxu0 0.0
    %4929 = vmatpush1.msra.mxu0 0.0
    %4930 = vmatprep.subr.mxu0 0.0
    %4931 = vmatpush1.msra.mxu0 0.0
    %4932 = vmatprep.subr.mxu0 0.0
    %4933 = vmatpush1.msra.mxu0 0.0
    %4934 = vmatprep.subr.mxu0 0.0
    %4935 = vmatpush1.msra.mxu0 0.0
    %4936 = vmatprep.subr.mxu0 0.0
    %4937 = vmatpush1.msra.mxu0 0.0
    %4938 = vmatprep.subr.mxu0 0.0
    %4939 = vmatpush1.msra.mxu0 0.0
    %4940 = vmatprep.subr.mxu0 0.0
    %4941 = vmatpush1.msra.mxu0 0.0
    %4942 = vmatprep.subr.mxu0 0.0
    %4943 = vmatpush1.msra.mxu0 0.0
    %4944 = vmatprep.subr.mxu0 0.0
    %4945 = vmatpush1.msra.mxu0 0.0
    %4946 = vmatprep.subr.mxu0 0.0
    %4947 = vmatpush1.msra.mxu0 0.0
    %4948 = vmatprep.subr.mxu0 0.0
    %4949 = vmatpush1.msra.mxu0 0.0
    %4950 = vmatprep.subr.mxu0 0.0
    %4951 = vmatpush1.msra.mxu0 0.0
    %4952 = vmatprep.subr.mxu0 0.0
    %4953 = vmatpush1.msra.mxu0 0.0
    %4954 = vmatprep.subr.mxu0 0.0
    %4955 = vmatpush1.msra.mxu0 0.0
    %4956 = vmatprep.subr.mxu0 0.0
    %4957 = vmatpush1.msra.mxu0 0.0
    %4958 = vmatprep.subr.mxu0 0.0
    %4959 = vmatpush1.msra.mxu0 0.0
    %4960 = vmatprep.subr.mxu0 0.0
    %4961 = vmatpush1.msra.mxu0 0.0
    %4962 = vmatprep.subr.mxu0 0.0
    %4963 = vmatpush1.msra.mxu0 0.0
    %4964 = vmatprep.subr.mxu0 0.0
    %4965 = vmatpush1.msra.mxu0 0.0
    %4966 = vmatprep.subr.mxu0 0.0
    %4967 = vmatpush1.msra.mxu0 0.0
    %4968 = vmatprep.subr.mxu0 0.0
    %4969 = vmatpush1.msra.mxu0 0.0
    %4970 = vmatprep.subr.mxu0 0.0
    %4971 = vmatpush1.msra.mxu0 0.0
    %4972 = vmatprep.subr.mxu0 0.0
    %4973 = vmatpush1.msra.mxu0 0.0
    %4974 = vmatprep.subr.mxu0 0.0
    %4975 = vmatpush1.msra.mxu0 0.0
    %4976 = vmatprep.subr.mxu0 0.0
    %4977 = vmatpush1.msra.mxu0 0.0
    %4978 = vmatprep.subr.mxu0 0.0
    %4979 = vmatpush1.msra.mxu0 0.0
    %4980 = vmatprep.subr.mxu0 0.0
    %4981 = vmatpush1.msra.mxu0 0.0
    %4982 = vmatprep.subr.mxu0 0.0
    %4983 = vmatpush1.msra.mxu0 0.0
    %4984 = vmatprep.mubr.f32.mxu0 0.0
    %4985 = vmatmul.mubr.f32.gmra.mrb[0].mxu0 %v4915
    %v4986 = vpop.f32.mrb[0].mxu0
    %v4987 = vadd.f32 %v4912, %v4986
    %v4988 = vpop.f32.mrb[0].mxu0
    %4989 = vmatprep.mubr.f32.mxu0 0.0
    %4990 = vmatmul.mubr.f32.gmra.mrb[0].mxu0 %v4918
    %v4991 = vpop.f32.mrb[0].mxu0
    %v4992 = vadd.f32 %v4912, %v4991
    %v4993 = vpop.f32.mrb[0].mxu0
    %4994 = vdwg.mxu0
    %v4996 = vsel %vm496, %v4900, 0
    %v4999 = vsel %vm496, %v4905, 0
    %v5002 = vsel %vm496, %v4987, 0
    %v5005 = vsel %vm496, %v4992, 0
    %5007 = vmatprep.subr.mxu0 0.0
    %5008 = vmatpush1.xpose.msra.mxu0 %v5002
    %5009 = vmatprep.subr.mxu0 0.0
    %5010 = vmatpush1.xpose.msra.mxu0 %v5005
    %5011 = vmatprep.subr.mxu0 0.0
    %5012 = vmatpush1.xpose.msra.mxu0 0.0
    %5013 = vmatprep.subr.mxu0 0.0
    %5014 = vmatpush1.xpose.msra.mxu0 0.0
    %5015 = vmatprep.subr.mxu0 0.0
    %5016 = vmatpush1.xpose.msra.mxu0 0.0
    %5017 = vmatprep.subr.mxu0 0.0
    %5018 = vmatpush1.xpose.msra.mxu0 0.0
    %5019 = vmatprep.subr.mxu0 0.0
    %5020 = vmatpush1.xpose.msra.mxu0 0.0
    %5021 = vmatprep.subr.mxu0 0.0
    %5022 = vmatpush1.xpose.msra.mxu0 0.0
    %5023 = vmatprep.subr.mxu0 0.0
    %5024 = vmatpush1.xpose.msra.mxu0 0.0
    %5025 = vmatprep.subr.mxu0 0.0
    %5026 = vmatpush1.xpose.msra.mxu0 0.0
    %5027 = vmatprep.subr.mxu0 0.0
    %5028 = vmatpush1.xpose.msra.mxu0 0.0
    %5029 = vmatprep.subr.mxu0 0.0
    %5030 = vmatpush1.xpose.msra.mxu0 0.0
    %5031 = vmatprep.subr.mxu0 0.0
    %5032 = vmatpush1.xpose.msra.mxu0 0.0
    %5033 = vmatprep.subr.mxu0 0.0
    %5034 = vmatpush1.xpose.msra.mxu0 0.0
    %5035 = vmatprep.subr.mxu0 0.0
    %5036 = vmatpush1.xpose.msra.mxu0 0.0
    %5037 = vmatprep.subr.mxu0 0.0
    %5038 = vmatpush1.xpose.msra.mxu0 0.0
    %5039 = vmatprep.subr.mxu0 0.0
    %5040 = vmatpush1.xpose.msra.mxu0 0.0
    %5041 = vmatprep.subr.mxu0 0.0
    %5042 = vmatpush1.xpose.msra.mxu0 0.0
    %5043 = vmatprep.subr.mxu0 0.0
    %5044 = vmatpush1.xpose.msra.mxu0 0.0
    %5045 = vmatprep.subr.mxu0 0.0
    %5046 = vmatpush1.xpose.msra.mxu0 0.0
    %5047 = vmatprep.subr.mxu0 0.0
    %5048 = vmatpush1.xpose.msra.mxu0 0.0
    %5049 = vmatprep.subr.mxu0 0.0
    %5050 = vmatpush1.xpose.msra.mxu0 0.0
    %5051 = vmatprep.subr.mxu0 0.0
    %5052 = vmatpush1.xpose.msra.mxu0 0.0
    %5053 = vmatprep.subr.mxu0 0.0
    %5054 = vmatpush1.xpose.msra.mxu0 0.0
    %5055 = vmatprep.subr.mxu0 0.0
    %5056 = vmatpush1.xpose.msra.mxu0 0.0
    %5057 = vmatprep.subr.mxu0 0.0
    %5058 = vmatpush1.xpose.msra.mxu0 0.0
    %5059 = vmatprep.subr.mxu0 0.0
    %5060 = vmatpush1.xpose.msra.mxu0 0.0
    %5061 = vmatprep.subr.mxu0 0.0
    %5062 = vmatpush1.xpose.msra.mxu0 0.0
    %5063 = vmatprep.subr.mxu0 0.0
    %5064 = vmatpush1.xpose.msra.mxu0 0.0
    %5065 = vmatprep.subr.mxu0 0.0
    %5066 = vmatpush1.xpose.msra.mxu0 0.0
    %5067 = vmatprep.subr.mxu0 0.0
    %5068 = vmatpush1.xpose.msra.mxu0 0.0
    %5069 = vmatprep.subr.mxu0 0.0
    %5070 = vmatpush1.xpose.msra.mxu0 0.0
    %5071 = vmatprep.mubr.f32.mxu0 0.0
    %5072 = vmatmul.mubr.f32.gmra.mrb[0].mxu0 %v4996
    %v5073 = vpop.f32.mrb[0].mxu0
    %v5074 = vadd.f32 0.0, %v5073
    %v5075 = vpop.f32.mrb[0].mxu0
    %5076 = vmatprep.mubr.f32.mxu0 0.0
    %5077 = vmatmul.mubr.f32.gmra.mrb[0].mxu0 %v4999
    %v5078 = vpop.f32.mrb[0].mxu0
    %v5079 = vadd.f32 0.0, %v5078
    %v5080 = vpop.f32.mrb[0].mxu0
    %5081 = vdwg.mxu0
    %v5082 = vmul.f32 %v5074, 0.35355338
    %v5083 = vmul.f32 %v5079, 0.35355338
    %v5084 = vadd.f32 %v5082, %v388
    %v5085 = vadd.f32 %v5083, %v389
    %v5086 = vsel %vm584, %v5084, -inf
    %5087 = vmax.xlane.f32.xlu0 %v5086
    %v5088 = vpop.xlane.xlu0 %5087
    %v5089 = vsel %vm584, %v5085, -inf
    %5090 = vmax.xlane.f32.xlu0 %v5089
    %v5091 = vpop.xlane.xlu0 %5090
    %v5092 = vsub.f32 %v5084, %v5088
    %v5093 = vsub.f32 %v5085, %v5091
    %v5094 = vmul.f32 %v5092, 1.442695
    %v5095 = vpow.pop %v5094
    %v5096 = vmul.f32 %v5093, 1.442695
    %v5097 = vpow.pop %v5096
    %v5098 = vsel %vm584, %v5095, 0.0
    %5099 = vadd.xlane.f32.xlu0 %v5098
    %v5100 = vpop.xlane.xlu0 %5099
    %v5101 = vsel %vm584, %v5097, 0.0
    %5102 = vadd.xlane.f32.xlu0 %v5101
    %v5103 = vpop.xlane.xlu0 %5102
    %v5104 = vrcp.pop %v5100
    %v5105 = vmul.f32 %v5095, %v5104
    %v5106 = vrcp.pop %v5103
    %v5107 = vmul.f32 %v5097, %v5106
    %5108 = vrot.lane.b32.xlu0 %v4987, 96
    %v5109 = vpop.permute.xlu0 %5108
    %5110 = vrot.lane.b32.xlu0 %v4992, 96
    %v5111 = vpop.permute.xlu0 %5110
    %v5115 = vsel %vm584, %v5105, 0
    %v5118 = vsel %vm584, %v5107, 0
    %5120 = vmatprep.subr.mxu0 0.0
    %5121 = vmatpush1.msra.mxu0 %v5109
    %5122 = vmatprep.subr.mxu0 0.0
    %5123 = vmatpush1.msra.mxu0 %v5111
    %5124 = vmatprep.subr.mxu0 0.0
    %5125 = vmatpush1.msra.mxu0 0.0
    %5126 = vmatprep.subr.mxu0 0.0
    %5127 = vmatpush1.msra.mxu0 0.0
    %5128 = vmatprep.subr.mxu0 0.0
    %5129 = vmatpush1.msra.mxu0 0.0
    %5130 = vmatprep.subr.mxu0 0.0
    %5131 = vmatpush1.msra.mxu0 0.0
    %5132 = vmatprep.subr.mxu0 0.0
    %5133 = vmatpush1.msra.mxu0 0.0
    %5134 = vmatprep.subr.mxu0 0.0
    %5135 = vmatpush1.msra.mxu0 0.0
    %5136 = vmatprep.subr.mxu0 0.0
    %5137 = vmatpush1.msra.mxu0 0.0
    %5138 = vmatprep.subr.mxu0 0.0
    %5139 = vmatpush1.msra.mxu0 0.0
    %5140 = vmatprep.subr.mxu0 0.0
    %5141 = vmatpush1.msra.mxu0 0.0
    %5142 = vmatprep.subr.mxu0 0.0
    %5143 = vmatpush1.msra.mxu0 0.0
    %5144 = vmatprep.subr.mxu0 0.0
    %5145 = vmatpush1.msra.mxu0 0.0
    %5146 = vmatprep.subr.mxu0 0.0
    %5147 = vmatpush1.msra.mxu0 0.0
    %5148 = vmatprep.subr.mxu0 0.0
    %5149 = vmatpush1.msra.mxu0 0.0
    %5150 = vmatprep.subr.mxu0 0.0
    %5151 = vmatpush1.msra.mxu0 0.0
    %5152 = vmatprep.subr.mxu0 0.0
    %5153 = vmatpush1.msra.mxu0 0.0
    %5154 = vmatprep.subr.mxu0 0.0
    %5155 = vmatpush1.msra.mxu0 0.0
    %5156 = vmatprep.subr.mxu0 0.0
    %5157 = vmatpush1.msra.mxu0 0.0
    %5158 = vmatprep.subr.mxu0 0.0
    %5159 = vmatpush1.msra.mxu0 0.0
    %5160 = vmatprep.subr.mxu0 0.0
    %5161 = vmatpush1.msra.mxu0 0.0
    %5162 = vmatprep.subr.mxu0 0.0
    %5163 = vmatpush1.msra.mxu0 0.0
    %5164 = vmatprep.subr.mxu0 0.0
    %5165 = vmatpush1.msra.mxu0 0.0
    %5166 = vmatprep.subr.mxu0 0.0
    %5167 = vmatpush1.msra.mxu0 0.0
    %5168 = vmatprep.subr.mxu0 0.0
    %5169 = vmatpush1.msra.mxu0 0.0
    %5170 = vmatprep.subr.mxu0 0.0
    %5171 = vmatpush1.msra.mxu0 0.0
    %5172 = vmatprep.subr.mxu0 0.0
    %5173 = vmatpush1.msra.mxu0 0.0
    %5174 = vmatprep.subr.mxu0 0.0
    %5175 = vmatpush1.msra.mxu0 0.0
    %5176 = vmatprep.subr.mxu0 0.0
    %5177 = vmatpush1.msra.mxu0 0.0
    %5178 = vmatprep.subr.mxu0 0.0
    %5179 = vmatpush1.msra.mxu0 0.0
    %5180 = vmatprep.subr.mxu0 0.0
    %5181 = vmatpush1.msra.mxu0 0.0
    %5182 = vmatprep.subr.mxu0 0.0
    %5183 = vmatpush1.msra.mxu0 0.0
    %5184 = vmatprep.mubr.f32.mxu0 0.0
    %5185 = vmatmul.mubr.f32.gmra.mrb[0].mxu0 %v5115
    %v5186 = vpop.f32.mrb[0].mxu0
    %v5187 = vadd.f32 0.0, %v5186
    %v5188 = vpop.f32.mrb[0].mxu0
    %5189 = vmatprep.mubr.f32.mxu0 0.0
    %5190 = vmatmul.mubr.f32.gmra.mrb[0].mxu0 %v5118
    %v5191 = vpop.f32.mrb[0].mxu0
    %v5192 = vadd.f32 0.0, %v5191
    %v5193 = vpop.f32.mrb[0].mxu0
    %5194 = vdwg.mxu0
    %5195 = vrot.lane.b32.xlu0 %v4900, 120
    %v5196 = vpop.permute.xlu0 %5195
    %5197 = vrot.lane.b32.xlu0 %v4905, 120
    %v5198 = vpop.permute.xlu0 %5197
    %5199 = vrot.lane.b32.xlu0 %v4987, 120
    %v5200 = vpop.permute.xlu0 %5199
    %5201 = vrot.lane.b32.xlu0 %v4992, 120
    %v5202 = vpop.permute.xlu0 %5201
    %v5203 = vsel %vm496, %v5196, 0
    %v5205 = vsel %vm496, %v5198, 0
    %v5207 = vsel %vm496, %v5200, 0
    %v5209 = vsel %vm496, %v5202, 0
    %5211 = vmatprep.subr.mxu0 0.0
    %5212 = vmatpush1.xpose.msra.mxu0 %v5207
    %5213 = vmatprep.subr.mxu0 0.0
    %5214 = vmatpush1.xpose.msra.mxu0 %v5209
    %5215 = vmatprep.subr.mxu0 0.0
    %5216 = vmatpush1.xpose.msra.mxu0 0.0
    %5217 = vmatprep.subr.mxu0 0.0
    %5218 = vmatpush1.xpose.msra.mxu0 0.0
    %5219 = vmatprep.subr.mxu0 0.0
    %5220 = vmatpush1.xpose.msra.mxu0 0.0
    %5221 = vmatprep.subr.mxu0 0.0
    %5222 = vmatpush1.xpose.msra.mxu0 0.0
    %5223 = vmatprep.subr.mxu0 0.0
    %5224 = vmatpush1.xpose.msra.mxu0 0.0
    %5225 = vmatprep.subr.mxu0 0.0
    %5226 = vmatpush1.xpose.msra.mxu0 0.0
    %5227 = vmatprep.subr.mxu0 0.0
    %5228 = vmatpush1.xpose.msra.mxu0 0.0
    %5229 = vmatprep.subr.mxu0 0.0
    %5230 = vmatpush1.xpose.msra.mxu0 0.0
    %5231 = vmatprep.subr.mxu0 0.0
    %5232 = vmatpush1.xpose.msra.mxu0 0.0
    %5233 = vmatprep.subr.mxu0 0.0
    %5234 = vmatpush1.xpose.msra.mxu0 0.0
    %5235 = vmatprep.subr.mxu0 0.0
    %5236 = vmatpush1.xpose.msra.mxu0 0.0
    %5237 = vmatprep.subr.mxu0 0.0
    %5238 = vmatpush1.xpose.msra.mxu0 0.0
    %5239 = vmatprep.subr.mxu0 0.0
    %5240 = vmatpush1.xpose.msra.mxu0 0.0
    %5241 = vmatprep.subr.mxu0 0.0
    %5242 = vmatpush1.xpose.msra.mxu0 0.0
    %5243 = vmatprep.subr.mxu0 0.0
    %5244 = vmatpush1.xpose.msra.mxu0 0.0
    %5245 = vmatprep.subr.mxu0 0.0
    %5246 = vmatpush1.xpose.msra.mxu0 0.0
    %5247 = vmatprep.subr.mxu0 0.0
    %5248 = vmatpush1.xpose.msra.mxu0 0.0
    %5249 = vmatprep.subr.mxu0 0.0
    %5250 = vmatpush1.xpose.msra.mxu0 0.0
    %5251 = vmatprep.subr.mxu0 0.0
    %5252 = vmatpush1.xpose.msra.mxu0 0.0
    %5253 = vmatprep.subr.mxu0 0.0
    %5254 = vmatpush1.xpose.msra.mxu0 0.0
    %5255 = vmatprep.subr.mxu0 0.0
    %5256 = vmatpush1.xpose.msra.mxu0 0.0
    %5257 = vmatprep.subr.mxu0 0.0
    %5258 = vmatpush1.xpose.msra.mxu0 0.0
    %5259 = vmatprep.subr.mxu0 0.0
    %5260 = vmatpush1.xpose.msra.mxu0 0.0
    %5261 = vmatprep.subr.mxu0 0.0
    %5262 = vmatpush1.xpose.msra.mxu0 0.0
    %5263 = vmatprep.subr.mxu0 0.0
    %5264 = vmatpush1.xpose.msra.mxu0 0.0
    %5265 = vmatprep.subr.mxu0 0.0
    %5266 = vmatpush1.xpose.msra.mxu0 0.0
    %5267 = vmatprep.subr.mxu0 0.0
    %5268 = vmatpush1.xpose.msra.mxu0 0.0
    %5269 = vmatprep.subr.mxu0 0.0
    %5270 = vmatpush1.xpose.msra.mxu0 0.0
    %5271 = vmatprep.subr.mxu0 0.0
    %5272 = vmatpush1.xpose.msra.mxu0 0.0
    %5273 = vmatprep.subr.mxu0 0.0
    %5274 = vmatpush1.xpose.msra.mxu0 0.0
    %5275 = vmatprep.mubr.f32.mxu0 0.0
    %5276 = vmatmul.mubr.f32.gmra.mrb[0].mxu0 %v5203
    %v5277 = vpop.f32.mrb[0].mxu0
    %v5278 = vadd.f32 0.0, %v5277
    %v5279 = vpop.f32.mrb[0].mxu0
    %5280 = vmatprep.mubr.f32.mxu0 0.0
    %5281 = vmatmul.mubr.f32.gmra.mrb[0].mxu0 %v5205
    %v5282 = vpop.f32.mrb[0].mxu0
    %v5283 = vadd.f32 0.0, %v5282
    %v5284 = vpop.f32.mrb[0].mxu0
    %5285 = vdwg.mxu0
    %v5286 = vmul.f32 %v5278, 0.35355338
    %v5287 = vmul.f32 %v5283, 0.35355338
    %v5288 = vadd.f32 %v5286, %v388
    %v5289 = vadd.f32 %v5287, %v389
    %v5290 = vsel %vm584, %v5288, -inf
    %5291 = vmax.xlane.f32.xlu0 %v5290
    %v5292 = vpop.xlane.xlu0 %5291
    %v5293 = vsel %vm584, %v5289, -inf
    %5294 = vmax.xlane.f32.xlu0 %v5293
    %v5295 = vpop.xlane.xlu0 %5294
    %v5296 = vsub.f32 %v5288, %v5292
    %v5297 = vsub.f32 %v5289, %v5295
    %v5298 = vmul.f32 %v5296, 1.442695
    %v5299 = vpow.pop %v5298
    %v5300 = vmul.f32 %v5297, 1.442695
    %v5301 = vpow.pop %v5300
    %v5302 = vsel %vm584, %v5299, 0.0
    %5303 = vadd.xlane.f32.xlu0 %v5302
    %v5304 = vpop.xlane.xlu0 %5303
    %v5305 = vsel %vm584, %v5301, 0.0
    %5306 = vadd.xlane.f32.xlu0 %v5305
    %v5307 = vpop.xlane.xlu0 %5306
    %v5308 = vrcp.pop %v5304
    %v5309 = vmul.f32 %v5299, %v5308
    %v5310 = vrcp.pop %v5307
    %v5311 = vmul.f32 %v5301, %v5310
    %5312 = vrot.lane.b32.xlu0 %v4987, 88
    %v5313 = vpop.permute.xlu0 %5312
    %5314 = vrot.lane.b32.xlu0 %v4992, 88
    %v5315 = vpop.permute.xlu0 %5314
    %v5319 = vsel %vm584, %v5309, 0
    %v5322 = vsel %vm584, %v5311, 0
    %5324 = vmatprep.subr.mxu0 0.0
    %5325 = vmatpush1.msra.mxu0 %v5313
    %5326 = vmatprep.subr.mxu0 0.0
    %5327 = vmatpush1.msra.mxu0 %v5315
    %5328 = vmatprep.subr.mxu0 0.0
    %5329 = vmatpush1.msra.mxu0 0.0
    %5330 = vmatprep.subr.mxu0 0.0
    %5331 = vmatpush1.msra.mxu0 0.0
    %5332 = vmatprep.subr.mxu0 0.0
    %5333 = vmatpush1.msra.mxu0 0.0
    %5334 = vmatprep.subr.mxu0 0.0
    %5335 = vmatpush1.msra.mxu0 0.0
    %5336 = vmatprep.subr.mxu0 0.0
    %5337 = vmatpush1.msra.mxu0 0.0
    %5338 = vmatprep.subr.mxu0 0.0
    %5339 = vmatpush1.msra.mxu0 0.0
    %5340 = vmatprep.subr.mxu0 0.0
    %5341 = vmatpush1.msra.mxu0 0.0
    %5342 = vmatprep.subr.mxu0 0.0
    %5343 = vmatpush1.msra.mxu0 0.0
    %5344 = vmatprep.subr.mxu0 0.0
    %5345 = vmatpush1.msra.mxu0 0.0
    %5346 = vmatprep.subr.mxu0 0.0
    %5347 = vmatpush1.msra.mxu0 0.0
    %5348 = vmatprep.subr.mxu0 0.0
    %5349 = vmatpush1.msra.mxu0 0.0
    %5350 = vmatprep.subr.mxu0 0.0
    %5351 = vmatpush1.msra.mxu0 0.0
    %5352 = vmatprep.subr.mxu0 0.0
    %5353 = vmatpush1.msra.mxu0 0.0
    %5354 = vmatprep.subr.mxu0 0.0
    %5355 = vmatpush1.msra.mxu0 0.0
    %5356 = vmatprep.subr.mxu0 0.0
    %5357 = vmatpush1.msra.mxu0 0.0
    %5358 = vmatprep.subr.mxu0 0.0
    %5359 = vmatpush1.msra.mxu0 0.0
    %5360 = vmatprep.subr.mxu0 0.0
    %5361 = vmatpush1.msra.mxu0 0.0
    %5362 = vmatprep.subr.mxu0 0.0
    %5363 = vmatpush1.msra.mxu0 0.0
    %5364 = vmatprep.subr.mxu0 0.0
    %5365 = vmatpush1.msra.mxu0 0.0
    %5366 = vmatprep.subr.mxu0 0.0
    %5367 = vmatpush1.msra.mxu0 0.0
    %5368 = vmatprep.subr.mxu0 0.0
    %5369 = vmatpush1.msra.mxu0 0.0
    %5370 = vmatprep.subr.mxu0 0.0
    %5371 = vmatpush1.msra.mxu0 0.0
    %5372 = vmatprep.subr.mxu0 0.0
    %5373 = vmatpush1.msra.mxu0 0.0
    %5374 = vmatprep.subr.mxu0 0.0
    %5375 = vmatpush1.msra.mxu0 0.0
    %5376 = vmatprep.subr.mxu0 0.0
    %5377 = vmatpush1.msra.mxu0 0.0
    %5378 = vmatprep.subr.mxu0 0.0
    %5379 = vmatpush1.msra.mxu0 0.0
    %5380 = vmatprep.subr.mxu0 0.0
    %5381 = vmatpush1.msra.mxu0 0.0
    %5382 = vmatprep.subr.mxu0 0.0
    %5383 = vmatpush1.msra.mxu0 0.0
    %5384 = vmatprep.subr.mxu0 0.0
    %5385 = vmatpush1.msra.mxu0 0.0
    %5386 = vmatprep.subr.mxu0 0.0
    %5387 = vmatpush1.msra.mxu0 0.0
    %5388 = vmatprep.mubr.f32.mxu0 0.0
    %5389 = vmatmul.mubr.f32.gmra.mrb[0].mxu0 %v5319
    %v5390 = vpop.f32.mrb[0].mxu0
    %v5391 = vadd.f32 0.0, %v5390
    %v5392 = vpop.f32.mrb[0].mxu0
    %5393 = vmatprep.mubr.f32.mxu0 0.0
    %5394 = vmatmul.mubr.f32.gmra.mrb[0].mxu0 %v5322
    %v5395 = vpop.f32.mrb[0].mxu0
    %v5396 = vadd.f32 0.0, %v5395
    %v5397 = vpop.f32.mrb[0].mxu0
    %5398 = vdwg.mxu0
    %v5400 = vsel %vm496, %v5391, 0
    %v5403 = vsel %vm496, %v5396, 0
    %5405 = vmatprep.subr.mxu0 0.0
    %5406 = vmatpush1.msra.mxu0 %v4817
    %5407 = vmatprep.subr.mxu0 0.0
    %5408 = vmatpush1.msra.mxu0 0.0
    %5409 = vmatprep.subr.mxu0 0.0
    %5410 = vmatpush1.msra.mxu0 0.0
    %5411 = vmatprep.subr.mxu0 0.0
    %5412 = vmatpush1.msra.mxu0 0.0
    %5413 = vmatprep.subr.mxu0 0.0
    %5414 = vmatpush1.msra.mxu0 0.0
    %5415 = vmatprep.subr.mxu0 0.0
    %5416 = vmatpush1.msra.mxu0 0.0
    %5417 = vmatprep.subr.mxu0 0.0
    %5418 = vmatpush1.msra.mxu0 0.0
    %5419 = vmatprep.subr.mxu0 0.0
    %5420 = vmatpush1.msra.mxu0 0.0
    %5421 = vmatprep.subr.mxu0 0.0
    %5422 = vmatpush1.msra.mxu0 0.0
    %5423 = vmatprep.subr.mxu0 0.0
    %5424 = vmatpush1.msra.mxu0 0.0
    %5425 = vmatprep.subr.mxu0 0.0
    %5426 = vmatpush1.msra.mxu0 0.0
    %5427 = vmatprep.subr.mxu0 0.0
    %5428 = vmatpush1.msra.mxu0 0.0
    %5429 = vmatprep.subr.mxu0 0.0
    %5430 = vmatpush1.msra.mxu0 0.0
    %5431 = vmatprep.subr.mxu0 0.0
    %5432 = vmatpush1.msra.mxu0 0.0
    %5433 = vmatprep.subr.mxu0 0.0
    %5434 = vmatpush1.msra.mxu0 0.0
    %5435 = vmatprep.subr.mxu0 0.0
    %5436 = vmatpush1.msra.mxu0 0.0
    %5437 = vmatprep.subr.mxu0 0.0
    %5438 = vmatpush1.msra.mxu0 0.0
    %5439 = vmatprep.subr.mxu0 0.0
    %5440 = vmatpush1.msra.mxu0 0.0
    %5441 = vmatprep.subr.mxu0 0.0
    %5442 = vmatpush1.msra.mxu0 0.0
    %5443 = vmatprep.subr.mxu0 0.0
    %5444 = vmatpush1.msra.mxu0 0.0
    %5445 = vmatprep.subr.mxu0 0.0
    %5446 = vmatpush1.msra.mxu0 0.0
    %5447 = vmatprep.subr.mxu0 0.0
    %5448 = vmatpush1.msra.mxu0 0.0
    %5449 = vmatprep.subr.mxu0 0.0
    %5450 = vmatpush1.msra.mxu0 0.0
    %5451 = vmatprep.subr.mxu0 0.0
    %5452 = vmatpush1.msra.mxu0 0.0
    %5453 = vmatprep.subr.mxu0 0.0
    %5454 = vmatpush1.msra.mxu0 0.0
    %5455 = vmatprep.subr.mxu0 0.0
    %5456 = vmatpush1.msra.mxu0 0.0
    %5457 = vmatprep.subr.mxu0 0.0
    %5458 = vmatpush1.msra.mxu0 0.0
    %5459 = vmatprep.subr.mxu0 0.0
    %5460 = vmatpush1.msra.mxu0 0.0
    %5461 = vmatprep.subr.mxu0 0.0
    %5462 = vmatpush1.msra.mxu0 0.0
    %5463 = vmatprep.subr.mxu0 0.0
    %5464 = vmatpush1.msra.mxu0 0.0
    %5465 = vmatprep.subr.mxu0 0.0
    %5466 = vmatpush1.msra.mxu0 0.0
    %5467 = vmatprep.subr.mxu0 0.0
    %5468 = vmatpush1.msra.mxu0 0.0
    %5469 = vmatprep.mubr.f32.mxu0 0.0
    %5470 = vmatmul.mubr.f32.gmra.mrb[0].mxu0 %v5400
    %v5471 = vpop.f32.mrb[0].mxu0
    %v5472 = vadd.f32 0.0, %v5471
    %v5473 = vpop.f32.mrb[0].mxu0
    %5474 = vmatprep.mubr.f32.mxu0 0.0
    %5475 = vmatmul.mubr.f32.gmra.mrb[0].mxu0 %v5403
    %v5476 = vpop.f32.mrb[0].mxu0
    %v5477 = vadd.f32 0.0, %v5476
    %v5478 = vpop.f32.mrb[0].mxu0
    %5479 = vdwg.mxu0
    %v5481 = vsel %vm496, %v5187, 0
    %v5484 = vsel %vm496, %v5192, 0
    %5486 = vmatprep.subr.mxu0 0.0
    %5487 = vmatpush1.msra.mxu0 %v4816
    %5488 = vmatprep.subr.mxu0 0.0
    %5489 = vmatpush1.msra.mxu0 0.0
    %5490 = vmatprep.subr.mxu0 0.0
    %5491 = vmatpush1.msra.mxu0 0.0
    %5492 = vmatprep.subr.mxu0 0.0
    %5493 = vmatpush1.msra.mxu0 0.0
    %5494 = vmatprep.subr.mxu0 0.0
    %5495 = vmatpush1.msra.mxu0 0.0
    %5496 = vmatprep.subr.mxu0 0.0
    %5497 = vmatpush1.msra.mxu0 0.0
    %5498 = vmatprep.subr.mxu0 0.0
    %5499 = vmatpush1.msra.mxu0 0.0
    %5500 = vmatprep.subr.mxu0 0.0
    %5501 = vmatpush1.msra.mxu0 0.0
    %5502 = vmatprep.subr.mxu0 0.0
    %5503 = vmatpush1.msra.mxu0 0.0
    %5504 = vmatprep.subr.mxu0 0.0
    %5505 = vmatpush1.msra.mxu0 0.0
    %5506 = vmatprep.subr.mxu0 0.0
    %5507 = vmatpush1.msra.mxu0 0.0
    %5508 = vmatprep.subr.mxu0 0.0
    %5509 = vmatpush1.msra.mxu0 0.0
    %5510 = vmatprep.subr.mxu0 0.0
    %5511 = vmatpush1.msra.mxu0 0.0
    %5512 = vmatprep.subr.mxu0 0.0
    %5513 = vmatpush1.msra.mxu0 0.0
    %5514 = vmatprep.subr.mxu0 0.0
    %5515 = vmatpush1.msra.mxu0 0.0
    %5516 = vmatprep.subr.mxu0 0.0
    %5517 = vmatpush1.msra.mxu0 0.0
    %5518 = vmatprep.subr.mxu0 0.0
    %5519 = vmatpush1.msra.mxu0 0.0
    %5520 = vmatprep.subr.mxu0 0.0
    %5521 = vmatpush1.msra.mxu0 0.0
    %5522 = vmatprep.subr.mxu0 0.0
    %5523 = vmatpush1.msra.mxu0 0.0
    %5524 = vmatprep.subr.mxu0 0.0
    %5525 = vmatpush1.msra.mxu0 0.0
    %5526 = vmatprep.subr.mxu0 0.0
    %5527 = vmatpush1.msra.mxu0 0.0
    %5528 = vmatprep.subr.mxu0 0.0
    %5529 = vmatpush1.msra.mxu0 0.0
    %5530 = vmatprep.subr.mxu0 0.0
    %5531 = vmatpush1.msra.mxu0 0.0
    %5532 = vmatprep.subr.mxu0 0.0
    %5533 = vmatpush1.msra.mxu0 0.0
    %5534 = vmatprep.subr.mxu0 0.0
    %5535 = vmatpush1.msra.mxu0 0.0
    %5536 = vmatprep.subr.mxu0 0.0
    %5537 = vmatpush1.msra.mxu0 0.0
    %5538 = vmatprep.subr.mxu0 0.0
    %5539 = vmatpush1.msra.mxu0 0.0
    %5540 = vmatprep.subr.mxu0 0.0
    %5541 = vmatpush1.msra.mxu0 0.0
    %5542 = vmatprep.subr.mxu0 0.0
    %5543 = vmatpush1.msra.mxu0 0.0
    %5544 = vmatprep.subr.mxu0 0.0
    %5545 = vmatpush1.msra.mxu0 0.0
    %5546 = vmatprep.subr.mxu0 0.0
    %5547 = vmatpush1.msra.mxu0 0.0
    %5548 = vmatprep.subr.mxu0 0.0
    %5549 = vmatpush1.msra.mxu0 0.0
    %5550 = vmatprep.mubr.f32.mxu0 0.0
    %5551 = vmatmul.mubr.f32.gmra.mrb[0].mxu0 %v5481
    %v5552 = vpop.f32.mrb[0].mxu0
    %v5553 = vadd.f32 %v5472, %v5552
    %v5554 = vpop.f32.mrb[0].mxu0
    %5555 = vmatprep.mubr.f32.mxu0 0.0
    %5556 = vmatmul.mubr.f32.gmra.mrb[0].mxu0 %v5484
    %v5557 = vpop.f32.mrb[0].mxu0
    %v5558 = vadd.f32 %v5477, %v5557
    %v5559 = vpop.f32.mrb[0].mxu0
    %5560 = vdwg.mxu0
    %5561 = vrot.lane.b32.xlu0 %v4900, 112
    %v5562 = vpop.permute.xlu0 %5561
    %5563 = vrot.lane.b32.xlu0 %v4905, 112
    %v5564 = vpop.permute.xlu0 %5563
    %5565 = vrot.lane.b32.xlu0 %v4987, 112
    %v5566 = vpop.permute.xlu0 %5565
    %5567 = vrot.lane.b32.xlu0 %v4992, 112
    %v5568 = vpop.permute.xlu0 %5567
    %v5569 = vsel %vm496, %v5562, 0
    %v5571 = vsel %vm496, %v5564, 0
    %v5573 = vsel %vm496, %v5566, 0
    %v5575 = vsel %vm496, %v5568, 0
    %5577 = vmatprep.subr.mxu0 0.0
    %5578 = vmatpush1.xpose.msra.mxu0 %v5573
    %5579 = vmatprep.subr.mxu0 0.0
    %5580 = vmatpush1.xpose.msra.mxu0 %v5575
    %5581 = vmatprep.subr.mxu0 0.0
    %5582 = vmatpush1.xpose.msra.mxu0 0.0
    %5583 = vmatprep.subr.mxu0 0.0
    %5584 = vmatpush1.xpose.msra.mxu0 0.0
    %5585 = vmatprep.subr.mxu0 0.0
    %5586 = vmatpush1.xpose.msra.mxu0 0.0
    %5587 = vmatprep.subr.mxu0 0.0
    %5588 = vmatpush1.xpose.msra.mxu0 0.0
    %5589 = vmatprep.subr.mxu0 0.0
    %5590 = vmatpush1.xpose.msra.mxu0 0.0
    %5591 = vmatprep.subr.mxu0 0.0
    %5592 = vmatpush1.xpose.msra.mxu0 0.0
    %5593 = vmatprep.subr.mxu0 0.0
    %5594 = vmatpush1.xpose.msra.mxu0 0.0
    %5595 = vmatprep.subr.mxu0 0.0
    %5596 = vmatpush1.xpose.msra.mxu0 0.0
    %5597 = vmatprep.subr.mxu0 0.0
    %5598 = vmatpush1.xpose.msra.mxu0 0.0
    %5599 = vmatprep.subr.mxu0 0.0
    %5600 = vmatpush1.xpose.msra.mxu0 0.0
    %5601 = vmatprep.subr.mxu0 0.0
    %5602 = vmatpush1.xpose.msra.mxu0 0.0
    %5603 = vmatprep.subr.mxu0 0.0
    %5604 = vmatpush1.xpose.msra.mxu0 0.0
    %5605 = vmatprep.subr.mxu0 0.0
    %5606 = vmatpush1.xpose.msra.mxu0 0.0
    %5607 = vmatprep.subr.mxu0 0.0
    %5608 = vmatpush1.xpose.msra.mxu0 0.0
    %5609 = vmatprep.subr.mxu0 0.0
    %5610 = vmatpush1.xpose.msra.mxu0 0.0
    %5611 = vmatprep.subr.mxu0 0.0
    %5612 = vmatpush1.xpose.msra.mxu0 0.0
    %5613 = vmatprep.subr.mxu0 0.0
    %5614 = vmatpush1.xpose.msra.mxu0 0.0
    %5615 = vmatprep.subr.mxu0 0.0
    %5616 = vmatpush1.xpose.msra.mxu0 0.0
    %5617 = vmatprep.subr.mxu0 0.0
    %5618 = vmatpush1.xpose.msra.mxu0 0.0
    %5619 = vmatprep.subr.mxu0 0.0
    %5620 = vmatpush1.xpose.msra.mxu0 0.0
    %5621 = vmatprep.subr.mxu0 0.0
    %5622 = vmatpush1.xpose.msra.mxu0 0.0
    %5623 = vmatprep.subr.mxu0 0.0
    %5624 = vmatpush1.xpose.msra.mxu0 0.0
    %5625 = vmatprep.subr.mxu0 0.0
    %5626 = vmatpush1.xpose.msra.mxu0 0.0
    %5627 = vmatprep.subr.mxu0 0.0
    %5628 = vmatpush1.xpose.msra.mxu0 0.0
    %5629 = vmatprep.subr.mxu0 0.0
    %5630 = vmatpush1.xpose.msra.mxu0 0.0
    %5631 = vmatprep.subr.mxu0 0.0
    %5632 = vmatpush1.xpose.msra.mxu0 0.0
    %5633 = vmatprep.subr.mxu0 0.0
    %5634 = vmatpush1.xpose.msra.mxu0 0.0
    %5635 = vmatprep.subr.mxu0 0.0
    %5636 = vmatpush1.xpose.msra.mxu0 0.0
    %5637 = vmatprep.subr.mxu0 0.0
    %5638 = vmatpush1.xpose.msra.mxu0 0.0
    %5639 = vmatprep.subr.mxu0 0.0
    %5640 = vmatpush1.xpose.msra.mxu0 0.0
    %5641 = vmatprep.mubr.f32.mxu0 0.0
    %5642 = vmatmul.mubr.f32.gmra.mrb[0].mxu0 %v5569
    %v5643 = vpop.f32.mrb[0].mxu0
    %v5644 = vadd.f32 0.0, %v5643
    %v5645 = vpop.f32.mrb[0].mxu0
    %5646 = vmatprep.mubr.f32.mxu0 0.0
    %5647 = vmatmul.mubr.f32.gmra.mrb[0].mxu0 %v5571
    %v5648 = vpop.f32.mrb[0].mxu0
    %v5649 = vadd.f32 0.0, %v5648
    %v5650 = vpop.f32.mrb[0].mxu0
    %5651 = vdwg.mxu0
    %v5652 = vmul.f32 %v5644, 0.35355338
    %v5653 = vmul.f32 %v5649, 0.35355338
    %v5654 = vadd.f32 %v5652, %v388
    %v5655 = vadd.f32 %v5653, %v389
    %v5656 = vsel %vm584, %v5654, -inf
    %5657 = vmax.xlane.f32.xlu0 %v5656
    %v5658 = vpop.xlane.xlu0 %5657
    %v5659 = vsel %vm584, %v5655, -inf
    %5660 = vmax.xlane.f32.xlu0 %v5659
    %v5661 = vpop.xlane.xlu0 %5660
    %v5662 = vsub.f32 %v5654, %v5658
    %v5663 = vsub.f32 %v5655, %v5661
    %v5664 = vmul.f32 %v5662, 1.442695
    %v5665 = vpow.pop %v5664
    %v5666 = vmul.f32 %v5663, 1.442695
    %v5667 = vpow.pop %v5666
    %v5668 = vsel %vm584, %v5665, 0.0
    %5669 = vadd.xlane.f32.xlu0 %v5668
    %v5670 = vpop.xlane.xlu0 %5669
    %v5671 = vsel %vm584, %v5667, 0.0
    %5672 = vadd.xlane.f32.xlu0 %v5671
    %v5673 = vpop.xlane.xlu0 %5672
    %v5674 = vrcp.pop %v5670
    %v5675 = vmul.f32 %v5665, %v5674
    %v5676 = vrcp.pop %v5673
    %v5677 = vmul.f32 %v5667, %v5676
    %5678 = vrot.lane.b32.xlu0 %v4987, 80
    %v5679 = vpop.permute.xlu0 %5678
    %5680 = vrot.lane.b32.xlu0 %v4992, 80
    %v5681 = vpop.permute.xlu0 %5680
    %v5685 = vsel %vm584, %v5675, 0
    %v5688 = vsel %vm584, %v5677, 0
    %5690 = vmatprep.subr.mxu0 0.0
    %5691 = vmatpush1.msra.mxu0 %v5679
    %5692 = vmatprep.subr.mxu0 0.0
    %5693 = vmatpush1.msra.mxu0 %v5681
    %5694 = vmatprep.subr.mxu0 0.0
    %5695 = vmatpush1.msra.mxu0 0.0
    %5696 = vmatprep.subr.mxu0 0.0
    %5697 = vmatpush1.msra.mxu0 0.0
    %5698 = vmatprep.subr.mxu0 0.0
    %5699 = vmatpush1.msra.mxu0 0.0
    %5700 = vmatprep.subr.mxu0 0.0
    %5701 = vmatpush1.msra.mxu0 0.0
    %5702 = vmatprep.subr.mxu0 0.0
    %5703 = vmatpush1.msra.mxu0 0.0
    %5704 = vmatprep.subr.mxu0 0.0
    %5705 = vmatpush1.msra.mxu0 0.0
    %5706 = vmatprep.subr.mxu0 0.0
    %5707 = vmatpush1.msra.mxu0 0.0
    %5708 = vmatprep.subr.mxu0 0.0
    %5709 = vmatpush1.msra.mxu0 0.0
    %5710 = vmatprep.subr.mxu0 0.0
    %5711 = vmatpush1.msra.mxu0 0.0
    %5712 = vmatprep.subr.mxu0 0.0
    %5713 = vmatpush1.msra.mxu0 0.0
    %5714 = vmatprep.subr.mxu0 0.0
    %5715 = vmatpush1.msra.mxu0 0.0
    %5716 = vmatprep.subr.mxu0 0.0
    %5717 = vmatpush1.msra.mxu0 0.0
    %5718 = vmatprep.subr.mxu0 0.0
    %5719 = vmatpush1.msra.mxu0 0.0
    %5720 = vmatprep.subr.mxu0 0.0
    %5721 = vmatpush1.msra.mxu0 0.0
    %5722 = vmatprep.subr.mxu0 0.0
    %5723 = vmatpush1.msra.mxu0 0.0
    %5724 = vmatprep.subr.mxu0 0.0
    %5725 = vmatpush1.msra.mxu0 0.0
    %5726 = vmatprep.subr.mxu0 0.0
    %5727 = vmatpush1.msra.mxu0 0.0
    %5728 = vmatprep.subr.mxu0 0.0
    %5729 = vmatpush1.msra.mxu0 0.0
    %5730 = vmatprep.subr.mxu0 0.0
    %5731 = vmatpush1.msra.mxu0 0.0
    %5732 = vmatprep.subr.mxu0 0.0
    %5733 = vmatpush1.msra.mxu0 0.0
    %5734 = vmatprep.subr.mxu0 0.0
    %5735 = vmatpush1.msra.mxu0 0.0
    %5736 = vmatprep.subr.mxu0 0.0
    %5737 = vmatpush1.msra.mxu0 0.0
    %5738 = vmatprep.subr.mxu0 0.0
    %5739 = vmatpush1.msra.mxu0 0.0
    %5740 = vmatprep.subr.mxu0 0.0
    %5741 = vmatpush1.msra.mxu0 0.0
    %5742 = vmatprep.subr.mxu0 0.0
    %5743 = vmatpush1.msra.mxu0 0.0
    %5744 = vmatprep.subr.mxu0 0.0
    %5745 = vmatpush1.msra.mxu0 0.0
    %5746 = vmatprep.subr.mxu0 0.0
    %5747 = vmatpush1.msra.mxu0 0.0
    %5748 = vmatprep.subr.mxu0 0.0
    %5749 = vmatpush1.msra.mxu0 0.0
    %5750 = vmatprep.subr.mxu0 0.0
    %5751 = vmatpush1.msra.mxu0 0.0
    %5752 = vmatprep.subr.mxu0 0.0
    %5753 = vmatpush1.msra.mxu0 0.0
    %5754 = vmatprep.mubr.f32.mxu0 0.0
    %5755 = vmatmul.mubr.f32.gmra.mrb[0].mxu0 %v5685
    %v5756 = vpop.f32.mrb[0].mxu0
    %v5757 = vadd.f32 0.0, %v5756
    %v5758 = vpop.f32.mrb[0].mxu0
    %5759 = vmatprep.mubr.f32.mxu0 0.0
    %5760 = vmatmul.mubr.f32.gmra.mrb[0].mxu0 %v5688
    %v5761 = vpop.f32.mrb[0].mxu0
    %v5762 = vadd.f32 0.0, %v5761
    %v5763 = vpop.f32.mrb[0].mxu0
    %5764 = vdwg.mxu0
    %v5766 = vsel %vm496, %v5757, 0
    %v5769 = vsel %vm496, %v5762, 0
    %5771 = vmatprep.subr.mxu0 0.0
    %5772 = vmatpush1.msra.mxu0 %v4818
    %5773 = vmatprep.subr.mxu0 0.0
    %5774 = vmatpush1.msra.mxu0 0.0
    %5775 = vmatprep.subr.mxu0 0.0
    %5776 = vmatpush1.msra.mxu0 0.0
    %5777 = vmatprep.subr.mxu0 0.0
    %5778 = vmatpush1.msra.mxu0 0.0
    %5779 = vmatprep.subr.mxu0 0.0
    %5780 = vmatpush1.msra.mxu0 0.0
    %5781 = vmatprep.subr.mxu0 0.0
    %5782 = vmatpush1.msra.mxu0 0.0
    %5783 = vmatprep.subr.mxu0 0.0
    %5784 = vmatpush1.msra.mxu0 0.0
    %5785 = vmatprep.subr.mxu0 0.0
    %5786 = vmatpush1.msra.mxu0 0.0
    %5787 = vmatprep.subr.mxu0 0.0
    %5788 = vmatpush1.msra.mxu0 0.0
    %5789 = vmatprep.subr.mxu0 0.0
    %5790 = vmatpush1.msra.mxu0 0.0
    %5791 = vmatprep.subr.mxu0 0.0
    %5792 = vmatpush1.msra.mxu0 0.0
    %5793 = vmatprep.subr.mxu0 0.0
    %5794 = vmatpush1.msra.mxu0 0.0
    %5795 = vmatprep.subr.mxu0 0.0
    %5796 = vmatpush1.msra.mxu0 0.0
    %5797 = vmatprep.subr.mxu0 0.0
    %5798 = vmatpush1.msra.mxu0 0.0
    %5799 = vmatprep.subr.mxu0 0.0
    %5800 = vmatpush1.msra.mxu0 0.0
    %5801 = vmatprep.subr.mxu0 0.0
    %5802 = vmatpush1.msra.mxu0 0.0
    %5803 = vmatprep.subr.mxu0 0.0
    %5804 = vmatpush1.msra.mxu0 0.0
    %5805 = vmatprep.subr.mxu0 0.0
    %5806 = vmatpush1.msra.mxu0 0.0
    %5807 = vmatprep.subr.mxu0 0.0
    %5808 = vmatpush1.msra.mxu0 0.0
    %5809 = vmatprep.subr.mxu0 0.0
    %5810 = vmatpush1.msra.mxu0 0.0
    %5811 = vmatprep.subr.mxu0 0.0
    %5812 = vmatpush1.msra.mxu0 0.0
    %5813 = vmatprep.subr.mxu0 0.0
    %5814 = vmatpush1.msra.mxu0 0.0
    %5815 = vmatprep.subr.mxu0 0.0
    %5816 = vmatpush1.msra.mxu0 0.0
    %5817 = vmatprep.subr.mxu0 0.0
    %5818 = vmatpush1.msra.mxu0 0.0
    %5819 = vmatprep.subr.mxu0 0.0
    %5820 = vmatpush1.msra.mxu0 0.0
    %5821 = vmatprep.subr.mxu0 0.0
    %5822 = vmatpush1.msra.mxu0 0.0
    %5823 = vmatprep.subr.mxu0 0.0
    %5824 = vmatpush1.msra.mxu0 0.0
    %5825 = vmatprep.subr.mxu0 0.0
    %5826 = vmatpush1.msra.mxu0 0.0
    %5827 = vmatprep.subr.mxu0 0.0
    %5828 = vmatpush1.msra.mxu0 0.0
    %5829 = vmatprep.subr.mxu0 0.0
    %5830 = vmatpush1.msra.mxu0 0.0
    %5831 = vmatprep.subr.mxu0 0.0
    %5832 = vmatpush1.msra.mxu0 0.0
    %5833 = vmatprep.subr.mxu0 0.0
    %5834 = vmatpush1.msra.mxu0 0.0
    %5835 = vmatprep.mubr.f32.mxu0 0.0
    %5836 = vmatmul.mubr.f32.gmra.mrb[0].mxu0 %v5766
    %v5837 = vpop.f32.mrb[0].mxu0
    %v5838 = vadd.f32 0.0, %v5837
    %v5839 = vpop.f32.mrb[0].mxu0
    %5840 = vmatprep.mubr.f32.mxu0 0.0
    %5841 = vmatmul.mubr.f32.gmra.mrb[0].mxu0 %v5769
    %v5842 = vpop.f32.mrb[0].mxu0
    %v5843 = vadd.f32 0.0, %v5842
    %v5844 = vpop.f32.mrb[0].mxu0
    %5845 = vdwg.mxu0
    %v5846 = vadd.f32 %v5553, %v5838
    %v5847 = vadd.f32 %v5558, %v5843
    %5848 = vrot.lane.b32.xlu0 %v4900, 104
    %v5849 = vpop.permute.xlu0 %5848
    %5850 = vrot.lane.b32.xlu0 %v4905, 104
    %v5851 = vpop.permute.xlu0 %5850
    %5852 = vrot.lane.b32.xlu0 %v4987, 104
    %v5853 = vpop.permute.xlu0 %5852
    %5854 = vrot.lane.b32.xlu0 %v4992, 104
    %v5855 = vpop.permute.xlu0 %5854
    %v5856 = vsel %vm496, %v5849, 0
    %v5858 = vsel %vm496, %v5851, 0
    %v5860 = vsel %vm496, %v5853, 0
    %v5862 = vsel %vm496, %v5855, 0
    %5864 = vmatprep.subr.mxu0 0.0
    %5865 = vmatpush1.xpose.msra.mxu0 %v5860
    %5866 = vmatprep.subr.mxu0 0.0
    %5867 = vmatpush1.xpose.msra.mxu0 %v5862
    %5868 = vmatprep.subr.mxu0 0.0
    %5869 = vmatpush1.xpose.msra.mxu0 0.0
    %5870 = vmatprep.subr.mxu0 0.0
    %5871 = vmatpush1.xpose.msra.mxu0 0.0
    %5872 = vmatprep.subr.mxu0 0.0
    %5873 = vmatpush1.xpose.msra.mxu0 0.0
    %5874 = vmatprep.subr.mxu0 0.0
    %5875 = vmatpush1.xpose.msra.mxu0 0.0
    %5876 = vmatprep.subr.mxu0 0.0
    %5877 = vmatpush1.xpose.msra.mxu0 0.0
    %5878 = vmatprep.subr.mxu0 0.0
    %5879 = vmatpush1.xpose.msra.mxu0 0.0
    %5880 = vmatprep.subr.mxu0 0.0
    %5881 = vmatpush1.xpose.msra.mxu0 0.0
    %5882 = vmatprep.subr.mxu0 0.0
    %5883 = vmatpush1.xpose.msra.mxu0 0.0
    %5884 = vmatprep.subr.mxu0 0.0
    %5885 = vmatpush1.xpose.msra.mxu0 0.0
    %5886 = vmatprep.subr.mxu0 0.0
    %5887 = vmatpush1.xpose.msra.mxu0 0.0
    %5888 = vmatprep.subr.mxu0 0.0
    %5889 = vmatpush1.xpose.msra.mxu0 0.0
    %5890 = vmatprep.subr.mxu0 0.0
    %5891 = vmatpush1.xpose.msra.mxu0 0.0
    %5892 = vmatprep.subr.mxu0 0.0
    %5893 = vmatpush1.xpose.msra.mxu0 0.0
    %5894 = vmatprep.subr.mxu0 0.0
    %5895 = vmatpush1.xpose.msra.mxu0 0.0
    %5896 = vmatprep.subr.mxu0 0.0
    %5897 = vmatpush1.xpose.msra.mxu0 0.0
    %5898 = vmatprep.subr.mxu0 0.0
    %5899 = vmatpush1.xpose.msra.mxu0 0.0
    %5900 = vmatprep.subr.mxu0 0.0
    %5901 = vmatpush1.xpose.msra.mxu0 0.0
    %5902 = vmatprep.subr.mxu0 0.0
    %5903 = vmatpush1.xpose.msra.mxu0 0.0
    %5904 = vmatprep.subr.mxu0 0.0
    %5905 = vmatpush1.xpose.msra.mxu0 0.0
    %5906 = vmatprep.subr.mxu0 0.0
    %5907 = vmatpush1.xpose.msra.mxu0 0.0
    %5908 = vmatprep.subr.mxu0 0.0
    %5909 = vmatpush1.xpose.msra.mxu0 0.0
    %5910 = vmatprep.subr.mxu0 0.0
    %5911 = vmatpush1.xpose.msra.mxu0 0.0
    %5912 = vmatprep.subr.mxu0 0.0
    %5913 = vmatpush1.xpose.msra.mxu0 0.0
    %5914 = vmatprep.subr.mxu0 0.0
    %5915 = vmatpush1.xpose.msra.mxu0 0.0
    %5916 = vmatprep.subr.mxu0 0.0
    %5917 = vmatpush1.xpose.msra.mxu0 0.0
    %5918 = vmatprep.subr.mxu0 0.0
    %5919 = vmatpush1.xpose.msra.mxu0 0.0
    %5920 = vmatprep.subr.mxu0 0.0
    %5921 = vmatpush1.xpose.msra.mxu0 0.0
    %5922 = vmatprep.subr.mxu0 0.0
    %5923 = vmatpush1.xpose.msra.mxu0 0.0
    %5924 = vmatprep.subr.mxu0 0.0
    %5925 = vmatpush1.xpose.msra.mxu0 0.0
    %5926 = vmatprep.subr.mxu0 0.0
    %5927 = vmatpush1.xpose.msra.mxu0 0.0
    %5928 = vmatprep.mubr.f32.mxu0 0.0
    %5929 = vmatmul.mubr.f32.gmra.mrb[0].mxu0 %v5856
    %v5930 = vpop.f32.mrb[0].mxu0
    %v5931 = vadd.f32 0.0, %v5930
    %v5932 = vpop.f32.mrb[0].mxu0
    %5933 = vmatprep.mubr.f32.mxu0 0.0
    %5934 = vmatmul.mubr.f32.gmra.mrb[0].mxu0 %v5858
    %v5935 = vpop.f32.mrb[0].mxu0
    %v5936 = vadd.f32 0.0, %v5935
    %v5937 = vpop.f32.mrb[0].mxu0
    %5938 = vdwg.mxu0
    %v5939 = vmul.f32 %v5931, 0.35355338
    %v5940 = vmul.f32 %v5936, 0.35355338
    %v5941 = vadd.f32 %v5939, %v388
    %v5942 = vadd.f32 %v5940, %v389
    %v5943 = vsel %vm584, %v5941, -inf
    %5944 = vmax.xlane.f32.xlu0 %v5943
    %v5945 = vpop.xlane.xlu0 %5944
    %v5946 = vsel %vm584, %v5942, -inf
    %5947 = vmax.xlane.f32.xlu0 %v5946
    %v5948 = vpop.xlane.xlu0 %5947
    %v5949 = vsub.f32 %v5941, %v5945
    %v5950 = vsub.f32 %v5942, %v5948
    %v5951 = vmul.f32 %v5949, 1.442695
    %v5952 = vpow.pop %v5951
    %v5953 = vmul.f32 %v5950, 1.442695
    %v5954 = vpow.pop %v5953
    %v5955 = vsel %vm584, %v5952, 0.0
    %5956 = vadd.xlane.f32.xlu0 %v5955
    %v5957 = vpop.xlane.xlu0 %5956
    %v5958 = vsel %vm584, %v5954, 0.0
    %5959 = vadd.xlane.f32.xlu0 %v5958
    %v5960 = vpop.xlane.xlu0 %5959
    %v5961 = vrcp.pop %v5957
    %v5962 = vmul.f32 %v5952, %v5961
    %v5963 = vrcp.pop %v5960
    %v5964 = vmul.f32 %v5954, %v5963
    %5965 = vrot.lane.b32.xlu0 %v4987, 72
    %v5966 = vpop.permute.xlu0 %5965
    %5967 = vrot.lane.b32.xlu0 %v4992, 72
    %v5968 = vpop.permute.xlu0 %5967
    %v5972 = vsel %vm584, %v5962, 0
    %v5975 = vsel %vm584, %v5964, 0
    %5977 = vmatprep.subr.mxu0 0.0
    %5978 = vmatpush1.msra.mxu0 %v5966
    %5979 = vmatprep.subr.mxu0 0.0
    %5980 = vmatpush1.msra.mxu0 %v5968
    %5981 = vmatprep.subr.mxu0 0.0
    %5982 = vmatpush1.msra.mxu0 0.0
    %5983 = vmatprep.subr.mxu0 0.0
    %5984 = vmatpush1.msra.mxu0 0.0
    %5985 = vmatprep.subr.mxu0 0.0
    %5986 = vmatpush1.msra.mxu0 0.0
    %5987 = vmatprep.subr.mxu0 0.0
    %5988 = vmatpush1.msra.mxu0 0.0
    %5989 = vmatprep.subr.mxu0 0.0
    %5990 = vmatpush1.msra.mxu0 0.0
    %5991 = vmatprep.subr.mxu0 0.0
    %5992 = vmatpush1.msra.mxu0 0.0
    %5993 = vmatprep.subr.mxu0 0.0
    %5994 = vmatpush1.msra.mxu0 0.0
    %5995 = vmatprep.subr.mxu0 0.0
    %5996 = vmatpush1.msra.mxu0 0.0
    %5997 = vmatprep.subr.mxu0 0.0
    %5998 = vmatpush1.msra.mxu0 0.0
    %5999 = vmatprep.subr.mxu0 0.0
    %6000 = vmatpush1.msra.mxu0 0.0
    %6001 = vmatprep.subr.mxu0 0.0
    %6002 = vmatpush1.msra.mxu0 0.0
    %6003 = vmatprep.subr.mxu0 0.0
    %6004 = vmatpush1.msra.mxu0 0.0
    %6005 = vmatprep.subr.mxu0 0.0
    %6006 = vmatpush1.msra.mxu0 0.0
    %6007 = vmatprep.subr.mxu0 0.0
    %6008 = vmatpush1.msra.mxu0 0.0
    %6009 = vmatprep.subr.mxu0 0.0
    %6010 = vmatpush1.msra.mxu0 0.0
    %6011 = vmatprep.subr.mxu0 0.0
    %6012 = vmatpush1.msra.mxu0 0.0
    %6013 = vmatprep.subr.mxu0 0.0
    %6014 = vmatpush1.msra.mxu0 0.0
    %6015 = vmatprep.subr.mxu0 0.0
    %6016 = vmatpush1.msra.mxu0 0.0
    %6017 = vmatprep.subr.mxu0 0.0
    %6018 = vmatpush1.msra.mxu0 0.0
    %6019 = vmatprep.subr.mxu0 0.0
    %6020 = vmatpush1.msra.mxu0 0.0
    %6021 = vmatprep.subr.mxu0 0.0
    %6022 = vmatpush1.msra.mxu0 0.0
    %6023 = vmatprep.subr.mxu0 0.0
    %6024 = vmatpush1.msra.mxu0 0.0
    %6025 = vmatprep.subr.mxu0 0.0
    %6026 = vmatpush1.msra.mxu0 0.0
    %6027 = vmatprep.subr.mxu0 0.0
    %6028 = vmatpush1.msra.mxu0 0.0
    %6029 = vmatprep.subr.mxu0 0.0
    %6030 = vmatpush1.msra.mxu0 0.0
    %6031 = vmatprep.subr.mxu0 0.0
    %6032 = vmatpush1.msra.mxu0 0.0
    %6033 = vmatprep.subr.mxu0 0.0
    %6034 = vmatpush1.msra.mxu0 0.0
    %6035 = vmatprep.subr.mxu0 0.0
    %6036 = vmatpush1.msra.mxu0 0.0
    %6037 = vmatprep.subr.mxu0 0.0
    %6038 = vmatpush1.msra.mxu0 0.0
    %6039 = vmatprep.subr.mxu0 0.0
    %6040 = vmatpush1.msra.mxu0 0.0
    %6041 = vmatprep.mubr.f32.mxu0 0.0
    %6042 = vmatmul.mubr.f32.gmra.mrb[0].mxu0 %v5972
    %v6043 = vpop.f32.mrb[0].mxu0
    %v6044 = vadd.f32 0.0, %v6043
    %v6045 = vpop.f32.mrb[0].mxu0
    %6046 = vmatprep.mubr.f32.mxu0 0.0
    %6047 = vmatmul.mubr.f32.gmra.mrb[0].mxu0 %v5975
    %v6048 = vpop.f32.mrb[0].mxu0
    %v6049 = vadd.f32 0.0, %v6048
    %v6050 = vpop.f32.mrb[0].mxu0
    %6051 = vdwg.mxu0
    %v6053 = vsel %vm496, %v6044, 0
    %v6056 = vsel %vm496, %v6049, 0
    %6058 = vmatprep.subr.mxu0 0.0
    %6059 = vmatpush1.msra.mxu0 %v4819
    %6060 = vmatprep.subr.mxu0 0.0
    %6061 = vmatpush1.msra.mxu0 0.0
    %6062 = vmatprep.subr.mxu0 0.0
    %6063 = vmatpush1.msra.mxu0 0.0
    %6064 = vmatprep.subr.mxu0 0.0
    %6065 = vmatpush1.msra.mxu0 0.0
    %6066 = vmatprep.subr.mxu0 0.0
    %6067 = vmatpush1.msra.mxu0 0.0
    %6068 = vmatprep.subr.mxu0 0.0
    %6069 = vmatpush1.msra.mxu0 0.0
    %6070 = vmatprep.subr.mxu0 0.0
    %6071 = vmatpush1.msra.mxu0 0.0
    %6072 = vmatprep.subr.mxu0 0.0
    %6073 = vmatpush1.msra.mxu0 0.0
    %6074 = vmatprep.subr.mxu0 0.0
    %6075 = vmatpush1.msra.mxu0 0.0
    %6076 = vmatprep.subr.mxu0 0.0
    %6077 = vmatpush1.msra.mxu0 0.0
    %6078 = vmatprep.subr.mxu0 0.0
    %6079 = vmatpush1.msra.mxu0 0.0
    %6080 = vmatprep.subr.mxu0 0.0
    %6081 = vmatpush1.msra.mxu0 0.0
    %6082 = vmatprep.subr.mxu0 0.0
    %6083 = vmatpush1.msra.mxu0 0.0
    %6084 = vmatprep.subr.mxu0 0.0
    %6085 = vmatpush1.msra.mxu0 0.0
    %6086 = vmatprep.subr.mxu0 0.0
    %6087 = vmatpush1.msra.mxu0 0.0
    %6088 = vmatprep.subr.mxu0 0.0
    %6089 = vmatpush1.msra.mxu0 0.0
    %6090 = vmatprep.subr.mxu0 0.0
    %6091 = vmatpush1.msra.mxu0 0.0
    %6092 = vmatprep.subr.mxu0 0.0
    %6093 = vmatpush1.msra.mxu0 0.0
    %6094 = vmatprep.subr.mxu0 0.0
    %6095 = vmatpush1.msra.mxu0 0.0
    %6096 = vmatprep.subr.mxu0 0.0
    %6097 = vmatpush1.msra.mxu0 0.0
    %6098 = vmatprep.subr.mxu0 0.0
    %6099 = vmatpush1.msra.mxu0 0.0
    %6100 = vmatprep.subr.mxu0 0.0
    %6101 = vmatpush1.msra.mxu0 0.0
    %6102 = vmatprep.subr.mxu0 0.0
    %6103 = vmatpush1.msra.mxu0 0.0
    %6104 = vmatprep.subr.mxu0 0.0
    %6105 = vmatpush1.msra.mxu0 0.0
    %6106 = vmatprep.subr.mxu0 0.0
    %6107 = vmatpush1.msra.mxu0 0.0
    %6108 = vmatprep.subr.mxu0 0.0
    %6109 = vmatpush1.msra.mxu0 0.0
    %6110 = vmatprep.subr.mxu0 0.0
    %6111 = vmatpush1.msra.mxu0 0.0
    %6112 = vmatprep.subr.mxu0 0.0
    %6113 = vmatpush1.msra.mxu0 0.0
    %6114 = vmatprep.subr.mxu0 0.0
    %6115 = vmatpush1.msra.mxu0 0.0
    %6116 = vmatprep.subr.mxu0 0.0
    %6117 = vmatpush1.msra.mxu0 0.0
    %6118 = vmatprep.subr.mxu0 0.0
    %6119 = vmatpush1.msra.mxu0 0.0
    %6120 = vmatprep.subr.mxu0 0.0
    %6121 = vmatpush1.msra.mxu0 0.0
    %6122 = vmatprep.mubr.f32.mxu0 0.0
    %6123 = vmatmul.mubr.f32.gmra.mrb[0].mxu0 %v6053
    %v6124 = vpop.f32.mrb[0].mxu0
    %v6125 = vadd.f32 0.0, %v6124
    %v6126 = vpop.f32.mrb[0].mxu0
    %6127 = vmatprep.mubr.f32.mxu0 0.0
    %6128 = vmatmul.mubr.f32.gmra.mrb[0].mxu0 %v6056
    %v6129 = vpop.f32.mrb[0].mxu0
    %v6130 = vadd.f32 0.0, %v6129
    %v6131 = vpop.f32.mrb[0].mxu0
    %6132 = vdwg.mxu0
    %v6133 = vadd.f32 %v5846, %v6125
    %v6134 = vadd.f32 %v5847, %v6130
    %v6136 = vlaneseq
    %v6137 = vshrl.u32 %v6136, 7
    %v6138 = vsub.s32 0, %v6137
    %v6139 = vrot.slane %v4820, %v6138
    %v6141 = vadd.f32 %v6133, %v6139
    %v6142 = vadd.f32 %v6134, %v6139
    %v6143 = vadd.f32 %v4804, %v6141
    %v6144 = vadd.f32 %v4805, %v6142
    %v6145 = vld [vmem:[%s71] sm:$0x1]
    %v6146 = vld [vmem:[%s73] sm:$0x1]
    %v6147 = vsel %vm408, %v6143, 0.0
    %6148 = vadd.xlane.f32.xlu0 %v6147
    %v6149 = vpop.xlane.xlu0 %6148
    %v6150 = vsel %vm408, %v6144, 0.0
    %6151 = vadd.xlane.f32.xlu0 %v6150
    %v6152 = vpop.xlane.xlu0 %6151
    %v6153 = vmul.f32 %v6149, %v1652
    %v6154 = vmul.f32 %v6152, %v1652
    %v6155 = vsub.f32 %v6143, %v6153
    %v6156 = vsub.f32 %v6144, %v6154
    %v6157 = vmul.f32 %v6155, %v6155
    %v6158 = vmul.f32 %v6156, %v6156
    %v6159 = vsel %vm408, %v6157, 0.0
    %6160 = vadd.xlane.f32.xlu0 %v6159
    %v6161 = vpop.xlane.xlu0 %6160
    %v6162 = vsel %vm408, %v6158, 0.0
    %6163 = vadd.xlane.f32.xlu0 %v6162
    %v6164 = vpop.xlane.xlu0 %6163
    %v6165 = vmul.f32 %v6161, %v1652
    %v6166 = vmul.f32 %v6164, %v1652
    %v6167 = vadd.f32 %v6165, 1e-05
    %v6168 = vadd.f32 %v6166, 1e-05
    %v6169 = vrsqrt.pop %v6167
    %v6170 = vrsqrt.pop %v6168
    %v6171 = vmul.f32 %v6155, %v6169
    %v6172 = vmul.f32 %v6156, %v6170
    %v6174 = vlaneseq
    %v6175 = vshrl.u32 %v6174, 7
    %v6176 = vsub.s32 0, %v6175
    %v6177 = vrot.slane %v6145, %v6176
    %v6179 = vmul.f32 %v6171, %v6177
    %v6180 = vmul.f32 %v6172, %v6177
    %v6182 = vlaneseq
    %v6183 = vshrl.u32 %v6182, 7
    %v6184 = vsub.s32 0, %v6183
    %v6185 = vrot.slane %v6146, %v6184
    %v6187 = vadd.f32 %v6179, %v6185
    %v6188 = vadd.f32 %v6180, %v6185
    %v6189 = vld [vmem:[#allocation26] sm:$0xff]
    %v6190 = vld [vmem:[#allocation26 + $0x8] sm:$0xff]
    %v6191 = vld [vmem:[#allocation26 + $0x10] sm:$0xff]
    %v6192 = vld [vmem:[#allocation26 + $0x18] sm:$0xff]
    %v6193 = vld [vmem:[%s61] sm:$0x1]
    %v6194 = vld [vmem:[%s63] sm:$0xff]
    %v6195 = vld [vmem:[%s63 + $0x8] sm:$0xff]
    %v6196 = vld [vmem:[%s63 + $0x10] sm:$0xff]
    %v6197 = vld [vmem:[%s63 + $0x18] sm:$0xff]
    %v6198 = vld [vmem:[%s63 + $0x20] sm:$0xff]
    %v6199 = vld [vmem:[%s63 + $0x28] sm:$0xff]
    %v6200 = vld [vmem:[%s63 + $0x30] sm:$0xff]
    %v6201 = vld [vmem:[%s63 + $0x38] sm:$0xff]
    %v6202 = vld [vmem:[%s65] sm:$0x1]
    %v6204 = vlaneseq
    %v6205 = vshrl.u32 %v6204, 7
    %v6206 = vsub.s32 0, %v6205
    %v6207 = vrot.slane %v6193, %v6206
    %v6210 = vsel %vm408, %v6187, 0
    %v6213 = vsel %vm408, %v6188, 0
    %6215 = vmatprep.subr.mxu0 0.0
    %6216 = vmatpush1.msra.mxu0 %v6189
    %6217 = vmatprep.subr.mxu0 0.0
    %6218 = vmatpush1.msra.mxu0 %v6190
    %6219 = vmatprep.subr.mxu0 0.0
    %6220 = vmatpush1.msra.mxu0 %v6191
    %6221 = vmatprep.subr.mxu0 0.0
    %6222 = vmatpush1.msra.mxu0 %v6192
    %6223 = vmatprep.subr.mxu0 0.0
    %6224 = vmatpush1.msra.mxu0 0.0
    %6225 = vmatprep.subr.mxu0 0.0
    %6226 = vmatpush1.msra.mxu0 0.0
    %6227 = vmatprep.subr.mxu0 0.0
    %6228 = vmatpush1.msra.mxu0 0.0
    %6229 = vmatprep.subr.mxu0 0.0
    %6230 = vmatpush1.msra.mxu0 0.0
    %6231 = vmatprep.subr.mxu0 0.0
    %6232 = vmatpush1.msra.mxu0 0.0
    %6233 = vmatprep.subr.mxu0 0.0
    %6234 = vmatpush1.msra.mxu0 0.0
    %6235 = vmatprep.subr.mxu0 0.0
    %6236 = vmatpush1.msra.mxu0 0.0
    %6237 = vmatprep.subr.mxu0 0.0
    %6238 = vmatpush1.msra.mxu0 0.0
    %6239 = vmatprep.subr.mxu0 0.0
    %6240 = vmatpush1.msra.mxu0 0.0
    %6241 = vmatprep.subr.mxu0 0.0
    %6242 = vmatpush1.msra.mxu0 0.0
    %6243 = vmatprep.subr.mxu0 0.0
    %6244 = vmatpush1.msra.mxu0 0.0
    %6245 = vmatprep.subr.mxu0 0.0
    %6246 = vmatpush1.msra.mxu0 0.0
    %6247 = vmatprep.subr.mxu0 0.0
    %6248 = vmatpush1.msra.mxu0 0.0
    %6249 = vmatprep.subr.mxu0 0.0
    %6250 = vmatpush1.msra.mxu0 0.0
    %6251 = vmatprep.subr.mxu0 0.0
    %6252 = vmatpush1.msra.mxu0 0.0
    %6253 = vmatprep.subr.mxu0 0.0
    %6254 = vmatpush1.msra.mxu0 0.0
    %6255 = vmatprep.subr.mxu0 0.0
    %6256 = vmatpush1.msra.mxu0 0.0
    %6257 = vmatprep.subr.mxu0 0.0
    %6258 = vmatpush1.msra.mxu0 0.0
    %6259 = vmatprep.subr.mxu0 0.0
    %6260 = vmatpush1.msra.mxu0 0.0
    %6261 = vmatprep.subr.mxu0 0.0
    %6262 = vmatpush1.msra.mxu0 0.0
    %6263 = vmatprep.subr.mxu0 0.0
    %6264 = vmatpush1.msra.mxu0 0.0
    %6265 = vmatprep.subr.mxu0 0.0
    %6266 = vmatpush1.msra.mxu0 0.0
    %6267 = vmatprep.subr.mxu0 0.0
    %6268 = vmatpush1.msra.mxu0 0.0
    %6269 = vmatprep.subr.mxu0 0.0
    %6270 = vmatpush1.msra.mxu0 0.0
    %6271 = vmatprep.subr.mxu0 0.0
    %6272 = vmatpush1.msra.mxu0 0.0
    %6273 = vmatprep.subr.mxu0 0.0
    %6274 = vmatpush1.msra.mxu0 0.0
    %6275 = vmatprep.subr.mxu0 0.0
    %6276 = vmatpush1.msra.mxu0 0.0
    %6277 = vmatprep.subr.mxu0 0.0
    %6278 = vmatpush1.msra.mxu0 0.0
    %6279 = vmatprep.mubr.f32.mxu0 0.0
    %6280 = vmatmul.mubr.f32.gmra.mrb[0].mxu0 %v6210
    %v6281 = vpop.f32.mrb[0].mxu0
    %v6282 = vadd.f32 %v6207, %v6281
    %v6283 = vpop.f32.mrb[0].mxu0
    %6284 = vmatprep.mubr.f32.mxu0 0.0
    %6285 = vmatmul.mubr.f32.gmra.mrb[0].mxu0 %v6213
    %v6286 = vpop.f32.mrb[0].mxu0
    %v6287 = vadd.f32 %v6207, %v6286
    %v6288 = vpop.f32.mrb[0].mxu0
    %6289 = vdwg.mxu0
    %v6290 = vmax.f32 %v6282, 0.0
    %v6291 = vmax.f32 %v6287, 0.0
    %v6293 = vlaneseq
    %v6294 = vshrl.u32 %v6293, 7
    %v6295 = vsub.s32 0, %v6294
    %v6296 = vrot.slane %v6202, %v6295
    %v6299 = vsel %vm1798, %v6290, 0
    %v6302 = vsel %vm1798, %v6291, 0
    %6304 = vmatprep.subr.mxu0 0.0
    %6305 = vmatpush1.msra.mxu0 %v6194
    %6306 = vmatprep.subr.mxu0 0.0
    %6307 = vmatpush1.msra.mxu0 %v6195
    %6308 = vmatprep.subr.mxu0 0.0
    %6309 = vmatpush1.msra.mxu0 %v6196
    %6310 = vmatprep.subr.mxu0 0.0
    %6311 = vmatpush1.msra.mxu0 %v6197
    %6312 = vmatprep.subr.mxu0 0.0
    %6313 = vmatpush1.msra.mxu0 %v6198
    %6314 = vmatprep.subr.mxu0 0.0
    %6315 = vmatpush1.msra.mxu0 %v6199
    %6316 = vmatprep.subr.mxu0 0.0
    %6317 = vmatpush1.msra.mxu0 %v6200
    %6318 = vmatprep.subr.mxu0 0.0
    %6319 = vmatpush1.msra.mxu0 %v6201
    %6320 = vmatprep.subr.mxu0 0.0
    %6321 = vmatpush1.msra.mxu0 0.0
    %6322 = vmatprep.subr.mxu0 0.0
    %6323 = vmatpush1.msra.mxu0 0.0
    %6324 = vmatprep.subr.mxu0 0.0
    %6325 = vmatpush1.msra.mxu0 0.0
    %6326 = vmatprep.subr.mxu0 0.0
    %6327 = vmatpush1.msra.mxu0 0.0
    %6328 = vmatprep.subr.mxu0 0.0
    %6329 = vmatpush1.msra.mxu0 0.0
    %6330 = vmatprep.subr.mxu0 0.0
    %6331 = vmatpush1.msra.mxu0 0.0
    %6332 = vmatprep.subr.mxu0 0.0
    %6333 = vmatpush1.msra.mxu0 0.0
    %6334 = vmatprep.subr.mxu0 0.0
    %6335 = vmatpush1.msra.mxu0 0.0
    %6336 = vmatprep.subr.mxu0 0.0
    %6337 = vmatpush1.msra.mxu0 0.0
    %6338 = vmatprep.subr.mxu0 0.0
    %6339 = vmatpush1.msra.mxu0 0.0
    %6340 = vmatprep.subr.mxu0 0.0
    %6341 = vmatpush1.msra.mxu0 0.0
    %6342 = vmatprep.subr.mxu0 0.0
    %6343 = vmatpush1.msra.mxu0 0.0
    %6344 = vmatprep.subr.mxu0 0.0
    %6345 = vmatpush1.msra.mxu0 0.0
    %6346 = vmatprep.subr.mxu0 0.0
    %6347 = vmatpush1.msra.mxu0 0.0
    %6348 = vmatprep.subr.mxu0 0.0
    %6349 = vmatpush1.msra.mxu0 0.0
    %6350 = vmatprep.subr.mxu0 0.0
    %6351 = vmatpush1.msra.mxu0 0.0
    %6352 = vmatprep.subr.mxu0 0.0
    %6353 = vmatpush1.msra.mxu0 0.0
    %6354 = vmatprep.subr.mxu0 0.0
    %6355 = vmatpush1.msra.mxu0 0.0
    %6356 = vmatprep.subr.mxu0 0.0
    %6357 = vmatpush1.msra.mxu0 0.0
    %6358 = vmatprep.subr.mxu0 0.0
    %6359 = vmatpush1.msra.mxu0 0.0
    %6360 = vmatprep.subr.mxu0 0.0
    %6361 = vmatpush1.msra.mxu0 0.0
    %6362 = vmatprep.subr.mxu0 0.0
    %6363 = vmatpush1.msra.mxu0 0.0
    %6364 = vmatprep.subr.mxu0 0.0
    %6365 = vmatpush1.msra.mxu0 0.0
    %6366 = vmatprep.subr.mxu0 0.0
    %6367 = vmatpush1.msra.mxu0 0.0
    %6368 = vmatprep.mubr.f32.mxu0 0.0
    %6369 = vmatmul.mubr.f32.gmra.mrb[0].mxu0 %v6299
    %v6370 = vpop.f32.mrb[0].mxu0
    %v6371 = vadd.f32 %v6296, %v6370
    %v6372 = vpop.f32.mrb[0].mxu0
    %6373 = vmatprep.mubr.f32.mxu0 0.0
    %6374 = vmatmul.mubr.f32.gmra.mrb[0].mxu0 %v6302
    %v6375 = vpop.f32.mrb[0].mxu0
    %v6376 = vadd.f32 %v6296, %v6375
    %v6377 = vpop.f32.mrb[0].mxu0
    %6378 = vdwg.mxu0
    %v6379 = vadd.f32 %v6187, %v6371
    %v6380 = vadd.f32 %v6188, %v6376
    %v6381 = vld [vmem:[%s75] sm:$0x1]
    %v6382 = vld [vmem:[%s77] sm:$0x1]
    %v6383 = vsel %vm408, %v6379, 0.0
    %6384 = vadd.xlane.f32.xlu0 %v6383
    %v6385 = vpop.xlane.xlu0 %6384
    %v6386 = vsel %vm408, %v6380, 0.0
    %6387 = vadd.xlane.f32.xlu0 %v6386
    %v6388 = vpop.xlane.xlu0 %6387
    %v6389 = vmul.f32 %v6385, %v1652
    %v6390 = vmul.f32 %v6388, %v1652
    %v6391 = vsub.f32 %v6379, %v6389
    %v6392 = vsub.f32 %v6380, %v6390
    %v6393 = vmul.f32 %v6391, %v6391
    %v6394 = vmul.f32 %v6392, %v6392
    %v6395 = vsel %vm408, %v6393, 0.0
    %6396 = vadd.xlane.f32.xlu0 %v6395
    %v6397 = vpop.xlane.xlu0 %6396
    %v6398 = vsel %vm408, %v6394, 0.0
    %6399 = vadd.xlane.f32.xlu0 %v6398
    %v6400 = vpop.xlane.xlu0 %6399
    %v6401 = vmul.f32 %v6397, %v1652
    %v6402 = vmul.f32 %v6400, %v1652
    %v6403 = vadd.f32 %v6401, 1e-05
    %v6404 = vadd.f32 %v6402, 1e-05
    %v6405 = vrsqrt.pop %v6403
    %v6406 = vrsqrt.pop %v6404
    %v6407 = vmul.f32 %v6391, %v6405
    %v6408 = vmul.f32 %v6392, %v6406
    %v6410 = vlaneseq
    %v6411 = vshrl.u32 %v6410, 7
    %v6412 = vsub.s32 0, %v6411
    %v6413 = vrot.slane %v6381, %v6412
    %v6415 = vmul.f32 %v6407, %v6413
    %v6416 = vmul.f32 %v6408, %v6413
    %v6418 = vlaneseq
    %v6419 = vshrl.u32 %v6418, 7
    %v6420 = vsub.s32 0, %v6419
    %v6421 = vrot.slane %v6382, %v6420
    %v6423 = vadd.f32 %v6415, %v6421
    %v6424 = vadd.f32 %v6416, %v6421
    %s6425 = scalar_lea.vmem %s39, 32
    %v6426 = vld [vmem:[%s6425] sm:$0xff]
    %v6427 = vld [vmem:[%s6425 + $0x8] sm:$0xff]
    %v6428 = vld [vmem:[%s6425 + $0x10] sm:$0xff]
    %v6429 = vld [vmem:[%s6425 + $0x18] sm:$0xff]
    %s6430 = scalar_lea.vmem %s41, 1
    %v6431 = vld [vmem:[%s6430] sm:$0x1]
    %s6432 = scalar_lea.vmem %s43, 32
    %v6433 = vld [vmem:[%s6432] sm:$0xff]
    %v6434 = vld [vmem:[%s6432 + $0x8] sm:$0xff]
    %v6435 = vld [vmem:[%s6432 + $0x10] sm:$0xff]
    %v6436 = vld [vmem:[%s6432 + $0x18] sm:$0xff]
    %s6437 = scalar_lea.vmem %s45, 1
    %v6438 = vld [vmem:[%s6437] sm:$0x1]
    %v6440 = vlaneseq
    %v6441 = vshrl.u32 %v6440, 7
    %v6442 = vsub.s32 0, %v6441
    %v6443 = vrot.slane %v6431, %v6442
    %v6446 = vsel %vm408, %v6423, 0
    %v6449 = vsel %vm408, %v6424, 0
    %6451 = vmatprep.subr.mxu0 0.0
    %6452 = vmatpush1.msra.mxu0 %v6426
    %6453 = vmatprep.subr.mxu0 0.0
    %6454 = vmatpush1.msra.mxu0 %v6427
    %6455 = vmatprep.subr.mxu0 0.0
    %6456 = vmatpush1.msra.mxu0 %v6428
    %6457 = vmatprep.subr.mxu0 0.0
    %6458 = vmatpush1.msra.mxu0 %v6429
    %6459 = vmatprep.subr.mxu0 0.0
    %6460 = vmatpush1.msra.mxu0 0.0
    %6461 = vmatprep.subr.mxu0 0.0
    %6462 = vmatpush1.msra.mxu0 0.0
    %6463 = vmatprep.subr.mxu0 0.0
    %6464 = vmatpush1.msra.mxu0 0.0
    %6465 = vmatprep.subr.mxu0 0.0
    %6466 = vmatpush1.msra.mxu0 0.0
    %6467 = vmatprep.subr.mxu0 0.0
    %6468 = vmatpush1.msra.mxu0 0.0
    %6469 = vmatprep.subr.mxu0 0.0
    %6470 = vmatpush1.msra.mxu0 0.0
    %6471 = vmatprep.subr.mxu0 0.0
    %6472 = vmatpush1.msra.mxu0 0.0
    %6473 = vmatprep.subr.mxu0 0.0
    %6474 = vmatpush1.msra.mxu0 0.0
    %6475 = vmatprep.subr.mxu0 0.0
    %6476 = vmatpush1.msra.mxu0 0.0
    %6477 = vmatprep.subr.mxu0 0.0
    %6478 = vmatpush1.msra.mxu0 0.0
    %6479 = vmatprep.subr.mxu0 0.0
    %6480 = vmatpush1.msra.mxu0 0.0
    %6481 = vmatprep.subr.mxu0 0.0
    %6482 = vmatpush1.msra.mxu0 0.0
    %6483 = vmatprep.subr.mxu0 0.0
    %6484 = vmatpush1.msra.mxu0 0.0
    %6485 = vmatprep.subr.mxu0 0.0
    %6486 = vmatpush1.msra.mxu0 0.0
    %6487 = vmatprep.subr.mxu0 0.0
    %6488 = vmatpush1.msra.mxu0 0.0
    %6489 = vmatprep.subr.mxu0 0.0
    %6490 = vmatpush1.msra.mxu0 0.0
    %6491 = vmatprep.subr.mxu0 0.0
    %6492 = vmatpush1.msra.mxu0 0.0
    %6493 = vmatprep.subr.mxu0 0.0
    %6494 = vmatpush1.msra.mxu0 0.0
    %6495 = vmatprep.subr.mxu0 0.0
    %6496 = vmatpush1.msra.mxu0 0.0
    %6497 = vmatprep.subr.mxu0 0.0
    %6498 = vmatpush1.msra.mxu0 0.0
    %6499 = vmatprep.subr.mxu0 0.0
    %6500 = vmatpush1.msra.mxu0 0.0
    %6501 = vmatprep.subr.mxu0 0.0
    %6502 = vmatpush1.msra.mxu0 0.0
    %6503 = vmatprep.subr.mxu0 0.0
    %6504 = vmatpush1.msra.mxu0 0.0
    %6505 = vmatprep.subr.mxu0 0.0
    %6506 = vmatpush1.msra.mxu0 0.0
    %6507 = vmatprep.subr.mxu0 0.0
    %6508 = vmatpush1.msra.mxu0 0.0
    %6509 = vmatprep.subr.mxu0 0.0
    %6510 = vmatpush1.msra.mxu0 0.0
    %6511 = vmatprep.subr.mxu0 0.0
    %6512 = vmatpush1.msra.mxu0 0.0
    %6513 = vmatprep.subr.mxu0 0.0
    %6514 = vmatpush1.msra.mxu0 0.0
    %6515 = vmatprep.mubr.f32.mxu0 0.0
    %6516 = vmatmul.mubr.f32.gmra.mrb[0].mxu0 %v6446
    %v6517 = vpop.f32.mrb[0].mxu0
    %v6518 = vadd.f32 %v6443, %v6517
    %v6519 = vpop.f32.mrb[0].mxu0
    %6520 = vmatprep.mubr.f32.mxu0 0.0
    %6521 = vmatmul.mubr.f32.gmra.mrb[0].mxu0 %v6449
    %v6522 = vpop.f32.mrb[0].mxu0
    %v6523 = vadd.f32 %v6443, %v6522
    %v6524 = vpop.f32.mrb[0].mxu0
    %6525 = vdwg.mxu0
    %6528 = vrot.lane.b32.xlu0 %v6518, 96
    %v6529 = vpop.permute.xlu0 %6528
    %6530 = vrot.lane.b32.xlu0 %v6523, 96
    %v6531 = vpop.permute.xlu0 %6530
    %v6532 = vsel %vm496, %v6518, 0
    %v6534 = vsel %vm496, %v6523, 0
    %v6536 = vsel %vm496, %v6529, 0
    %v6538 = vsel %vm496, %v6531, 0
    %6540 = vmatprep.subr.mxu0 0.0
    %6541 = vmatpush1.xpose.msra.mxu0 %v6536
    %6542 = vmatprep.subr.mxu0 0.0
    %6543 = vmatpush1.xpose.msra.mxu0 %v6538
    %6544 = vmatprep.subr.mxu0 0.0
    %6545 = vmatpush1.xpose.msra.mxu0 0.0
    %6546 = vmatprep.subr.mxu0 0.0
    %6547 = vmatpush1.xpose.msra.mxu0 0.0
    %6548 = vmatprep.subr.mxu0 0.0
    %6549 = vmatpush1.xpose.msra.mxu0 0.0
    %6550 = vmatprep.subr.mxu0 0.0
    %6551 = vmatpush1.xpose.msra.mxu0 0.0
    %6552 = vmatprep.subr.mxu0 0.0
    %6553 = vmatpush1.xpose.msra.mxu0 0.0
    %6554 = vmatprep.subr.mxu0 0.0
    %6555 = vmatpush1.xpose.msra.mxu0 0.0
    %6556 = vmatprep.subr.mxu0 0.0
    %6557 = vmatpush1.xpose.msra.mxu0 0.0
    %6558 = vmatprep.subr.mxu0 0.0
    %6559 = vmatpush1.xpose.msra.mxu0 0.0
    %6560 = vmatprep.subr.mxu0 0.0
    %6561 = vmatpush1.xpose.msra.mxu0 0.0
    %6562 = vmatprep.subr.mxu0 0.0
    %6563 = vmatpush1.xpose.msra.mxu0 0.0
    %6564 = vmatprep.subr.mxu0 0.0
    %6565 = vmatpush1.xpose.msra.mxu0 0.0
    %6566 = vmatprep.subr.mxu0 0.0
    %6567 = vmatpush1.xpose.msra.mxu0 0.0
    %6568 = vmatprep.subr.mxu0 0.0
    %6569 = vmatpush1.xpose.msra.mxu0 0.0
    %6570 = vmatprep.subr.mxu0 0.0
    %6571 = vmatpush1.xpose.msra.mxu0 0.0
    %6572 = vmatprep.subr.mxu0 0.0
    %6573 = vmatpush1.xpose.msra.mxu0 0.0
    %6574 = vmatprep.subr.mxu0 0.0
    %6575 = vmatpush1.xpose.msra.mxu0 0.0
    %6576 = vmatprep.subr.mxu0 0.0
    %6577 = vmatpush1.xpose.msra.mxu0 0.0
    %6578 = vmatprep.subr.mxu0 0.0
    %6579 = vmatpush1.xpose.msra.mxu0 0.0
    %6580 = vmatprep.subr.mxu0 0.0
    %6581 = vmatpush1.xpose.msra.mxu0 0.0
    %6582 = vmatprep.subr.mxu0 0.0
    %6583 = vmatpush1.xpose.msra.mxu0 0.0
    %6584 = vmatprep.subr.mxu0 0.0
    %6585 = vmatpush1.xpose.msra.mxu0 0.0
    %6586 = vmatprep.subr.mxu0 0.0
    %6587 = vmatpush1.xpose.msra.mxu0 0.0
    %6588 = vmatprep.subr.mxu0 0.0
    %6589 = vmatpush1.xpose.msra.mxu0 0.0
    %6590 = vmatprep.subr.mxu0 0.0
    %6591 = vmatpush1.xpose.msra.mxu0 0.0
    %6592 = vmatprep.subr.mxu0 0.0
    %6593 = vmatpush1.xpose.msra.mxu0 0.0
    %6594 = vmatprep.subr.mxu0 0.0
    %6595 = vmatpush1.xpose.msra.mxu0 0.0
    %6596 = vmatprep.subr.mxu0 0.0
    %6597 = vmatpush1.xpose.msra.mxu0 0.0
    %6598 = vmatprep.subr.mxu0 0.0
    %6599 = vmatpush1.xpose.msra.mxu0 0.0
    %6600 = vmatprep.subr.mxu0 0.0
    %6601 = vmatpush1.xpose.msra.mxu0 0.0
    %6602 = vmatprep.subr.mxu0 0.0
    %6603 = vmatpush1.xpose.msra.mxu0 0.0
    %6604 = vmatprep.mubr.f32.mxu0 0.0
    %6605 = vmatmul.mubr.f32.gmra.mrb[0].mxu0 %v6532
    %v6606 = vpop.f32.mrb[0].mxu0
    %v6607 = vadd.f32 0.0, %v6606
    %v6608 = vpop.f32.mrb[0].mxu0
    %6609 = vmatprep.mubr.f32.mxu0 0.0
    %6610 = vmatmul.mubr.f32.gmra.mrb[0].mxu0 %v6534
    %v6611 = vpop.f32.mrb[0].mxu0
    %v6612 = vadd.f32 0.0, %v6611
    %v6613 = vpop.f32.mrb[0].mxu0
    %6614 = vdwg.mxu0
    %v6615 = vmul.f32 %v6607, 0.35355338
    %v6616 = vmul.f32 %v6612, 0.35355338
    %v6617 = vadd.f32 %v6615, %v386
    %v6618 = vadd.f32 %v6616, %v387
    %v6619 = vsel %vm584, %v6617, -inf
    %6620 = vmax.xlane.f32.xlu0 %v6619
    %v6621 = vpop.xlane.xlu0 %6620
    %v6622 = vsel %vm584, %v6618, -inf
    %6623 = vmax.xlane.f32.xlu0 %v6622
    %v6624 = vpop.xlane.xlu0 %6623
    %v6625 = vsub.f32 %v6617, %v6621
    %v6626 = vsub.f32 %v6618, %v6624
    %v6627 = vmul.f32 %v6625, 1.442695
    %v6628 = vpow.pop %v6627
    %v6629 = vmul.f32 %v6626, 1.442695
    %v6630 = vpow.pop %v6629
    %v6631 = vsel %vm584, %v6628, 0.0
    %6632 = vadd.xlane.f32.xlu0 %v6631
    %v6633 = vpop.xlane.xlu0 %6632
    %v6634 = vsel %vm584, %v6630, 0.0
    %6635 = vadd.xlane.f32.xlu0 %v6634
    %v6636 = vpop.xlane.xlu0 %6635
    %v6637 = vrcp.pop %v6633
    %v6638 = vmul.f32 %v6628, %v6637
    %v6639 = vrcp.pop %v6636
    %v6640 = vmul.f32 %v6630, %v6639
    %6641 = vrot.lane.b32.xlu0 %v6518, 64
    %v6642 = vpop.permute.xlu0 %6641
    %6643 = vrot.lane.b32.xlu0 %v6523, 64
    %v6644 = vpop.permute.xlu0 %6643
    %v6648 = vsel %vm584, %v6638, 0
    %v6651 = vsel %vm584, %v6640, 0
    %6653 = vmatprep.subr.mxu0 0.0
    %6654 = vmatpush1.msra.mxu0 %v6642
    %6655 = vmatprep.subr.mxu0 0.0
    %6656 = vmatpush1.msra.mxu0 %v6644
    %6657 = vmatprep.subr.mxu0 0.0
    %6658 = vmatpush1.msra.mxu0 0.0
    %6659 = vmatprep.subr.mxu0 0.0
    %6660 = vmatpush1.msra.mxu0 0.0
    %6661 = vmatprep.subr.mxu0 0.0
    %6662 = vmatpush1.msra.mxu0 0.0
    %6663 = vmatprep.subr.mxu0 0.0
    %6664 = vmatpush1.msra.mxu0 0.0
    %6665 = vmatprep.subr.mxu0 0.0
    %6666 = vmatpush1.msra.mxu0 0.0
    %6667 = vmatprep.subr.mxu0 0.0
    %6668 = vmatpush1.msra.mxu0 0.0
    %6669 = vmatprep.subr.mxu0 0.0
    %6670 = vmatpush1.msra.mxu0 0.0
    %6671 = vmatprep.subr.mxu0 0.0
    %6672 = vmatpush1.msra.mxu0 0.0
    %6673 = vmatprep.subr.mxu0 0.0
    %6674 = vmatpush1.msra.mxu0 0.0
    %6675 = vmatprep.subr.mxu0 0.0
    %6676 = vmatpush1.msra.mxu0 0.0
    %6677 = vmatprep.subr.mxu0 0.0
    %6678 = vmatpush1.msra.mxu0 0.0
    %6679 = vmatprep.subr.mxu0 0.0
    %6680 = vmatpush1.msra.mxu0 0.0
    %6681 = vmatprep.subr.mxu0 0.0
    %6682 = vmatpush1.msra.mxu0 0.0
    %6683 = vmatprep.subr.mxu0 0.0
    %6684 = vmatpush1.msra.mxu0 0.0
    %6685 = vmatprep.subr.mxu0 0.0
    %6686 = vmatpush1.msra.mxu0 0.0
    %6687 = vmatprep.subr.mxu0 0.0
    %6688 = vmatpush1.msra.mxu0 0.0
    %6689 = vmatprep.subr.mxu0 0.0
    %6690 = vmatpush1.msra.mxu0 0.0
    %6691 = vmatprep.subr.mxu0 0.0
    %6692 = vmatpush1.msra.mxu0 0.0
    %6693 = vmatprep.subr.mxu0 0.0
    %6694 = vmatpush1.msra.mxu0 0.0
    %6695 = vmatprep.subr.mxu0 0.0
    %6696 = vmatpush1.msra.mxu0 0.0
    %6697 = vmatprep.subr.mxu0 0.0
    %6698 = vmatpush1.msra.mxu0 0.0
    %6699 = vmatprep.subr.mxu0 0.0
    %6700 = vmatpush1.msra.mxu0 0.0
    %6701 = vmatprep.subr.mxu0 0.0
    %6702 = vmatpush1.msra.mxu0 0.0
    %6703 = vmatprep.subr.mxu0 0.0
    %6704 = vmatpush1.msra.mxu0 0.0
    %6705 = vmatprep.subr.mxu0 0.0
    %6706 = vmatpush1.msra.mxu0 0.0
    %6707 = vmatprep.subr.mxu0 0.0
    %6708 = vmatpush1.msra.mxu0 0.0
    %6709 = vmatprep.subr.mxu0 0.0
    %6710 = vmatpush1.msra.mxu0 0.0
    %6711 = vmatprep.subr.mxu0 0.0
    %6712 = vmatpush1.msra.mxu0 0.0
    %6713 = vmatprep.subr.mxu0 0.0
    %6714 = vmatpush1.msra.mxu0 0.0
    %6715 = vmatprep.subr.mxu0 0.0
    %6716 = vmatpush1.msra.mxu0 0.0
    %6717 = vmatprep.mubr.f32.mxu0 0.0
    %6718 = vmatmul.mubr.f32.gmra.mrb[0].mxu0 %v6648
    %v6719 = vpop.f32.mrb[0].mxu0
    %v6720 = vadd.f32 0.0, %v6719
    %v6721 = vpop.f32.mrb[0].mxu0
    %6722 = vmatprep.mubr.f32.mxu0 0.0
    %6723 = vmatmul.mubr.f32.gmra.mrb[0].mxu0 %v6651
    %v6724 = vpop.f32.mrb[0].mxu0
    %v6725 = vadd.f32 0.0, %v6724
    %v6726 = vpop.f32.mrb[0].mxu0
    %6727 = vdwg.mxu0
    %6728 = vrot.lane.b32.xlu0 %v6518, 120
    %v6729 = vpop.permute.xlu0 %6728
    %6730 = vrot.lane.b32.xlu0 %v6523, 120
    %v6731 = vpop.permute.xlu0 %6730
    %6732 = vrot.lane.b32.xlu0 %v6518, 88
    %v6733 = vpop.permute.xlu0 %6732
    %6734 = vrot.lane.b32.xlu0 %v6523, 88
    %v6735 = vpop.permute.xlu0 %6734
    %v6736 = vsel %vm496, %v6729, 0
    %v6738 = vsel %vm496, %v6731, 0
    %v6740 = vsel %vm496, %v6733, 0
    %v6742 = vsel %vm496, %v6735, 0
    %6744 = vmatprep.subr.mxu0 0.0
    %6745 = vmatpush1.xpose.msra.mxu0 %v6740
    %6746 = vmatprep.subr.mxu0 0.0
    %6747 = vmatpush1.xpose.msra.mxu0 %v6742
    %6748 = vmatprep.subr.mxu0 0.0
    %6749 = vmatpush1.xpose.msra.mxu0 0.0
    %6750 = vmatprep.subr.mxu0 0.0
    %6751 = vmatpush1.xpose.msra.mxu0 0.0
    %6752 = vmatprep.subr.mxu0 0.0
    %6753 = vmatpush1.xpose.msra.mxu0 0.0
    %6754 = vmatprep.subr.mxu0 0.0
    %6755 = vmatpush1.xpose.msra.mxu0 0.0
    %6756 = vmatprep.subr.mxu0 0.0
    %6757 = vmatpush1.xpose.msra.mxu0 0.0
    %6758 = vmatprep.subr.mxu0 0.0
    %6759 = vmatpush1.xpose.msra.mxu0 0.0
    %6760 = vmatprep.subr.mxu0 0.0
    %6761 = vmatpush1.xpose.msra.mxu0 0.0
    %6762 = vmatprep.subr.mxu0 0.0
    %6763 = vmatpush1.xpose.msra.mxu0 0.0
    %6764 = vmatprep.subr.mxu0 0.0
    %6765 = vmatpush1.xpose.msra.mxu0 0.0
    %6766 = vmatprep.subr.mxu0 0.0
    %6767 = vmatpush1.xpose.msra.mxu0 0.0
    %6768 = vmatprep.subr.mxu0 0.0
    %6769 = vmatpush1.xpose.msra.mxu0 0.0
    %6770 = vmatprep.subr.mxu0 0.0
    %6771 = vmatpush1.xpose.msra.mxu0 0.0
    %6772 = vmatprep.subr.mxu0 0.0
    %6773 = vmatpush1.xpose.msra.mxu0 0.0
    %6774 = vmatprep.subr.mxu0 0.0
    %6775 = vmatpush1.xpose.msra.mxu0 0.0
    %6776 = vmatprep.subr.mxu0 0.0
    %6777 = vmatpush1.xpose.msra.mxu0 0.0
    %6778 = vmatprep.subr.mxu0 0.0
    %6779 = vmatpush1.xpose.msra.mxu0 0.0
    %6780 = vmatprep.subr.mxu0 0.0
    %6781 = vmatpush1.xpose.msra.mxu0 0.0
    %6782 = vmatprep.subr.mxu0 0.0
    %6783 = vmatpush1.xpose.msra.mxu0 0.0
    %6784 = vmatprep.subr.mxu0 0.0
    %6785 = vmatpush1.xpose.msra.mxu0 0.0
    %6786 = vmatprep.subr.mxu0 0.0
    %6787 = vmatpush1.xpose.msra.mxu0 0.0
    %6788 = vmatprep.subr.mxu0 0.0
    %6789 = vmatpush1.xpose.msra.mxu0 0.0
    %6790 = vmatprep.subr.mxu0 0.0
    %6791 = vmatpush1.xpose.msra.mxu0 0.0
    %6792 = vmatprep.subr.mxu0 0.0
    %6793 = vmatpush1.xpose.msra.mxu0 0.0
    %6794 = vmatprep.subr.mxu0 0.0
    %6795 = vmatpush1.xpose.msra.mxu0 0.0
    %6796 = vmatprep.subr.mxu0 0.0
    %6797 = vmatpush1.xpose.msra.mxu0 0.0
    %6798 = vmatprep.subr.mxu0 0.0
    %6799 = vmatpush1.xpose.msra.mxu0 0.0
    %6800 = vmatprep.subr.mxu0 0.0
    %6801 = vmatpush1.xpose.msra.mxu0 0.0
    %6802 = vmatprep.subr.mxu0 0.0
    %6803 = vmatpush1.xpose.msra.mxu0 0.0
    %6804 = vmatprep.subr.mxu0 0.0
    %6805 = vmatpush1.xpose.msra.mxu0 0.0
    %6806 = vmatprep.subr.mxu0 0.0
    %6807 = vmatpush1.xpose.msra.mxu0 0.0
    %6808 = vmatprep.mubr.f32.mxu0 0.0
    %6809 = vmatmul.mubr.f32.gmra.mrb[0].mxu0 %v6736
    %v6810 = vpop.f32.mrb[0].mxu0
    %v6811 = vadd.f32 0.0, %v6810
    %v6812 = vpop.f32.mrb[0].mxu0
    %6813 = vmatprep.mubr.f32.mxu0 0.0
    %6814 = vmatmul.mubr.f32.gmra.mrb[0].mxu0 %v6738
    %v6815 = vpop.f32.mrb[0].mxu0
    %v6816 = vadd.f32 0.0, %v6815
    %v6817 = vpop.f32.mrb[0].mxu0
    %6818 = vdwg.mxu0
    %v6819 = vmul.f32 %v6811, 0.35355338
    %v6820 = vmul.f32 %v6816, 0.35355338
    %v6821 = vadd.f32 %v6819, %v386
    %v6822 = vadd.f32 %v6820, %v387
    %v6823 = vsel %vm584, %v6821, -inf
    %6824 = vmax.xlane.f32.xlu0 %v6823
    %v6825 = vpop.xlane.xlu0 %6824
    %v6826 = vsel %vm584, %v6822, -inf
    %6827 = vmax.xlane.f32.xlu0 %v6826
    %v6828 = vpop.xlane.xlu0 %6827
    %v6829 = vsub.f32 %v6821, %v6825
    %v6830 = vsub.f32 %v6822, %v6828
    %v6831 = vmul.f32 %v6829, 1.442695
    %v6832 = vpow.pop %v6831
    %v6833 = vmul.f32 %v6830, 1.442695
    %v6834 = vpow.pop %v6833
    %v6835 = vsel %vm584, %v6832, 0.0
    %6836 = vadd.xlane.f32.xlu0 %v6835
    %v6837 = vpop.xlane.xlu0 %6836
    %v6838 = vsel %vm584, %v6834, 0.0
    %6839 = vadd.xlane.f32.xlu0 %v6838
    %v6840 = vpop.xlane.xlu0 %6839
    %v6841 = vrcp.pop %v6837
    %v6842 = vmul.f32 %v6832, %v6841
    %v6843 = vrcp.pop %v6840
    %v6844 = vmul.f32 %v6834, %v6843
    %6845 = vrot.lane.b32.xlu0 %v6518, 56
    %v6846 = vpop.permute.xlu0 %6845
    %6847 = vrot.lane.b32.xlu0 %v6523, 56
    %v6848 = vpop.permute.xlu0 %6847
    %v6852 = vsel %vm584, %v6842, 0
    %v6855 = vsel %vm584, %v6844, 0
    %6857 = vmatprep.subr.mxu0 0.0
    %6858 = vmatpush1.msra.mxu0 %v6846
    %6859 = vmatprep.subr.mxu0 0.0
    %6860 = vmatpush1.msra.mxu0 %v6848
    %6861 = vmatprep.subr.mxu0 0.0
    %6862 = vmatpush1.msra.mxu0 0.0
    %6863 = vmatprep.subr.mxu0 0.0
    %6864 = vmatpush1.msra.mxu0 0.0
    %6865 = vmatprep.subr.mxu0 0.0
    %6866 = vmatpush1.msra.mxu0 0.0
    %6867 = vmatprep.subr.mxu0 0.0
    %6868 = vmatpush1.msra.mxu0 0.0
    %6869 = vmatprep.subr.mxu0 0.0
    %6870 = vmatpush1.msra.mxu0 0.0
    %6871 = vmatprep.subr.mxu0 0.0
    %6872 = vmatpush1.msra.mxu0 0.0
    %6873 = vmatprep.subr.mxu0 0.0
    %6874 = vmatpush1.msra.mxu0 0.0
    %6875 = vmatprep.subr.mxu0 0.0
    %6876 = vmatpush1.msra.mxu0 0.0
    %6877 = vmatprep.subr.mxu0 0.0
    %6878 = vmatpush1.msra.mxu0 0.0
    %6879 = vmatprep.subr.mxu0 0.0
    %6880 = vmatpush1.msra.mxu0 0.0
    %6881 = vmatprep.subr.mxu0 0.0
    %6882 = vmatpush1.msra.mxu0 0.0
    %6883 = vmatprep.subr.mxu0 0.0
    %6884 = vmatpush1.msra.mxu0 0.0
    %6885 = vmatprep.subr.mxu0 0.0
    %6886 = vmatpush1.msra.mxu0 0.0
    %6887 = vmatprep.subr.mxu0 0.0
    %6888 = vmatpush1.msra.mxu0 0.0
    %6889 = vmatprep.subr.mxu0 0.0
    %6890 = vmatpush1.msra.mxu0 0.0
    %6891 = vmatprep.subr.mxu0 0.0
    %6892 = vmatpush1.msra.mxu0 0.0
    %6893 = vmatprep.subr.mxu0 0.0
    %6894 = vmatpush1.msra.mxu0 0.0
    %6895 = vmatprep.subr.mxu0 0.0
    %6896 = vmatpush1.msra.mxu0 0.0
    %6897 = vmatprep.subr.mxu0 0.0
    %6898 = vmatpush1.msra.mxu0 0.0
    %6899 = vmatprep.subr.mxu0 0.0
    %6900 = vmatpush1.msra.mxu0 0.0
    %6901 = vmatprep.subr.mxu0 0.0
    %6902 = vmatpush1.msra.mxu0 0.0
    %6903 = vmatprep.subr.mxu0 0.0
    %6904 = vmatpush1.msra.mxu0 0.0
    %6905 = vmatprep.subr.mxu0 0.0
    %6906 = vmatpush1.msra.mxu0 0.0
    %6907 = vmatprep.subr.mxu0 0.0
    %6908 = vmatpush1.msra.mxu0 0.0
    %6909 = vmatprep.subr.mxu0 0.0
    %6910 = vmatpush1.msra.mxu0 0.0
    %6911 = vmatprep.subr.mxu0 0.0
    %6912 = vmatpush1.msra.mxu0 0.0
    %6913 = vmatprep.subr.mxu0 0.0
    %6914 = vmatpush1.msra.mxu0 0.0
    %6915 = vmatprep.subr.mxu0 0.0
    %6916 = vmatpush1.msra.mxu0 0.0
    %6917 = vmatprep.subr.mxu0 0.0
    %6918 = vmatpush1.msra.mxu0 0.0
    %6919 = vmatprep.subr.mxu0 0.0
    %6920 = vmatpush1.msra.mxu0 0.0
    %6921 = vmatprep.mubr.f32.mxu0 0.0
    %6922 = vmatmul.mubr.f32.gmra.mrb[0].mxu0 %v6852
    %v6923 = vpop.f32.mrb[0].mxu0
    %v6924 = vadd.f32 0.0, %v6923
    %v6925 = vpop.f32.mrb[0].mxu0
    %6926 = vmatprep.mubr.f32.mxu0 0.0
    %6927 = vmatmul.mubr.f32.gmra.mrb[0].mxu0 %v6855
    %v6928 = vpop.f32.mrb[0].mxu0
    %v6929 = vadd.f32 0.0, %v6928
    %v6930 = vpop.f32.mrb[0].mxu0
    %6931 = vdwg.mxu0
    %v6933 = vsel %vm496, %v6924, 0
    %v6936 = vsel %vm496, %v6929, 0
    %6938 = vmatprep.subr.mxu0 0.0
    %6939 = vmatpush1.msra.mxu0 %v6434
    %6940 = vmatprep.subr.mxu0 0.0
    %6941 = vmatpush1.msra.mxu0 0.0
    %6942 = vmatprep.subr.mxu0 0.0
    %6943 = vmatpush1.msra.mxu0 0.0
    %6944 = vmatprep.subr.mxu0 0.0
    %6945 = vmatpush1.msra.mxu0 0.0
    %6946 = vmatprep.subr.mxu0 0.0
    %6947 = vmatpush1.msra.mxu0 0.0
    %6948 = vmatprep.subr.mxu0 0.0
    %6949 = vmatpush1.msra.mxu0 0.0
    %6950 = vmatprep.subr.mxu0 0.0
    %6951 = vmatpush1.msra.mxu0 0.0
    %6952 = vmatprep.subr.mxu0 0.0
    %6953 = vmatpush1.msra.mxu0 0.0
    %6954 = vmatprep.subr.mxu0 0.0
    %6955 = vmatpush1.msra.mxu0 0.0
    %6956 = vmatprep.subr.mxu0 0.0
    %6957 = vmatpush1.msra.mxu0 0.0
    %6958 = vmatprep.subr.mxu0 0.0
    %6959 = vmatpush1.msra.mxu0 0.0
    %6960 = vmatprep.subr.mxu0 0.0
    %6961 = vmatpush1.msra.mxu0 0.0
    %6962 = vmatprep.subr.mxu0 0.0
    %6963 = vmatpush1.msra.mxu0 0.0
    %6964 = vmatprep.subr.mxu0 0.0
    %6965 = vmatpush1.msra.mxu0 0.0
    %6966 = vmatprep.subr.mxu0 0.0
    %6967 = vmatpush1.msra.mxu0 0.0
    %6968 = vmatprep.subr.mxu0 0.0
    %6969 = vmatpush1.msra.mxu0 0.0
    %6970 = vmatprep.subr.mxu0 0.0
    %6971 = vmatpush1.msra.mxu0 0.0
    %6972 = vmatprep.subr.mxu0 0.0
    %6973 = vmatpush1.msra.mxu0 0.0
    %6974 = vmatprep.subr.mxu0 0.0
    %6975 = vmatpush1.msra.mxu0 0.0
    %6976 = vmatprep.subr.mxu0 0.0
    %6977 = vmatpush1.msra.mxu0 0.0
    %6978 = vmatprep.subr.mxu0 0.0
    %6979 = vmatpush1.msra.mxu0 0.0
    %6980 = vmatprep.subr.mxu0 0.0
    %6981 = vmatpush1.msra.mxu0 0.0
    %6982 = vmatprep.subr.mxu0 0.0
    %6983 = vmatpush1.msra.mxu0 0.0
    %6984 = vmatprep.subr.mxu0 0.0
    %6985 = vmatpush1.msra.mxu0 0.0
    %6986 = vmatprep.subr.mxu0 0.0
    %6987 = vmatpush1.msra.mxu0 0.0
    %6988 = vmatprep.subr.mxu0 0.0
    %6989 = vmatpush1.msra.mxu0 0.0
    %6990 = vmatprep.subr.mxu0 0.0
    %6991 = vmatpush1.msra.mxu0 0.0
    %6992 = vmatprep.subr.mxu0 0.0
    %6993 = vmatpush1.msra.mxu0 0.0
    %6994 = vmatprep.subr.mxu0 0.0
    %6995 = vmatpush1.msra.mxu0 0.0
    %6996 = vmatprep.subr.mxu0 0.0
    %6997 = vmatpush1.msra.mxu0 0.0
    %6998 = vmatprep.subr.mxu0 0.0
    %6999 = vmatpush1.msra.mxu0 0.0
    %7000 = vmatprep.subr.mxu0 0.0
    %7001 = vmatpush1.msra.mxu0 0.0
    %7002 = vmatprep.mubr.f32.mxu0 0.0
    %7003 = vmatmul.mubr.f32.gmra.mrb[0].mxu0 %v6933
    %v7004 = vpop.f32.mrb[0].mxu0
    %v7005 = vadd.f32 0.0, %v7004
    %v7006 = vpop.f32.mrb[0].mxu0
    %7007 = vmatprep.mubr.f32.mxu0 0.0
    %7008 = vmatmul.mubr.f32.gmra.mrb[0].mxu0 %v6936
    %v7009 = vpop.f32.mrb[0].mxu0
    %v7010 = vadd.f32 0.0, %v7009
    %v7011 = vpop.f32.mrb[0].mxu0
    %7012 = vdwg.mxu0
    %v7014 = vsel %vm496, %v6720, 0
    %v7017 = vsel %vm496, %v6725, 0
    %7019 = vmatprep.subr.mxu0 0.0
    %7020 = vmatpush1.msra.mxu0 %v6433
    %7021 = vmatprep.subr.mxu0 0.0
    %7022 = vmatpush1.msra.mxu0 0.0
    %7023 = vmatprep.subr.mxu0 0.0
    %7024 = vmatpush1.msra.mxu0 0.0
    %7025 = vmatprep.subr.mxu0 0.0
    %7026 = vmatpush1.msra.mxu0 0.0
    %7027 = vmatprep.subr.mxu0 0.0
    %7028 = vmatpush1.msra.mxu0 0.0
    %7029 = vmatprep.subr.mxu0 0.0
    %7030 = vmatpush1.msra.mxu0 0.0
    %7031 = vmatprep.subr.mxu0 0.0
    %7032 = vmatpush1.msra.mxu0 0.0
    %7033 = vmatprep.subr.mxu0 0.0
    %7034 = vmatpush1.msra.mxu0 0.0
    %7035 = vmatprep.subr.mxu0 0.0
    %7036 = vmatpush1.msra.mxu0 0.0
    %7037 = vmatprep.subr.mxu0 0.0
    %7038 = vmatpush1.msra.mxu0 0.0
    %7039 = vmatprep.subr.mxu0 0.0
    %7040 = vmatpush1.msra.mxu0 0.0
    %7041 = vmatprep.subr.mxu0 0.0
    %7042 = vmatpush1.msra.mxu0 0.0
    %7043 = vmatprep.subr.mxu0 0.0
    %7044 = vmatpush1.msra.mxu0 0.0
    %7045 = vmatprep.subr.mxu0 0.0
    %7046 = vmatpush1.msra.mxu0 0.0
    %7047 = vmatprep.subr.mxu0 0.0
    %7048 = vmatpush1.msra.mxu0 0.0
    %7049 = vmatprep.subr.mxu0 0.0
    %7050 = vmatpush1.msra.mxu0 0.0
    %7051 = vmatprep.subr.mxu0 0.0
    %7052 = vmatpush1.msra.mxu0 0.0
    %7053 = vmatprep.subr.mxu0 0.0
    %7054 = vmatpush1.msra.mxu0 0.0
    %7055 = vmatprep.subr.mxu0 0.0
    %7056 = vmatpush1.msra.mxu0 0.0
    %7057 = vmatprep.subr.mxu0 0.0
    %7058 = vmatpush1.msra.mxu0 0.0
    %7059 = vmatprep.subr.mxu0 0.0
    %7060 = vmatpush1.msra.mxu0 0.0
    %7061 = vmatprep.subr.mxu0 0.0
    %7062 = vmatpush1.msra.mxu0 0.0
    %7063 = vmatprep.subr.mxu0 0.0
    %7064 = vmatpush1.msra.mxu0 0.0
    %7065 = vmatprep.subr.mxu0 0.0
    %7066 = vmatpush1.msra.mxu0 0.0
    %7067 = vmatprep.subr.mxu0 0.0
    %7068 = vmatpush1.msra.mxu0 0.0
    %7069 = vmatprep.subr.mxu0 0.0
    %7070 = vmatpush1.msra.mxu0 0.0
    %7071 = vmatprep.subr.mxu0 0.0
    %7072 = vmatpush1.msra.mxu0 0.0
    %7073 = vmatprep.subr.mxu0 0.0
    %7074 = vmatpush1.msra.mxu0 0.0
    %7075 = vmatprep.subr.mxu0 0.0
    %7076 = vmatpush1.msra.mxu0 0.0
    %7077 = vmatprep.subr.mxu0 0.0
    %7078 = vmatpush1.msra.mxu0 0.0
    %7079 = vmatprep.subr.mxu0 0.0
    %7080 = vmatpush1.msra.mxu0 0.0
    %7081 = vmatprep.subr.mxu0 0.0
    %7082 = vmatpush1.msra.mxu0 0.0
    %7083 = vmatprep.mubr.f32.mxu0 0.0
    %7084 = vmatmul.mubr.f32.gmra.mrb[0].mxu0 %v7014
    %v7085 = vpop.f32.mrb[0].mxu0
    %v7086 = vadd.f32 %v7005, %v7085
    %v7087 = vpop.f32.mrb[0].mxu0
    %7088 = vmatprep.mubr.f32.mxu0 0.0
    %7089 = vmatmul.mubr.f32.gmra.mrb[0].mxu0 %v7017
    %v7090 = vpop.f32.mrb[0].mxu0
    %v7091 = vadd.f32 %v7010, %v7090
    %v7092 = vpop.f32.mrb[0].mxu0
    %7093 = vdwg.mxu0
    %7094 = vrot.lane.b32.xlu0 %v6518, 112
    %v7095 = vpop.permute.xlu0 %7094
    %7096 = vrot.lane.b32.xlu0 %v6523, 112
    %v7097 = vpop.permute.xlu0 %7096
    %7098 = vrot.lane.b32.xlu0 %v6518, 80
    %v7099 = vpop.permute.xlu0 %7098
    %7100 = vrot.lane.b32.xlu0 %v6523, 80
    %v7101 = vpop.permute.xlu0 %7100
    %v7102 = vsel %vm496, %v7095, 0
    %v7104 = vsel %vm496, %v7097, 0
    %v7106 = vsel %vm496, %v7099, 0
    %v7108 = vsel %vm496, %v7101, 0
    %7110 = vmatprep.subr.mxu0 0.0
    %7111 = vmatpush1.xpose.msra.mxu0 %v7106
    %7112 = vmatprep.subr.mxu0 0.0
    %7113 = vmatpush1.xpose.msra.mxu0 %v7108
    %7114 = vmatprep.subr.mxu0 0.0
    %7115 = vmatpush1.xpose.msra.mxu0 0.0
    %7116 = vmatprep.subr.mxu0 0.0
    %7117 = vmatpush1.xpose.msra.mxu0 0.0
    %7118 = vmatprep.subr.mxu0 0.0
    %7119 = vmatpush1.xpose.msra.mxu0 0.0
    %7120 = vmatprep.subr.mxu0 0.0
    %7121 = vmatpush1.xpose.msra.mxu0 0.0
    %7122 = vmatprep.subr.mxu0 0.0
    %7123 = vmatpush1.xpose.msra.mxu0 0.0
    %7124 = vmatprep.subr.mxu0 0.0
    %7125 = vmatpush1.xpose.msra.mxu0 0.0
    %7126 = vmatprep.subr.mxu0 0.0
    %7127 = vmatpush1.xpose.msra.mxu0 0.0
    %7128 = vmatprep.subr.mxu0 0.0
    %7129 = vmatpush1.xpose.msra.mxu0 0.0
    %7130 = vmatprep.subr.mxu0 0.0
    %7131 = vmatpush1.xpose.msra.mxu0 0.0
    %7132 = vmatprep.subr.mxu0 0.0
    %7133 = vmatpush1.xpose.msra.mxu0 0.0
    %7134 = vmatprep.subr.mxu0 0.0
    %7135 = vmatpush1.xpose.msra.mxu0 0.0
    %7136 = vmatprep.subr.mxu0 0.0
    %7137 = vmatpush1.xpose.msra.mxu0 0.0
    %7138 = vmatprep.subr.mxu0 0.0
    %7139 = vmatpush1.xpose.msra.mxu0 0.0
    %7140 = vmatprep.subr.mxu0 0.0
    %7141 = vmatpush1.xpose.msra.mxu0 0.0
    %7142 = vmatprep.subr.mxu0 0.0
    %7143 = vmatpush1.xpose.msra.mxu0 0.0
    %7144 = vmatprep.subr.mxu0 0.0
    %7145 = vmatpush1.xpose.msra.mxu0 0.0
    %7146 = vmatprep.subr.mxu0 0.0
    %7147 = vmatpush1.xpose.msra.mxu0 0.0
    %7148 = vmatprep.subr.mxu0 0.0
    %7149 = vmatpush1.xpose.msra.mxu0 0.0
    %7150 = vmatprep.subr.mxu0 0.0
    %7151 = vmatpush1.xpose.msra.mxu0 0.0
    %7152 = vmatprep.subr.mxu0 0.0
    %7153 = vmatpush1.xpose.msra.mxu0 0.0
    %7154 = vmatprep.subr.mxu0 0.0
    %7155 = vmatpush1.xpose.msra.mxu0 0.0
    %7156 = vmatprep.subr.mxu0 0.0
    %7157 = vmatpush1.xpose.msra.mxu0 0.0
    %7158 = vmatprep.subr.mxu0 0.0
    %7159 = vmatpush1.xpose.msra.mxu0 0.0
    %7160 = vmatprep.subr.mxu0 0.0
    %7161 = vmatpush1.xpose.msra.mxu0 0.0
    %7162 = vmatprep.subr.mxu0 0.0
    %7163 = vmatpush1.xpose.msra.mxu0 0.0
    %7164 = vmatprep.subr.mxu0 0.0
    %7165 = vmatpush1.xpose.msra.mxu0 0.0
    %7166 = vmatprep.subr.mxu0 0.0
    %7167 = vmatpush1.xpose.msra.mxu0 0.0
    %7168 = vmatprep.subr.mxu0 0.0
    %7169 = vmatpush1.xpose.msra.mxu0 0.0
    %7170 = vmatprep.subr.mxu0 0.0
    %7171 = vmatpush1.xpose.msra.mxu0 0.0
    %7172 = vmatprep.subr.mxu0 0.0
    %7173 = vmatpush1.xpose.msra.mxu0 0.0
    %7174 = vmatprep.mubr.f32.mxu0 0.0
    %7175 = vmatmul.mubr.f32.gmra.mrb[0].mxu0 %v7102
    %v7176 = vpop.f32.mrb[0].mxu0
    %v7177 = vadd.f32 0.0, %v7176
    %v7178 = vpop.f32.mrb[0].mxu0
    %7179 = vmatprep.mubr.f32.mxu0 0.0
    %7180 = vmatmul.mubr.f32.gmra.mrb[0].mxu0 %v7104
    %v7181 = vpop.f32.mrb[0].mxu0
    %v7182 = vadd.f32 0.0, %v7181
    %v7183 = vpop.f32.mrb[0].mxu0
    %7184 = vdwg.mxu0
    %v7185 = vmul.f32 %v7177, 0.35355338
    %v7186 = vmul.f32 %v7182, 0.35355338
    %v7187 = vadd.f32 %v7185, %v386
    %v7188 = vadd.f32 %v7186, %v387
    %v7189 = vsel %vm584, %v7187, -inf
    %7190 = vmax.xlane.f32.xlu0 %v7189
    %v7191 = vpop.xlane.xlu0 %7190
    %v7192 = vsel %vm584, %v7188, -inf
    %7193 = vmax.xlane.f32.xlu0 %v7192
    %v7194 = vpop.xlane.xlu0 %7193
    %v7195 = vsub.f32 %v7187, %v7191
    %v7196 = vsub.f32 %v7188, %v7194
    %v7197 = vmul.f32 %v7195, 1.442695
    %v7198 = vpow.pop %v7197
    %v7199 = vmul.f32 %v7196, 1.442695
    %v7200 = vpow.pop %v7199
    %v7201 = vsel %vm584, %v7198, 0.0
    %7202 = vadd.xlane.f32.xlu0 %v7201
    %v7203 = vpop.xlane.xlu0 %7202
    %v7204 = vsel %vm584, %v7200, 0.0
    %7205 = vadd.xlane.f32.xlu0 %v7204
    %v7206 = vpop.xlane.xlu0 %7205
    %v7207 = vrcp.pop %v7203
    %v7208 = vmul.f32 %v7198, %v7207
    %v7209 = vrcp.pop %v7206
    %v7210 = vmul.f32 %v7200, %v7209
    %7211 = vrot.lane.b32.xlu0 %v6518, 48
    %v7212 = vpop.permute.xlu0 %7211
    %7213 = vrot.lane.b32.xlu0 %v6523, 48
    %v7214 = vpop.permute.xlu0 %7213
    %v7218 = vsel %vm584, %v7208, 0
    %v7221 = vsel %vm584, %v7210, 0
    %7223 = vmatprep.subr.mxu0 0.0
    %7224 = vmatpush1.msra.mxu0 %v7212
    %7225 = vmatprep.subr.mxu0 0.0
    %7226 = vmatpush1.msra.mxu0 %v7214
    %7227 = vmatprep.subr.mxu0 0.0
    %7228 = vmatpush1.msra.mxu0 0.0
    %7229 = vmatprep.subr.mxu0 0.0
    %7230 = vmatpush1.msra.mxu0 0.0
    %7231 = vmatprep.subr.mxu0 0.0
    %7232 = vmatpush1.msra.mxu0 0.0
    %7233 = vmatprep.subr.mxu0 0.0
    %7234 = vmatpush1.msra.mxu0 0.0
    %7235 = vmatprep.subr.mxu0 0.0
    %7236 = vmatpush1.msra.mxu0 0.0
    %7237 = vmatprep.subr.mxu0 0.0
    %7238 = vmatpush1.msra.mxu0 0.0
    %7239 = vmatprep.subr.mxu0 0.0
    %7240 = vmatpush1.msra.mxu0 0.0
    %7241 = vmatprep.subr.mxu0 0.0
    %7242 = vmatpush1.msra.mxu0 0.0
    %7243 = vmatprep.subr.mxu0 0.0
    %7244 = vmatpush1.msra.mxu0 0.0
    %7245 = vmatprep.subr.mxu0 0.0
    %7246 = vmatpush1.msra.mxu0 0.0
    %7247 = vmatprep.subr.mxu0 0.0
    %7248 = vmatpush1.msra.mxu0 0.0
    %7249 = vmatprep.subr.mxu0 0.0
    %7250 = vmatpush1.msra.mxu0 0.0
    %7251 = vmatprep.subr.mxu0 0.0
    %7252 = vmatpush1.msra.mxu0 0.0
    %7253 = vmatprep.subr.mxu0 0.0
    %7254 = vmatpush1.msra.mxu0 0.0
    %7255 = vmatprep.subr.mxu0 0.0
    %7256 = vmatpush1.msra.mxu0 0.0
    %7257 = vmatprep.subr.mxu0 0.0
    %7258 = vmatpush1.msra.mxu0 0.0
    %7259 = vmatprep.subr.mxu0 0.0
    %7260 = vmatpush1.msra.mxu0 0.0
    %7261 = vmatprep.subr.mxu0 0.0
    %7262 = vmatpush1.msra.mxu0 0.0
    %7263 = vmatprep.subr.mxu0 0.0
    %7264 = vmatpush1.msra.mxu0 0.0
    %7265 = vmatprep.subr.mxu0 0.0
    %7266 = vmatpush1.msra.mxu0 0.0
    %7267 = vmatprep.subr.mxu0 0.0
    %7268 = vmatpush1.msra.mxu0 0.0
    %7269 = vmatprep.subr.mxu0 0.0
    %7270 = vmatpush1.msra.mxu0 0.0
    %7271 = vmatprep.subr.mxu0 0.0
    %7272 = vmatpush1.msra.mxu0 0.0
    %7273 = vmatprep.subr.mxu0 0.0
    %7274 = vmatpush1.msra.mxu0 0.0
    %7275 = vmatprep.subr.mxu0 0.0
    %7276 = vmatpush1.msra.mxu0 0.0
    %7277 = vmatprep.subr.mxu0 0.0
    %7278 = vmatpush1.msra.mxu0 0.0
    %7279 = vmatprep.subr.mxu0 0.0
    %7280 = vmatpush1.msra.mxu0 0.0
    %7281 = vmatprep.subr.mxu0 0.0
    %7282 = vmatpush1.msra.mxu0 0.0
    %7283 = vmatprep.subr.mxu0 0.0
    %7284 = vmatpush1.msra.mxu0 0.0
    %7285 = vmatprep.subr.mxu0 0.0
    %7286 = vmatpush1.msra.mxu0 0.0
    %7287 = vmatprep.mubr.f32.mxu0 0.0
    %7288 = vmatmul.mubr.f32.gmra.mrb[0].mxu0 %v7218
    %v7289 = vpop.f32.mrb[0].mxu0
    %v7290 = vadd.f32 0.0, %v7289
    %v7291 = vpop.f32.mrb[0].mxu0
    %7292 = vmatprep.mubr.f32.mxu0 0.0
    %7293 = vmatmul.mubr.f32.gmra.mrb[0].mxu0 %v7221
    %v7294 = vpop.f32.mrb[0].mxu0
    %v7295 = vadd.f32 0.0, %v7294
    %v7296 = vpop.f32.mrb[0].mxu0
    %7297 = vdwg.mxu0
    %v7299 = vsel %vm496, %v7290, 0
    %v7302 = vsel %vm496, %v7295, 0
    %7304 = vmatprep.subr.mxu0 0.0
    %7305 = vmatpush1.msra.mxu0 %v6435
    %7306 = vmatprep.subr.mxu0 0.0
    %7307 = vmatpush1.msra.mxu0 0.0
    %7308 = vmatprep.subr.mxu0 0.0
    %7309 = vmatpush1.msra.mxu0 0.0
    %7310 = vmatprep.subr.mxu0 0.0
    %7311 = vmatpush1.msra.mxu0 0.0
    %7312 = vmatprep.subr.mxu0 0.0
    %7313 = vmatpush1.msra.mxu0 0.0
    %7314 = vmatprep.subr.mxu0 0.0
    %7315 = vmatpush1.msra.mxu0 0.0
    %7316 = vmatprep.subr.mxu0 0.0
    %7317 = vmatpush1.msra.mxu0 0.0
    %7318 = vmatprep.subr.mxu0 0.0
    %7319 = vmatpush1.msra.mxu0 0.0
    %7320 = vmatprep.subr.mxu0 0.0
    %7321 = vmatpush1.msra.mxu0 0.0
    %7322 = vmatprep.subr.mxu0 0.0
    %7323 = vmatpush1.msra.mxu0 0.0
    %7324 = vmatprep.subr.mxu0 0.0
    %7325 = vmatpush1.msra.mxu0 0.0
    %7326 = vmatprep.subr.mxu0 0.0
    %7327 = vmatpush1.msra.mxu0 0.0
    %7328 = vmatprep.subr.mxu0 0.0
    %7329 = vmatpush1.msra.mxu0 0.0
    %7330 = vmatprep.subr.mxu0 0.0
    %7331 = vmatpush1.msra.mxu0 0.0
    %7332 = vmatprep.subr.mxu0 0.0
    %7333 = vmatpush1.msra.mxu0 0.0
    %7334 = vmatprep.subr.mxu0 0.0
    %7335 = vmatpush1.msra.mxu0 0.0
    %7336 = vmatprep.subr.mxu0 0.0
    %7337 = vmatpush1.msra.mxu0 0.0
    %7338 = vmatprep.subr.mxu0 0.0
    %7339 = vmatpush1.msra.mxu0 0.0
    %7340 = vmatprep.subr.mxu0 0.0
    %7341 = vmatpush1.msra.mxu0 0.0
    %7342 = vmatprep.subr.mxu0 0.0
    %7343 = vmatpush1.msra.mxu0 0.0
    %7344 = vmatprep.subr.mxu0 0.0
    %7345 = vmatpush1.msra.mxu0 0.0
    %7346 = vmatprep.subr.mxu0 0.0
    %7347 = vmatpush1.msra.mxu0 0.0
    %7348 = vmatprep.subr.mxu0 0.0
    %7349 = vmatpush1.msra.mxu0 0.0
    %7350 = vmatprep.subr.mxu0 0.0
    %7351 = vmatpush1.msra.mxu0 0.0
    %7352 = vmatprep.subr.mxu0 0.0
    %7353 = vmatpush1.msra.mxu0 0.0
    %7354 = vmatprep.subr.mxu0 0.0
    %7355 = vmatpush1.msra.mxu0 0.0
    %7356 = vmatprep.subr.mxu0 0.0
    %7357 = vmatpush1.msra.mxu0 0.0
    %7358 = vmatprep.subr.mxu0 0.0
    %7359 = vmatpush1.msra.mxu0 0.0
    %7360 = vmatprep.subr.mxu0 0.0
    %7361 = vmatpush1.msra.mxu0 0.0
    %7362 = vmatprep.subr.mxu0 0.0
    %7363 = vmatpush1.msra.mxu0 0.0
    %7364 = vmatprep.subr.mxu0 0.0
    %7365 = vmatpush1.msra.mxu0 0.0
    %7366 = vmatprep.subr.mxu0 0.0
    %7367 = vmatpush1.msra.mxu0 0.0
    %7368 = vmatprep.mubr.f32.mxu0 0.0
    %7369 = vmatmul.mubr.f32.gmra.mrb[0].mxu0 %v7299
    %v7370 = vpop.f32.mrb[0].mxu0
    %v7371 = vadd.f32 0.0, %v7370
    %v7372 = vpop.f32.mrb[0].mxu0
    %7373 = vmatprep.mubr.f32.mxu0 0.0
    %7374 = vmatmul.mubr.f32.gmra.mrb[0].mxu0 %v7302
    %v7375 = vpop.f32.mrb[0].mxu0
    %v7376 = vadd.f32 0.0, %v7375
    %v7377 = vpop.f32.mrb[0].mxu0
    %7378 = vdwg.mxu0
    %v7379 = vadd.f32 %v7086, %v7371
    %v7380 = vadd.f32 %v7091, %v7376
    %7381 = vrot.lane.b32.xlu0 %v6518, 104
    %v7382 = vpop.permute.xlu0 %7381
    %7383 = vrot.lane.b32.xlu0 %v6523, 104
    %v7384 = vpop.permute.xlu0 %7383
    %7385 = vrot.lane.b32.xlu0 %v6518, 72
    %v7386 = vpop.permute.xlu0 %7385
    %7387 = vrot.lane.b32.xlu0 %v6523, 72
    %v7388 = vpop.permute.xlu0 %7387
    %v7389 = vsel %vm496, %v7382, 0
    %v7391 = vsel %vm496, %v7384, 0
    %v7393 = vsel %vm496, %v7386, 0
    %v7395 = vsel %vm496, %v7388, 0
    %7397 = vmatprep.subr.mxu0 0.0
    %7398 = vmatpush1.xpose.msra.mxu0 %v7393
    %7399 = vmatprep.subr.mxu0 0.0
    %7400 = vmatpush1.xpose.msra.mxu0 %v7395
    %7401 = vmatprep.subr.mxu0 0.0
    %7402 = vmatpush1.xpose.msra.mxu0 0.0
    %7403 = vmatprep.subr.mxu0 0.0
    %7404 = vmatpush1.xpose.msra.mxu0 0.0
    %7405 = vmatprep.subr.mxu0 0.0
    %7406 = vmatpush1.xpose.msra.mxu0 0.0
    %7407 = vmatprep.subr.mxu0 0.0
    %7408 = vmatpush1.xpose.msra.mxu0 0.0
    %7409 = vmatprep.subr.mxu0 0.0
    %7410 = vmatpush1.xpose.msra.mxu0 0.0
    %7411 = vmatprep.subr.mxu0 0.0
    %7412 = vmatpush1.xpose.msra.mxu0 0.0
    %7413 = vmatprep.subr.mxu0 0.0
    %7414 = vmatpush1.xpose.msra.mxu0 0.0
    %7415 = vmatprep.subr.mxu0 0.0
    %7416 = vmatpush1.xpose.msra.mxu0 0.0
    %7417 = vmatprep.subr.mxu0 0.0
    %7418 = vmatpush1.xpose.msra.mxu0 0.0
    %7419 = vmatprep.subr.mxu0 0.0
    %7420 = vmatpush1.xpose.msra.mxu0 0.0
    %7421 = vmatprep.subr.mxu0 0.0
    %7422 = vmatpush1.xpose.msra.mxu0 0.0
    %7423 = vmatprep.subr.mxu0 0.0
    %7424 = vmatpush1.xpose.msra.mxu0 0.0
    %7425 = vmatprep.subr.mxu0 0.0
    %7426 = vmatpush1.xpose.msra.mxu0 0.0
    %7427 = vmatprep.subr.mxu0 0.0
    %7428 = vmatpush1.xpose.msra.mxu0 0.0
    %7429 = vmatprep.subr.mxu0 0.0
    %7430 = vmatpush1.xpose.msra.mxu0 0.0
    %7431 = vmatprep.subr.mxu0 0.0
    %7432 = vmatpush1.xpose.msra.mxu0 0.0
    %7433 = vmatprep.subr.mxu0 0.0
    %7434 = vmatpush1.xpose.msra.mxu0 0.0
    %7435 = vmatprep.subr.mxu0 0.0
    %7436 = vmatpush1.xpose.msra.mxu0 0.0
    %7437 = vmatprep.subr.mxu0 0.0
    %7438 = vmatpush1.xpose.msra.mxu0 0.0
    %7439 = vmatprep.subr.mxu0 0.0
    %7440 = vmatpush1.xpose.msra.mxu0 0.0
    %7441 = vmatprep.subr.mxu0 0.0
    %7442 = vmatpush1.xpose.msra.mxu0 0.0
    %7443 = vmatprep.subr.mxu0 0.0
    %7444 = vmatpush1.xpose.msra.mxu0 0.0
    %7445 = vmatprep.subr.mxu0 0.0
    %7446 = vmatpush1.xpose.msra.mxu0 0.0
    %7447 = vmatprep.subr.mxu0 0.0
    %7448 = vmatpush1.xpose.msra.mxu0 0.0
    %7449 = vmatprep.subr.mxu0 0.0
    %7450 = vmatpush1.xpose.msra.mxu0 0.0
    %7451 = vmatprep.subr.mxu0 0.0
    %7452 = vmatpush1.xpose.msra.mxu0 0.0
    %7453 = vmatprep.subr.mxu0 0.0
    %7454 = vmatpush1.xpose.msra.mxu0 0.0
    %7455 = vmatprep.subr.mxu0 0.0
    %7456 = vmatpush1.xpose.msra.mxu0 0.0
    %7457 = vmatprep.subr.mxu0 0.0
    %7458 = vmatpush1.xpose.msra.mxu0 0.0
    %7459 = vmatprep.subr.mxu0 0.0
    %7460 = vmatpush1.xpose.msra.mxu0 0.0
    %7461 = vmatprep.mubr.f32.mxu0 0.0
    %7462 = vmatmul.mubr.f32.gmra.mrb[0].mxu0 %v7389
    %v7463 = vpop.f32.mrb[0].mxu0
    %v7464 = vadd.f32 0.0, %v7463
    %v7465 = vpop.f32.mrb[0].mxu0
    %7466 = vmatprep.mubr.f32.mxu0 0.0
    %7467 = vmatmul.mubr.f32.gmra.mrb[0].mxu0 %v7391
    %v7468 = vpop.f32.mrb[0].mxu0
    %v7469 = vadd.f32 0.0, %v7468
    %v7470 = vpop.f32.mrb[0].mxu0
    %7471 = vdwg.mxu0
    %v7472 = vmul.f32 %v7464, 0.35355338
    %v7473 = vmul.f32 %v7469, 0.35355338
    %v7474 = vadd.f32 %v7472, %v386
    %v7475 = vadd.f32 %v7473, %v387
    %v7476 = vsel %vm584, %v7474, -inf
    %7477 = vmax.xlane.f32.xlu0 %v7476
    %v7478 = vpop.xlane.xlu0 %7477
    %v7479 = vsel %vm584, %v7475, -inf
    %7480 = vmax.xlane.f32.xlu0 %v7479
    %v7481 = vpop.xlane.xlu0 %7480
    %v7482 = vsub.f32 %v7474, %v7478
    %v7483 = vsub.f32 %v7475, %v7481
    %v7484 = vmul.f32 %v7482, 1.442695
    %v7485 = vpow.pop %v7484
    %v7486 = vmul.f32 %v7483, 1.442695
    %v7487 = vpow.pop %v7486
    %v7488 = vsel %vm584, %v7485, 0.0
    %7489 = vadd.xlane.f32.xlu0 %v7488
    %v7490 = vpop.xlane.xlu0 %7489
    %v7491 = vsel %vm584, %v7487, 0.0
    %7492 = vadd.xlane.f32.xlu0 %v7491
    %v7493 = vpop.xlane.xlu0 %7492
    %v7494 = vrcp.pop %v7490
    %v7495 = vmul.f32 %v7485, %v7494
    %v7496 = vrcp.pop %v7493
    %v7497 = vmul.f32 %v7487, %v7496
    %7498 = vrot.lane.b32.xlu0 %v6518, 40
    %v7499 = vpop.permute.xlu0 %7498
    %7500 = vrot.lane.b32.xlu0 %v6523, 40
    %v7501 = vpop.permute.xlu0 %7500
    %v7505 = vsel %vm584, %v7495, 0
    %v7508 = vsel %vm584, %v7497, 0
    %7510 = vmatprep.subr.mxu0 0.0
    %7511 = vmatpush1.msra.mxu0 %v7499
    %7512 = vmatprep.subr.mxu0 0.0
    %7513 = vmatpush1.msra.mxu0 %v7501
    %7514 = vmatprep.subr.mxu0 0.0
    %7515 = vmatpush1.msra.mxu0 0.0
    %7516 = vmatprep.subr.mxu0 0.0
    %7517 = vmatpush1.msra.mxu0 0.0
    %7518 = vmatprep.subr.mxu0 0.0
    %7519 = vmatpush1.msra.mxu0 0.0
    %7520 = vmatprep.subr.mxu0 0.0
    %7521 = vmatpush1.msra.mxu0 0.0
    %7522 = vmatprep.subr.mxu0 0.0
    %7523 = vmatpush1.msra.mxu0 0.0
    %7524 = vmatprep.subr.mxu0 0.0
    %7525 = vmatpush1.msra.mxu0 0.0
    %7526 = vmatprep.subr.mxu0 0.0
    %7527 = vmatpush1.msra.mxu0 0.0
    %7528 = vmatprep.subr.mxu0 0.0
    %7529 = vmatpush1.msra.mxu0 0.0
    %7530 = vmatprep.subr.mxu0 0.0
    %7531 = vmatpush1.msra.mxu0 0.0
    %7532 = vmatprep.subr.mxu0 0.0
    %7533 = vmatpush1.msra.mxu0 0.0
    %7534 = vmatprep.subr.mxu0 0.0
    %7535 = vmatpush1.msra.mxu0 0.0
    %7536 = vmatprep.subr.mxu0 0.0
    %7537 = vmatpush1.msra.mxu0 0.0
    %7538 = vmatprep.subr.mxu0 0.0
    %7539 = vmatpush1.msra.mxu0 0.0
    %7540 = vmatprep.subr.mxu0 0.0
    %7541 = vmatpush1.msra.mxu0 0.0
    %7542 = vmatprep.subr.mxu0 0.0
    %7543 = vmatpush1.msra.mxu0 0.0
    %7544 = vmatprep.subr.mxu0 0.0
    %7545 = vmatpush1.msra.mxu0 0.0
    %7546 = vmatprep.subr.mxu0 0.0
    %7547 = vmatpush1.msra.mxu0 0.0
    %7548 = vmatprep.subr.mxu0 0.0
    %7549 = vmatpush1.msra.mxu0 0.0
    %7550 = vmatprep.subr.mxu0 0.0
    %7551 = vmatpush1.msra.mxu0 0.0
    %7552 = vmatprep.subr.mxu0 0.0
    %7553 = vmatpush1.msra.mxu0 0.0
    %7554 = vmatprep.subr.mxu0 0.0
    %7555 = vmatpush1.msra.mxu0 0.0
    %7556 = vmatprep.subr.mxu0 0.0
    %7557 = vmatpush1.msra.mxu0 0.0
    %7558 = vmatprep.subr.mxu0 0.0
    %7559 = vmatpush1.msra.mxu0 0.0
    %7560 = vmatprep.subr.mxu0 0.0
    %7561 = vmatpush1.msra.mxu0 0.0
    %7562 = vmatprep.subr.mxu0 0.0
    %7563 = vmatpush1.msra.mxu0 0.0
    %7564 = vmatprep.subr.mxu0 0.0
    %7565 = vmatpush1.msra.mxu0 0.0
    %7566 = vmatprep.subr.mxu0 0.0
    %7567 = vmatpush1.msra.mxu0 0.0
    %7568 = vmatprep.subr.mxu0 0.0
    %7569 = vmatpush1.msra.mxu0 0.0
    %7570 = vmatprep.subr.mxu0 0.0
    %7571 = vmatpush1.msra.mxu0 0.0
    %7572 = vmatprep.subr.mxu0 0.0
    %7573 = vmatpush1.msra.mxu0 0.0
    %7574 = vmatprep.mubr.f32.mxu0 0.0
    %7575 = vmatmul.mubr.f32.gmra.mrb[0].mxu0 %v7505
    %v7576 = vpop.f32.mrb[0].mxu0
    %v7577 = vadd.f32 0.0, %v7576
    %v7578 = vpop.f32.mrb[0].mxu0
    %7579 = vmatprep.mubr.f32.mxu0 0.0
    %7580 = vmatmul.mubr.f32.gmra.mrb[0].mxu0 %v7508
    %v7581 = vpop.f32.mrb[0].mxu0
    %v7582 = vadd.f32 0.0, %v7581
    %v7583 = vpop.f32.mrb[0].mxu0
    %7584 = vdwg.mxu0
    %v7586 = vsel %vm496, %v7577, 0
    %v7589 = vsel %vm496, %v7582, 0
    %7591 = vmatprep.subr.mxu0 0.0
    %7592 = vmatpush1.msra.mxu0 %v6436
    %7593 = vmatprep.subr.mxu0 0.0
    %7594 = vmatpush1.msra.mxu0 0.0
    %7595 = vmatprep.subr.mxu0 0.0
    %7596 = vmatpush1.msra.mxu0 0.0
    %7597 = vmatprep.subr.mxu0 0.0
    %7598 = vmatpush1.msra.mxu0 0.0
    %7599 = vmatprep.subr.mxu0 0.0
    %7600 = vmatpush1.msra.mxu0 0.0
    %7601 = vmatprep.subr.mxu0 0.0
    %7602 = vmatpush1.msra.mxu0 0.0
    %7603 = vmatprep.subr.mxu0 0.0
    %7604 = vmatpush1.msra.mxu0 0.0
    %7605 = vmatprep.subr.mxu0 0.0
    %7606 = vmatpush1.msra.mxu0 0.0
    %7607 = vmatprep.subr.mxu0 0.0
    %7608 = vmatpush1.msra.mxu0 0.0
    %7609 = vmatprep.subr.mxu0 0.0
    %7610 = vmatpush1.msra.mxu0 0.0
    %7611 = vmatprep.subr.mxu0 0.0
    %7612 = vmatpush1.msra.mxu0 0.0
    %7613 = vmatprep.subr.mxu0 0.0
    %7614 = vmatpush1.msra.mxu0 0.0
    %7615 = vmatprep.subr.mxu0 0.0
    %7616 = vmatpush1.msra.mxu0 0.0
    %7617 = vmatprep.subr.mxu0 0.0
    %7618 = vmatpush1.msra.mxu0 0.0
    %7619 = vmatprep.subr.mxu0 0.0
    %7620 = vmatpush1.msra.mxu0 0.0
    %7621 = vmatprep.subr.mxu0 0.0
    %7622 = vmatpush1.msra.mxu0 0.0
    %7623 = vmatprep.subr.mxu0 0.0
    %7624 = vmatpush1.msra.mxu0 0.0
    %7625 = vmatprep.subr.mxu0 0.0
    %7626 = vmatpush1.msra.mxu0 0.0
    %7627 = vmatprep.subr.mxu0 0.0
    %7628 = vmatpush1.msra.mxu0 0.0
    %7629 = vmatprep.subr.mxu0 0.0
    %7630 = vmatpush1.msra.mxu0 0.0
    %7631 = vmatprep.subr.mxu0 0.0
    %7632 = vmatpush1.msra.mxu0 0.0
    %7633 = vmatprep.subr.mxu0 0.0
    %7634 = vmatpush1.msra.mxu0 0.0
    %7635 = vmatprep.subr.mxu0 0.0
    %7636 = vmatpush1.msra.mxu0 0.0
    %7637 = vmatprep.subr.mxu0 0.0
    %7638 = vmatpush1.msra.mxu0 0.0
    %7639 = vmatprep.subr.mxu0 0.0
    %7640 = vmatpush1.msra.mxu0 0.0
    %7641 = vmatprep.subr.mxu0 0.0
    %7642 = vmatpush1.msra.mxu0 0.0
    %7643 = vmatprep.subr.mxu0 0.0
    %7644 = vmatpush1.msra.mxu0 0.0
    %7645 = vmatprep.subr.mxu0 0.0
    %7646 = vmatpush1.msra.mxu0 0.0
    %7647 = vmatprep.subr.mxu0 0.0
    %7648 = vmatpush1.msra.mxu0 0.0
    %7649 = vmatprep.subr.mxu0 0.0
    %7650 = vmatpush1.msra.mxu0 0.0
    %7651 = vmatprep.subr.mxu0 0.0
    %7652 = vmatpush1.msra.mxu0 0.0
    %7653 = vmatprep.subr.mxu0 0.0
    %7654 = vmatpush1.msra.mxu0 0.0
    %7655 = vmatprep.mubr.f32.mxu0 0.0
    %7656 = vmatmul.mubr.f32.gmra.mrb[0].mxu0 %v7586
    %v7657 = vpop.f32.mrb[0].mxu0
    %v7658 = vadd.f32 0.0, %v7657
    %v7659 = vpop.f32.mrb[0].mxu0
    %7660 = vmatprep.mubr.f32.mxu0 0.0
    %7661 = vmatmul.mubr.f32.gmra.mrb[0].mxu0 %v7589
    %v7662 = vpop.f32.mrb[0].mxu0
    %v7663 = vadd.f32 0.0, %v7662
    %v7664 = vpop.f32.mrb[0].mxu0
    %7665 = vdwg.mxu0
    %v7666 = vadd.f32 %v7379, %v7658
    %v7667 = vadd.f32 %v7380, %v7663
    %v7669 = vlaneseq
    %v7670 = vshrl.u32 %v7669, 7
    %v7671 = vsub.s32 0, %v7670
    %v7672 = vrot.slane %v6438, %v7671
    %v7674 = vadd.f32 %v7666, %v7672
    %v7675 = vadd.f32 %v7667, %v7672
    %v7676 = vadd.f32 %v6423, %v7674
    %v7677 = vadd.f32 %v6424, %v7675
    %s7678 = scalar_lea.vmem %s67, 1
    %v7679 = vld [vmem:[%s7678] sm:$0x1]
    %s7680 = scalar_lea.vmem %s69, 1
    %v7681 = vld [vmem:[%s7680] sm:$0x1]
    %v7682 = vsel %vm408, %v7676, 0.0
    %7683 = vadd.xlane.f32.xlu0 %v7682
    %v7684 = vpop.xlane.xlu0 %7683
    %v7685 = vsel %vm408, %v7677, 0.0
    %7686 = vadd.xlane.f32.xlu0 %v7685
    %v7687 = vpop.xlane.xlu0 %7686
    %v7688 = vmul.f32 %v7684, %v1652
    %v7689 = vmul.f32 %v7687, %v1652
    %v7690 = vsub.f32 %v7676, %v7688
    %v7691 = vsub.f32 %v7677, %v7689
    %v7692 = vmul.f32 %v7690, %v7690
    %v7693 = vmul.f32 %v7691, %v7691
    %v7694 = vsel %vm408, %v7692, 0.0
    %7695 = vadd.xlane.f32.xlu0 %v7694
    %v7696 = vpop.xlane.xlu0 %7695
    %v7697 = vsel %vm408, %v7693, 0.0
    %7698 = vadd.xlane.f32.xlu0 %v7697
    %v7699 = vpop.xlane.xlu0 %7698
    %v7700 = vmul.f32 %v7696, %v1652
    %v7701 = vmul.f32 %v7699, %v1652
    %v7702 = vadd.f32 %v7700, 1e-05
    %v7703 = vadd.f32 %v7701, 1e-05
    %v7704 = vrsqrt.pop %v7702
    %v7705 = vrsqrt.pop %v7703
    %v7706 = vmul.f32 %v7690, %v7704
    %v7707 = vmul.f32 %v7691, %v7705
    %v7709 = vlaneseq
    %v7710 = vshrl.u32 %v7709, 7
    %v7711 = vsub.s32 0, %v7710
    %v7712 = vrot.slane %v7679, %v7711
    %v7714 = vmul.f32 %v7706, %v7712
    %v7715 = vmul.f32 %v7707, %v7712
    %v7717 = vlaneseq
    %v7718 = vshrl.u32 %v7717, 7
    %v7719 = vsub.s32 0, %v7718
    %v7720 = vrot.slane %v7681, %v7719
    %v7722 = vadd.f32 %v7714, %v7720
    %v7723 = vadd.f32 %v7715, %v7720
    %s7724 = scalar_lea.vmem %s47, 32
    %v7725 = vld [vmem:[%s7724] sm:$0xff]
    %v7726 = vld [vmem:[%s7724 + $0x8] sm:$0xff]
    %v7727 = vld [vmem:[%s7724 + $0x10] sm:$0xff]
    %v7728 = vld [vmem:[%s7724 + $0x18] sm:$0xff]
    %s7729 = scalar_lea.vmem %s49, 1
    %v7730 = vld [vmem:[%s7729] sm:$0x1]
    %s7731 = scalar_lea.vmem [#allocation23], 32
    %v7732 = vld [vmem:[%s7731] sm:$0xff]
    %v7733 = vld [vmem:[%s7731 + $0x8] sm:$0xff]
    %v7734 = vld [vmem:[%s7731 + $0x10] sm:$0xff]
    %v7735 = vld [vmem:[%s7731 + $0x18] sm:$0xff]
    %s7736 = scalar_lea.vmem %s53, 1
    %v7737 = vld [vmem:[%s7736] sm:$0x1]
    %s7738 = scalar_lea.vmem [#allocation25], 32
    %v7739 = vld [vmem:[%s7738] sm:$0xff]
    %v7740 = vld [vmem:[%s7738 + $0x8] sm:$0xff]
    %v7741 = vld [vmem:[%s7738 + $0x10] sm:$0xff]
    %v7742 = vld [vmem:[%s7738 + $0x18] sm:$0xff]
    %s7743 = scalar_lea.vmem %s57, 1
    %v7744 = vld [vmem:[%s7743] sm:$0x1]
    %v7746 = vlaneseq
    %v7747 = vshrl.u32 %v7746, 7
    %v7748 = vsub.s32 0, %v7747
    %v7749 = vrot.slane %v7730, %v7748
    %v7752 = vsel %vm408, %v7722, 0
    %v7755 = vsel %vm408, %v7723, 0
    %7757 = vmatprep.subr.mxu0 0.0
    %7758 = vmatpush1.msra.mxu0 %v7725
    %7759 = vmatprep.subr.mxu0 0.0
    %7760 = vmatpush1.msra.mxu0 %v7726
    %7761 = vmatprep.subr.mxu0 0.0
    %7762 = vmatpush1.msra.mxu0 %v7727
    %7763 = vmatprep.subr.mxu0 0.0
    %7764 = vmatpush1.msra.mxu0 %v7728
    %7765 = vmatprep.subr.mxu0 0.0
    %7766 = vmatpush1.msra.mxu0 0.0
    %7767 = vmatprep.subr.mxu0 0.0
    %7768 = vmatpush1.msra.mxu0 0.0
    %7769 = vmatprep.subr.mxu0 0.0
    %7770 = vmatpush1.msra.mxu0 0.0
    %7771 = vmatprep.subr.mxu0 0.0
    %7772 = vmatpush1.msra.mxu0 0.0
    %7773 = vmatprep.subr.mxu0 0.0
    %7774 = vmatpush1.msra.mxu0 0.0
    %7775 = vmatprep.subr.mxu0 0.0
    %7776 = vmatpush1.msra.mxu0 0.0
    %7777 = vmatprep.subr.mxu0 0.0
    %7778 = vmatpush1.msra.mxu0 0.0
    %7779 = vmatprep.subr.mxu0 0.0
    %7780 = vmatpush1.msra.mxu0 0.0
    %7781 = vmatprep.subr.mxu0 0.0
    %7782 = vmatpush1.msra.mxu0 0.0
    %7783 = vmatprep.subr.mxu0 0.0
    %7784 = vmatpush1.msra.mxu0 0.0
    %7785 = vmatprep.subr.mxu0 0.0
    %7786 = vmatpush1.msra.mxu0 0.0
    %7787 = vmatprep.subr.mxu0 0.0
    %7788 = vmatpush1.msra.mxu0 0.0
    %7789 = vmatprep.subr.mxu0 0.0
    %7790 = vmatpush1.msra.mxu0 0.0
    %7791 = vmatprep.subr.mxu0 0.0
    %7792 = vmatpush1.msra.mxu0 0.0
    %7793 = vmatprep.subr.mxu0 0.0
    %7794 = vmatpush1.msra.mxu0 0.0
    %7795 = vmatprep.subr.mxu0 0.0
    %7796 = vmatpush1.msra.mxu0 0.0
    %7797 = vmatprep.subr.mxu0 0.0
    %7798 = vmatpush1.msra.mxu0 0.0
    %7799 = vmatprep.subr.mxu0 0.0
    %7800 = vmatpush1.msra.mxu0 0.0
    %7801 = vmatprep.subr.mxu0 0.0
    %7802 = vmatpush1.msra.mxu0 0.0
    %7803 = vmatprep.subr.mxu0 0.0
    %7804 = vmatpush1.msra.mxu0 0.0
    %7805 = vmatprep.subr.mxu0 0.0
    %7806 = vmatpush1.msra.mxu0 0.0
    %7807 = vmatprep.subr.mxu0 0.0
    %7808 = vmatpush1.msra.mxu0 0.0
    %7809 = vmatprep.subr.mxu0 0.0
    %7810 = vmatpush1.msra.mxu0 0.0
    %7811 = vmatprep.subr.mxu0 0.0
    %7812 = vmatpush1.msra.mxu0 0.0
    %7813 = vmatprep.subr.mxu0 0.0
    %7814 = vmatpush1.msra.mxu0 0.0
    %7815 = vmatprep.subr.mxu0 0.0
    %7816 = vmatpush1.msra.mxu0 0.0
    %7817 = vmatprep.subr.mxu0 0.0
    %7818 = vmatpush1.msra.mxu0 0.0
    %7819 = vmatprep.subr.mxu0 0.0
    %7820 = vmatpush1.msra.mxu0 0.0
    %7821 = vmatprep.mubr.f32.mxu0 0.0
    %7822 = vmatmul.mubr.f32.gmra.mrb[0].mxu0 %v7752
    %v7823 = vpop.f32.mrb[0].mxu0
    %v7824 = vadd.f32 %v7749, %v7823
    %v7825 = vpop.f32.mrb[0].mxu0
    %7826 = vmatprep.mubr.f32.mxu0 0.0
    %7827 = vmatmul.mubr.f32.gmra.mrb[0].mxu0 %v7755
    %v7828 = vpop.f32.mrb[0].mxu0
    %v7829 = vadd.f32 %v7749, %v7828
    %v7830 = vpop.f32.mrb[0].mxu0
    %7831 = vdwg.mxu0
    %v7833 = vlaneseq
    %v7834 = vshrl.u32 %v7833, 7
    %v7835 = vsub.s32 0, %v7834
    %v7836 = vrot.slane %v7737, %v7835
    %7838 = vmatprep.subr.mxu0 0.0
    %7839 = vmatpush1.msra.mxu0 %v7732
    %7840 = vmatprep.subr.mxu0 0.0
    %7841 = vmatpush1.msra.mxu0 %v7733
    %7842 = vmatprep.subr.mxu0 0.0
    %7843 = vmatpush1.msra.mxu0 %v7734
    %7844 = vmatprep.subr.mxu0 0.0
    %7845 = vmatpush1.msra.mxu0 %v7735
    %7846 = vmatprep.subr.mxu0 0.0
    %7847 = vmatpush1.msra.mxu0 0.0
    %7848 = vmatprep.subr.mxu0 0.0
    %7849 = vmatpush1.msra.mxu0 0.0
    %7850 = vmatprep.subr.mxu0 0.0
    %7851 = vmatpush1.msra.mxu0 0.0
    %7852 = vmatprep.subr.mxu0 0.0
    %7853 = vmatpush1.msra.mxu0 0.0
    %7854 = vmatprep.subr.mxu0 0.0
    %7855 = vmatpush1.msra.mxu0 0.0
    %7856 = vmatprep.subr.mxu0 0.0
    %7857 = vmatpush1.msra.mxu0 0.0
    %7858 = vmatprep.subr.mxu0 0.0
    %7859 = vmatpush1.msra.mxu0 0.0
    %7860 = vmatprep.subr.mxu0 0.0
    %7861 = vmatpush1.msra.mxu0 0.0
    %7862 = vmatprep.subr.mxu0 0.0
    %7863 = vmatpush1.msra.mxu0 0.0
    %7864 = vmatprep.subr.mxu0 0.0
    %7865 = vmatpush1.msra.mxu0 0.0
    %7866 = vmatprep.subr.mxu0 0.0
    %7867 = vmatpush1.msra.mxu0 0.0
    %7868 = vmatprep.subr.mxu0 0.0
    %7869 = vmatpush1.msra.mxu0 0.0
    %7870 = vmatprep.subr.mxu0 0.0
    %7871 = vmatpush1.msra.mxu0 0.0
    %7872 = vmatprep.subr.mxu0 0.0
    %7873 = vmatpush1.msra.mxu0 0.0
    %7874 = vmatprep.subr.mxu0 0.0
    %7875 = vmatpush1.msra.mxu0 0.0
    %7876 = vmatprep.subr.mxu0 0.0
    %7877 = vmatpush1.msra.mxu0 0.0
    %7878 = vmatprep.subr.mxu0 0.0
    %7879 = vmatpush1.msra.mxu0 0.0
    %7880 = vmatprep.subr.mxu0 0.0
    %7881 = vmatpush1.msra.mxu0 0.0
    %7882 = vmatprep.subr.mxu0 0.0
    %7883 = vmatpush1.msra.mxu0 0.0
    %7884 = vmatprep.subr.mxu0 0.0
    %7885 = vmatpush1.msra.mxu0 0.0
    %7886 = vmatprep.subr.mxu0 0.0
    %7887 = vmatpush1.msra.mxu0 0.0
    %7888 = vmatprep.subr.mxu0 0.0
    %7889 = vmatpush1.msra.mxu0 0.0
    %7890 = vmatprep.subr.mxu0 0.0
    %7891 = vmatpush1.msra.mxu0 0.0
    %7892 = vmatprep.subr.mxu0 0.0
    %7893 = vmatpush1.msra.mxu0 0.0
    %7894 = vmatprep.subr.mxu0 0.0
    %7895 = vmatpush1.msra.mxu0 0.0
    %7896 = vmatprep.subr.mxu0 0.0
    %7897 = vmatpush1.msra.mxu0 0.0
    %7898 = vmatprep.subr.mxu0 0.0
    %7899 = vmatpush1.msra.mxu0 0.0
    %7900 = vmatprep.subr.mxu0 0.0
    %7901 = vmatpush1.msra.mxu0 0.0
    %7902 = vmatprep.mubr.f32.mxu0 0.0
    %7903 = vmatmul.mubr.f32.gmra.mrb[0].mxu0 %v4915
    %v7904 = vpop.f32.mrb[0].mxu0
    %v7905 = vadd.f32 %v7836, %v7904
    %v7906 = vpop.f32.mrb[0].mxu0
    %7907 = vmatprep.mubr.f32.mxu0 0.0
    %7908 = vmatmul.mubr.f32.gmra.mrb[0].mxu0 %v4918
    %v7909 = vpop.f32.mrb[0].mxu0
    %v7910 = vadd.f32 %v7836, %v7909
    %v7911 = vpop.f32.mrb[0].mxu0
    %7912 = vdwg.mxu0
    %v7914 = vsel %vm496, %v7824, 0
    %v7917 = vsel %vm496, %v7829, 0
    %v7920 = vsel %vm496, %v7905, 0
    %v7923 = vsel %vm496, %v7910, 0
    %7925 = vmatprep.subr.mxu0 0.0
    %7926 = vmatpush1.xpose.msra.mxu0 %v7920
    %7927 = vmatprep.subr.mxu0 0.0
    %7928 = vmatpush1.xpose.msra.mxu0 %v7923
    %7929 = vmatprep.subr.mxu0 0.0
    %7930 = vmatpush1.xpose.msra.mxu0 0.0
    %7931 = vmatprep.subr.mxu0 0.0
    %7932 = vmatpush1.xpose.msra.mxu0 0.0
    %7933 = vmatprep.subr.mxu0 0.0
    %7934 = vmatpush1.xpose.msra.mxu0 0.0
    %7935 = vmatprep.subr.mxu0 0.0
    %7936 = vmatpush1.xpose.msra.mxu0 0.0
    %7937 = vmatprep.subr.mxu0 0.0
    %7938 = vmatpush1.xpose.msra.mxu0 0.0
    %7939 = vmatprep.subr.mxu0 0.0
    %7940 = vmatpush1.xpose.msra.mxu0 0.0
    %7941 = vmatprep.subr.mxu0 0.0
    %7942 = vmatpush1.xpose.msra.mxu0 0.0
    %7943 = vmatprep.subr.mxu0 0.0
    %7944 = vmatpush1.xpose.msra.mxu0 0.0
    %7945 = vmatprep.subr.mxu0 0.0
    %7946 = vmatpush1.xpose.msra.mxu0 0.0
    %7947 = vmatprep.subr.mxu0 0.0
    %7948 = vmatpush1.xpose.msra.mxu0 0.0
    %7949 = vmatprep.subr.mxu0 0.0
    %7950 = vmatpush1.xpose.msra.mxu0 0.0
    %7951 = vmatprep.subr.mxu0 0.0
    %7952 = vmatpush1.xpose.msra.mxu0 0.0
    %7953 = vmatprep.subr.mxu0 0.0
    %7954 = vmatpush1.xpose.msra.mxu0 0.0
    %7955 = vmatprep.subr.mxu0 0.0
    %7956 = vmatpush1.xpose.msra.mxu0 0.0
    %7957 = vmatprep.subr.mxu0 0.0
    %7958 = vmatpush1.xpose.msra.mxu0 0.0
    %7959 = vmatprep.subr.mxu0 0.0
    %7960 = vmatpush1.xpose.msra.mxu0 0.0
    %7961 = vmatprep.subr.mxu0 0.0
    %7962 = vmatpush1.xpose.msra.mxu0 0.0
    %7963 = vmatprep.subr.mxu0 0.0
    %7964 = vmatpush1.xpose.msra.mxu0 0.0
    %7965 = vmatprep.subr.mxu0 0.0
    %7966 = vmatpush1.xpose.msra.mxu0 0.0
    %7967 = vmatprep.subr.mxu0 0.0
    %7968 = vmatpush1.xpose.msra.mxu0 0.0
    %7969 = vmatprep.subr.mxu0 0.0
    %7970 = vmatpush1.xpose.msra.mxu0 0.0
    %7971 = vmatprep.subr.mxu0 0.0
    %7972 = vmatpush1.xpose.msra.mxu0 0.0
    %7973 = vmatprep.subr.mxu0 0.0
    %7974 = vmatpush1.xpose.msra.mxu0 0.0
    %7975 = vmatprep.subr.mxu0 0.0
    %7976 = vmatpush1.xpose.msra.mxu0 0.0
    %7977 = vmatprep.subr.mxu0 0.0
    %7978 = vmatpush1.xpose.msra.mxu0 0.0
    %7979 = vmatprep.subr.mxu0 0.0
    %7980 = vmatpush1.xpose.msra.mxu0 0.0
    %7981 = vmatprep.subr.mxu0 0.0
    %7982 = vmatpush1.xpose.msra.mxu0 0.0
    %7983 = vmatprep.subr.mxu0 0.0
    %7984 = vmatpush1.xpose.msra.mxu0 0.0
    %7985 = vmatprep.subr.mxu0 0.0
    %7986 = vmatpush1.xpose.msra.mxu0 0.0
    %7987 = vmatprep.subr.mxu0 0.0
    %7988 = vmatpush1.xpose.msra.mxu0 0.0
    %7989 = vmatprep.mubr.f32.mxu0 0.0
    %7990 = vmatmul.mubr.f32.gmra.mrb[0].mxu0 %v7914
    %v7991 = vpop.f32.mrb[0].mxu0
    %v7992 = vadd.f32 0.0, %v7991
    %v7993 = vpop.f32.mrb[0].mxu0
    %7994 = vmatprep.mubr.f32.mxu0 0.0
    %7995 = vmatmul.mubr.f32.gmra.mrb[0].mxu0 %v7917
    %v7996 = vpop.f32.mrb[0].mxu0
    %v7997 = vadd.f32 0.0, %v7996
    %v7998 = vpop.f32.mrb[0].mxu0
    %7999 = vdwg.mxu0
    %v8000 = vmul.f32 %v7992, 0.35355338
    %v8001 = vmul.f32 %v7997, 0.35355338
    %v8002 = vadd.f32 %v8000, %v388
    %v8003 = vadd.f32 %v8001, %v389
    %v8004 = vsel %vm584, %v8002, -inf
    %8005 = vmax.xlane.f32.xlu0 %v8004
    %v8006 = vpop.xlane.xlu0 %8005
    %v8007 = vsel %vm584, %v8003, -inf
    %8008 = vmax.xlane.f32.xlu0 %v8007
    %v8009 = vpop.xlane.xlu0 %8008
    %v8010 = vsub.f32 %v8002, %v8006
    %v8011 = vsub.f32 %v8003, %v8009
    %v8012 = vmul.f32 %v8010, 1.442695
    %v8013 = vpow.pop %v8012
    %v8014 = vmul.f32 %v8011, 1.442695
    %v8015 = vpow.pop %v8014
    %v8016 = vsel %vm584, %v8013, 0.0
    %8017 = vadd.xlane.f32.xlu0 %v8016
    %v8018 = vpop.xlane.xlu0 %8017
    %v8019 = vsel %vm584, %v8015, 0.0
    %8020 = vadd.xlane.f32.xlu0 %v8019
    %v8021 = vpop.xlane.xlu0 %8020
    %v8022 = vrcp.pop %v8018
    %v8023 = vmul.f32 %v8013, %v8022
    %v8024 = vrcp.pop %v8021
    %v8025 = vmul.f32 %v8015, %v8024
    %8026 = vrot.lane.b32.xlu0 %v7905, 96
    %v8027 = vpop.permute.xlu0 %8026
    %8028 = vrot.lane.b32.xlu0 %v7910, 96
    %v8029 = vpop.permute.xlu0 %8028
    %v8033 = vsel %vm584, %v8023, 0
    %v8036 = vsel %vm584, %v8025, 0
    %8038 = vmatprep.subr.mxu0 0.0
    %8039 = vmatpush1.msra.mxu0 %v8027
    %8040 = vmatprep.subr.mxu0 0.0
    %8041 = vmatpush1.msra.mxu0 %v8029
    %8042 = vmatprep.subr.mxu0 0.0
    %8043 = vmatpush1.msra.mxu0 0.0
    %8044 = vmatprep.subr.mxu0 0.0
    %8045 = vmatpush1.msra.mxu0 0.0
    %8046 = vmatprep.subr.mxu0 0.0
    %8047 = vmatpush1.msra.mxu0 0.0
    %8048 = vmatprep.subr.mxu0 0.0
    %8049 = vmatpush1.msra.mxu0 0.0
    %8050 = vmatprep.subr.mxu0 0.0
    %8051 = vmatpush1.msra.mxu0 0.0
    %8052 = vmatprep.subr.mxu0 0.0
    %8053 = vmatpush1.msra.mxu0 0.0
    %8054 = vmatprep.subr.mxu0 0.0
    %8055 = vmatpush1.msra.mxu0 0.0
    %8056 = vmatprep.subr.mxu0 0.0
    %8057 = vmatpush1.msra.mxu0 0.0
    %8058 = vmatprep.subr.mxu0 0.0
    %8059 = vmatpush1.msra.mxu0 0.0
    %8060 = vmatprep.subr.mxu0 0.0
    %8061 = vmatpush1.msra.mxu0 0.0
    %8062 = vmatprep.subr.mxu0 0.0
    %8063 = vmatpush1.msra.mxu0 0.0
    %8064 = vmatprep.subr.mxu0 0.0
    %8065 = vmatpush1.msra.mxu0 0.0
    %8066 = vmatprep.subr.mxu0 0.0
    %8067 = vmatpush1.msra.mxu0 0.0
    %8068 = vmatprep.subr.mxu0 0.0
    %8069 = vmatpush1.msra.mxu0 0.0
    %8070 = vmatprep.subr.mxu0 0.0
    %8071 = vmatpush1.msra.mxu0 0.0
    %8072 = vmatprep.subr.mxu0 0.0
    %8073 = vmatpush1.msra.mxu0 0.0
    %8074 = vmatprep.subr.mxu0 0.0
    %8075 = vmatpush1.msra.mxu0 0.0
    %8076 = vmatprep.subr.mxu0 0.0
    %8077 = vmatpush1.msra.mxu0 0.0
    %8078 = vmatprep.subr.mxu0 0.0
    %8079 = vmatpush1.msra.mxu0 0.0
    %8080 = vmatprep.subr.mxu0 0.0
    %8081 = vmatpush1.msra.mxu0 0.0
    %8082 = vmatprep.subr.mxu0 0.0
    %8083 = vmatpush1.msra.mxu0 0.0
    %8084 = vmatprep.subr.mxu0 0.0
    %8085 = vmatpush1.msra.mxu0 0.0
    %8086 = vmatprep.subr.mxu0 0.0
    %8087 = vmatpush1.msra.mxu0 0.0
    %8088 = vmatprep.subr.mxu0 0.0
    %8089 = vmatpush1.msra.mxu0 0.0
    %8090 = vmatprep.subr.mxu0 0.0
    %8091 = vmatpush1.msra.mxu0 0.0
    %8092 = vmatprep.subr.mxu0 0.0
    %8093 = vmatpush1.msra.mxu0 0.0
    %8094 = vmatprep.subr.mxu0 0.0
    %8095 = vmatpush1.msra.mxu0 0.0
    %8096 = vmatprep.subr.mxu0 0.0
    %8097 = vmatpush1.msra.mxu0 0.0
    %8098 = vmatprep.subr.mxu0 0.0
    %8099 = vmatpush1.msra.mxu0 0.0
    %8100 = vmatprep.subr.mxu0 0.0
    %8101 = vmatpush1.msra.mxu0 0.0
    %8102 = vmatprep.mubr.f32.mxu0 0.0
    %8103 = vmatmul.mubr.f32.gmra.mrb[0].mxu0 %v8033
    %v8104 = vpop.f32.mrb[0].mxu0
    %v8105 = vadd.f32 0.0, %v8104
    %v8106 = vpop.f32.mrb[0].mxu0
    %8107 = vmatprep.mubr.f32.mxu0 0.0
    %8108 = vmatmul.mubr.f32.gmra.mrb[0].mxu0 %v8036
    %v8109 = vpop.f32.mrb[0].mxu0
    %v8110 = vadd.f32 0.0, %v8109
    %v8111 = vpop.f32.mrb[0].mxu0
    %8112 = vdwg.mxu0
    %8113 = vrot.lane.b32.xlu0 %v7824, 120
    %v8114 = vpop.permute.xlu0 %8113
    %8115 = vrot.lane.b32.xlu0 %v7829, 120
    %v8116 = vpop.permute.xlu0 %8115
    %8117 = vrot.lane.b32.xlu0 %v7905, 120
    %v8118 = vpop.permute.xlu0 %8117
    %8119 = vrot.lane.b32.xlu0 %v7910, 120
    %v8120 = vpop.permute.xlu0 %8119
    %v8121 = vsel %vm496, %v8114, 0
    %v8123 = vsel %vm496, %v8116, 0
    %v8125 = vsel %vm496, %v8118, 0
    %v8127 = vsel %vm496, %v8120, 0
    %8129 = vmatprep.subr.mxu0 0.0
    %8130 = vmatpush1.xpose.msra.mxu0 %v8125
    %8131 = vmatprep.subr.mxu0 0.0
    %8132 = vmatpush1.xpose.msra.mxu0 %v8127
    %8133 = vmatprep.subr.mxu0 0.0
    %8134 = vmatpush1.xpose.msra.mxu0 0.0
    %8135 = vmatprep.subr.mxu0 0.0
    %8136 = vmatpush1.xpose.msra.mxu0 0.0
    %8137 = vmatprep.subr.mxu0 0.0
    %8138 = vmatpush1.xpose.msra.mxu0 0.0
    %8139 = vmatprep.subr.mxu0 0.0
    %8140 = vmatpush1.xpose.msra.mxu0 0.0
    %8141 = vmatprep.subr.mxu0 0.0
    %8142 = vmatpush1.xpose.msra.mxu0 0.0
    %8143 = vmatprep.subr.mxu0 0.0
    %8144 = vmatpush1.xpose.msra.mxu0 0.0
    %8145 = vmatprep.subr.mxu0 0.0
    %8146 = vmatpush1.xpose.msra.mxu0 0.0
    %8147 = vmatprep.subr.mxu0 0.0
    %8148 = vmatpush1.xpose.msra.mxu0 0.0
    %8149 = vmatprep.subr.mxu0 0.0
    %8150 = vmatpush1.xpose.msra.mxu0 0.0
    %8151 = vmatprep.subr.mxu0 0.0
    %8152 = vmatpush1.xpose.msra.mxu0 0.0
    %8153 = vmatprep.subr.mxu0 0.0
    %8154 = vmatpush1.xpose.msra.mxu0 0.0
    %8155 = vmatprep.subr.mxu0 0.0
    %8156 = vmatpush1.xpose.msra.mxu0 0.0
    %8157 = vmatprep.subr.mxu0 0.0
    %8158 = vmatpush1.xpose.msra.mxu0 0.0
    %8159 = vmatprep.subr.mxu0 0.0
    %8160 = vmatpush1.xpose.msra.mxu0 0.0
    %8161 = vmatprep.subr.mxu0 0.0
    %8162 = vmatpush1.xpose.msra.mxu0 0.0
    %8163 = vmatprep.subr.mxu0 0.0
    %8164 = vmatpush1.xpose.msra.mxu0 0.0
    %8165 = vmatprep.subr.mxu0 0.0
    %8166 = vmatpush1.xpose.msra.mxu0 0.0
    %8167 = vmatprep.subr.mxu0 0.0
    %8168 = vmatpush1.xpose.msra.mxu0 0.0
    %8169 = vmatprep.subr.mxu0 0.0
    %8170 = vmatpush1.xpose.msra.mxu0 0.0
    %8171 = vmatprep.subr.mxu0 0.0
    %8172 = vmatpush1.xpose.msra.mxu0 0.0
    %8173 = vmatprep.subr.mxu0 0.0
    %8174 = vmatpush1.xpose.msra.mxu0 0.0
    %8175 = vmatprep.subr.mxu0 0.0
    %8176 = vmatpush1.xpose.msra.mxu0 0.0
    %8177 = vmatprep.subr.mxu0 0.0
    %8178 = vmatpush1.xpose.msra.mxu0 0.0
    %8179 = vmatprep.subr.mxu0 0.0
    %8180 = vmatpush1.xpose.msra.mxu0 0.0
    %8181 = vmatprep.subr.mxu0 0.0
    %8182 = vmatpush1.xpose.msra.mxu0 0.0
    %8183 = vmatprep.subr.mxu0 0.0
    %8184 = vmatpush1.xpose.msra.mxu0 0.0
    %8185 = vmatprep.subr.mxu0 0.0
    %8186 = vmatpush1.xpose.msra.mxu0 0.0
    %8187 = vmatprep.subr.mxu0 0.0
    %8188 = vmatpush1.xpose.msra.mxu0 0.0
    %8189 = vmatprep.subr.mxu0 0.0
    %8190 = vmatpush1.xpose.msra.mxu0 0.0
    %8191 = vmatprep.subr.mxu0 0.0
    %8192 = vmatpush1.xpose.msra.mxu0 0.0
    %8193 = vmatprep.mubr.f32.mxu0 0.0
    %8194 = vmatmul.mubr.f32.gmra.mrb[0].mxu0 %v8121
    %v8195 = vpop.f32.mrb[0].mxu0
    %v8196 = vadd.f32 0.0, %v8195
    %v8197 = vpop.f32.mrb[0].mxu0
    %8198 = vmatprep.mubr.f32.mxu0 0.0
    %8199 = vmatmul.mubr.f32.gmra.mrb[0].mxu0 %v8123
    %v8200 = vpop.f32.mrb[0].mxu0
    %v8201 = vadd.f32 0.0, %v8200
    %v8202 = vpop.f32.mrb[0].mxu0
    %8203 = vdwg.mxu0
    %v8204 = vmul.f32 %v8196, 0.35355338
    %v8205 = vmul.f32 %v8201, 0.35355338
    %v8206 = vadd.f32 %v8204, %v388
    %v8207 = vadd.f32 %v8205, %v389
    %v8208 = vsel %vm584, %v8206, -inf
    %8209 = vmax.xlane.f32.xlu0 %v8208
    %v8210 = vpop.xlane.xlu0 %8209
    %v8211 = vsel %vm584, %v8207, -inf
    %8212 = vmax.xlane.f32.xlu0 %v8211
    %v8213 = vpop.xlane.xlu0 %8212
    %v8214 = vsub.f32 %v8206, %v8210
    %v8215 = vsub.f32 %v8207, %v8213
    %v8216 = vmul.f32 %v8214, 1.442695
    %v8217 = vpow.pop %v8216
    %v8218 = vmul.f32 %v8215, 1.442695
    %v8219 = vpow.pop %v8218
    %v8220 = vsel %vm584, %v8217, 0.0
    %8221 = vadd.xlane.f32.xlu0 %v8220
    %v8222 = vpop.xlane.xlu0 %8221
    %v8223 = vsel %vm584, %v8219, 0.0
    %8224 = vadd.xlane.f32.xlu0 %v8223
    %v8225 = vpop.xlane.xlu0 %8224
    %v8226 = vrcp.pop %v8222
    %v8227 = vmul.f32 %v8217, %v8226
    %v8228 = vrcp.pop %v8225
    %v8229 = vmul.f32 %v8219, %v8228
    %8230 = vrot.lane.b32.xlu0 %v7905, 88
    %v8231 = vpop.permute.xlu0 %8230
    %8232 = vrot.lane.b32.xlu0 %v7910, 88
    %v8233 = vpop.permute.xlu0 %8232
    %v8237 = vsel %vm584, %v8227, 0
    %v8240 = vsel %vm584, %v8229, 0
    %8242 = vmatprep.subr.mxu0 0.0
    %8243 = vmatpush1.msra.mxu0 %v8231
    %8244 = vmatprep.subr.mxu0 0.0
    %8245 = vmatpush1.msra.mxu0 %v8233
    %8246 = vmatprep.subr.mxu0 0.0
    %8247 = vmatpush1.msra.mxu0 0.0
    %8248 = vmatprep.subr.mxu0 0.0
    %8249 = vmatpush1.msra.mxu0 0.0
    %8250 = vmatprep.subr.mxu0 0.0
    %8251 = vmatpush1.msra.mxu0 0.0
    %8252 = vmatprep.subr.mxu0 0.0
    %8253 = vmatpush1.msra.mxu0 0.0
    %8254 = vmatprep.subr.mxu0 0.0
    %8255 = vmatpush1.msra.mxu0 0.0
    %8256 = vmatprep.subr.mxu0 0.0
    %8257 = vmatpush1.msra.mxu0 0.0
    %8258 = vmatprep.subr.mxu0 0.0
    %8259 = vmatpush1.msra.mxu0 0.0
    %8260 = vmatprep.subr.mxu0 0.0
    %8261 = vmatpush1.msra.mxu0 0.0
    %8262 = vmatprep.subr.mxu0 0.0
    %8263 = vmatpush1.msra.mxu0 0.0
    %8264 = vmatprep.subr.mxu0 0.0
    %8265 = vmatpush1.msra.mxu0 0.0
    %8266 = vmatprep.subr.mxu0 0.0
    %8267 = vmatpush1.msra.mxu0 0.0
    %8268 = vmatprep.subr.mxu0 0.0
    %8269 = vmatpush1.msra.mxu0 0.0
    %8270 = vmatprep.subr.mxu0 0.0
    %8271 = vmatpush1.msra.mxu0 0.0
    %8272 = vmatprep.subr.mxu0 0.0
    %8273 = vmatpush1.msra.mxu0 0.0
    %8274 = vmatprep.subr.mxu0 0.0
    %8275 = vmatpush1.msra.mxu0 0.0
    %8276 = vmatprep.subr.mxu0 0.0
    %8277 = vmatpush1.msra.mxu0 0.0
    %8278 = vmatprep.subr.mxu0 0.0
    %8279 = vmatpush1.msra.mxu0 0.0
    %8280 = vmatprep.subr.mxu0 0.0
    %8281 = vmatpush1.msra.mxu0 0.0
    %8282 = vmatprep.subr.mxu0 0.0
    %8283 = vmatpush1.msra.mxu0 0.0
    %8284 = vmatprep.subr.mxu0 0.0
    %8285 = vmatpush1.msra.mxu0 0.0
    %8286 = vmatprep.subr.mxu0 0.0
    %8287 = vmatpush1.msra.mxu0 0.0
    %8288 = vmatprep.subr.mxu0 0.0
    %8289 = vmatpush1.msra.mxu0 0.0
    %8290 = vmatprep.subr.mxu0 0.0
    %8291 = vmatpush1.msra.mxu0 0.0
    %8292 = vmatprep.subr.mxu0 0.0
    %8293 = vmatpush1.msra.mxu0 0.0
    %8294 = vmatprep.subr.mxu0 0.0
    %8295 = vmatpush1.msra.mxu0 0.0
    %8296 = vmatprep.subr.mxu0 0.0
    %8297 = vmatpush1.msra.mxu0 0.0
    %8298 = vmatprep.subr.mxu0 0.0
    %8299 = vmatpush1.msra.mxu0 0.0
    %8300 = vmatprep.subr.mxu0 0.0
    %8301 = vmatpush1.msra.mxu0 0.0
    %8302 = vmatprep.subr.mxu0 0.0
    %8303 = vmatpush1.msra.mxu0 0.0
    %8304 = vmatprep.subr.mxu0 0.0
    %8305 = vmatpush1.msra.mxu0 0.0
    %8306 = vmatprep.mubr.f32.mxu0 0.0
    %8307 = vmatmul.mubr.f32.gmra.mrb[0].mxu0 %v8237
    %v8308 = vpop.f32.mrb[0].mxu0
    %v8309 = vadd.f32 0.0, %v8308
    %v8310 = vpop.f32.mrb[0].mxu0
    %8311 = vmatprep.mubr.f32.mxu0 0.0
    %8312 = vmatmul.mubr.f32.gmra.mrb[0].mxu0 %v8240
    %v8313 = vpop.f32.mrb[0].mxu0
    %v8314 = vadd.f32 0.0, %v8313
    %v8315 = vpop.f32.mrb[0].mxu0
    %8316 = vdwg.mxu0
    %v8318 = vsel %vm496, %v8309, 0
    %v8321 = vsel %vm496, %v8314, 0
    %8323 = vmatprep.subr.mxu0 0.0
    %8324 = vmatpush1.msra.mxu0 %v7740
    %8325 = vmatprep.subr.mxu0 0.0
    %8326 = vmatpush1.msra.mxu0 0.0
    %8327 = vmatprep.subr.mxu0 0.0
    %8328 = vmatpush1.msra.mxu0 0.0
    %8329 = vmatprep.subr.mxu0 0.0
    %8330 = vmatpush1.msra.mxu0 0.0
    %8331 = vmatprep.subr.mxu0 0.0
    %8332 = vmatpush1.msra.mxu0 0.0
    %8333 = vmatprep.subr.mxu0 0.0
    %8334 = vmatpush1.msra.mxu0 0.0
    %8335 = vmatprep.subr.mxu0 0.0
    %8336 = vmatpush1.msra.mxu0 0.0
    %8337 = vmatprep.subr.mxu0 0.0
    %8338 = vmatpush1.msra.mxu0 0.0
    %8339 = vmatprep.subr.mxu0 0.0
    %8340 = vmatpush1.msra.mxu0 0.0
    %8341 = vmatprep.subr.mxu0 0.0
    %8342 = vmatpush1.msra.mxu0 0.0
    %8343 = vmatprep.subr.mxu0 0.0
    %8344 = vmatpush1.msra.mxu0 0.0
    %8345 = vmatprep.subr.mxu0 0.0
    %8346 = vmatpush1.msra.mxu0 0.0
    %8347 = vmatprep.subr.mxu0 0.0
    %8348 = vmatpush1.msra.mxu0 0.0
    %8349 = vmatprep.subr.mxu0 0.0
    %8350 = vmatpush1.msra.mxu0 0.0
    %8351 = vmatprep.subr.mxu0 0.0
    %8352 = vmatpush1.msra.mxu0 0.0
    %8353 = vmatprep.subr.mxu0 0.0
    %8354 = vmatpush1.msra.mxu0 0.0
    %8355 = vmatprep.subr.mxu0 0.0
    %8356 = vmatpush1.msra.mxu0 0.0
    %8357 = vmatprep.subr.mxu0 0.0
    %8358 = vmatpush1.msra.mxu0 0.0
    %8359 = vmatprep.subr.mxu0 0.0
    %8360 = vmatpush1.msra.mxu0 0.0
    %8361 = vmatprep.subr.mxu0 0.0
    %8362 = vmatpush1.msra.mxu0 0.0
    %8363 = vmatprep.subr.mxu0 0.0
    %8364 = vmatpush1.msra.mxu0 0.0
    %8365 = vmatprep.subr.mxu0 0.0
    %8366 = vmatpush1.msra.mxu0 0.0
    %8367 = vmatprep.subr.mxu0 0.0
    %8368 = vmatpush1.msra.mxu0 0.0
    %8369 = vmatprep.subr.mxu0 0.0
    %8370 = vmatpush1.msra.mxu0 0.0
    %8371 = vmatprep.subr.mxu0 0.0
    %8372 = vmatpush1.msra.mxu0 0.0
    %8373 = vmatprep.subr.mxu0 0.0
    %8374 = vmatpush1.msra.mxu0 0.0
    %8375 = vmatprep.subr.mxu0 0.0
    %8376 = vmatpush1.msra.mxu0 0.0
    %8377 = vmatprep.subr.mxu0 0.0
    %8378 = vmatpush1.msra.mxu0 0.0
    %8379 = vmatprep.subr.mxu0 0.0
    %8380 = vmatpush1.msra.mxu0 0.0
    %8381 = vmatprep.subr.mxu0 0.0
    %8382 = vmatpush1.msra.mxu0 0.0
    %8383 = vmatprep.subr.mxu0 0.0
    %8384 = vmatpush1.msra.mxu0 0.0
    %8385 = vmatprep.subr.mxu0 0.0
    %8386 = vmatpush1.msra.mxu0 0.0
    %8387 = vmatprep.mubr.f32.mxu0 0.0
    %8388 = vmatmul.mubr.f32.gmra.mrb[0].mxu0 %v8318
    %v8389 = vpop.f32.mrb[0].mxu0
    %v8390 = vadd.f32 0.0, %v8389
    %v8391 = vpop.f32.mrb[0].mxu0
    %8392 = vmatprep.mubr.f32.mxu0 0.0
    %8393 = vmatmul.mubr.f32.gmra.mrb[0].mxu0 %v8321
    %v8394 = vpop.f32.mrb[0].mxu0
    %v8395 = vadd.f32 0.0, %v8394
    %v8396 = vpop.f32.mrb[0].mxu0
    %8397 = vdwg.mxu0
    %v8399 = vsel %vm496, %v8105, 0
    %v8402 = vsel %vm496, %v8110, 0
    %8404 = vmatprep.subr.mxu0 0.0
    %8405 = vmatpush1.msra.mxu0 %v7739
    %8406 = vmatprep.subr.mxu0 0.0
    %8407 = vmatpush1.msra.mxu0 0.0
    %8408 = vmatprep.subr.mxu0 0.0
    %8409 = vmatpush1.msra.mxu0 0.0
    %8410 = vmatprep.subr.mxu0 0.0
    %8411 = vmatpush1.msra.mxu0 0.0
    %8412 = vmatprep.subr.mxu0 0.0
    %8413 = vmatpush1.msra.mxu0 0.0
    %8414 = vmatprep.subr.mxu0 0.0
    %8415 = vmatpush1.msra.mxu0 0.0
    %8416 = vmatprep.subr.mxu0 0.0
    %8417 = vmatpush1.msra.mxu0 0.0
    %8418 = vmatprep.subr.mxu0 0.0
    %8419 = vmatpush1.msra.mxu0 0.0
    %8420 = vmatprep.subr.mxu0 0.0
    %8421 = vmatpush1.msra.mxu0 0.0
    %8422 = vmatprep.subr.mxu0 0.0
    %8423 = vmatpush1.msra.mxu0 0.0
    %8424 = vmatprep.subr.mxu0 0.0
    %8425 = vmatpush1.msra.mxu0 0.0
    %8426 = vmatprep.subr.mxu0 0.0
    %8427 = vmatpush1.msra.mxu0 0.0
    %8428 = vmatprep.subr.mxu0 0.0
    %8429 = vmatpush1.msra.mxu0 0.0
    %8430 = vmatprep.subr.mxu0 0.0
    %8431 = vmatpush1.msra.mxu0 0.0
    %8432 = vmatprep.subr.mxu0 0.0
    %8433 = vmatpush1.msra.mxu0 0.0
    %8434 = vmatprep.subr.mxu0 0.0
    %8435 = vmatpush1.msra.mxu0 0.0
    %8436 = vmatprep.subr.mxu0 0.0
    %8437 = vmatpush1.msra.mxu0 0.0
    %8438 = vmatprep.subr.mxu0 0.0
    %8439 = vmatpush1.msra.mxu0 0.0
    %8440 = vmatprep.subr.mxu0 0.0
    %8441 = vmatpush1.msra.mxu0 0.0
    %8442 = vmatprep.subr.mxu0 0.0
    %8443 = vmatpush1.msra.mxu0 0.0
    %8444 = vmatprep.subr.mxu0 0.0
    %8445 = vmatpush1.msra.mxu0 0.0
    %8446 = vmatprep.subr.mxu0 0.0
    %8447 = vmatpush1.msra.mxu0 0.0
    %8448 = vmatprep.subr.mxu0 0.0
    %8449 = vmatpush1.msra.mxu0 0.0
    %8450 = vmatprep.subr.mxu0 0.0
    %8451 = vmatpush1.msra.mxu0 0.0
    %8452 = vmatprep.subr.mxu0 0.0
    %8453 = vmatpush1.msra.mxu0 0.0
    %8454 = vmatprep.subr.mxu0 0.0
    %8455 = vmatpush1.msra.mxu0 0.0
    %8456 = vmatprep.subr.mxu0 0.0
    %8457 = vmatpush1.msra.mxu0 0.0
    %8458 = vmatprep.subr.mxu0 0.0
    %8459 = vmatpush1.msra.mxu0 0.0
    %8460 = vmatprep.subr.mxu0 0.0
    %8461 = vmatpush1.msra.mxu0 0.0
    %8462 = vmatprep.subr.mxu0 0.0
    %8463 = vmatpush1.msra.mxu0 0.0
    %8464 = vmatprep.subr.mxu0 0.0
    %8465 = vmatpush1.msra.mxu0 0.0
    %8466 = vmatprep.subr.mxu0 0.0
    %8467 = vmatpush1.msra.mxu0 0.0
    %8468 = vmatprep.mubr.f32.mxu0 0.0
    %8469 = vmatmul.mubr.f32.gmra.mrb[0].mxu0 %v8399
    %v8470 = vpop.f32.mrb[0].mxu0
    %v8471 = vadd.f32 %v8390, %v8470
    %v8472 = vpop.f32.mrb[0].mxu0
    %8473 = vmatprep.mubr.f32.mxu0 0.0
    %8474 = vmatmul.mubr.f32.gmra.mrb[0].mxu0 %v8402
    %v8475 = vpop.f32.mrb[0].mxu0
    %v8476 = vadd.f32 %v8395, %v8475
    %v8477 = vpop.f32.mrb[0].mxu0
    %8478 = vdwg.mxu0
    %8479 = vrot.lane.b32.xlu0 %v7824, 112
    %v8480 = vpop.permute.xlu0 %8479
    %8481 = vrot.lane.b32.xlu0 %v7829, 112
    %v8482 = vpop.permute.xlu0 %8481
    %8483 = vrot.lane.b32.xlu0 %v7905, 112
    %v8484 = vpop.permute.xlu0 %8483
    %8485 = vrot.lane.b32.xlu0 %v7910, 112
    %v8486 = vpop.permute.xlu0 %8485
    %v8487 = vsel %vm496, %v8480, 0
    %v8489 = vsel %vm496, %v8482, 0
    %v8491 = vsel %vm496, %v8484, 0
    %v8493 = vsel %vm496, %v8486, 0
    %8495 = vmatprep.subr.mxu0 0.0
    %8496 = vmatpush1.xpose.msra.mxu0 %v8491
    %8497 = vmatprep.subr.mxu0 0.0
    %8498 = vmatpush1.xpose.msra.mxu0 %v8493
    %8499 = vmatprep.subr.mxu0 0.0
    %8500 = vmatpush1.xpose.msra.mxu0 0.0
    %8501 = vmatprep.subr.mxu0 0.0
    %8502 = vmatpush1.xpose.msra.mxu0 0.0
    %8503 = vmatprep.subr.mxu0 0.0
    %8504 = vmatpush1.xpose.msra.mxu0 0.0
    %8505 = vmatprep.subr.mxu0 0.0
    %8506 = vmatpush1.xpose.msra.mxu0 0.0
    %8507 = vmatprep.subr.mxu0 0.0
    %8508 = vmatpush1.xpose.msra.mxu0 0.0
    %8509 = vmatprep.subr.mxu0 0.0
    %8510 = vmatpush1.xpose.msra.mxu0 0.0
    %8511 = vmatprep.subr.mxu0 0.0
    %8512 = vmatpush1.xpose.msra.mxu0 0.0
    %8513 = vmatprep.subr.mxu0 0.0
    %8514 = vmatpush1.xpose.msra.mxu0 0.0
    %8515 = vmatprep.subr.mxu0 0.0
    %8516 = vmatpush1.xpose.msra.mxu0 0.0
    %8517 = vmatprep.subr.mxu0 0.0
    %8518 = vmatpush1.xpose.msra.mxu0 0.0
    %8519 = vmatprep.subr.mxu0 0.0
    %8520 = vmatpush1.xpose.msra.mxu0 0.0
    %8521 = vmatprep.subr.mxu0 0.0
    %8522 = vmatpush1.xpose.msra.mxu0 0.0
    %8523 = vmatprep.subr.mxu0 0.0
    %8524 = vmatpush1.xpose.msra.mxu0 0.0
    %8525 = vmatprep.subr.mxu0 0.0
    %8526 = vmatpush1.xpose.msra.mxu0 0.0
    %8527 = vmatprep.subr.mxu0 0.0
    %8528 = vmatpush1.xpose.msra.mxu0 0.0
    %8529 = vmatprep.subr.mxu0 0.0
    %8530 = vmatpush1.xpose.msra.mxu0 0.0
    %8531 = vmatprep.subr.mxu0 0.0
    %8532 = vmatpush1.xpose.msra.mxu0 0.0
    %8533 = vmatprep.subr.mxu0 0.0
    %8534 = vmatpush1.xpose.msra.mxu0 0.0
    %8535 = vmatprep.subr.mxu0 0.0
    %8536 = vmatpush1.xpose.msra.mxu0 0.0
    %8537 = vmatprep.subr.mxu0 0.0
    %8538 = vmatpush1.xpose.msra.mxu0 0.0
    %8539 = vmatprep.subr.mxu0 0.0
    %8540 = vmatpush1.xpose.msra.mxu0 0.0
    %8541 = vmatprep.subr.mxu0 0.0
    %8542 = vmatpush1.xpose.msra.mxu0 0.0
    %8543 = vmatprep.subr.mxu0 0.0
    %8544 = vmatpush1.xpose.msra.mxu0 0.0
    %8545 = vmatprep.subr.mxu0 0.0
    %8546 = vmatpush1.xpose.msra.mxu0 0.0
    %8547 = vmatprep.subr.mxu0 0.0
    %8548 = vmatpush1.xpose.msra.mxu0 0.0
    %8549 = vmatprep.subr.mxu0 0.0
    %8550 = vmatpush1.xpose.msra.mxu0 0.0
    %8551 = vmatprep.subr.mxu0 0.0
    %8552 = vmatpush1.xpose.msra.mxu0 0.0
    %8553 = vmatprep.subr.mxu0 0.0
    %8554 = vmatpush1.xpose.msra.mxu0 0.0
    %8555 = vmatprep.subr.mxu0 0.0
    %8556 = vmatpush1.xpose.msra.mxu0 0.0
    %8557 = vmatprep.subr.mxu0 0.0
    %8558 = vmatpush1.xpose.msra.mxu0 0.0
    %8559 = vmatprep.mubr.f32.mxu0 0.0
    %8560 = vmatmul.mubr.f32.gmra.mrb[0].mxu0 %v8487
    %v8561 = vpop.f32.mrb[0].mxu0
    %v8562 = vadd.f32 0.0, %v8561
    %v8563 = vpop.f32.mrb[0].mxu0
    %8564 = vmatprep.mubr.f32.mxu0 0.0
    %8565 = vmatmul.mubr.f32.gmra.mrb[0].mxu0 %v8489
    %v8566 = vpop.f32.mrb[0].mxu0
    %v8567 = vadd.f32 0.0, %v8566
    %v8568 = vpop.f32.mrb[0].mxu0
    %8569 = vdwg.mxu0
    %v8570 = vmul.f32 %v8562, 0.35355338
    %v8571 = vmul.f32 %v8567, 0.35355338
    %v8572 = vadd.f32 %v8570, %v388
    %v8573 = vadd.f32 %v8571, %v389
    %v8574 = vsel %vm584, %v8572, -inf
    %8575 = vmax.xlane.f32.xlu0 %v8574
    %v8576 = vpop.xlane.xlu0 %8575
    %v8577 = vsel %vm584, %v8573, -inf
    %8578 = vmax.xlane.f32.xlu0 %v8577
    %v8579 = vpop.xlane.xlu0 %8578
    %v8580 = vsub.f32 %v8572, %v8576
    %v8581 = vsub.f32 %v8573, %v8579
    %v8582 = vmul.f32 %v8580, 1.442695
    %v8583 = vpow.pop %v8582
    %v8584 = vmul.f32 %v8581, 1.442695
    %v8585 = vpow.pop %v8584
    %v8586 = vsel %vm584, %v8583, 0.0
    %8587 = vadd.xlane.f32.xlu0 %v8586
    %v8588 = vpop.xlane.xlu0 %8587
    %v8589 = vsel %vm584, %v8585, 0.0
    %8590 = vadd.xlane.f32.xlu0 %v8589
    %v8591 = vpop.xlane.xlu0 %8590
    %v8592 = vrcp.pop %v8588
    %v8593 = vmul.f32 %v8583, %v8592
    %v8594 = vrcp.pop %v8591
    %v8595 = vmul.f32 %v8585, %v8594
    %8596 = vrot.lane.b32.xlu0 %v7905, 80
    %v8597 = vpop.permute.xlu0 %8596
    %8598 = vrot.lane.b32.xlu0 %v7910, 80
    %v8599 = vpop.permute.xlu0 %8598
    %v8603 = vsel %vm584, %v8593, 0
    %v8606 = vsel %vm584, %v8595, 0
    %8608 = vmatprep.subr.mxu0 0.0
    %8609 = vmatpush1.msra.mxu0 %v8597
    %8610 = vmatprep.subr.mxu0 0.0
    %8611 = vmatpush1.msra.mxu0 %v8599
    %8612 = vmatprep.subr.mxu0 0.0
    %8613 = vmatpush1.msra.mxu0 0.0
    %8614 = vmatprep.subr.mxu0 0.0
    %8615 = vmatpush1.msra.mxu0 0.0
    %8616 = vmatprep.subr.mxu0 0.0
    %8617 = vmatpush1.msra.mxu0 0.0
    %8618 = vmatprep.subr.mxu0 0.0
    %8619 = vmatpush1.msra.mxu0 0.0
    %8620 = vmatprep.subr.mxu0 0.0
    %8621 = vmatpush1.msra.mxu0 0.0
    %8622 = vmatprep.subr.mxu0 0.0
    %8623 = vmatpush1.msra.mxu0 0.0
    %8624 = vmatprep.subr.mxu0 0.0
    %8625 = vmatpush1.msra.mxu0 0.0
    %8626 = vmatprep.subr.mxu0 0.0
    %8627 = vmatpush1.msra.mxu0 0.0
    %8628 = vmatprep.subr.mxu0 0.0
    %8629 = vmatpush1.msra.mxu0 0.0
    %8630 = vmatprep.subr.mxu0 0.0
    %8631 = vmatpush1.msra.mxu0 0.0
    %8632 = vmatprep.subr.mxu0 0.0
    %8633 = vmatpush1.msra.mxu0 0.0
    %8634 = vmatprep.subr.mxu0 0.0
    %8635 = vmatpush1.msra.mxu0 0.0
    %8636 = vmatprep.subr.mxu0 0.0
    %8637 = vmatpush1.msra.mxu0 0.0
    %8638 = vmatprep.subr.mxu0 0.0
    %8639 = vmatpush1.msra.mxu0 0.0
    %8640 = vmatprep.subr.mxu0 0.0
    %8641 = vmatpush1.msra.mxu0 0.0
    %8642 = vmatprep.subr.mxu0 0.0
    %8643 = vmatpush1.msra.mxu0 0.0
    %8644 = vmatprep.subr.mxu0 0.0
    %8645 = vmatpush1.msra.mxu0 0.0
    %8646 = vmatprep.subr.mxu0 0.0
    %8647 = vmatpush1.msra.mxu0 0.0
    %8648 = vmatprep.subr.mxu0 0.0
    %8649 = vmatpush1.msra.mxu0 0.0
    %8650 = vmatprep.subr.mxu0 0.0
    %8651 = vmatpush1.msra.mxu0 0.0
    %8652 = vmatprep.subr.mxu0 0.0
    %8653 = vmatpush1.msra.mxu0 0.0
    %8654 = vmatprep.subr.mxu0 0.0
    %8655 = vmatpush1.msra.mxu0 0.0
    %8656 = vmatprep.subr.mxu0 0.0
    %8657 = vmatpush1.msra.mxu0 0.0
    %8658 = vmatprep.subr.mxu0 0.0
    %8659 = vmatpush1.msra.mxu0 0.0
    %8660 = vmatprep.subr.mxu0 0.0
    %8661 = vmatpush1.msra.mxu0 0.0
    %8662 = vmatprep.subr.mxu0 0.0
    %8663 = vmatpush1.msra.mxu0 0.0
    %8664 = vmatprep.subr.mxu0 0.0
    %8665 = vmatpush1.msra.mxu0 0.0
    %8666 = vmatprep.subr.mxu0 0.0
    %8667 = vmatpush1.msra.mxu0 0.0
    %8668 = vmatprep.subr.mxu0 0.0
    %8669 = vmatpush1.msra.mxu0 0.0
    %8670 = vmatprep.subr.mxu0 0.0
    %8671 = vmatpush1.msra.mxu0 0.0
    %8672 = vmatprep.mubr.f32.mxu0 0.0
    %8673 = vmatmul.mubr.f32.gmra.mrb[0].mxu0 %v8603
    %v8674 = vpop.f32.mrb[0].mxu0
    %v8675 = vadd.f32 0.0, %v8674
    %v8676 = vpop.f32.mrb[0].mxu0
    %8677 = vmatprep.mubr.f32.mxu0 0.0
    %8678 = vmatmul.mubr.f32.gmra.mrb[0].mxu0 %v8606
    %v8679 = vpop.f32.mrb[0].mxu0
    %v8680 = vadd.f32 0.0, %v8679
    %v8681 = vpop.f32.mrb[0].mxu0
    %8682 = vdwg.mxu0
    %v8684 = vsel %vm496, %v8675, 0
    %v8687 = vsel %vm496, %v8680, 0
    %8689 = vmatprep.subr.mxu0 0.0
    %8690 = vmatpush1.msra.mxu0 %v7741
    %8691 = vmatprep.subr.mxu0 0.0
    %8692 = vmatpush1.msra.mxu0 0.0
    %8693 = vmatprep.subr.mxu0 0.0
    %8694 = vmatpush1.msra.mxu0 0.0
    %8695 = vmatprep.subr.mxu0 0.0
    %8696 = vmatpush1.msra.mxu0 0.0
    %8697 = vmatprep.subr.mxu0 0.0
    %8698 = vmatpush1.msra.mxu0 0.0
    %8699 = vmatprep.subr.mxu0 0.0
    %8700 = vmatpush1.msra.mxu0 0.0
    %8701 = vmatprep.subr.mxu0 0.0
    %8702 = vmatpush1.msra.mxu0 0.0
    %8703 = vmatprep.subr.mxu0 0.0
    %8704 = vmatpush1.msra.mxu0 0.0
    %8705 = vmatprep.subr.mxu0 0.0
    %8706 = vmatpush1.msra.mxu0 0.0
    %8707 = vmatprep.subr.mxu0 0.0
    %8708 = vmatpush1.msra.mxu0 0.0
    %8709 = vmatprep.subr.mxu0 0.0
    %8710 = vmatpush1.msra.mxu0 0.0
    %8711 = vmatprep.subr.mxu0 0.0
    %8712 = vmatpush1.msra.mxu0 0.0
    %8713 = vmatprep.subr.mxu0 0.0
    %8714 = vmatpush1.msra.mxu0 0.0
    %8715 = vmatprep.subr.mxu0 0.0
    %8716 = vmatpush1.msra.mxu0 0.0
    %8717 = vmatprep.subr.mxu0 0.0
    %8718 = vmatpush1.msra.mxu0 0.0
    %8719 = vmatprep.subr.mxu0 0.0
    %8720 = vmatpush1.msra.mxu0 0.0
    %8721 = vmatprep.subr.mxu0 0.0
    %8722 = vmatpush1.msra.mxu0 0.0
    %8723 = vmatprep.subr.mxu0 0.0
    %8724 = vmatpush1.msra.mxu0 0.0
    %8725 = vmatprep.subr.mxu0 0.0
    %8726 = vmatpush1.msra.mxu0 0.0
    %8727 = vmatprep.subr.mxu0 0.0
    %8728 = vmatpush1.msra.mxu0 0.0
    %8729 = vmatprep.subr.mxu0 0.0
    %8730 = vmatpush1.msra.mxu0 0.0
    %8731 = vmatprep.subr.mxu0 0.0
    %8732 = vmatpush1.msra.mxu0 0.0
    %8733 = vmatprep.subr.mxu0 0.0
    %8734 = vmatpush1.msra.mxu0 0.0
    %8735 = vmatprep.subr.mxu0 0.0
    %8736 = vmatpush1.msra.mxu0 0.0
    %8737 = vmatprep.subr.mxu0 0.0
    %8738 = vmatpush1.msra.mxu0 0.0
    %8739 = vmatprep.subr.mxu0 0.0
    %8740 = vmatpush1.msra.mxu0 0.0
    %8741 = vmatprep.subr.mxu0 0.0
    %8742 = vmatpush1.msra.mxu0 0.0
    %8743 = vmatprep.subr.mxu0 0.0
    %8744 = vmatpush1.msra.mxu0 0.0
    %8745 = vmatprep.subr.mxu0 0.0
    %8746 = vmatpush1.msra.mxu0 0.0
    %8747 = vmatprep.subr.mxu0 0.0
    %8748 = vmatpush1.msra.mxu0 0.0
    %8749 = vmatprep.subr.mxu0 0.0
    %8750 = vmatpush1.msra.mxu0 0.0
    %8751 = vmatprep.subr.mxu0 0.0
    %8752 = vmatpush1.msra.mxu0 0.0
    %8753 = vmatprep.mubr.f32.mxu0 0.0
    %8754 = vmatmul.mubr.f32.gmra.mrb[0].mxu0 %v8684
    %v8755 = vpop.f32.mrb[0].mxu0
    %v8756 = vadd.f32 0.0, %v8755
    %v8757 = vpop.f32.mrb[0].mxu0
    %8758 = vmatprep.mubr.f32.mxu0 0.0
    %8759 = vmatmul.mubr.f32.gmra.mrb[0].mxu0 %v8687
    %v8760 = vpop.f32.mrb[0].mxu0
    %v8761 = vadd.f32 0.0, %v8760
    %v8762 = vpop.f32.mrb[0].mxu0
    %8763 = vdwg.mxu0
    %v8764 = vadd.f32 %v8471, %v8756
    %v8765 = vadd.f32 %v8476, %v8761
    %8766 = vrot.lane.b32.xlu0 %v7824, 104
    %v8767 = vpop.permute.xlu0 %8766
    %8768 = vrot.lane.b32.xlu0 %v7829, 104
    %v8769 = vpop.permute.xlu0 %8768
    %8770 = vrot.lane.b32.xlu0 %v7905, 104
    %v8771 = vpop.permute.xlu0 %8770
    %8772 = vrot.lane.b32.xlu0 %v7910, 104
    %v8773 = vpop.permute.xlu0 %8772
    %v8774 = vsel %vm496, %v8767, 0
    %v8776 = vsel %vm496, %v8769, 0
    %v8778 = vsel %vm496, %v8771, 0
    %v8780 = vsel %vm496, %v8773, 0
    %8782 = vmatprep.subr.mxu0 0.0
    %8783 = vmatpush1.xpose.msra.mxu0 %v8778
    %8784 = vmatprep.subr.mxu0 0.0
    %8785 = vmatpush1.xpose.msra.mxu0 %v8780
    %8786 = vmatprep.subr.mxu0 0.0
    %8787 = vmatpush1.xpose.msra.mxu0 0.0
    %8788 = vmatprep.subr.mxu0 0.0
    %8789 = vmatpush1.xpose.msra.mxu0 0.0
    %8790 = vmatprep.subr.mxu0 0.0
    %8791 = vmatpush1.xpose.msra.mxu0 0.0
    %8792 = vmatprep.subr.mxu0 0.0
    %8793 = vmatpush1.xpose.msra.mxu0 0.0
    %8794 = vmatprep.subr.mxu0 0.0
    %8795 = vmatpush1.xpose.msra.mxu0 0.0
    %8796 = vmatprep.subr.mxu0 0.0
    %8797 = vmatpush1.xpose.msra.mxu0 0.0
    %8798 = vmatprep.subr.mxu0 0.0
    %8799 = vmatpush1.xpose.msra.mxu0 0.0
    %8800 = vmatprep.subr.mxu0 0.0
    %8801 = vmatpush1.xpose.msra.mxu0 0.0
    %8802 = vmatprep.subr.mxu0 0.0
    %8803 = vmatpush1.xpose.msra.mxu0 0.0
    %8804 = vmatprep.subr.mxu0 0.0
    %8805 = vmatpush1.xpose.msra.mxu0 0.0
    %8806 = vmatprep.subr.mxu0 0.0
    %8807 = vmatpush1.xpose.msra.mxu0 0.0
    %8808 = vmatprep.subr.mxu0 0.0
    %8809 = vmatpush1.xpose.msra.mxu0 0.0
    %8810 = vmatprep.subr.mxu0 0.0
    %8811 = vmatpush1.xpose.msra.mxu0 0.0
    %8812 = vmatprep.subr.mxu0 0.0
    %8813 = vmatpush1.xpose.msra.mxu0 0.0
    %8814 = vmatprep.subr.mxu0 0.0
    %8815 = vmatpush1.xpose.msra.mxu0 0.0
    %8816 = vmatprep.subr.mxu0 0.0
    %8817 = vmatpush1.xpose.msra.mxu0 0.0
    %8818 = vmatprep.subr.mxu0 0.0
    %8819 = vmatpush1.xpose.msra.mxu0 0.0
    %8820 = vmatprep.subr.mxu0 0.0
    %8821 = vmatpush1.xpose.msra.mxu0 0.0
    %8822 = vmatprep.subr.mxu0 0.0
    %8823 = vmatpush1.xpose.msra.mxu0 0.0
    %8824 = vmatprep.subr.mxu0 0.0
    %8825 = vmatpush1.xpose.msra.mxu0 0.0
    %8826 = vmatprep.subr.mxu0 0.0
    %8827 = vmatpush1.xpose.msra.mxu0 0.0
    %8828 = vmatprep.subr.mxu0 0.0
    %8829 = vmatpush1.xpose.msra.mxu0 0.0
    %8830 = vmatprep.subr.mxu0 0.0
    %8831 = vmatpush1.xpose.msra.mxu0 0.0
    %8832 = vmatprep.subr.mxu0 0.0
    %8833 = vmatpush1.xpose.msra.mxu0 0.0
    %8834 = vmatprep.subr.mxu0 0.0
    %8835 = vmatpush1.xpose.msra.mxu0 0.0
    %8836 = vmatprep.subr.mxu0 0.0
    %8837 = vmatpush1.xpose.msra.mxu0 0.0
    %8838 = vmatprep.subr.mxu0 0.0
    %8839 = vmatpush1.xpose.msra.mxu0 0.0
    %8840 = vmatprep.subr.mxu0 0.0
    %8841 = vmatpush1.xpose.msra.mxu0 0.0
    %8842 = vmatprep.subr.mxu0 0.0
    %8843 = vmatpush1.xpose.msra.mxu0 0.0
    %8844 = vmatprep.subr.mxu0 0.0
    %8845 = vmatpush1.xpose.msra.mxu0 0.0
    %8846 = vmatprep.mubr.f32.mxu0 0.0
    %8847 = vmatmul.mubr.f32.gmra.mrb[0].mxu0 %v8774
    %v8848 = vpop.f32.mrb[0].mxu0
    %v8849 = vadd.f32 0.0, %v8848
    %v8850 = vpop.f32.mrb[0].mxu0
    %8851 = vmatprep.mubr.f32.mxu0 0.0
    %8852 = vmatmul.mubr.f32.gmra.mrb[0].mxu0 %v8776
    %v8853 = vpop.f32.mrb[0].mxu0
    %v8854 = vadd.f32 0.0, %v8853
    %v8855 = vpop.f32.mrb[0].mxu0
    %8856 = vdwg.mxu0
    %v8857 = vmul.f32 %v8849, 0.35355338
    %v8858 = vmul.f32 %v8854, 0.35355338
    %v8859 = vadd.f32 %v8857, %v388
    %v8860 = vadd.f32 %v8858, %v389
    %v8861 = vsel %vm584, %v8859, -inf
    %8862 = vmax.xlane.f32.xlu0 %v8861
    %v8863 = vpop.xlane.xlu0 %8862
    %v8864 = vsel %vm584, %v8860, -inf
    %8865 = vmax.xlane.f32.xlu0 %v8864
    %v8866 = vpop.xlane.xlu0 %8865
    %v8867 = vsub.f32 %v8859, %v8863
    %v8868 = vsub.f32 %v8860, %v8866
    %v8869 = vmul.f32 %v8867, 1.442695
    %v8870 = vpow.pop %v8869
    %v8871 = vmul.f32 %v8868, 1.442695
    %v8872 = vpow.pop %v8871
    %v8873 = vsel %vm584, %v8870, 0.0
    %8874 = vadd.xlane.f32.xlu0 %v8873
    %v8875 = vpop.xlane.xlu0 %8874
    %v8876 = vsel %vm584, %v8872, 0.0
    %8877 = vadd.xlane.f32.xlu0 %v8876
    %v8878 = vpop.xlane.xlu0 %8877
    %v8879 = vrcp.pop %v8875
    %v8880 = vmul.f32 %v8870, %v8879
    %v8881 = vrcp.pop %v8878
    %v8882 = vmul.f32 %v8872, %v8881
    %8883 = vrot.lane.b32.xlu0 %v7905, 72
    %v8884 = vpop.permute.xlu0 %8883
    %8885 = vrot.lane.b32.xlu0 %v7910, 72
    %v8886 = vpop.permute.xlu0 %8885
    %v8890 = vsel %vm584, %v8880, 0
    %v8893 = vsel %vm584, %v8882, 0
    %8895 = vmatprep.subr.mxu0 0.0
    %8896 = vmatpush1.msra.mxu0 %v8884
    %8897 = vmatprep.subr.mxu0 0.0
    %8898 = vmatpush1.msra.mxu0 %v8886
    %8899 = vmatprep.subr.mxu0 0.0
    %8900 = vmatpush1.msra.mxu0 0.0
    %8901 = vmatprep.subr.mxu0 0.0
    %8902 = vmatpush1.msra.mxu0 0.0
    %8903 = vmatprep.subr.mxu0 0.0
    %8904 = vmatpush1.msra.mxu0 0.0
    %8905 = vmatprep.subr.mxu0 0.0
    %8906 = vmatpush1.msra.mxu0 0.0
    %8907 = vmatprep.subr.mxu0 0.0
    %8908 = vmatpush1.msra.mxu0 0.0
    %8909 = vmatprep.subr.mxu0 0.0
    %8910 = vmatpush1.msra.mxu0 0.0
    %8911 = vmatprep.subr.mxu0 0.0
    %8912 = vmatpush1.msra.mxu0 0.0
    %8913 = vmatprep.subr.mxu0 0.0
    %8914 = vmatpush1.msra.mxu0 0.0
    %8915 = vmatprep.subr.mxu0 0.0
    %8916 = vmatpush1.msra.mxu0 0.0
    %8917 = vmatprep.subr.mxu0 0.0
    %8918 = vmatpush1.msra.mxu0 0.0
    %8919 = vmatprep.subr.mxu0 0.0
    %8920 = vmatpush1.msra.mxu0 0.0
    %8921 = vmatprep.subr.mxu0 0.0
    %8922 = vmatpush1.msra.mxu0 0.0
    %8923 = vmatprep.subr.mxu0 0.0
    %8924 = vmatpush1.msra.mxu0 0.0
    %8925 = vmatprep.subr.mxu0 0.0
    %8926 = vmatpush1.msra.mxu0 0.0
    %8927 = vmatprep.subr.mxu0 0.0
    %8928 = vmatpush1.msra.mxu0 0.0
    %8929 = vmatprep.subr.mxu0 0.0
    %8930 = vmatpush1.msra.mxu0 0.0
    %8931 = vmatprep.subr.mxu0 0.0
    %8932 = vmatpush1.msra.mxu0 0.0
    %8933 = vmatprep.subr.mxu0 0.0
    %8934 = vmatpush1.msra.mxu0 0.0
    %8935 = vmatprep.subr.mxu0 0.0
    %8936 = vmatpush1.msra.mxu0 0.0
    %8937 = vmatprep.subr.mxu0 0.0
    %8938 = vmatpush1.msra.mxu0 0.0
    %8939 = vmatprep.subr.mxu0 0.0
    %8940 = vmatpush1.msra.mxu0 0.0
    %8941 = vmatprep.subr.mxu0 0.0
    %8942 = vmatpush1.msra.mxu0 0.0
    %8943 = vmatprep.subr.mxu0 0.0
    %8944 = vmatpush1.msra.mxu0 0.0
    %8945 = vmatprep.subr.mxu0 0.0
    %8946 = vmatpush1.msra.mxu0 0.0
    %8947 = vmatprep.subr.mxu0 0.0
    %8948 = vmatpush1.msra.mxu0 0.0
    %8949 = vmatprep.subr.mxu0 0.0
    %8950 = vmatpush1.msra.mxu0 0.0
    %8951 = vmatprep.subr.mxu0 0.0
    %8952 = vmatpush1.msra.mxu0 0.0
    %8953 = vmatprep.subr.mxu0 0.0
    %8954 = vmatpush1.msra.mxu0 0.0
    %8955 = vmatprep.subr.mxu0 0.0
    %8956 = vmatpush1.msra.mxu0 0.0
    %8957 = vmatprep.subr.mxu0 0.0
    %8958 = vmatpush1.msra.mxu0 0.0
    %8959 = vmatprep.mubr.f32.mxu0 0.0
    %8960 = vmatmul.mubr.f32.gmra.mrb[0].mxu0 %v8890
    %v8961 = vpop.f32.mrb[0].mxu0
    %v8962 = vadd.f32 0.0, %v8961
    %v8963 = vpop.f32.mrb[0].mxu0
    %8964 = vmatprep.mubr.f32.mxu0 0.0
    %8965 = vmatmul.mubr.f32.gmra.mrb[0].mxu0 %v8893
    %v8966 = vpop.f32.mrb[0].mxu0
    %v8967 = vadd.f32 0.0, %v8966
    %v8968 = vpop.f32.mrb[0].mxu0
    %8969 = vdwg.mxu0
    %v8971 = vsel %vm496, %v8962, 0
    %v8974 = vsel %vm496, %v8967, 0
    %8976 = vmatprep.subr.mxu0 0.0
    %8977 = vmatpush1.msra.mxu0 %v7742
    %8978 = vmatprep.subr.mxu0 0.0
    %8979 = vmatpush1.msra.mxu0 0.0
    %8980 = vmatprep.subr.mxu0 0.0
    %8981 = vmatpush1.msra.mxu0 0.0
    %8982 = vmatprep.subr.mxu0 0.0
    %8983 = vmatpush1.msra.mxu0 0.0
    %8984 = vmatprep.subr.mxu0 0.0
    %8985 = vmatpush1.msra.mxu0 0.0
    %8986 = vmatprep.subr.mxu0 0.0
    %8987 = vmatpush1.msra.mxu0 0.0
    %8988 = vmatprep.subr.mxu0 0.0
    %8989 = vmatpush1.msra.mxu0 0.0
    %8990 = vmatprep.subr.mxu0 0.0
    %8991 = vmatpush1.msra.mxu0 0.0
    %8992 = vmatprep.subr.mxu0 0.0
    %8993 = vmatpush1.msra.mxu0 0.0
    %8994 = vmatprep.subr.mxu0 0.0
    %8995 = vmatpush1.msra.mxu0 0.0
    %8996 = vmatprep.subr.mxu0 0.0
    %8997 = vmatpush1.msra.mxu0 0.0
    %8998 = vmatprep.subr.mxu0 0.0
    %8999 = vmatpush1.msra.mxu0 0.0
    %9000 = vmatprep.subr.mxu0 0.0
    %9001 = vmatpush1.msra.mxu0 0.0
    %9002 = vmatprep.subr.mxu0 0.0
    %9003 = vmatpush1.msra.mxu0 0.0
    %9004 = vmatprep.subr.mxu0 0.0
    %9005 = vmatpush1.msra.mxu0 0.0
    %9006 = vmatprep.subr.mxu0 0.0
    %9007 = vmatpush1.msra.mxu0 0.0
    %9008 = vmatprep.subr.mxu0 0.0
    %9009 = vmatpush1.msra.mxu0 0.0
    %9010 = vmatprep.subr.mxu0 0.0
    %9011 = vmatpush1.msra.mxu0 0.0
    %9012 = vmatprep.subr.mxu0 0.0
    %9013 = vmatpush1.msra.mxu0 0.0
    %9014 = vmatprep.subr.mxu0 0.0
    %9015 = vmatpush1.msra.mxu0 0.0
    %9016 = vmatprep.subr.mxu0 0.0
    %9017 = vmatpush1.msra.mxu0 0.0
    %9018 = vmatprep.subr.mxu0 0.0
    %9019 = vmatpush1.msra.mxu0 0.0
    %9020 = vmatprep.subr.mxu0 0.0
    %9021 = vmatpush1.msra.mxu0 0.0
    %9022 = vmatprep.subr.mxu0 0.0
    %9023 = vmatpush1.msra.mxu0 0.0
    %9024 = vmatprep.subr.mxu0 0.0
    %9025 = vmatpush1.msra.mxu0 0.0
    %9026 = vmatprep.subr.mxu0 0.0
    %9027 = vmatpush1.msra.mxu0 0.0
    %9028 = vmatprep.subr.mxu0 0.0
    %9029 = vmatpush1.msra.mxu0 0.0
    %9030 = vmatprep.subr.mxu0 0.0
    %9031 = vmatpush1.msra.mxu0 0.0
    %9032 = vmatprep.subr.mxu0 0.0
    %9033 = vmatpush1.msra.mxu0 0.0
    %9034 = vmatprep.subr.mxu0 0.0
    %9035 = vmatpush1.msra.mxu0 0.0
    %9036 = vmatprep.subr.mxu0 0.0
    %9037 = vmatpush1.msra.mxu0 0.0
    %9038 = vmatprep.subr.mxu0 0.0
    %9039 = vmatpush1.msra.mxu0 0.0
    %9040 = vmatprep.mubr.f32.mxu0 0.0
    %9041 = vmatmul.mubr.f32.gmra.mrb[0].mxu0 %v8971
    %v9042 = vpop.f32.mrb[0].mxu0
    %v9043 = vadd.f32 0.0, %v9042
    %v9044 = vpop.f32.mrb[0].mxu0
    %9045 = vmatprep.mubr.f32.mxu0 0.0
    %9046 = vmatmul.mubr.f32.gmra.mrb[0].mxu0 %v8974
    %v9047 = vpop.f32.mrb[0].mxu0
    %v9048 = vadd.f32 0.0, %v9047
    %v9049 = vpop.f32.mrb[0].mxu0
    %9050 = vdwg.mxu0
    %v9051 = vadd.f32 %v8764, %v9043
    %v9052 = vadd.f32 %v8765, %v9048
    %v9054 = vlaneseq
    %v9055 = vshrl.u32 %v9054, 7
    %v9056 = vsub.s32 0, %v9055
    %v9057 = vrot.slane %v7744, %v9056
    %v9059 = vadd.f32 %v9051, %v9057
    %v9060 = vadd.f32 %v9052, %v9057
    %v9061 = vadd.f32 %v7722, %v9059
    %v9062 = vadd.f32 %v7723, %v9060
    %s9063 = scalar_lea.vmem %s71, 1
    %v9064 = vld [vmem:[%s9063] sm:$0x1]
    %s9065 = scalar_lea.vmem %s73, 1
    %v9066 = vld [vmem:[%s9065] sm:$0x1]
    %v9067 = vsel %vm408, %v9061, 0.0
    %9068 = vadd.xlane.f32.xlu0 %v9067
    %v9069 = vpop.xlane.xlu0 %9068
    %v9070 = vsel %vm408, %v9062, 0.0
    %9071 = vadd.xlane.f32.xlu0 %v9070
    %v9072 = vpop.xlane.xlu0 %9071
    %v9073 = vmul.f32 %v9069, %v1652
    %v9074 = vmul.f32 %v9072, %v1652
    %v9075 = vsub.f32 %v9061, %v9073
    %v9076 = vsub.f32 %v9062, %v9074
    %v9077 = vmul.f32 %v9075, %v9075
    %v9078 = vmul.f32 %v9076, %v9076
    %v9079 = vsel %vm408, %v9077, 0.0
    %9080 = vadd.xlane.f32.xlu0 %v9079
    %v9081 = vpop.xlane.xlu0 %9080
    %v9082 = vsel %vm408, %v9078, 0.0
    %9083 = vadd.xlane.f32.xlu0 %v9082
    %v9084 = vpop.xlane.xlu0 %9083
    %v9085 = vmul.f32 %v9081, %v1652
    %v9086 = vmul.f32 %v9084, %v1652
    %v9087 = vadd.f32 %v9085, 1e-05
    %v9088 = vadd.f32 %v9086, 1e-05
    %v9089 = vrsqrt.pop %v9087
    %v9090 = vrsqrt.pop %v9088
    %v9091 = vmul.f32 %v9075, %v9089
    %v9092 = vmul.f32 %v9076, %v9090
    %v9094 = vlaneseq
    %v9095 = vshrl.u32 %v9094, 7
    %v9096 = vsub.s32 0, %v9095
    %v9097 = vrot.slane %v9064, %v9096
    %v9099 = vmul.f32 %v9091, %v9097
    %v9100 = vmul.f32 %v9092, %v9097
    %v9102 = vlaneseq
    %v9103 = vshrl.u32 %v9102, 7
    %v9104 = vsub.s32 0, %v9103
    %v9105 = vrot.slane %v9066, %v9104
    %v9107 = vadd.f32 %v9099, %v9105
    %v9108 = vadd.f32 %v9100, %v9105
    %s9109 = scalar_lea.vmem [#allocation26], 32
    %v9110 = vld [vmem:[%s9109] sm:$0xff]
    %v9111 = vld [vmem:[%s9109 + $0x8] sm:$0xff]
    %v9112 = vld [vmem:[%s9109 + $0x10] sm:$0xff]
    %v9113 = vld [vmem:[%s9109 + $0x18] sm:$0xff]
    %s9114 = scalar_lea.vmem %s61, 1
    %v9115 = vld [vmem:[%s9114] sm:$0x1]
    %s9116 = scalar_lea.vmem %s63, 64
    %v9117 = vld [vmem:[%s9116] sm:$0xff]
    %v9118 = vld [vmem:[%s9116 + $0x8] sm:$0xff]
    %v9119 = vld [vmem:[%s9116 + $0x10] sm:$0xff]
    %v9120 = vld [vmem:[%s9116 + $0x18] sm:$0xff]
    %v9121 = vld [vmem:[%s9116 + $0x20] sm:$0xff]
    %v9122 = vld [vmem:[%s9116 + $0x28] sm:$0xff]
    %v9123 = vld [vmem:[%s9116 + $0x30] sm:$0xff]
    %v9124 = vld [vmem:[%s9116 + $0x38] sm:$0xff]
    %s9125 = scalar_lea.vmem %s65, 1
    %v9126 = vld [vmem:[%s9125] sm:$0x1]
    %v9128 = vlaneseq
    %v9129 = vshrl.u32 %v9128, 7
    %v9130 = vsub.s32 0, %v9129
    %v9131 = vrot.slane %v9115, %v9130
    %v9134 = vsel %vm408, %v9107, 0
    %v9137 = vsel %vm408, %v9108, 0
    %9139 = vmatprep.subr.mxu0 0.0
    %9140 = vmatpush1.msra.mxu0 %v9110
    %9141 = vmatprep.subr.mxu0 0.0
    %9142 = vmatpush1.msra.mxu0 %v9111
    %9143 = vmatprep.subr.mxu0 0.0
    %9144 = vmatpush1.msra.mxu0 %v9112
    %9145 = vmatprep.subr.mxu0 0.0
    %9146 = vmatpush1.msra.mxu0 %v9113
    %9147 = vmatprep.subr.mxu0 0.0
    %9148 = vmatpush1.msra.mxu0 0.0
    %9149 = vmatprep.subr.mxu0 0.0
    %9150 = vmatpush1.msra.mxu0 0.0
    %9151 = vmatprep.subr.mxu0 0.0
    %9152 = vmatpush1.msra.mxu0 0.0
    %9153 = vmatprep.subr.mxu0 0.0
    %9154 = vmatpush1.msra.mxu0 0.0
    %9155 = vmatprep.subr.mxu0 0.0
    %9156 = vmatpush1.msra.mxu0 0.0
    %9157 = vmatprep.subr.mxu0 0.0
    %9158 = vmatpush1.msra.mxu0 0.0
    %9159 = vmatprep.subr.mxu0 0.0
    %9160 = vmatpush1.msra.mxu0 0.0
    %9161 = vmatprep.subr.mxu0 0.0
    %9162 = vmatpush1.msra.mxu0 0.0
    %9163 = vmatprep.subr.mxu0 0.0
    %9164 = vmatpush1.msra.mxu0 0.0
    %9165 = vmatprep.subr.mxu0 0.0
    %9166 = vmatpush1.msra.mxu0 0.0
    %9167 = vmatprep.subr.mxu0 0.0
    %9168 = vmatpush1.msra.mxu0 0.0
    %9169 = vmatprep.subr.mxu0 0.0
    %9170 = vmatpush1.msra.mxu0 0.0
    %9171 = vmatprep.subr.mxu0 0.0
    %9172 = vmatpush1.msra.mxu0 0.0
    %9173 = vmatprep.subr.mxu0 0.0
    %9174 = vmatpush1.msra.mxu0 0.0
    %9175 = vmatprep.subr.mxu0 0.0
    %9176 = vmatpush1.msra.mxu0 0.0
    %9177 = vmatprep.subr.mxu0 0.0
    %9178 = vmatpush1.msra.mxu0 0.0
    %9179 = vmatprep.subr.mxu0 0.0
    %9180 = vmatpush1.msra.mxu0 0.0
    %9181 = vmatprep.subr.mxu0 0.0
    %9182 = vmatpush1.msra.mxu0 0.0
    %9183 = vmatprep.subr.mxu0 0.0
    %9184 = vmatpush1.msra.mxu0 0.0
    %9185 = vmatprep.subr.mxu0 0.0
    %9186 = vmatpush1.msra.mxu0 0.0
    %9187 = vmatprep.subr.mxu0 0.0
    %9188 = vmatpush1.msra.mxu0 0.0
    %9189 = vmatprep.subr.mxu0 0.0
    %9190 = vmatpush1.msra.mxu0 0.0
    %9191 = vmatprep.subr.mxu0 0.0
    %9192 = vmatpush1.msra.mxu0 0.0
    %9193 = vmatprep.subr.mxu0 0.0
    %9194 = vmatpush1.msra.mxu0 0.0
    %9195 = vmatprep.subr.mxu0 0.0
    %9196 = vmatpush1.msra.mxu0 0.0
    %9197 = vmatprep.subr.mxu0 0.0
    %9198 = vmatpush1.msra.mxu0 0.0
    %9199 = vmatprep.subr.mxu0 0.0
    %9200 = vmatpush1.msra.mxu0 0.0
    %9201 = vmatprep.subr.mxu0 0.0
    %9202 = vmatpush1.msra.mxu0 0.0
    %9203 = vmatprep.mubr.f32.mxu0 0.0
    %9204 = vmatmul.mubr.f32.gmra.mrb[0].mxu0 %v9134
    %v9205 = vpop.f32.mrb[0].mxu0
    %v9206 = vadd.f32 %v9131, %v9205
    %v9207 = vpop.f32.mrb[0].mxu0
    %9208 = vmatprep.mubr.f32.mxu0 0.0
    %9209 = vmatmul.mubr.f32.gmra.mrb[0].mxu0 %v9137
    %v9210 = vpop.f32.mrb[0].mxu0
    %v9211 = vadd.f32 %v9131, %v9210
    %v9212 = vpop.f32.mrb[0].mxu0
    %9213 = vdwg.mxu0
    %v9214 = vmax.f32 %v9206, 0.0
    %v9215 = vmax.f32 %v9211, 0.0
    %v9217 = vlaneseq
    %v9218 = vshrl.u32 %v9217, 7
    %v9219 = vsub.s32 0, %v9218
    %v9220 = vrot.slane %v9126, %v9219
    %v9223 = vsel %vm1798, %v9214, 0
    %v9226 = vsel %vm1798, %v9215, 0
    %9228 = vmatprep.subr.mxu0 0.0
    %9229 = vmatpush1.msra.mxu0 %v9117
    %9230 = vmatprep.subr.mxu0 0.0
    %9231 = vmatpush1.msra.mxu0 %v9118
    %9232 = vmatprep.subr.mxu0 0.0
    %9233 = vmatpush1.msra.mxu0 %v9119
    %9234 = vmatprep.subr.mxu0 0.0
    %9235 = vmatpush1.msra.mxu0 %v9120
    %9236 = vmatprep.subr.mxu0 0.0
    %9237 = vmatpush1.msra.mxu0 %v9121
    %9238 = vmatprep.subr.mxu0 0.0
    %9239 = vmatpush1.msra.mxu0 %v9122
    %9240 = vmatprep.subr.mxu0 0.0
    %9241 = vmatpush1.msra.mxu0 %v9123
    %9242 = vmatprep.subr.mxu0 0.0
    %9243 = vmatpush1.msra.mxu0 %v9124
    %9244 = vmatprep.subr.mxu0 0.0
    %9245 = vmatpush1.msra.mxu0 0.0
    %9246 = vmatprep.subr.mxu0 0.0
    %9247 = vmatpush1.msra.mxu0 0.0
    %9248 = vmatprep.subr.mxu0 0.0
    %9249 = vmatpush1.msra.mxu0 0.0
    %9250 = vmatprep.subr.mxu0 0.0
    %9251 = vmatpush1.msra.mxu0 0.0
    %9252 = vmatprep.subr.mxu0 0.0
    %9253 = vmatpush1.msra.mxu0 0.0
    %9254 = vmatprep.subr.mxu0 0.0
    %9255 = vmatpush1.msra.mxu0 0.0
    %9256 = vmatprep.subr.mxu0 0.0
    %9257 = vmatpush1.msra.mxu0 0.0
    %9258 = vmatprep.subr.mxu0 0.0
    %9259 = vmatpush1.msra.mxu0 0.0
    %9260 = vmatprep.subr.mxu0 0.0
    %9261 = vmatpush1.msra.mxu0 0.0
    %9262 = vmatprep.subr.mxu0 0.0
    %9263 = vmatpush1.msra.mxu0 0.0
    %9264 = vmatprep.subr.mxu0 0.0
    %9265 = vmatpush1.msra.mxu0 0.0
    %9266 = vmatprep.subr.mxu0 0.0
    %9267 = vmatpush1.msra.mxu0 0.0
    %9268 = vmatprep.subr.mxu0 0.0
    %9269 = vmatpush1.msra.mxu0 0.0
    %9270 = vmatprep.subr.mxu0 0.0
    %9271 = vmatpush1.msra.mxu0 0.0
    %9272 = vmatprep.subr.mxu0 0.0
    %9273 = vmatpush1.msra.mxu0 0.0
    %9274 = vmatprep.subr.mxu0 0.0
    %9275 = vmatpush1.msra.mxu0 0.0
    %9276 = vmatprep.subr.mxu0 0.0
    %9277 = vmatpush1.msra.mxu0 0.0
    %9278 = vmatprep.subr.mxu0 0.0
    %9279 = vmatpush1.msra.mxu0 0.0
    %9280 = vmatprep.subr.mxu0 0.0
    %9281 = vmatpush1.msra.mxu0 0.0
    %9282 = vmatprep.subr.mxu0 0.0
    %9283 = vmatpush1.msra.mxu0 0.0
    %9284 = vmatprep.subr.mxu0 0.0
    %9285 = vmatpush1.msra.mxu0 0.0
    %9286 = vmatprep.subr.mxu0 0.0
    %9287 = vmatpush1.msra.mxu0 0.0
    %9288 = vmatprep.subr.mxu0 0.0
    %9289 = vmatpush1.msra.mxu0 0.0
    %9290 = vmatprep.subr.mxu0 0.0
    %9291 = vmatpush1.msra.mxu0 0.0
    %9292 = vmatprep.mubr.f32.mxu0 0.0
    %9293 = vmatmul.mubr.f32.gmra.mrb[0].mxu0 %v9223
    %v9294 = vpop.f32.mrb[0].mxu0
    %v9295 = vadd.f32 %v9220, %v9294
    %v9296 = vpop.f32.mrb[0].mxu0
    %9297 = vmatprep.mubr.f32.mxu0 0.0
    %9298 = vmatmul.mubr.f32.gmra.mrb[0].mxu0 %v9226
    %v9299 = vpop.f32.mrb[0].mxu0
    %v9300 = vadd.f32 %v9220, %v9299
    %v9301 = vpop.f32.mrb[0].mxu0
    %9302 = vdwg.mxu0
    %v9303 = vadd.f32 %v9107, %v9295
    %v9304 = vadd.f32 %v9108, %v9300
    %s9305 = scalar_lea.vmem %s75, 1
    %v9306 = vld [vmem:[%s9305] sm:$0x1]
    %s9307 = scalar_lea.vmem %s77, 1
    %v9308 = vld [vmem:[%s9307] sm:$0x1]
    %v9309 = vsel %vm408, %v9303, 0.0
    %9310 = vadd.xlane.f32.xlu0 %v9309
    %v9311 = vpop.xlane.xlu0 %9310
    %v9312 = vsel %vm408, %v9304, 0.0
    %9313 = vadd.xlane.f32.xlu0 %v9312
    %v9314 = vpop.xlane.xlu0 %9313
    %v9315 = vmul.f32 %v9311, %v1652
    %v9316 = vmul.f32 %v9314, %v1652
    %v9317 = vsub.f32 %v9303, %v9315
    %v9318 = vsub.f32 %v9304, %v9316
    %v9319 = vmul.f32 %v9317, %v9317
    %v9320 = vmul.f32 %v9318, %v9318
    %v9321 = vsel %vm408, %v9319, 0.0
    %9322 = vadd.xlane.f32.xlu0 %v9321
    %v9323 = vpop.xlane.xlu0 %9322
    %v9324 = vsel %vm408, %v9320, 0.0
    %9325 = vadd.xlane.f32.xlu0 %v9324
    %v9326 = vpop.xlane.xlu0 %9325
    %v9327 = vmul.f32 %v9323, %v1652
    %v9328 = vmul.f32 %v9326, %v1652
    %v9329 = vadd.f32 %v9327, 1e-05
    %v9330 = vadd.f32 %v9328, 1e-05
    %v9331 = vrsqrt.pop %v9329
    %v9332 = vrsqrt.pop %v9330
    %v9333 = vmul.f32 %v9317, %v9331
    %v9334 = vmul.f32 %v9318, %v9332
    %v9336 = vlaneseq
    %v9337 = vshrl.u32 %v9336, 7
    %v9338 = vsub.s32 0, %v9337
    %v9339 = vrot.slane %v9306, %v9338
    %v9341 = vmul.f32 %v9333, %v9339
    %v9342 = vmul.f32 %v9334, %v9339
    %v9344 = vlaneseq
    %v9345 = vshrl.u32 %v9344, 7
    %v9346 = vsub.s32 0, %v9345
    %v9347 = vrot.slane %v9308, %v9346
    %v9349 = vadd.f32 %v9341, %v9347
    %v9350 = vadd.f32 %v9342, %v9347
    %v9351 = vld [vmem:[%s79] sm:$0x1]
    %v9352 = vld [vmem:[%s81] sm:$0x1]
    %v9353 = vsel %vm408, %v9349, 0.0
    %9354 = vadd.xlane.f32.xlu0 %v9353
    %v9355 = vpop.xlane.xlu0 %9354
    %v9356 = vsel %vm408, %v9350, 0.0
    %9357 = vadd.xlane.f32.xlu0 %v9356
    %v9358 = vpop.xlane.xlu0 %9357
    %v9359 = vmul.f32 %v9355, %v1652
    %v9360 = vmul.f32 %v9358, %v1652
    %v9361 = vsub.f32 %v9349, %v9359
    %v9362 = vsub.f32 %v9350, %v9360
    %v9363 = vmul.f32 %v9361, %v9361
    %v9364 = vmul.f32 %v9362, %v9362
    %v9365 = vsel %vm408, %v9363, 0.0
    %9366 = vadd.xlane.f32.xlu0 %v9365
    %v9367 = vpop.xlane.xlu0 %9366
    %v9368 = vsel %vm408, %v9364, 0.0
    %9369 = vadd.xlane.f32.xlu0 %v9368
    %v9370 = vpop.xlane.xlu0 %9369
    %v9371 = vmul.f32 %v9367, %v1652
    %v9372 = vmul.f32 %v9370, %v1652
    %v9373 = vadd.f32 %v9371, 1e-05
    %v9374 = vadd.f32 %v9372, 1e-05
    %v9375 = vrsqrt.pop %v9373
    %v9376 = vrsqrt.pop %v9374
    %v9377 = vmul.f32 %v9361, %v9375
    %v9378 = vmul.f32 %v9362, %v9376
    %v9380 = vlaneseq
    %v9381 = vshrl.u32 %v9380, 7
    %v9382 = vsub.s32 0, %v9381
    %v9383 = vrot.slane %v9351, %v9382
    %v9385 = vmul.f32 %v9377, %v9383
    %v9386 = vmul.f32 %v9378, %v9383
    %v9388 = vlaneseq
    %v9389 = vshrl.u32 %v9388, 7
    %v9390 = vsub.s32 0, %v9389
    %v9391 = vrot.slane %v9352, %v9390
    %v9393 = vadd.f32 %v9385, %v9391
    %v9394 = vadd.f32 %v9386, %v9391
    %9395 = vst.msk [vmem:[#allocation28] sm:$0xff] %vm408, %v9393
    %9396 = vst.msk [vmem:[#allocation28 + $0x8] sm:$0xff] %vm408, %v9394
    // Predicated region
    $region230: #{tpu_custom_call.1} parent=1 // pred_check
      _
    $region231: #{tpu_custom_call.1} parent=1 // pred_check_branch
      %9398 = sbr.rel (0) target = $region233
    $region232: #{tpu_custom_call.1} parent=1 // pred_region
      %s9400 = ssub.s32 256, 256
      %9401 = vsyncadd [#allocation4], %s9400
      %s9402 = sshll.u32 [#allocation28], 4
      %s9403 = int_to_ptr.vmem [resolvable:$true] %s9402
      %9408 = dma.vmem_to_hbm [thread:$0]  %s9403, 256, %s83, [#allocation4], 128, 128, 8
    $region233: #{tpu_custom_call.1} parent=1 // pred_fallthru
      _
    // Predicated region
    $region234: #{tpu_custom_call.1} parent=1 // pred_check
      _
    $region235: #{tpu_custom_call.1} parent=1 // pred_check_branch
      %9410 = sbr.rel (0) target = $region237
    $region236: #{tpu_custom_call.1} parent=1 // pred_region
      %9411 = dma.done [#allocation4], 256
    $region237: #{tpu_custom_call.1} parent=1 // pred_fallthru
      _
    %9412 = vsyncpa [#allocation3], 1
    %9413 = vsyncpa [#allocation6], 1
    %9414 = vsyncpa [#allocation9], 1
    %9415 = vsyncpa [#allocation12], 1
    %9416 = vsyncpa [#allocation15], 1
    %9417 = vsyncpa [#allocation18], 1
    %9418 = vsyncpa [#allocation21], 1
    %9419 = vsyncpa [#allocation24], 1
    %9420 = vsyncpa [#allocation27], 1
    %9421 = vsyncpa [#allocation4], 1

</llo_original>
